<compile_context>
chip_gen: v5e
topology: v5e:2x2
jax: 0.10.0
libtpu: 0.0.40
codegen_flags: <defaults>
</compile_context>

<pallas_src>
import math
import functools

import jax
import jax.numpy as jnp
from jax.experimental import pallas as pl
from jax.experimental.pallas import tpu as pltpu

_SQRT1_2 = 1.0 / math.sqrt(2.0)


def _vmem_limit_bytes():
    # v5e/v6e have 128 MiB VMEM, v7x 64 MiB per TensorCore.  Leave headroom
    # for double-buffering / compiler scratch.
    try:
        cap = pltpu.get_tpu_info().vmem_capacity_bytes
    except Exception:  # pragma: no cover - conservative fallback
        cap = 64 * 1024 * 1024
    return min(96 * 1024 * 1024, int(0.6 * cap))


_VMEM_LIMIT = _vmem_limit_bytes()


def _pick_tile(dim, target, base):
    """Largest divisor of `dim` that is <= target and a multiple of `base`
    (falls back to the full dim, which always satisfies the (8,128) rule)."""
    if dim <= target:
        return dim
    t = (target // base) * base
    while t >= base:
        if dim % t == 0:
            return t
        t -= base
    return dim


def _gelu(y):
    # exact gelu (erf form), matching torch.nn.functional.gelu default
    return 0.5 * y * (1.0 + jax.lax.erf(y * _SQRT1_2))


def _ln_math(x, g, b):
    mean = jnp.mean(x, axis=-1, keepdims=True)
    xc = x - mean
    var = jnp.mean(xc * xc, axis=-1, keepdims=True)
    inv = jax.lax.rsqrt(var + 1e-5)
    return (xc * inv) * g + b


# ----------------------------------------------------------------------------
# Tiled linear (bias + optional GELU fused)
# ----------------------------------------------------------------------------

def _linear_kernel(x_ref, w_ref, b_ref, o_ref, acc_ref, *, activation):
    @pl.when(pl.program_id(2) == 0)
    def _():
        acc_ref[...] = jnp.zeros_like(acc_ref)

    acc_ref[...] += jnp.dot(x_ref[...], w_ref[...],
                            preferred_element_type=jnp.float32)

    @pl.when(pl.program_id(2) == pl.num_programs(2) - 1)
    def _():
        y = acc_ref[...] + b_ref[...].astype(jnp.float32)
        if activation == "gelu":
            y = _gelu(y)
        o_ref[...] = y.astype(o_ref.dtype)


def pallas_linear(x, w, b, activation=None, out_dtype=jnp.bfloat16):
    """x: (M, K), w: (K, N), b: (N,) -> (M, N) out_dtype (bf16 MXU, f32 acc)."""
    M, K = x.shape
    N = w.shape[1]
    tm = _pick_tile(M, 256, 16)
    big = N >= 1024 and K >= 1024
    tn = _pick_tile(N, 1024 if big else 512, 128)
    tk = _pick_tile(K, 1024 if big else 512, 128)
    # v7x has 2 TensorCores sharded over 'parallel' grid axes: make sure the
    # parallel extent is >= 2 when M fits a single row tile (decode case).
    if M // tm == 1 and N // tn == 1 and N >= 256:
        tn = _pick_tile(N, max(128, N // 2), 128)
    grid = (M // tm, N // tn, K // tk)
    kernel = functools.partial(_linear_kernel, activation=activation)
    return pl.pallas_call(
        kernel,
        out_shape=jax.ShapeDtypeStruct((M, N), out_dtype),
        grid=grid,
        in_specs=[
            pl.BlockSpec((tm, tk), lambda i, j, k: (i, k)),
            pl.BlockSpec((tk, tn), lambda i, j, k: (k, j)),
            pl.BlockSpec((1, tn), lambda i, j, k: (0, j)),
        ],
        out_specs=pl.BlockSpec((tm, tn), lambda i, j, k: (i, j)),
        scratch_shapes=[pltpu.VMEM((tm, tn), jnp.float32)],
        compiler_params=pltpu.CompilerParams(
            dimension_semantics=("parallel", "parallel", "arbitrary"),
            vmem_limit_bytes=_VMEM_LIMIT),
    )(x.astype(jnp.bfloat16), w.astype(jnp.bfloat16),
      b.astype(jnp.float32).reshape(1, N))


# ----------------------------------------------------------------------------
# Fused FFN: fc1 + GELU + fc2 + residual + LayerNorm (F chunked in-kernel)
# ----------------------------------------------------------------------------

def _ffn_kernel(x_ref, w1_ref, b1_ref, w2_ref, b2_ref, res_ref, g_ref, bt_ref,
                o_ref, *, f_chunk):
    F = w1_ref.shape[1]
    D = o_ref.shape[1]
    tm = x_ref.shape[0]
    x = x_ref[...]
    acc = jnp.zeros((tm, D), jnp.float32)
    for lo in range(0, F, f_chunk):
        hi = lo + f_chunk
        h = jnp.dot(x, w1_ref[:, lo:hi], preferred_element_type=jnp.float32)
        h = _gelu(h + b1_ref[:, lo:hi].astype(jnp.float32))
        acc = acc + jnp.dot(h.astype(jnp.bfloat16), w2_ref[lo:hi, :],
                            preferred_element_type=jnp.float32)
    y = acc + b2_ref[...].astype(jnp.float32) + res_ref[...].astype(jnp.float32)
    o_ref[...] = _ln_math(y, g_ref[...], bt_ref[...]).astype(o_ref.dtype)


def pallas_ffn(x, w1, b1, w2, b2, residual, gamma, beta):
    """LayerNorm(residual + fc2(gelu(fc1(x)))) with post-LN fused in."""
    M, D = x.shape
    F = w1.shape[1]
    tm = _pick_tile(M, 256, 16)
    f_chunk = _pick_tile(F, 512, 128)
    # VMEM estimate: double-buffered bf16 weights + bf16 row tiles + f32
    # chunk intermediates.  Fall back to two K-streamed matmuls + add-LN when
    # the fused path would not fit the (generation-aware) VMEM budget.
    weight_bytes = 2 * 2 * (D * F + F * D + F + D)
    act_bytes = 2 * 2 * tm * (3 * D) + 4 * tm * (f_chunk + D)
    if weight_bytes + act_bytes > int(0.5 * _VMEM_LIMIT):
        h = pallas_linear(x, w1, b1, activation="gelu")
        y = pallas_linear(h, w2, b2)
        return pallas_layernorm(y, gamma, beta, residual=residual)
    grid = (M // tm,)
    kernel = functools.partial(_ffn_kernel, f_chunk=f_chunk)
    row_spec = pl.BlockSpec((tm, D), lambda i: (i, 0))
    vec_spec = pl.BlockSpec((1, D), lambda i: (0, 0))
    return pl.pallas_call(
        kernel,
        out_shape=jax.ShapeDtypeStruct((M, D), jnp.bfloat16),
        grid=grid,
        in_specs=[
            row_spec,
            pl.BlockSpec((D, F), lambda i: (0, 0)),
            pl.BlockSpec((1, F), lambda i: (0, 0)),
            pl.BlockSpec((F, D), lambda i: (0, 0)),
            vec_spec,
            row_spec,
            vec_spec,
            vec_spec,
        ],
        out_specs=row_spec,
        compiler_params=pltpu.CompilerParams(
            dimension_semantics=("parallel",),
            vmem_limit_bytes=_VMEM_LIMIT),
    )(x.astype(jnp.bfloat16), w1.astype(jnp.bfloat16),
      b1.astype(jnp.float32).reshape(1, F),
      w2.astype(jnp.bfloat16), b2.astype(jnp.float32).reshape(1, D),
      residual.astype(jnp.bfloat16),
      gamma.astype(jnp.float32).reshape(1, D),
      beta.astype(jnp.float32).reshape(1, D))


# ----------------------------------------------------------------------------
# LayerNorm (optionally fused with residual add), row-tiled
# (used for the embedding LN and the FFN fallback path)
# ----------------------------------------------------------------------------

def _ln_kernel(x_ref, g_ref, b_ref, o_ref):
    x = x_ref[...].astype(jnp.float32)
    o_ref[...] = _ln_math(x, g_ref[...], b_ref[...]).astype(o_ref.dtype)


def _add_ln_kernel(x_ref, r_ref, g_ref, b_ref, o_ref):
    x = x_ref[...].astype(jnp.float32) + r_ref[...].astype(jnp.float32)
    o_ref[...] = _ln_math(x, g_ref[...], b_ref[...]).astype(o_ref.dtype)


def pallas_layernorm(x, gamma, beta, residual=None):
    """LayerNorm(x [+ residual]) over the last dim (eps = 1e-5), bf16 out."""
    M, D = x.shape
    tm = _pick_tile(M, 512, 16)
    grid = (M // tm,)
    row_spec = pl.BlockSpec((tm, D), lambda i: (i, 0))
    vec_spec = pl.BlockSpec((1, D), lambda i: (0, 0))
    args = [x]
    in_specs = [row_spec]
    kernel = _ln_kernel
    if residual is not None:
        args.append(residual)
        in_specs.append(row_spec)
        kernel = _add_ln_kernel
    args += [gamma.astype(jnp.float32).reshape(1, D),
             beta.astype(jnp.float32).reshape(1, D)]
    in_specs += [vec_spec, vec_spec]
    return pl.pallas_call(
        kernel,
        out_shape=jax.ShapeDtypeStruct((M, D), jnp.bfloat16),
        grid=grid,
        in_specs=in_specs,
        out_specs=row_spec,
        compiler_params=pltpu.CompilerParams(
            dimension_semantics=("parallel",),
            vmem_limit_bytes=_VMEM_LIMIT),
    )(*args)


# ----------------------------------------------------------------------------
# Fused multi-head attention + output projection + residual + LayerNorm
# ----------------------------------------------------------------------------

def _mha_kernel(q_ref, kv_ref, wo_ref, bo_ref, res_ref, g_ref, bt_ref, o_ref,
                ctx_ref, *, heads, head_dim, scale, causal, k_off):
    tq = q_ref.shape[0]
    sk = kv_ref.shape[0]
    v_off = k_off + heads * head_dim

    if causal:
        q_start = pl.program_id(0) * tq
        qi = q_start + jax.lax.broadcasted_iota(jnp.int32, (tq, sk), 0)
        ki = jax.lax.broadcasted_iota(jnp.int32, (tq, sk), 1)
        mask = ki <= qi

    # Per-head attention; ref slices keep data in VMEM until each matmul
    # consumes it, and the per-head context lands in the ctx VMEM scratch so
    # live ranges stay bounded across the (static) head loop.
    for h in range(heads):
        lo = h * head_dim
        hi = lo + head_dim
        qh = (q_ref[:, lo:hi].astype(jnp.float32) * scale).astype(jnp.bfloat16)
        kh = kv_ref[:, k_off + lo:k_off + hi]
        vh = kv_ref[:, v_off + lo:v_off + hi]
        # contract the last dim of q and k directly (no k.T transpose)
        s = jax.lax.dot_general(qh, kh, (((1,), (1,)), ((), ())),
                                preferred_element_type=jnp.float32)
        if causal:
            s = jnp.where(mask, s, -1e30)
        s = s - jnp.max(s, axis=-1, keepdims=True)
        p = jnp.exp(s)
        p = p * pl.reciprocal(jnp.sum(p, axis=-1, keepdims=True), approx=True)
        ctx_ref[:, lo:hi] = jnp.dot(
            p.astype(jnp.bfloat16), vh,
            preferred_element_type=jnp.float32).astype(jnp.bfloat16)

    # Single full-width output projection (K = H*Dh saturates the MXU) with
    # fused bias + residual add + post-LayerNorm epilogue.
    y = jnp.dot(ctx_ref[...], wo_ref[...], preferred_element_type=jnp.float32)
    y = y + bo_ref[...].astype(jnp.float32) + res_ref[...].astype(jnp.float32)
    o_ref[...] = _ln_math(y, g_ref[...], bt_ref[...]).astype(o_ref.dtype)


def pallas_mha(q, kv, wo, bo, residual, gamma, beta, *, heads, head_dim,
               causal, k_off):
    """q: (Sq, >=H*Dh) (only the first H*Dh columns are used),
    kv: (Sk, k_off + 2*H*Dh) fused projection (k columns start at k_off),
    wo: (H*Dh, D), bo: (D,), residual: (Sq, D) -> LN(residual + attn) (Sq, D).
    """
    Sq = q.shape[0]
    HD = heads * head_dim
    Sk, KVW = kv.shape
    D = wo.shape[1]
    tq = _pick_tile(Sq, 256, 16)
    grid = (Sq // tq,)
    # TODO(synk): for very long encoder sequences, stream k/v with an online
    # softmax (flash-style) instead of holding the full (Sk, KVW) block.
    kernel = functools.partial(_mha_kernel, heads=heads, head_dim=head_dim,
                               scale=head_dim ** -0.5, causal=causal,
                               k_off=k_off)
    row_spec = pl.BlockSpec((tq, D), lambda i: (i, 0))
    vec_spec = pl.BlockSpec((1, D), lambda i: (0, 0))
    return pl.pallas_call(
        kernel,
        out_shape=jax.ShapeDtypeStruct((Sq, D), jnp.bfloat16),
        grid=grid,
        in_specs=[
            pl.BlockSpec((tq, HD), lambda i: (i, 0)),     # q columns of q/qkv
            pl.BlockSpec((Sk, KVW), lambda i: (0, 0)),    # fused kv / qkv
            pl.BlockSpec((HD, D), lambda i: (0, 0)),
            vec_spec,
            row_spec,                                     # residual
            vec_spec,                                     # ln gamma
            vec_spec,                                     # ln beta
        ],
        out_specs=row_spec,
        scratch_shapes=[pltpu.VMEM((tq, HD), jnp.bfloat16)],
        compiler_params=pltpu.CompilerParams(
            dimension_semantics=("parallel",),
            vmem_limit_bytes=_VMEM_LIMIT),
    )(q.astype(jnp.bfloat16), kv.astype(jnp.bfloat16),
      wo.astype(jnp.bfloat16), bo.astype(jnp.float32).reshape(1, D),
      residual.astype(jnp.bfloat16),
      gamma.astype(jnp.float32).reshape(1, D),
      beta.astype(jnp.float32).reshape(1, D))


# ----------------------------------------------------------------------------
# Parameter initialization (deterministic, synthetic — no checkpoint loading)
# ----------------------------------------------------------------------------

def _dense(key, k_in, k_out, std=0.02):
    kw, kb = jax.random.split(key)
    w = (jax.random.normal(kw, (k_in, k_out), jnp.float32) * std).astype(
        jnp.bfloat16)
    b = jax.random.normal(kb, (k_out,), jnp.float32) * std
    return w, b


def _ln(d):
    return jnp.ones((d,), jnp.float32), jnp.zeros((d,), jnp.float32)


def init_params(key, cfg):
    d = cfg["d_model"]
    ffn = cfg["ffn_dim"]
    keys = iter(jax.random.split(key, 256))

    params = {}
    # BartScaledWordEmbedding (shared / tied encoder+decoder token embedding)
    params["shared_embed"] = jax.random.normal(
        next(keys), (cfg["vocab_size"], d), jnp.float32) * 0.02
    # BartLearnedPositionalEmbedding (offset 2) for encoder and decoder
    params["enc_pos_embed"] = jax.random.normal(
        next(keys), (cfg["max_pos"] + 2, d), jnp.float32) * 0.02
    params["dec_pos_embed"] = jax.random.normal(
        next(keys), (cfg["max_pos"] + 2, d), jnp.float32) * 0.02
    params["enc_ln_emb"] = _ln(d)
    params["dec_ln_emb"] = _ln(d)

    def self_attn_params():
        wqkv, bqkv = _dense(next(keys), d, 3 * d)
        wo, bo = _dense(next(keys), d, d)
        return {"wqkv": wqkv, "bqkv": bqkv, "wo": wo, "bo": bo}

    def cross_attn_params():
        wq, bq = _dense(next(keys), d, d)
        wkv, bkv = _dense(next(keys), d, 2 * d)
        wo, bo = _dense(next(keys), d, d)
        return {"wq": wq, "bq": bq, "wkv": wkv, "bkv": bkv,
                "wo": wo, "bo": bo}

    enc_layers = []
    for _ in range(cfg["encoder_layers"]):
        w1, b1 = _dense(next(keys), d, ffn)
        w2, b2 = _dense(next(keys), ffn, d)
        enc_layers.append({
            "self_attn": self_attn_params(),
            "self_attn_ln": _ln(d),
            "fc1_w": w1, "fc1_b": b1, "fc2_w": w2, "fc2_b": b2,
            "final_ln": _ln(d),
        })
    params["enc_layers"] = enc_layers

    dec_layers = []
    for _ in range(cfg["decoder_layers"]):
        w1, b1 = _dense(next(keys), d, ffn)
        w2, b2 = _dense(next(keys), ffn, d)
        dec_layers.append({
            "self_attn": self_attn_params(),
            "self_attn_ln": _ln(d),
            "cross_attn": cross_attn_params(),
            "cross_attn_ln": _ln(d),
            "fc1_w": w1, "fc1_b": b1, "fc2_w": w2, "fc2_b": b2,
            "final_ln": _ln(d),
        })
    params["dec_layers"] = dec_layers
    return params


# ----------------------------------------------------------------------------
# Model forward (glue in JAX, compute in Pallas)
# ----------------------------------------------------------------------------

def _self_attention_block(h, p, ln, cfg, causal):
    """LN(h + self_attn(h)): fused QKV proj -> fused MHA+proj+residual+LN."""
    HD = cfg["heads"] * cfg["head_dim"]
    qkv = pallas_linear(h, p["wqkv"], p["bqkv"])          # (S, 3*HD)
    # The fused qkv tensor is passed twice: row-tiled q columns and the full
    # block for k/v selection inside the kernel (no jnp.split HBM round trip).
    return pallas_mha(qkv, qkv, p["wo"], p["bo"], h, ln[0], ln[1],
                      heads=cfg["heads"], head_dim=cfg["head_dim"],
                      causal=causal, k_off=HD)


def _cross_attention_block(h, enc_h, p, ln, cfg):
    """LN(h + cross_attn(h, enc_h))."""
    q = pallas_linear(h, p["wq"], p["bq"])                 # (Sq, HD)
    kv = pallas_linear(enc_h, p["wkv"], p["bkv"])          # (Sk, 2*HD)
    return pallas_mha(q, kv, p["wo"], p["bo"], h, ln[0], ln[1],
                      heads=cfg["heads"], head_dim=cfg["head_dim"],
                      causal=False, k_off=0)


def _encoder_layer(h, lp, cfg):
    h = _self_attention_block(h, lp["self_attn"], lp["self_attn_ln"], cfg,
                              causal=False)
    h = pallas_ffn(h, lp["fc1_w"], lp["fc1_b"], lp["fc2_w"], lp["fc2_b"],
                   residual=h, gamma=lp["final_ln"][0], beta=lp["final_ln"][1])
    return h


def _decoder_layer(h, enc_h, lp, cfg):
    h = _self_attention_block(h, lp["self_attn"], lp["self_attn_ln"], cfg,
                              causal=True)
    if enc_h is not None:  # BartDecoderLayer skips cross-attn when None
        h = _cross_attention_block(h, enc_h, lp["cross_attn"],
                                   lp["cross_attn_ln"], cfg)
    h = pallas_ffn(h, lp["fc1_w"], lp["fc1_b"], lp["fc2_w"], lp["fc2_b"],
                   residual=h, gamma=lp["final_ln"][0], beta=lp["final_ln"][1])
    return h


def encoder_forward(params, cfg, input_ids, positions):
    emb = params["shared_embed"][input_ids] * cfg["embed_scale"]
    pos = params["enc_pos_embed"][positions + 2]  # BART positional offset = 2
    h = pallas_layernorm(emb + pos, *params["enc_ln_emb"])
    for lp in params["enc_layers"]:
        h = _encoder_layer(h, lp, cfg)
    return h


def decoder_forward(params, cfg, input_ids, positions, encoder_hidden_states):
    emb = params["shared_embed"][input_ids] * cfg["embed_scale"]
    pos = params["dec_pos_embed"][positions + 2]
    h = pallas_layernorm(emb + pos, *params["dec_ln_emb"])
    for lp in params["dec_layers"]:
        h = _decoder_layer(h, encoder_hidden_states, lp, cfg)
    return h


def florence2_language_forward(params, cfg, input_ids, positions,
                               encoder_input_ids, encoder_positions):
    """Mirrors Florence2LanguageForConditionalGeneration.forward:
    returns decoder hidden states of shape [decoder_seq, d_model]."""
    # TODO(synk): compute_logits (lm_head @ hidden + LogitsProcessor) is a
    # separate vLLM entry point and is intentionally not part of forward().
    encoder_hidden_states = None
    if encoder_input_ids.size > 0:
        encoder_hidden_states = encoder_forward(
            params, cfg, encoder_input_ids, encoder_positions)
    out = decoder_forward(params, cfg, input_ids, positions,
                          encoder_hidden_states)
    return out.astype(jnp.float32)


# ----------------------------------------------------------------------------
# Main
# ----------------------------------------------------------------------------

if __name__ == "__main__":
    cfg = {
        "vocab_size": 128,
        "d_model": 128,
        "heads": 4,
        "head_dim": 32,
        "ffn_dim": 256,
        "encoder_layers": 2,
        "decoder_layers": 2,
        "max_pos": 64,
        "embed_scale": math.sqrt(128.0),  # scale_embedding=True
    }

    key = jax.random.PRNGKey(0)
    kp, ke, kd = jax.random.split(key, 3)
    params = init_params(kp, cfg)

    enc_seq, dec_seq = 16, 8
    encoder_input_ids = jax.random.randint(
        ke, (enc_seq,), 0, cfg["vocab_size"], dtype=jnp.int32)
    encoder_positions = jnp.arange(enc_seq, dtype=jnp.int32)
    decoder_input_ids = jax.random.randint(
        kd, (dec_seq,), 0, cfg["vocab_size"], dtype=jnp.int32)
    decoder_positions = jnp.arange(dec_seq, dtype=jnp.int32)

    # One jitted executable so the many per-layer pallas_calls are dispatched
    # from a single launch (cfg is closed over; everything else is traced).
    @jax.jit
    def fwd(params, dec_ids, dec_pos, enc_ids, enc_pos):
        return florence2_language_forward(params, cfg, dec_ids, dec_pos,
                                          enc_ids, enc_pos)

    out = fwd(params, decoder_input_ids, decoder_positions,
              encoder_input_ids, encoder_positions)
    out = jax.block_until_ready(out)

    assert out.shape == (dec_seq, cfg["d_model"])
    assert bool(jnp.all(jnp.isfinite(out)))
    print("KERNEL_OK")
</pallas_src>

<mosaic_0001>
module attributes {stable_mosaic.version = 11 : i64} {
  func.func @_linear_kernel(%arg0: i32, %arg1: i32, %arg2: i32, %arg3: memref<16x128xbf16, #tpu.memory_space<vmem>>, %arg4: memref<128x128xbf16, #tpu.memory_space<vmem>>, %arg5: memref<1x128xf32, #tpu.memory_space<vmem>>, %arg6: memref<16x128xbf16, #tpu.memory_space<vmem>>, %arg7: memref<16x128xf32, #tpu.memory_space<vmem>>) attributes {dimension_semantics = [#tpu.dimension_semantics<parallel>, #tpu.dimension_semantics<parallel>, #tpu.dimension_semantics<arbitrary>], iteration_bounds = array<i64: 1, 3, 1>, scalar_prefetch = 0 : i64, scratch_operands = 1 : i64, tpu.core_type = #tpu.core_type<tc>, window_params = [{transform_indices = @transform_0, window_bounds = array<i64: 16, 128>}, {transform_indices = @transform_1, window_bounds = array<i64: 128, 128>}, {transform_indices = @transform_2, window_bounds = array<i64: 1, 128>}, {transform_indices = @transform_3, window_bounds = array<i64: 16, 128>}]} {
    %c0_i32 = arith.constant 0 : i32
    %0 = arith.cmpi eq, %arg2, %c0_i32 : i32
    %1 = arith.extui %0 : i1 to i32
    %c0_i32_0 = arith.constant 0 : i32
    %2 = arith.cmpi ne, %1, %c0_i32_0 : i32
    scf.if %2 {
      %cst_10 = arith.constant 0.000000e+00 : f32
      %12 = vector.broadcast %cst_10 : f32 to vector<16x128xf32>
      %c0_11 = arith.constant 0 : index
      %c0_12 = arith.constant 0 : index
      %13 = vector.load %arg7[%c0_11, %c0_12] : memref<16x128xf32, #tpu.memory_space<vmem>>, vector<16x128xf32>
      tpu.vector_store %arg7[%c0_11, %c0_12], %12 {strides = array<i32>} : memref<16x128xf32, #tpu.memory_space<vmem>>, vector<16x128xf32>,
    } else {
    }
    %c0 = arith.constant 0 : index
    %c0_1 = arith.constant 0 : index
    %3 = vector.load %arg7[%c0, %c0_1] : memref<16x128xf32, #tpu.memory_space<vmem>>, vector<16x128xf32>
    %c0_2 = arith.constant 0 : index
    %c0_3 = arith.constant 0 : index
    %4 = vector.load %arg3[%c0_2, %c0_3] : memref<16x128xbf16, #tpu.memory_space<vmem>>, vector<16x128xbf16>
    %c0_4 = arith.constant 0 : index
    %c0_5 = arith.constant 0 : index
    %5 = vector.load %arg4[%c0_4, %c0_5] : memref<128x128xbf16, #tpu.memory_space<vmem>>, vector<128x128xbf16>
    %cst = arith.constant dense<0.000000e+00> : vector<16x128xf32>
    %6 = tpu.matmul %4, %5, %cst {dimension_numbers = #tpu.dot_dimension_numbers<[1], [0], [0], [1], [0, 0, 1, 1], [], []>} : vector<16x128xbf16>, vector<128x128xbf16>, vector<16x128xf32> -> vector<16x128xf32>
    %7 = arith.addf %3, %6 : vector<16x128xf32>
    %c0_6 = arith.constant 0 : index
    %c0_7 = arith.constant 0 : index
    %8 = vector.load %arg7[%c0_6, %c0_7] : memref<16x128xf32, #tpu.memory_space<vmem>>, vector<16x128xf32>
    tpu.vector_store %arg7[%c0_6, %c0_7], %7 {strides = array<i32>} : memref<16x128xf32, #tpu.memory_space<vmem>>, vector<16x128xf32>,
    %c0_i32_8 = arith.constant 0 : i32
    %9 = arith.cmpi eq, %arg2, %c0_i32_8 : i32
    %10 = arith.extui %9 : i1 to i32
    %c0_i32_9 = arith.constant 0 : i32
    %11 = arith.cmpi ne, %10, %c0_i32_9 : i32
    scf.if %11 {
      %c0_10 = arith.constant 0 : index
      %c0_11 = arith.constant 0 : index
      %12 = vector.load %arg7[%c0_10, %c0_11] : memref<16x128xf32, #tpu.memory_space<vmem>>, vector<16x128xf32>
      %c0_12 = arith.constant 0 : index
      %c0_13 = arith.constant 0 : index
      %13 = vector.load %arg5[%c0_12, %c0_13] : memref<1x128xf32, #tpu.memory_space<vmem>>, vector<1x128xf32>
      %14 = vector.broadcast %13 : vector<1x128xf32> to vector<16x128xf32>
      %15 = arith.addf %12, %14 : vector<16x128xf32>
      %16 = arith.truncf %15 : vector<16x128xf32> to vector<16x128xbf16>
      %c0_14 = arith.constant 0 : index
      %c0_15 = arith.constant 0 : index
      %17 = vector.load %arg6[%c0_14, %c0_15] : memref<16x128xbf16, #tpu.memory_space<vmem>>, vector<16x128xbf16>
      tpu.vector_store %arg6[%c0_14, %c0_15], %16 {strides = array<i32>} : memref<16x128xbf16, #tpu.memory_space<vmem>>, vector<16x128xbf16>,
    } else {
    }
    return
  }
  func.func @transform_0(%arg0: i32, %arg1: i32, %arg2: i32) -> (i32, i32) {
    %c0_i32 = arith.constant 0 : i32
    return %arg0, %arg2 : i32, i32
  }
  func.func @transform_1(%arg0: i32, %arg1: i32, %arg2: i32) -> (i32, i32) {
    %c0_i32 = arith.constant 0 : i32
    return %arg2, %arg1 : i32, i32
  }
  func.func @transform_2(%arg0: i32, %arg1: i32, %arg2: i32) -> (i32, i32) {
    %c0_i32 = arith.constant 0 : i32
    %c0_i32_0 = arith.constant 0 : i32
    return %c0_i32, %arg1 : i32, i32
  }
  func.func @transform_3(%arg0: i32, %arg1: i32, %arg2: i32) -> (i32, i32) {
    %c0_i32 = arith.constant 0 : i32
    return %arg0, %arg1 : i32, i32
  }
}

module attributes {stable_mosaic.version = 11 : i64} {
  func.func @_ln_kernel(%arg0: i32, %arg1: memref<16x128xf32, #tpu.memory_space<vmem>>, %arg2: memref<1x128xf32, #tpu.memory_space<vmem>>, %arg3: memref<1x128xf32, #tpu.memory_space<vmem>>, %arg4: memref<16x128xbf16, #tpu.memory_space<vmem>>) attributes {dimension_semantics = [#tpu.dimension_semantics<parallel>], iteration_bounds = array<i64: 1>, scalar_prefetch = 0 : i64, scratch_operands = 0 : i64, tpu.core_type = #tpu.core_type<tc>, window_params = [{transform_indices = @transform_0, window_bounds = array<i64: 16, 128>}, {pipeline_mode = #tpu.pipeline_mode<synchronous>, transform_indices = @transform_1, window_bounds = array<i64: 1, 128>}, {pipeline_mode = #tpu.pipeline_mode<synchronous>, transform_indices = @transform_2, window_bounds = array<i64: 1, 128>}, {transform_indices = @transform_3, window_bounds = array<i64: 16, 128>}]} {
    %c0 = arith.constant 0 : index
    %c0_0 = arith.constant 0 : index
    %0 = vector.load %arg1[%c0, %c0_0] : memref<16x128xf32, #tpu.memory_space<vmem>>, vector<16x128xf32>
    %c0_1 = arith.constant 0 : index
    %c0_2 = arith.constant 0 : index
    %1 = vector.load %arg2[%c0_1, %c0_2] : memref<1x128xf32, #tpu.memory_space<vmem>>, vector<1x128xf32>
    %c0_3 = arith.constant 0 : index
    %c0_4 = arith.constant 0 : index
    %2 = vector.load %arg3[%c0_3, %c0_4] : memref<1x128xf32, #tpu.memory_space<vmem>>, vector<1x128xf32>
    %cst = arith.constant dense<0.000000e+00> : vector<16xf32>
    %3 = vector.multi_reduction <add>, %0, %cst [1] : vector<16x128xf32> to vector<16xf32>
    %4 = vector.shape_cast %3 : vector<16xf32> to vector<16x1xf32>
    %cst_5 = arith.constant 1.280000e+02 : f32
    %5 = vector.broadcast %cst_5 : f32 to vector<16x1xf32>
    %6 = arith.divf %4, %5 : vector<16x1xf32>
    %7 = vector.broadcast %6 : vector<16x1xf32> to vector<16x128xf32>
    %8 = arith.subf %0, %7 : vector<16x128xf32>
    %9 = arith.mulf %8, %8 : vector<16x128xf32>
    %cst_6 = arith.constant dense<0.000000e+00> : vector<16xf32>
    %10 = vector.multi_reduction <add>, %9, %cst_6 [1] : vector<16x128xf32> to vector<16xf32>
    %11 = vector.shape_cast %10 : vector<16xf32> to vector<16x1xf32>
    %cst_7 = arith.constant 1.280000e+02 : f32
    %12 = vector.broadcast %cst_7 : f32 to vector<16x1xf32>
    %13 = arith.divf %11, %12 : vector<16x1xf32>
    %cst_8 = arith.constant 9.99999974E-6 : f32
    %14 = vector.broadcast %cst_8 : f32 to vector<16x1xf32>
    %15 = arith.addf %13, %14 : vector<16x1xf32>
    %16 = math.rsqrt %15 : vector<16x1xf32>
    %17 = vector.broadcast %16 : vector<16x1xf32> to vector<16x128xf32>
    %18 = arith.mulf %8, %17 : vector<16x128xf32>
    %19 = vector.broadcast %1 : vector<1x128xf32> to vector<16x128xf32>
    %20 = arith.mulf %18, %19 : vector<16x128xf32>
    %21 = vector.broadcast %2 : vector<1x128xf32> to vector<16x128xf32>
    %22 = arith.addf %20, %21 : vector<16x128xf32>
    %23 = arith.truncf %22 : vector<16x128xf32> to vector<16x128xbf16>
    %c0_9 = arith.constant 0 : index
    %c0_10 = arith.constant 0 : index
    %24 = vector.load %arg4[%c0_9, %c0_10] : memref<16x128xbf16, #tpu.memory_space<vmem>>, vector<16x128xbf16>
    tpu.vector_store %arg4[%c0_9, %c0_10], %23 {strides = array<i32>} : memref<16x128xbf16, #tpu.memory_space<vmem>>, vector<16x128xbf16>,
    return
  }
  func.func @transform_0(%arg0: i32) -> (i32, i32) {
    %c0_i32 = arith.constant 0 : i32
    %c0_i32_0 = arith.constant 0 : i32
    return %arg0, %c0_i32 : i32, i32
  }
  func.func @transform_1(%arg0: i32) -> (i32, i32) {
    %c0_i32 = arith.constant 0 : i32
    %c0_i32_0 = arith.constant 0 : i32
    %c0_i32_1 = arith.constant 0 : i32
    return %c0_i32, %c0_i32_0 : i32, i32
  }
  func.func @transform_2(%arg0: i32) -> (i32, i32) {
    %c0_i32 = arith.constant 0 : i32
    %c0_i32_0 = arith.constant 0 : i32
    %c0_i32_1 = arith.constant 0 : i32
    return %c0_i32, %c0_i32_0 : i32, i32
  }
  func.func @transform_3(%arg0: i32) -> (i32, i32) {
    %c0_i32 = arith.constant 0 : i32
    %c0_i32_0 = arith.constant 0 : i32
    return %arg0, %c0_i32 : i32, i32
  }
}

module attributes {stable_mosaic.version = 11 : i64} {
  func.func @_mha_kernel(%arg0: i32, %arg1: memref<16x128xbf16, #tpu.memory_space<vmem>>, %arg2: memref<16x384xbf16, #tpu.memory_space<vmem>>, %arg3: memref<128x128xbf16, #tpu.memory_space<vmem>>, %arg4: memref<1x128xf32, #tpu.memory_space<vmem>>, %arg5: memref<16x128xbf16, #tpu.memory_space<vmem>>, %arg6: memref<1x128xf32, #tpu.memory_space<vmem>>, %arg7: memref<1x128xf32, #tpu.memory_space<vmem>>, %arg8: memref<16x128xbf16, #tpu.memory_space<vmem>>, %arg9: memref<16x128xbf16, #tpu.memory_space<vmem>>) attributes {dimension_semantics = [#tpu.dimension_semantics<parallel>], iteration_bounds = array<i64: 1>, scalar_prefetch = 0 : i64, scratch_operands = 1 : i64, tpu.core_type = #tpu.core_type<tc>, window_params = [{transform_indices = @transform_0, window_bounds = array<i64: 16, 128>}, {pipeline_mode = #tpu.pipeline_mode<synchronous>, transform_indices = @transform_1, window_bounds = array<i64: 16, 384>}, {pipeline_mode = #tpu.pipeline_mode<synchronous>, transform_indices = @transform_2, window_bounds = array<i64: 128, 128>}, {pipeline_mode = #tpu.pipeline_mode<synchronous>, transform_indices = @transform_3, window_bounds = array<i64: 1, 128>}, {transform_indices = @transform_4, window_bounds = array<i64: 16, 128>}, {pipeline_mode = #tpu.pipeline_mode<synchronous>, transform_indices = @transform_5, window_bounds = array<i64: 1, 128>}, {pipeline_mode = #tpu.pipeline_mode<synchronous>, transform_indices = @transform_6, window_bounds = array<i64: 1, 128>}, {transform_indices = @transform_7, window_bounds = array<i64: 16, 128>}]} {
    %c0 = arith.constant 0 : index
    %c0_0 = arith.constant 0 : index
    %0 = vector.load %arg1[%c0, %c0_0] : memref<16x128xbf16, #tpu.memory_space<vmem>>, vector<16x32xbf16>
    %1 = arith.extf %0 : vector<16x32xbf16> to vector<16x32xf32>
    %cst = arith.constant 0.176776692 : f32
    %2 = vector.broadcast %cst : f32 to vector<16x32xf32>
    %3 = arith.mulf %1, %2 : vector<16x32xf32>
    %4 = arith.truncf %3 : vector<16x32xf32> to vector<16x32xbf16>
    %c0_1 = arith.constant 0 : index
    %c128 = arith.constant 128 : index
    %5 = vector.load %arg2[%c0_1, %c128] : memref<16x384xbf16, #tpu.memory_space<vmem>>, vector<16x32xbf16>
    %c0_2 = arith.constant 0 : index
    %c256 = arith.constant 256 : index
    %6 = vector.load %arg2[%c0_2, %c256] : memref<16x384xbf16, #tpu.memory_space<vmem>>, vector<16x32xbf16>
    %cst_3 = arith.constant dense<0.000000e+00> : vector<16x16xf32>
    %7 = tpu.matmul %4, %5, %cst_3 {dimension_numbers = #tpu.dot_dimension_numbers<[1], [1], [0], [0], [0, 0, 1, 0], [], []>} : vector<16x32xbf16>, vector<16x32xbf16>, vector<16x16xf32> -> vector<16x16xf32>
    %cst_4 = arith.constant dense<0xFF800000> : vector<16xf32>
    %8 = vector.multi_reduction <maximumf>, %7, %cst_4 [1] : vector<16x16xf32> to vector<16xf32>
    %9 = vector.shape_cast %8 : vector<16xf32> to vector<16x1xf32>
    %10 = vector.broadcast %9 : vector<16x1xf32> to vector<16x16xf32>
    %11 = arith.subf %7, %10 : vector<16x16xf32>
    %12 = math.exp %11 : vector<16x16xf32>
    %cst_5 = arith.constant dense<0.000000e+00> : vector<16xf32>
    %13 = vector.multi_reduction <add>, %12, %cst_5 [1] : vector<16x16xf32> to vector<16xf32>
    %14 = vector.shape_cast %13 : vector<16xf32> to vector<16x1xf32>
    %15 = tpu.reciprocal %14 {approx = true} : vector<16x1xf32> -> vector<16x1xf32>
    %16 = vector.broadcast %15 : vector<16x1xf32> to vector<16x16xf32>
    %17 = arith.mulf %12, %16 : vector<16x16xf32>
    %18 = arith.truncf %17 : vector<16x16xf32> to vector<16x16xbf16>
    %cst_6 = arith.constant dense<0.000000e+00> : vector<16x32xf32>
    %19 = tpu.matmul %18, %6, %cst_6 {dimension_numbers = #tpu.dot_dimension_numbers<[1], [0], [0], [1], [0, 0, 1, 1], [], []>} : vector<16x16xbf16>, vector<16x32xbf16>, vector<16x32xf32> -> vector<16x32xf32>
    %20 = arith.truncf %19 : vector<16x32xf32> to vector<16x32xbf16>
    %c0_7 = arith.constant 0 : index
    %c0_8 = arith.constant 0 : index
    %21 = vector.load %arg9[%c0_7, %c0_8] : memref<16x128xbf16, #tpu.memory_space<vmem>>, vector<16x32xbf16>
    tpu.vector_store %arg9[%c0_7, %c0_8], %20 {strides = array<i32>} : memref<16x128xbf16, #tpu.memory_space<vmem>>, vector<16x32xbf16>,
    %c0_9 = arith.constant 0 : index
    %c32 = arith.constant 32 : index
    %22 = vector.load %arg1[%c0_9, %c32] : memref<16x128xbf16, #tpu.memory_space<vmem>>, vector<16x32xbf16>
    %23 = arith.extf %22 : vector<16x32xbf16> to vector<16x32xf32>
    %cst_10 = arith.constant 0.176776692 : f32
    %24 = vector.broadcast %cst_10 : f32 to vector<16x32xf32>
    %25 = arith.mulf %23, %24 : vector<16x32xf32>
    %26 = arith.truncf %25 : vector<16x32xf32> to vector<16x32xbf16>
    %c0_11 = arith.constant 0 : index
    %c160 = arith.constant 160 : index
    %27 = vector.load %arg2[%c0_11, %c160] : memref<16x384xbf16, #tpu.memory_space<vmem>>, vector<16x32xbf16>
    %c0_12 = arith.constant 0 : index
    %c288 = arith.constant 288 : index
    %28 = vector.load %arg2[%c0_12, %c288] : memref<16x384xbf16, #tpu.memory_space<vmem>>, vector<16x32xbf16>
    %cst_13 = arith.constant dense<0.000000e+00> : vector<16x16xf32>
    %29 = tpu.matmul %26, %27, %cst_13 {dimension_numbers = #tpu.dot_dimension_numbers<[1], [1], [0], [0], [0, 0, 1, 0], [], []>} : vector<16x32xbf16>, vector<16x32xbf16>, vector<16x16xf32> -> vector<16x16xf32>
    %cst_14 = arith.constant dense<0xFF800000> : vector<16xf32>
    %30 = vector.multi_reduction <maximumf>, %29, %cst_14 [1] : vector<16x16xf32> to vector<16xf32>
    %31 = vector.shape_cast %30 : vector<16xf32> to vector<16x1xf32>
    %32 = vector.broadcast %31 : vector<16x1xf32> to vector<16x16xf32>
    %33 = arith.subf %29, %32 : vector<16x16xf32>
    %34 = math.exp %33 : vector<16x16xf32>
    %cst_15 = arith.constant dense<0.000000e+00> : vector<16xf32>
    %35 = vector.multi_reduction <add>, %34, %cst_15 [1] : vector<16x16xf32> to vector<16xf32>
    %36 = vector.shape_cast %35 : vector<16xf32> to vector<16x1xf32>
    %37 = tpu.reciprocal %36 {approx = true} : vector<16x1xf32> -> vector<16x1xf32>
    %38 = vector.broadcast %37 : vector<16x1xf32> to vector<16x16xf32>
    %39 = arith.mulf %34, %38 : vector<16x16xf32>
    %40 = arith.truncf %39 : vector<16x16xf32> to vector<16x16xbf16>
    %cst_16 = arith.constant dense<0.000000e+00> : vector<16x32xf32>
    %41 = tpu.matmul %40, %28, %cst_16 {dimension_numbers = #tpu.dot_dimension_numbers<[1], [0], [0], [1], [0, 0, 1, 1], [], []>} : vector<16x16xbf16>, vector<16x32xbf16>, vector<16x32xf32> -> vector<16x32xf32>
    %42 = arith.truncf %41 : vector<16x32xf32> to vector<16x32xbf16>
    %c0_17 = arith.constant 0 : index
    %c32_18 = arith.constant 32 : index
    %43 = vector.load %arg9[%c0_17, %c32_18] : memref<16x128xbf16, #tpu.memory_space<vmem>>, vector<16x32xbf16>
    tpu.vector_store %arg9[%c0_17, %c32_18], %42 {strides = array<i32>} : memref<16x128xbf16, #tpu.memory_space<vmem>>, vector<16x32xbf16>,
    %c0_19 = arith.constant 0 : index
    %c64 = arith.constant 64 : index
    %44 = vector.load %arg1[%c0_19, %c64] : memref<16x128xbf16, #tpu.memory_space<vmem>>, vector<16x32xbf16>
    %45 = arith.extf %44 : vector<16x32xbf16> to vector<16x32xf32>
    %cst_20 = arith.constant 0.176776692 : f32
    %46 = vector.broadcast %cst_20 : f32 to vector<16x32xf32>
    %47 = arith.mulf %45, %46 : vector<16x32xf32>
    %48 = arith.truncf %47 : vector<16x32xf32> to vector<16x32xbf16>
    %c0_21 = arith.constant 0 : index
    %c192 = arith.constant 192 : index
    %49 = vector.load %arg2[%c0_21, %c192] : memref<16x384xbf16, #tpu.memory_space<vmem>>, vector<16x32xbf16>
    %c0_22 = arith.constant 0 : index
    %c320 = arith.constant 320 : index
    %50 = vector.load %arg2[%c0_22, %c320] : memref<16x384xbf16, #tpu.memory_space<vmem>>, vector<16x32xbf16>
    %cst_23 = arith.constant dense<0.000000e+00> : vector<16x16xf32>
    %51 = tpu.matmul %48, %49, %cst_23 {dimension_numbers = #tpu.dot_dimension_numbers<[1], [1], [0], [0], [0, 0, 1, 0], [], []>} : vector<16x32xbf16>, vector<16x32xbf16>, vector<16x16xf32> -> vector<16x16xf32>
    %cst_24 = arith.constant dense<0xFF800000> : vector<16xf32>
    %52 = vector.multi_reduction <maximumf>, %51, %cst_24 [1] : vector<16x16xf32> to vector<16xf32>
    %53 = vector.shape_cast %52 : vector<16xf32> to vector<16x1xf32>
    %54 = vector.broadcast %53 : vector<16x1xf32> to vector<16x16xf32>
    %55 = arith.subf %51, %54 : vector<16x16xf32>
    %56 = math.exp %55 : vector<16x16xf32>
    %cst_25 = arith.constant dense<0.000000e+00> : vector<16xf32>
    %57 = vector.multi_reduction <add>, %56, %cst_25 [1] : vector<16x16xf32> to vector<16xf32>
    %58 = vector.shape_cast %57 : vector<16xf32> to vector<16x1xf32>
    %59 = tpu.reciprocal %58 {approx = true} : vector<16x1xf32> -> vector<16x1xf32>
    %60 = vector.broadcast %59 : vector<16x1xf32> to vector<16x16xf32>
    %61 = arith.mulf %56, %60 : vector<16x16xf32>
    %62 = arith.truncf %61 : vector<16x16xf32> to vector<16x16xbf16>
    %cst_26 = arith.constant dense<0.000000e+00> : vector<16x32xf32>
    %63 = tpu.matmul %62, %50, %cst_26 {dimension_numbers = #tpu.dot_dimension_numbers<[1], [0], [0], [1], [0, 0, 1, 1], [], []>} : vector<16x16xbf16>, vector<16x32xbf16>, vector<16x32xf32> -> vector<16x32xf32>
    %64 = arith.truncf %63 : vector<16x32xf32> to vector<16x32xbf16>
    %c0_27 = arith.constant 0 : index
    %c64_28 = arith.constant 64 : index
    %65 = vector.load %arg9[%c0_27, %c64_28] : memref<16x128xbf16, #tpu.memory_space<vmem>>, vector<16x32xbf16>
    tpu.vector_store %arg9[%c0_27, %c64_28], %64 {strides = array<i32>} : memref<16x128xbf16, #tpu.memory_space<vmem>>, vector<16x32xbf16>,
    %c0_29 = arith.constant 0 : index
    %c96 = arith.constant 96 : index
    %66 = vector.load %arg1[%c0_29, %c96] : memref<16x128xbf16, #tpu.memory_space<vmem>>, vector<16x32xbf16>
    %67 = arith.extf %66 : vector<16x32xbf16> to vector<16x32xf32>
    %cst_30 = arith.constant 0.176776692 : f32
    %68 = vector.broadcast %cst_30 : f32 to vector<16x32xf32>
    %69 = arith.mulf %67, %68 : vector<16x32xf32>
    %70 = arith.truncf %69 : vector<16x32xf32> to vector<16x32xbf16>
    %c0_31 = arith.constant 0 : index
    %c224 = arith.constant 224 : index
    %71 = vector.load %arg2[%c0_31, %c224] : memref<16x384xbf16, #tpu.memory_space<vmem>>, vector<16x32xbf16>
    %c0_32 = arith.constant 0 : index
    %c352 = arith.constant 352 : index
    %72 = vector.load %arg2[%c0_32, %c352] : memref<16x384xbf16, #tpu.memory_space<vmem>>, vector<16x32xbf16>
    %cst_33 = arith.constant dense<0.000000e+00> : vector<16x16xf32>
    %73 = tpu.matmul %70, %71, %cst_33 {dimension_numbers = #tpu.dot_dimension_numbers<[1], [1], [0], [0], [0, 0, 1, 0], [], []>} : vector<16x32xbf16>, vector<16x32xbf16>, vector<16x16xf32> -> vector<16x16xf32>
    %cst_34 = arith.constant dense<0xFF800000> : vector<16xf32>
    %74 = vector.multi_reduction <maximumf>, %73, %cst_34 [1] : vector<16x16xf32> to vector<16xf32>
    %75 = vector.shape_cast %74 : vector<16xf32> to vector<16x1xf32>
    %76 = vector.broadcast %75 : vector<16x1xf32> to vector<16x16xf32>
    %77 = arith.subf %73, %76 : vector<16x16xf32>
    %78 = math.exp %77 : vector<16x16xf32>
    %cst_35 = arith.constant dense<0.000000e+00> : vector<16xf32>
    %79 = vector.multi_reduction <add>, %78, %cst_35 [1] : vector<16x16xf32> to vector<16xf32>
    %80 = vector.shape_cast %79 : vector<16xf32> to vector<16x1xf32>
    %81 = tpu.reciprocal %80 {approx = true} : vector<16x1xf32> -> vector<16x1xf32>
    %82 = vector.broadcast %81 : vector<16x1xf32> to vector<16x16xf32>
    %83 = arith.mulf %78, %82 : vector<16x16xf32>
    %84 = arith.truncf %83 : vector<16x16xf32> to vector<16x16xbf16>
    %cst_36 = arith.constant dense<0.000000e+00> : vector<16x32xf32>
    %85 = tpu.matmul %84, %72, %cst_36 {dimension_numbers = #tpu.dot_dimension_numbers<[1], [0], [0], [1], [0, 0, 1, 1], [], []>} : vector<16x16xbf16>, vector<16x32xbf16>, vector<16x32xf32> -> vector<16x32xf32>
    %86 = arith.truncf %85 : vector<16x32xf32> to vector<16x32xbf16>
    %c0_37 = arith.constant 0 : index
    %c96_38 = arith.constant 96 : index
    %87 = vector.load %arg9[%c0_37, %c96_38] : memref<16x128xbf16, #tpu.memory_space<vmem>>, vector<16x32xbf16>
    tpu.vector_store %arg9[%c0_37, %c96_38], %86 {strides = array<i32>} : memref<16x128xbf16, #tpu.memory_space<vmem>>, vector<16x32xbf16>,
    %c0_39 = arith.constant 0 : index
    %c0_40 = arith.constant 0 : index
    %88 = vector.load %arg9[%c0_39, %c0_40] : memref<16x128xbf16, #tpu.memory_space<vmem>>, vector<16x128xbf16>
    %c0_41 = arith.constant 0 : index
    %c0_42 = arith.constant 0 : index
    %89 = vector.load %arg3[%c0_41, %c0_42] : memref<128x128xbf16, #tpu.memory_space<vmem>>, vector<128x128xbf16>
    %cst_43 = arith.constant dense<0.000000e+00> : vector<16x128xf32>
    %90 = tpu.matmul %88, %89, %cst_43 {dimension_numbers = #tpu.dot_dimension_numbers<[1], [0], [0], [1], [0, 0, 1, 1], [], []>} : vector<16x128xbf16>, vector<128x128xbf16>, vector<16x128xf32> -> vector<16x128xf32>
    %c0_44 = arith.constant 0 : index
    %c0_45 = arith.constant 0 : index
    %91 = vector.load %arg4[%c0_44, %c0_45] : memref<1x128xf32, #tpu.memory_space<vmem>>, vector<1x128xf32>
    %92 = vector.broadcast %91 : vector<1x128xf32> to vector<16x128xf32>
    %93 = arith.addf %90, %92 : vector<16x128xf32>
    %c0_46 = arith.constant 0 : index
    %c0_47 = arith.constant 0 : index
    %94 = vector.load %arg5[%c0_46, %c0_47] : memref<16x128xbf16, #tpu.memory_space<vmem>>, vector<16x128xbf16>
    %95 = arith.extf %94 : vector<16x128xbf16> to vector<16x128xf32>
    %96 = arith.addf %93, %95 : vector<16x128xf32>
    %c0_48 = arith.constant 0 : index
    %c0_49 = arith.constant 0 : index
    %97 = vector.load %arg6[%c0_48, %c0_49] : memref<1x128xf32, #tpu.memory_space<vmem>>, vector<1x128xf32>
    %c0_50 = arith.constant 0 : index
    %c0_51 = arith.constant 0 : index
    %98 = vector.load %arg7[%c0_50, %c0_51] : memref<1x128xf32, #tpu.memory_space<vmem>>, vector<1x128xf32>
    %cst_52 = arith.constant dense<0.000000e+00> : vector<16xf32>
    %99 = vector.multi_reduction <add>, %96, %cst_52 [1] : vector<16x128xf32> to vector<16xf32>
    %100 = vector.shape_cast %99 : vector<16xf32> to vector<16x1xf32>
    %cst_53 = arith.constant 1.280000e+02 : f32
    %101 = vector.broadcast %cst_53 : f32 to vector<16x1xf32>
    %102 = arith.divf %100, %101 : vector<16x1xf32>
    %103 = vector.broadcast %102 : vector<16x1xf32> to vector<16x128xf32>
    %104 = arith.subf %96, %103 : vector<16x128xf32>
    %105 = arith.mulf %104, %104 : vector<16x128xf32>
    %cst_54 = arith.constant dense<0.000000e+00> : vector<16xf32>
    %106 = vector.multi_reduction <add>, %105, %cst_54 [1] : vector<16x128xf32> to vector<16xf32>
    %107 = vector.shape_cast %106 : vector<16xf32> to vector<16x1xf32>
    %cst_55 = arith.constant 1.280000e+02 : f32
    %108 = vector.broadcast %cst_55 : f32 to vector<16x1xf32>
    %109 = arith.divf %107, %108 : vector<16x1xf32>
    %cst_56 = arith.constant 9.99999974E-6 : f32
    %110 = vector.broadcast %cst_56 : f32 to vector<16x1xf32>
    %111 = arith.addf %109, %110 : vector<16x1xf32>
    %112 = math.rsqrt %111 : vector<16x1xf32>
    %113 = vector.broadcast %112 : vector<16x1xf32> to vector<16x128xf32>
    %114 = arith.mulf %104, %113 : vector<16x128xf32>
    %115 = vector.broadcast %97 : vector<1x128xf32> to vector<16x128xf32>
    %116 = arith.mulf %114, %115 : vector<16x128xf32>
    %117 = vector.broadcast %98 : vector<1x128xf32> to vector<16x128xf32>
    %118 = arith.addf %116, %117 : vector<16x128xf32>
    %119 = arith.truncf %118 : vector<16x128xf32> to vector<16x128xbf16>
    %c0_57 = arith.constant 0 : index
    %c0_58 = arith.constant 0 : index
    %120 = vector.load %arg8[%c0_57, %c0_58] : memref<16x128xbf16, #tpu.memory_space<vmem>>, vector<16x128xbf16>
    tpu.vector_store %arg8[%c0_57, %c0_58], %119 {strides = array<i32>} : memref<16x128xbf16, #tpu.memory_space<vmem>>, vector<16x128xbf16>,
    return
  }
  func.func @transform_0(%arg0: i32) -> (i32, i32) {
    %c0_i32 = arith.constant 0 : i32
    %c0_i32_0 = arith.constant 0 : i32
    return %arg0, %c0_i32 : i32, i32
  }
  func.func @transform_1(%arg0: i32) -> (i32, i32) {
    %c0_i32 = arith.constant 0 : i32
    %c0_i32_0 = arith.constant 0 : i32
    %c0_i32_1 = arith.constant 0 : i32
    return %c0_i32, %c0_i32_0 : i32, i32
  }
  func.func @transform_2(%arg0: i32) -> (i32, i32) {
    %c0_i32 = arith.constant 0 : i32
    %c0_i32_0 = arith.constant 0 : i32
    %c0_i32_1 = arith.constant 0 : i32
    return %c0_i32, %c0_i32_0 : i32, i32
  }
  func.func @transform_3(%arg0: i32) -> (i32, i32) {
    %c0_i32 = arith.constant 0 : i32
    %c0_i32_0 = arith.constant 0 : i32
    %c0_i32_1 = arith.constant 0 : i32
    return %c0_i32, %c0_i32_0 : i32, i32
  }
  func.func @transform_4(%arg0: i32) -> (i32, i32) {
    %c0_i32 = arith.constant 0 : i32
    %c0_i32_0 = arith.constant 0 : i32
    return %arg0, %c0_i32 : i32, i32
  }
  func.func @transform_5(%arg0: i32) -> (i32, i32) {
    %c0_i32 = arith.constant 0 : i32
    %c0_i32_0 = arith.constant 0 : i32
    %c0_i32_1 = arith.constant 0 : i32
    return %c0_i32, %c0_i32_0 : i32, i32
  }
  func.func @transform_6(%arg0: i32) -> (i32, i32) {
    %c0_i32 = arith.constant 0 : i32
    %c0_i32_0 = arith.constant 0 : i32
    %c0_i32_1 = arith.constant 0 : i32
    return %c0_i32, %c0_i32_0 : i32, i32
  }
  func.func @transform_7(%arg0: i32) -> (i32, i32) {
    %c0_i32 = arith.constant 0 : i32
    %c0_i32_0 = arith.constant 0 : i32
    return %arg0, %c0_i32 : i32, i32
  }
}

module attributes {stable_mosaic.version = 11 : i64} {
  func.func @_ffn_kernel(%arg0: i32, %arg1: memref<16x128xbf16, #tpu.memory_space<vmem>>, %arg2: memref<128x256xbf16, #tpu.memory_space<vmem>>, %arg3: memref<1x256xf32, #tpu.memory_space<vmem>>, %arg4: memref<256x128xbf16, #tpu.memory_space<vmem>>, %arg5: memref<1x128xf32, #tpu.memory_space<vmem>>, %arg6: memref<16x128xbf16, #tpu.memory_space<vmem>>, %arg7: memref<1x128xf32, #tpu.memory_space<vmem>>, %arg8: memref<1x128xf32, #tpu.memory_space<vmem>>, %arg9: memref<16x128xbf16, #tpu.memory_space<vmem>>) attributes {dimension_semantics = [#tpu.dimension_semantics<parallel>], iteration_bounds = array<i64: 1>, scalar_prefetch = 0 : i64, scratch_operands = 0 : i64, tpu.core_type = #tpu.core_type<tc>, window_params = [{transform_indices = @transform_0, window_bounds = array<i64: 16, 128>}, {pipeline_mode = #tpu.pipeline_mode<synchronous>, transform_indices = @transform_1, window_bounds = array<i64: 128, 256>}, {pipeline_mode = #tpu.pipeline_mode<synchronous>, transform_indices = @transform_2, window_bounds = array<i64: 1, 256>}, {pipeline_mode = #tpu.pipeline_mode<synchronous>, transform_indices = @transform_3, window_bounds = array<i64: 256, 128>}, {pipeline_mode = #tpu.pipeline_mode<synchronous>, transform_indices = @transform_4, window_bounds = array<i64: 1, 128>}, {transform_indices = @transform_5, window_bounds = array<i64: 16, 128>}, {pipeline_mode = #tpu.pipeline_mode<synchronous>, transform_indices = @transform_6, window_bounds = array<i64: 1, 128>}, {pipeline_mode = #tpu.pipeline_mode<synchronous>, transform_indices = @transform_7, window_bounds = array<i64: 1, 128>}, {transform_indices = @transform_8, window_bounds = array<i64: 16, 128>}]} {
    %c0 = arith.constant 0 : index
    %c0_0 = arith.constant 0 : index
    %0 = vector.load %arg1[%c0, %c0_0] : memref<16x128xbf16, #tpu.memory_space<vmem>>, vector<16x128xbf16>
    %cst = arith.constant 0.000000e+00 : f32
    %1 = vector.broadcast %cst : f32 to vector<16x128xf32>
    %c0_1 = arith.constant 0 : index
    %c0_2 = arith.constant 0 : index
    %2 = vector.load %arg2[%c0_1, %c0_2] : memref<128x256xbf16, #tpu.memory_space<vmem>>, vector<128x256xbf16>
    %cst_3 = arith.constant dense<0.000000e+00> : vector<16x256xf32>
    %3 = tpu.matmul %0, %2, %cst_3 {dimension_numbers = #tpu.dot_dimension_numbers<[1], [0], [0], [1], [0, 0, 1, 1], [], []>} : vector<16x128xbf16>, vector<128x256xbf16>, vector<16x256xf32> -> vector<16x256xf32>
    %c0_4 = arith.constant 0 : index
    %c0_5 = arith.constant 0 : index
    %4 = vector.load %arg3[%c0_4, %c0_5] : memref<1x256xf32, #tpu.memory_space<vmem>>, vector<1x256xf32>
    %5 = vector.broadcast %4 : vector<1x256xf32> to vector<16x256xf32>
    %6 = arith.addf %3, %5 : vector<16x256xf32>
    %cst_6 = arith.constant 5.000000e-01 : f32
    %7 = vector.broadcast %cst_6 : f32 to vector<16x256xf32>
    %8 = arith.mulf %7, %6 : vector<16x256xf32>
    %cst_7 = arith.constant 0.707106769 : f32
    %9 = vector.broadcast %cst_7 : f32 to vector<16x256xf32>
    %10 = arith.mulf %6, %9 : vector<16x256xf32>
    %11 = math.erf %10 : vector<16x256xf32>
    %cst_8 = arith.constant 1.000000e+00 : f32
    %12 = vector.broadcast %cst_8 : f32 to vector<16x256xf32>
    %13 = arith.addf %12, %11 : vector<16x256xf32>
    %14 = arith.mulf %8, %13 : vector<16x256xf32>
    %15 = arith.truncf %14 : vector<16x256xf32> to vector<16x256xbf16>
    %c0_9 = arith.constant 0 : index
    %c0_10 = arith.constant 0 : index
    %16 = vector.load %arg4[%c0_9, %c0_10] : memref<256x128xbf16, #tpu.memory_space<vmem>>, vector<256x128xbf16>
    %cst_11 = arith.constant dense<0.000000e+00> : vector<16x128xf32>
    %17 = tpu.matmul %15, %16, %cst_11 {dimension_numbers = #tpu.dot_dimension_numbers<[1], [0], [0], [1], [0, 0, 1, 1], [], []>} : vector<16x256xbf16>, vector<256x128xbf16>, vector<16x128xf32> -> vector<16x128xf32>
    %18 = arith.addf %1, %17 : vector<16x128xf32>
    %c0_12 = arith.constant 0 : index
    %c0_13 = arith.constant 0 : index
    %19 = vector.load %arg5[%c0_12, %c0_13] : memref<1x128xf32, #tpu.memory_space<vmem>>, vector<1x128xf32>
    %20 = vector.broadcast %19 : vector<1x128xf32> to vector<16x128xf32>
    %21 = arith.addf %18, %20 : vector<16x128xf32>
    %c0_14 = arith.constant 0 : index
    %c0_15 = arith.constant 0 : index
    %22 = vector.load %arg6[%c0_14, %c0_15] : memref<16x128xbf16, #tpu.memory_space<vmem>>, vector<16x128xbf16>
    %23 = arith.extf %22 : vector<16x128xbf16> to vector<16x128xf32>
    %24 = arith.addf %21, %23 : vector<16x128xf32>
    %c0_16 = arith.constant 0 : index
    %c0_17 = arith.constant 0 : index
    %25 = vector.load %arg7[%c0_16, %c0_17] : memref<1x128xf32, #tpu.memory_space<vmem>>, vector<1x128xf32>
    %c0_18 = arith.constant 0 : index
    %c0_19 = arith.constant 0 : index
    %26 = vector.load %arg8[%c0_18, %c0_19] : memref<1x128xf32, #tpu.memory_space<vmem>>, vector<1x128xf32>
    %cst_20 = arith.constant dense<0.000000e+00> : vector<16xf32>
    %27 = vector.multi_reduction <add>, %24, %cst_20 [1] : vector<16x128xf32> to vector<16xf32>
    %28 = vector.shape_cast %27 : vector<16xf32> to vector<16x1xf32>
    %cst_21 = arith.constant 1.280000e+02 : f32
    %29 = vector.broadcast %cst_21 : f32 to vector<16x1xf32>
    %30 = arith.divf %28, %29 : vector<16x1xf32>
    %31 = vector.broadcast %30 : vector<16x1xf32> to vector<16x128xf32>
    %32 = arith.subf %24, %31 : vector<16x128xf32>
    %33 = arith.mulf %32, %32 : vector<16x128xf32>
    %cst_22 = arith.constant dense<0.000000e+00> : vector<16xf32>
    %34 = vector.multi_reduction <add>, %33, %cst_22 [1] : vector<16x128xf32> to vector<16xf32>
    %35 = vector.shape_cast %34 : vector<16xf32> to vector<16x1xf32>
    %cst_23 = arith.constant 1.280000e+02 : f32
    %36 = vector.broadcast %cst_23 : f32 to vector<16x1xf32>
    %37 = arith.divf %35, %36 : vector<16x1xf32>
    %cst_24 = arith.constant 9.99999974E-6 : f32
    %38 = vector.broadcast %cst_24 : f32 to vector<16x1xf32>
    %39 = arith.addf %37, %38 : vector<16x1xf32>
    %40 = math.rsqrt %39 : vector<16x1xf32>
    %41 = vector.broadcast %40 : vector<16x1xf32> to vector<16x128xf32>
    %42 = arith.mulf %32, %41 : vector<16x128xf32>
    %43 = vector.broadcast %25 : vector<1x128xf32> to vector<16x128xf32>
    %44 = arith.mulf %42, %43 : vector<16x128xf32>
    %45 = vector.broadcast %26 : vector<1x128xf32> to vector<16x128xf32>
    %46 = arith.addf %44, %45 : vector<16x128xf32>
    %47 = arith.truncf %46 : vector<16x128xf32> to vector<16x128xbf16>
    %c0_25 = arith.constant 0 : index
    %c0_26 = arith.constant 0 : index
    %48 = vector.load %arg9[%c0_25, %c0_26] : memref<16x128xbf16, #tpu.memory_space<vmem>>, vector<16x128xbf16>
    tpu.vector_store %arg9[%c0_25, %c0_26], %47 {strides = array<i32>} : memref<16x128xbf16, #tpu.memory_space<vmem>>, vector<16x128xbf16>,
    return
  }
  func.func @transform_0(%arg0: i32) -> (i32, i32) {
    %c0_i32 = arith.constant 0 : i32
    %c0_i32_0 = arith.constant 0 : i32
    return %arg0, %c0_i32 : i32, i32
  }
  func.func @transform_1(%arg0: i32) -> (i32, i32) {
    %c0_i32 = arith.constant 0 : i32
    %c0_i32_0 = arith.constant 0 : i32
    %c0_i32_1 = arith.constant 0 : i32
    return %c0_i32, %c0_i32_0 : i32, i32
  }
  func.func @transform_2(%arg0: i32) -> (i32, i32) {
    %c0_i32 = arith.constant 0 : i32
    %c0_i32_0 = arith.constant 0 : i32
    %c0_i32_1 = arith.constant 0 : i32
    return %c0_i32, %c0_i32_0 : i32, i32
  }
  func.func @transform_3(%arg0: i32) -> (i32, i32) {
    %c0_i32 = arith.constant 0 : i32
    %c0_i32_0 = arith.constant 0 : i32
    %c0_i32_1 = arith.constant 0 : i32
    return %c0_i32, %c0_i32_0 : i32, i32
  }
  func.func @transform_4(%arg0: i32) -> (i32, i32) {
    %c0_i32 = arith.constant 0 : i32
    %c0_i32_0 = arith.constant 0 : i32
    %c0_i32_1 = arith.constant 0 : i32
    return %c0_i32, %c0_i32_0 : i32, i32
  }
  func.func @transform_5(%arg0: i32) -> (i32, i32) {
    %c0_i32 = arith.constant 0 : i32
    %c0_i32_0 = arith.constant 0 : i32
    return %arg0, %c0_i32 : i32, i32
  }
  func.func @transform_6(%arg0: i32) -> (i32, i32) {
    %c0_i32 = arith.constant 0 : i32
    %c0_i32_0 = arith.constant 0 : i32
    %c0_i32_1 = arith.constant 0 : i32
    return %c0_i32, %c0_i32_0 : i32, i32
  }
  func.func @transform_7(%arg0: i32) -> (i32, i32) {
    %c0_i32 = arith.constant 0 : i32
    %c0_i32_0 = arith.constant 0 : i32
    %c0_i32_1 = arith.constant 0 : i32
    return %c0_i32, %c0_i32_0 : i32, i32
  }
  func.func @transform_8(%arg0: i32) -> (i32, i32) {
    %c0_i32 = arith.constant 0 : i32
    %c0_i32_0 = arith.constant 0 : i32
    return %arg0, %c0_i32 : i32, i32
  }
}

module attributes {stable_mosaic.version = 11 : i64} {
  func.func @_linear_kernel(%arg0: i32, %arg1: i32, %arg2: i32, %arg3: memref<16x128xbf16, #tpu.memory_space<vmem>>, %arg4: memref<128x128xbf16, #tpu.memory_space<vmem>>, %arg5: memref<1x128xf32, #tpu.memory_space<vmem>>, %arg6: memref<16x128xbf16, #tpu.memory_space<vmem>>, %arg7: memref<16x128xf32, #tpu.memory_space<vmem>>) attributes {dimension_semantics = [#tpu.dimension_semantics<parallel>, #tpu.dimension_semantics<parallel>, #tpu.dimension_semantics<arbitrary>], iteration_bounds = array<i64: 1, 3, 1>, scalar_prefetch = 0 : i64, scratch_operands = 1 : i64, tpu.core_type = #tpu.core_type<tc>, window_params = [{transform_indices = @transform_0, window_bounds = array<i64: 16, 128>}, {transform_indices = @transform_1, window_bounds = array<i64: 128, 128>}, {transform_indices = @transform_2, window_bounds = array<i64: 1, 128>}, {transform_indices = @transform_3, window_bounds = array<i64: 16, 128>}]} {
    %c0_i32 = arith.constant 0 : i32
    %0 = arith.cmpi eq, %arg2, %c0_i32 : i32
    %1 = arith.extui %0 : i1 to i32
    %c0_i32_0 = arith.constant 0 : i32
    %2 = arith.cmpi ne, %1, %c0_i32_0 : i32
    scf.if %2 {
      %cst_10 = arith.constant 0.000000e+00 : f32
      %12 = vector.broadcast %cst_10 : f32 to vector<16x128xf32>
      %c0_11 = arith.constant 0 : index
      %c0_12 = arith.constant 0 : index
      %13 = vector.load %arg7[%c0_11, %c0_12] : memref<16x128xf32, #tpu.memory_space<vmem>>, vector<16x128xf32>
      tpu.vector_store %arg7[%c0_11, %c0_12], %12 {strides = array<i32>} : memref<16x128xf32, #tpu.memory_space<vmem>>, vector<16x128xf32>,
    } else {
    }
    %c0 = arith.constant 0 : index
    %c0_1 = arith.constant 0 : index
    %3 = vector.load %arg7[%c0, %c0_1] : memref<16x128xf32, #tpu.memory_space<vmem>>, vector<16x128xf32>
    %c0_2 = arith.constant 0 : index
    %c0_3 = arith.constant 0 : index
    %4 = vector.load %arg3[%c0_2, %c0_3] : memref<16x128xbf16, #tpu.memory_space<vmem>>, vector<16x128xbf16>
    %c0_4 = arith.constant 0 : index
    %c0_5 = arith.constant 0 : index
    %5 = vector.load %arg4[%c0_4, %c0_5] : memref<128x128xbf16, #tpu.memory_space<vmem>>, vector<128x128xbf16>
    %cst = arith.constant dense<0.000000e+00> : vector<16x128xf32>
    %6 = tpu.matmul %4, %5, %cst {dimension_numbers = #tpu.dot_dimension_numbers<[1], [0], [0], [1], [0, 0, 1, 1], [], []>} : vector<16x128xbf16>, vector<128x128xbf16>, vector<16x128xf32> -> vector<16x128xf32>
    %7 = arith.addf %3, %6 : vector<16x128xf32>
    %c0_6 = arith.constant 0 : index
    %c0_7 = arith.constant 0 : index
    %8 = vector.load %arg7[%c0_6, %c0_7] : memref<16x128xf32, #tpu.memory_space<vmem>>, vector<16x128xf32>
    tpu.vector_store %arg7[%c0_6, %c0_7], %7 {strides = array<i32>} : memref<16x128xf32, #tpu.memory_space<vmem>>, vector<16x128xf32>,
    %c0_i32_8 = arith.constant 0 : i32
    %9 = arith.cmpi eq, %arg2, %c0_i32_8 : i32
    %10 = arith.extui %9 : i1 to i32
    %c0_i32_9 = arith.constant 0 : i32
    %11 = arith.cmpi ne, %10, %c0_i32_9 : i32
    scf.if %11 {
      %c0_10 = arith.constant 0 : index
      %c0_11 = arith.constant 0 : index
      %12 = vector.load %arg7[%c0_10, %c0_11] : memref<16x128xf32, #tpu.memory_space<vmem>>, vector<16x128xf32>
      %c0_12 = arith.constant 0 : index
      %c0_13 = arith.constant 0 : index
      %13 = vector.load %arg5[%c0_12, %c0_13] : memref<1x128xf32, #tpu.memory_space<vmem>>, vector<1x128xf32>
      %14 = vector.broadcast %13 : vector<1x128xf32> to vector<16x128xf32>
      %15 = arith.addf %12, %14 : vector<16x128xf32>
      %16 = arith.truncf %15 : vector<16x128xf32> to vector<16x128xbf16>
      %c0_14 = arith.constant 0 : index
      %c0_15 = arith.constant 0 : index
      %17 = vector.load %arg6[%c0_14, %c0_15] : memref<16x128xbf16, #tpu.memory_space<vmem>>, vector<16x128xbf16>
      tpu.vector_store %arg6[%c0_14, %c0_15], %16 {strides = array<i32>} : memref<16x128xbf16, #tpu.memory_space<vmem>>, vector<16x128xbf16>,
    } else {
    }
    return
  }
  func.func @transform_0(%arg0: i32, %arg1: i32, %arg2: i32) -> (i32, i32) {
    %c0_i32 = arith.constant 0 : i32
    return %arg0, %arg2 : i32, i32
  }
  func.func @transform_1(%arg0: i32, %arg1: i32, %arg2: i32) -> (i32, i32) {
    %c0_i32 = arith.constant 0 : i32
    return %arg2, %arg1 : i32, i32
  }
  func.func @transform_2(%arg0: i32, %arg1: i32, %arg2: i32) -> (i32, i32) {
    %c0_i32 = arith.constant 0 : i32
    %c0_i32_0 = arith.constant 0 : i32
    return %c0_i32, %arg1 : i32, i32
  }
  func.func @transform_3(%arg0: i32, %arg1: i32, %arg2: i32) -> (i32, i32) {
    %c0_i32 = arith.constant 0 : i32
    return %arg0, %arg1 : i32, i32
  }
}

module attributes {stable_mosaic.version = 11 : i64} {
  func.func @_mha_kernel(%arg0: i32, %arg1: memref<16x128xbf16, #tpu.memory_space<vmem>>, %arg2: memref<16x384xbf16, #tpu.memory_space<vmem>>, %arg3: memref<128x128xbf16, #tpu.memory_space<vmem>>, %arg4: memref<1x128xf32, #tpu.memory_space<vmem>>, %arg5: memref<16x128xbf16, #tpu.memory_space<vmem>>, %arg6: memref<1x128xf32, #tpu.memory_space<vmem>>, %arg7: memref<1x128xf32, #tpu.memory_space<vmem>>, %arg8: memref<16x128xbf16, #tpu.memory_space<vmem>>, %arg9: memref<16x128xbf16, #tpu.memory_space<vmem>>) attributes {dimension_semantics = [#tpu.dimension_semantics<parallel>], iteration_bounds = array<i64: 1>, scalar_prefetch = 0 : i64, scratch_operands = 1 : i64, tpu.core_type = #tpu.core_type<tc>, window_params = [{transform_indices = @transform_0, window_bounds = array<i64: 16, 128>}, {pipeline_mode = #tpu.pipeline_mode<synchronous>, transform_indices = @transform_1, window_bounds = array<i64: 16, 384>}, {pipeline_mode = #tpu.pipeline_mode<synchronous>, transform_indices = @transform_2, window_bounds = array<i64: 128, 128>}, {pipeline_mode = #tpu.pipeline_mode<synchronous>, transform_indices = @transform_3, window_bounds = array<i64: 1, 128>}, {transform_indices = @transform_4, window_bounds = array<i64: 16, 128>}, {pipeline_mode = #tpu.pipeline_mode<synchronous>, transform_indices = @transform_5, window_bounds = array<i64: 1, 128>}, {pipeline_mode = #tpu.pipeline_mode<synchronous>, transform_indices = @transform_6, window_bounds = array<i64: 1, 128>}, {transform_indices = @transform_7, window_bounds = array<i64: 16, 128>}]} {
    %c0 = arith.constant 0 : index
    %c0_0 = arith.constant 0 : index
    %0 = vector.load %arg1[%c0, %c0_0] : memref<16x128xbf16, #tpu.memory_space<vmem>>, vector<16x32xbf16>
    %1 = arith.extf %0 : vector<16x32xbf16> to vector<16x32xf32>
    %cst = arith.constant 0.176776692 : f32
    %2 = vector.broadcast %cst : f32 to vector<16x32xf32>
    %3 = arith.mulf %1, %2 : vector<16x32xf32>
    %4 = arith.truncf %3 : vector<16x32xf32> to vector<16x32xbf16>
    %c0_1 = arith.constant 0 : index
    %c128 = arith.constant 128 : index
    %5 = vector.load %arg2[%c0_1, %c128] : memref<16x384xbf16, #tpu.memory_space<vmem>>, vector<16x32xbf16>
    %c0_2 = arith.constant 0 : index
    %c256 = arith.constant 256 : index
    %6 = vector.load %arg2[%c0_2, %c256] : memref<16x384xbf16, #tpu.memory_space<vmem>>, vector<16x32xbf16>
    %cst_3 = arith.constant dense<0.000000e+00> : vector<16x16xf32>
    %7 = tpu.matmul %4, %5, %cst_3 {dimension_numbers = #tpu.dot_dimension_numbers<[1], [1], [0], [0], [0, 0, 1, 0], [], []>} : vector<16x32xbf16>, vector<16x32xbf16>, vector<16x16xf32> -> vector<16x16xf32>
    %cst_4 = arith.constant dense<0xFF800000> : vector<16xf32>
    %8 = vector.multi_reduction <maximumf>, %7, %cst_4 [1] : vector<16x16xf32> to vector<16xf32>
    %9 = vector.shape_cast %8 : vector<16xf32> to vector<16x1xf32>
    %10 = vector.broadcast %9 : vector<16x1xf32> to vector<16x16xf32>
    %11 = arith.subf %7, %10 : vector<16x16xf32>
    %12 = math.exp %11 : vector<16x16xf32>
    %cst_5 = arith.constant dense<0.000000e+00> : vector<16xf32>
    %13 = vector.multi_reduction <add>, %12, %cst_5 [1] : vector<16x16xf32> to vector<16xf32>
    %14 = vector.shape_cast %13 : vector<16xf32> to vector<16x1xf32>
    %15 = tpu.reciprocal %14 {approx = true} : vector<16x1xf32> -> vector<16x1xf32>
    %16 = vector.broadcast %15 : vector<16x1xf32> to vector<16x16xf32>
    %17 = arith.mulf %12, %16 : vector<16x16xf32>
    %18 = arith.truncf %17 : vector<16x16xf32> to vector<16x16xbf16>
    %cst_6 = arith.constant dense<0.000000e+00> : vector<16x32xf32>
    %19 = tpu.matmul %18, %6, %cst_6 {dimension_numbers = #tpu.dot_dimension_numbers<[1], [0], [0], [1], [0, 0, 1, 1], [], []>} : vector<16x16xbf16>, vector<16x32xbf16>, vector<16x32xf32> -> vector<16x32xf32>
    %20 = arith.truncf %19 : vector<16x32xf32> to vector<16x32xbf16>
    %c0_7 = arith.constant 0 : index
    %c0_8 = arith.constant 0 : index
    %21 = vector.load %arg9[%c0_7, %c0_8] : memref<16x128xbf16, #tpu.memory_space<vmem>>, vector<16x32xbf16>
    tpu.vector_store %arg9[%c0_7, %c0_8], %20 {strides = array<i32>} : memref<16x128xbf16, #tpu.memory_space<vmem>>, vector<16x32xbf16>,
    %c0_9 = arith.constant 0 : index
    %c32 = arith.constant 32 : index
    %22 = vector.load %arg1[%c0_9, %c32] : memref<16x128xbf16, #tpu.memory_space<vmem>>, vector<16x32xbf16>
    %23 = arith.extf %22 : vector<16x32xbf16> to vector<16x32xf32>
    %cst_10 = arith.constant 0.176776692 : f32
    %24 = vector.broadcast %cst_10 : f32 to vector<16x32xf32>
    %25 = arith.mulf %23, %24 : vector<16x32xf32>
    %26 = arith.truncf %25 : vector<16x32xf32> to vector<16x32xbf16>
    %c0_11 = arith.constant 0 : index
    %c160 = arith.constant 160 : index
    %27 = vector.load %arg2[%c0_11, %c160] : memref<16x384xbf16, #tpu.memory_space<vmem>>, vector<16x32xbf16>
    %c0_12 = arith.constant 0 : index
    %c288 = arith.constant 288 : index
    %28 = vector.load %arg2[%c0_12, %c288] : memref<16x384xbf16, #tpu.memory_space<vmem>>, vector<16x32xbf16>
    %cst_13 = arith.constant dense<0.000000e+00> : vector<16x16xf32>
    %29 = tpu.matmul %26, %27, %cst_13 {dimension_numbers = #tpu.dot_dimension_numbers<[1], [1], [0], [0], [0, 0, 1, 0], [], []>} : vector<16x32xbf16>, vector<16x32xbf16>, vector<16x16xf32> -> vector<16x16xf32>
    %cst_14 = arith.constant dense<0xFF800000> : vector<16xf32>
    %30 = vector.multi_reduction <maximumf>, %29, %cst_14 [1] : vector<16x16xf32> to vector<16xf32>
    %31 = vector.shape_cast %30 : vector<16xf32> to vector<16x1xf32>
    %32 = vector.broadcast %31 : vector<16x1xf32> to vector<16x16xf32>
    %33 = arith.subf %29, %32 : vector<16x16xf32>
    %34 = math.exp %33 : vector<16x16xf32>
    %cst_15 = arith.constant dense<0.000000e+00> : vector<16xf32>
    %35 = vector.multi_reduction <add>, %34, %cst_15 [1] : vector<16x16xf32> to vector<16xf32>
    %36 = vector.shape_cast %35 : vector<16xf32> to vector<16x1xf32>
    %37 = tpu.reciprocal %36 {approx = true} : vector<16x1xf32> -> vector<16x1xf32>
    %38 = vector.broadcast %37 : vector<16x1xf32> to vector<16x16xf32>
    %39 = arith.mulf %34, %38 : vector<16x16xf32>
    %40 = arith.truncf %39 : vector<16x16xf32> to vector<16x16xbf16>
    %cst_16 = arith.constant dense<0.000000e+00> : vector<16x32xf32>
    %41 = tpu.matmul %40, %28, %cst_16 {dimension_numbers = #tpu.dot_dimension_numbers<[1], [0], [0], [1], [0, 0, 1, 1], [], []>} : vector<16x16xbf16>, vector<16x32xbf16>, vector<16x32xf32> -> vector<16x32xf32>
    %42 = arith.truncf %41 : vector<16x32xf32> to vector<16x32xbf16>
    %c0_17 = arith.constant 0 : index
    %c32_18 = arith.constant 32 : index
    %43 = vector.load %arg9[%c0_17, %c32_18] : memref<16x128xbf16, #tpu.memory_space<vmem>>, vector<16x32xbf16>
    tpu.vector_store %arg9[%c0_17, %c32_18], %42 {strides = array<i32>} : memref<16x128xbf16, #tpu.memory_space<vmem>>, vector<16x32xbf16>,
    %c0_19 = arith.constant 0 : index
    %c64 = arith.constant 64 : index
    %44 = vector.load %arg1[%c0_19, %c64] : memref<16x128xbf16, #tpu.memory_space<vmem>>, vector<16x32xbf16>
    %45 = arith.extf %44 : vector<16x32xbf16> to vector<16x32xf32>
    %cst_20 = arith.constant 0.176776692 : f32
    %46 = vector.broadcast %cst_20 : f32 to vector<16x32xf32>
    %47 = arith.mulf %45, %46 : vector<16x32xf32>
    %48 = arith.truncf %47 : vector<16x32xf32> to vector<16x32xbf16>
    %c0_21 = arith.constant 0 : index
    %c192 = arith.constant 192 : index
    %49 = vector.load %arg2[%c0_21, %c192] : memref<16x384xbf16, #tpu.memory_space<vmem>>, vector<16x32xbf16>
    %c0_22 = arith.constant 0 : index
    %c320 = arith.constant 320 : index
    %50 = vector.load %arg2[%c0_22, %c320] : memref<16x384xbf16, #tpu.memory_space<vmem>>, vector<16x32xbf16>
    %cst_23 = arith.constant dense<0.000000e+00> : vector<16x16xf32>
    %51 = tpu.matmul %48, %49, %cst_23 {dimension_numbers = #tpu.dot_dimension_numbers<[1], [1], [0], [0], [0, 0, 1, 0], [], []>} : vector<16x32xbf16>, vector<16x32xbf16>, vector<16x16xf32> -> vector<16x16xf32>
    %cst_24 = arith.constant dense<0xFF800000> : vector<16xf32>
    %52 = vector.multi_reduction <maximumf>, %51, %cst_24 [1] : vector<16x16xf32> to vector<16xf32>
    %53 = vector.shape_cast %52 : vector<16xf32> to vector<16x1xf32>
    %54 = vector.broadcast %53 : vector<16x1xf32> to vector<16x16xf32>
    %55 = arith.subf %51, %54 : vector<16x16xf32>
    %56 = math.exp %55 : vector<16x16xf32>
    %cst_25 = arith.constant dense<0.000000e+00> : vector<16xf32>
    %57 = vector.multi_reduction <add>, %56, %cst_25 [1] : vector<16x16xf32> to vector<16xf32>
    %58 = vector.shape_cast %57 : vector<16xf32> to vector<16x1xf32>
    %59 = tpu.reciprocal %58 {approx = true} : vector<16x1xf32> -> vector<16x1xf32>
    %60 = vector.broadcast %59 : vector<16x1xf32> to vector<16x16xf32>
    %61 = arith.mulf %56, %60 : vector<16x16xf32>
    %62 = arith.truncf %61 : vector<16x16xf32> to vector<16x16xbf16>
    %cst_26 = arith.constant dense<0.000000e+00> : vector<16x32xf32>
    %63 = tpu.matmul %62, %50, %cst_26 {dimension_numbers = #tpu.dot_dimension_numbers<[1], [0], [0], [1], [0, 0, 1, 1], [], []>} : vector<16x16xbf16>, vector<16x32xbf16>, vector<16x32xf32> -> vector<16x32xf32>
    %64 = arith.truncf %63 : vector<16x32xf32> to vector<16x32xbf16>
    %c0_27 = arith.constant 0 : index
    %c64_28 = arith.constant 64 : index
    %65 = vector.load %arg9[%c0_27, %c64_28] : memref<16x128xbf16, #tpu.memory_space<vmem>>, vector<16x32xbf16>
    tpu.vector_store %arg9[%c0_27, %c64_28], %64 {strides = array<i32>} : memref<16x128xbf16, #tpu.memory_space<vmem>>, vector<16x32xbf16>,
    %c0_29 = arith.constant 0 : index
    %c96 = arith.constant 96 : index
    %66 = vector.load %arg1[%c0_29, %c96] : memref<16x128xbf16, #tpu.memory_space<vmem>>, vector<16x32xbf16>
    %67 = arith.extf %66 : vector<16x32xbf16> to vector<16x32xf32>
    %cst_30 = arith.constant 0.176776692 : f32
    %68 = vector.broadcast %cst_30 : f32 to vector<16x32xf32>
    %69 = arith.mulf %67, %68 : vector<16x32xf32>
    %70 = arith.truncf %69 : vector<16x32xf32> to vector<16x32xbf16>
    %c0_31 = arith.constant 0 : index
    %c224 = arith.constant 224 : index
    %71 = vector.load %arg2[%c0_31, %c224] : memref<16x384xbf16, #tpu.memory_space<vmem>>, vector<16x32xbf16>
    %c0_32 = arith.constant 0 : index
    %c352 = arith.constant 352 : index
    %72 = vector.load %arg2[%c0_32, %c352] : memref<16x384xbf16, #tpu.memory_space<vmem>>, vector<16x32xbf16>
    %cst_33 = arith.constant dense<0.000000e+00> : vector<16x16xf32>
    %73 = tpu.matmul %70, %71, %cst_33 {dimension_numbers = #tpu.dot_dimension_numbers<[1], [1], [0], [0], [0, 0, 1, 0], [], []>} : vector<16x32xbf16>, vector<16x32xbf16>, vector<16x16xf32> -> vector<16x16xf32>
    %cst_34 = arith.constant dense<0xFF800000> : vector<16xf32>
    %74 = vector.multi_reduction <maximumf>, %73, %cst_34 [1] : vector<16x16xf32> to vector<16xf32>
    %75 = vector.shape_cast %74 : vector<16xf32> to vector<16x1xf32>
    %76 = vector.broadcast %75 : vector<16x1xf32> to vector<16x16xf32>
    %77 = arith.subf %73, %76 : vector<16x16xf32>
    %78 = math.exp %77 : vector<16x16xf32>
    %cst_35 = arith.constant dense<0.000000e+00> : vector<16xf32>
    %79 = vector.multi_reduction <add>, %78, %cst_35 [1] : vector<16x16xf32> to vector<16xf32>
    %80 = vector.shape_cast %79 : vector<16xf32> to vector<16x1xf32>
    %81 = tpu.reciprocal %80 {approx = true} : vector<16x1xf32> -> vector<16x1xf32>
    %82 = vector.broadcast %81 : vector<16x1xf32> to vector<16x16xf32>
    %83 = arith.mulf %78, %82 : vector<16x16xf32>
    %84 = arith.truncf %83 : vector<16x16xf32> to vector<16x16xbf16>
    %cst_36 = arith.constant dense<0.000000e+00> : vector<16x32xf32>
    %85 = tpu.matmul %84, %72, %cst_36 {dimension_numbers = #tpu.dot_dimension_numbers<[1], [0], [0], [1], [0, 0, 1, 1], [], []>} : vector<16x16xbf16>, vector<16x32xbf16>, vector<16x32xf32> -> vector<16x32xf32>
    %86 = arith.truncf %85 : vector<16x32xf32> to vector<16x32xbf16>
    %c0_37 = arith.constant 0 : index
    %c96_38 = arith.constant 96 : index
    %87 = vector.load %arg9[%c0_37, %c96_38] : memref<16x128xbf16, #tpu.memory_space<vmem>>, vector<16x32xbf16>
    tpu.vector_store %arg9[%c0_37, %c96_38], %86 {strides = array<i32>} : memref<16x128xbf16, #tpu.memory_space<vmem>>, vector<16x32xbf16>,
    %c0_39 = arith.constant 0 : index
    %c0_40 = arith.constant 0 : index
    %88 = vector.load %arg9[%c0_39, %c0_40] : memref<16x128xbf16, #tpu.memory_space<vmem>>, vector<16x128xbf16>
    %c0_41 = arith.constant 0 : index
    %c0_42 = arith.constant 0 : index
    %89 = vector.load %arg3[%c0_41, %c0_42] : memref<128x128xbf16, #tpu.memory_space<vmem>>, vector<128x128xbf16>
    %cst_43 = arith.constant dense<0.000000e+00> : vector<16x128xf32>
    %90 = tpu.matmul %88, %89, %cst_43 {dimension_numbers = #tpu.dot_dimension_numbers<[1], [0], [0], [1], [0, 0, 1, 1], [], []>} : vector<16x128xbf16>, vector<128x128xbf16>, vector<16x128xf32> -> vector<16x128xf32>
    %c0_44 = arith.constant 0 : index
    %c0_45 = arith.constant 0 : index
    %91 = vector.load %arg4[%c0_44, %c0_45] : memref<1x128xf32, #tpu.memory_space<vmem>>, vector<1x128xf32>
    %92 = vector.broadcast %91 : vector<1x128xf32> to vector<16x128xf32>
    %93 = arith.addf %90, %92 : vector<16x128xf32>
    %c0_46 = arith.constant 0 : index
    %c0_47 = arith.constant 0 : index
    %94 = vector.load %arg5[%c0_46, %c0_47] : memref<16x128xbf16, #tpu.memory_space<vmem>>, vector<16x128xbf16>
    %95 = arith.extf %94 : vector<16x128xbf16> to vector<16x128xf32>
    %96 = arith.addf %93, %95 : vector<16x128xf32>
    %c0_48 = arith.constant 0 : index
    %c0_49 = arith.constant 0 : index
    %97 = vector.load %arg6[%c0_48, %c0_49] : memref<1x128xf32, #tpu.memory_space<vmem>>, vector<1x128xf32>
    %c0_50 = arith.constant 0 : index
    %c0_51 = arith.constant 0 : index
    %98 = vector.load %arg7[%c0_50, %c0_51] : memref<1x128xf32, #tpu.memory_space<vmem>>, vector<1x128xf32>
    %cst_52 = arith.constant dense<0.000000e+00> : vector<16xf32>
    %99 = vector.multi_reduction <add>, %96, %cst_52 [1] : vector<16x128xf32> to vector<16xf32>
    %100 = vector.shape_cast %99 : vector<16xf32> to vector<16x1xf32>
    %cst_53 = arith.constant 1.280000e+02 : f32
    %101 = vector.broadcast %cst_53 : f32 to vector<16x1xf32>
    %102 = arith.divf %100, %101 : vector<16x1xf32>
    %103 = vector.broadcast %102 : vector<16x1xf32> to vector<16x128xf32>
    %104 = arith.subf %96, %103 : vector<16x128xf32>
    %105 = arith.mulf %104, %104 : vector<16x128xf32>
    %cst_54 = arith.constant dense<0.000000e+00> : vector<16xf32>
    %106 = vector.multi_reduction <add>, %105, %cst_54 [1] : vector<16x128xf32> to vector<16xf32>
    %107 = vector.shape_cast %106 : vector<16xf32> to vector<16x1xf32>
    %cst_55 = arith.constant 1.280000e+02 : f32
    %108 = vector.broadcast %cst_55 : f32 to vector<16x1xf32>
    %109 = arith.divf %107, %108 : vector<16x1xf32>
    %cst_56 = arith.constant 9.99999974E-6 : f32
    %110 = vector.broadcast %cst_56 : f32 to vector<16x1xf32>
    %111 = arith.addf %109, %110 : vector<16x1xf32>
    %112 = math.rsqrt %111 : vector<16x1xf32>
    %113 = vector.broadcast %112 : vector<16x1xf32> to vector<16x128xf32>
    %114 = arith.mulf %104, %113 : vector<16x128xf32>
    %115 = vector.broadcast %97 : vector<1x128xf32> to vector<16x128xf32>
    %116 = arith.mulf %114, %115 : vector<16x128xf32>
    %117 = vector.broadcast %98 : vector<1x128xf32> to vector<16x128xf32>
    %118 = arith.addf %116, %117 : vector<16x128xf32>
    %119 = arith.truncf %118 : vector<16x128xf32> to vector<16x128xbf16>
    %c0_57 = arith.constant 0 : index
    %c0_58 = arith.constant 0 : index
    %120 = vector.load %arg8[%c0_57, %c0_58] : memref<16x128xbf16, #tpu.memory_space<vmem>>, vector<16x128xbf16>
    tpu.vector_store %arg8[%c0_57, %c0_58], %119 {strides = array<i32>} : memref<16x128xbf16, #tpu.memory_space<vmem>>, vector<16x128xbf16>,
    return
  }
  func.func @transform_0(%arg0: i32) -> (i32, i32) {
    %c0_i32 = arith.constant 0 : i32
    %c0_i32_0 = arith.constant 0 : i32
    return %arg0, %c0_i32 : i32, i32
  }
  func.func @transform_1(%arg0: i32) -> (i32, i32) {
    %c0_i32 = arith.constant 0 : i32
    %c0_i32_0 = arith.constant 0 : i32
    %c0_i32_1 = arith.constant 0 : i32
    return %c0_i32, %c0_i32_0 : i32, i32
  }
  func.func @transform_2(%arg0: i32) -> (i32, i32) {
    %c0_i32 = arith.constant 0 : i32
    %c0_i32_0 = arith.constant 0 : i32
    %c0_i32_1 = arith.constant 0 : i32
    return %c0_i32, %c0_i32_0 : i32, i32
  }
  func.func @transform_3(%arg0: i32) -> (i32, i32) {
    %c0_i32 = arith.constant 0 : i32
    %c0_i32_0 = arith.constant 0 : i32
    %c0_i32_1 = arith.constant 0 : i32
    return %c0_i32, %c0_i32_0 : i32, i32
  }
  func.func @transform_4(%arg0: i32) -> (i32, i32) {
    %c0_i32 = arith.constant 0 : i32
    %c0_i32_0 = arith.constant 0 : i32
    return %arg0, %c0_i32 : i32, i32
  }
  func.func @transform_5(%arg0: i32) -> (i32, i32) {
    %c0_i32 = arith.constant 0 : i32
    %c0_i32_0 = arith.constant 0 : i32
    %c0_i32_1 = arith.constant 0 : i32
    return %c0_i32, %c0_i32_0 : i32, i32
  }
  func.func @transform_6(%arg0: i32) -> (i32, i32) {
    %c0_i32 = arith.constant 0 : i32
    %c0_i32_0 = arith.constant 0 : i32
    %c0_i32_1 = arith.constant 0 : i32
    return %c0_i32, %c0_i32_0 : i32, i32
  }
  func.func @transform_7(%arg0: i32) -> (i32, i32) {
    %c0_i32 = arith.constant 0 : i32
    %c0_i32_0 = arith.constant 0 : i32
    return %arg0, %c0_i32 : i32, i32
  }
}

module attributes {stable_mosaic.version = 11 : i64} {
  func.func @_linear_kernel(%arg0: i32, %arg1: i32, %arg2: i32, %arg3: memref<16x128xbf16, #tpu.memory_space<vmem>>, %arg4: memref<128x128xbf16, #tpu.memory_space<vmem>>, %arg5: memref<1x128xf32, #tpu.memory_space<vmem>>, %arg6: memref<16x128xbf16, #tpu.memory_space<vmem>>, %arg7: memref<16x128xf32, #tpu.memory_space<vmem>>) attributes {dimension_semantics = [#tpu.dimension_semantics<parallel>, #tpu.dimension_semantics<parallel>, #tpu.dimension_semantics<arbitrary>], iteration_bounds = array<i64: 1, 2, 1>, scalar_prefetch = 0 : i64, scratch_operands = 1 : i64, tpu.core_type = #tpu.core_type<tc>, window_params = [{transform_indices = @transform_0, window_bounds = array<i64: 16, 128>}, {transform_indices = @transform_1, window_bounds = array<i64: 128, 128>}, {transform_indices = @transform_2, window_bounds = array<i64: 1, 128>}, {transform_indices = @transform_3, window_bounds = array<i64: 16, 128>}]} {
    %c0_i32 = arith.constant 0 : i32
    %0 = arith.cmpi eq, %arg2, %c0_i32 : i32
    %1 = arith.extui %0 : i1 to i32
    %c0_i32_0 = arith.constant 0 : i32
    %2 = arith.cmpi ne, %1, %c0_i32_0 : i32
    scf.if %2 {
      %cst_10 = arith.constant 0.000000e+00 : f32
      %12 = vector.broadcast %cst_10 : f32 to vector<16x128xf32>
      %c0_11 = arith.constant 0 : index
      %c0_12 = arith.constant 0 : index
      %13 = vector.load %arg7[%c0_11, %c0_12] : memref<16x128xf32, #tpu.memory_space<vmem>>, vector<16x128xf32>
      tpu.vector_store %arg7[%c0_11, %c0_12], %12 {strides = array<i32>} : memref<16x128xf32, #tpu.memory_space<vmem>>, vector<16x128xf32>,
    } else {
    }
    %c0 = arith.constant 0 : index
    %c0_1 = arith.constant 0 : index
    %3 = vector.load %arg7[%c0, %c0_1] : memref<16x128xf32, #tpu.memory_space<vmem>>, vector<16x128xf32>
    %c0_2 = arith.constant 0 : index
    %c0_3 = arith.constant 0 : index
    %4 = vector.load %arg3[%c0_2, %c0_3] : memref<16x128xbf16, #tpu.memory_space<vmem>>, vector<16x128xbf16>
    %c0_4 = arith.constant 0 : index
    %c0_5 = arith.constant 0 : index
    %5 = vector.load %arg4[%c0_4, %c0_5] : memref<128x128xbf16, #tpu.memory_space<vmem>>, vector<128x128xbf16>
    %cst = arith.constant dense<0.000000e+00> : vector<16x128xf32>
    %6 = tpu.matmul %4, %5, %cst {dimension_numbers = #tpu.dot_dimension_numbers<[1], [0], [0], [1], [0, 0, 1, 1], [], []>} : vector<16x128xbf16>, vector<128x128xbf16>, vector<16x128xf32> -> vector<16x128xf32>
    %7 = arith.addf %3, %6 : vector<16x128xf32>
    %c0_6 = arith.constant 0 : index
    %c0_7 = arith.constant 0 : index
    %8 = vector.load %arg7[%c0_6, %c0_7] : memref<16x128xf32, #tpu.memory_space<vmem>>, vector<16x128xf32>
    tpu.vector_store %arg7[%c0_6, %c0_7], %7 {strides = array<i32>} : memref<16x128xf32, #tpu.memory_space<vmem>>, vector<16x128xf32>,
    %c0_i32_8 = arith.constant 0 : i32
    %9 = arith.cmpi eq, %arg2, %c0_i32_8 : i32
    %10 = arith.extui %9 : i1 to i32
    %c0_i32_9 = arith.constant 0 : i32
    %11 = arith.cmpi ne, %10, %c0_i32_9 : i32
    scf.if %11 {
      %c0_10 = arith.constant 0 : index
      %c0_11 = arith.constant 0 : index
      %12 = vector.load %arg7[%c0_10, %c0_11] : memref<16x128xf32, #tpu.memory_space<vmem>>, vector<16x128xf32>
      %c0_12 = arith.constant 0 : index
      %c0_13 = arith.constant 0 : index
      %13 = vector.load %arg5[%c0_12, %c0_13] : memref<1x128xf32, #tpu.memory_space<vmem>>, vector<1x128xf32>
      %14 = vector.broadcast %13 : vector<1x128xf32> to vector<16x128xf32>
      %15 = arith.addf %12, %14 : vector<16x128xf32>
      %16 = arith.truncf %15 : vector<16x128xf32> to vector<16x128xbf16>
      %c0_14 = arith.constant 0 : index
      %c0_15 = arith.constant 0 : index
      %17 = vector.load %arg6[%c0_14, %c0_15] : memref<16x128xbf16, #tpu.memory_space<vmem>>, vector<16x128xbf16>
      tpu.vector_store %arg6[%c0_14, %c0_15], %16 {strides = array<i32>} : memref<16x128xbf16, #tpu.memory_space<vmem>>, vector<16x128xbf16>,
    } else {
    }
    return
  }
  func.func @transform_0(%arg0: i32, %arg1: i32, %arg2: i32) -> (i32, i32) {
    %c0_i32 = arith.constant 0 : i32
    return %arg0, %arg2 : i32, i32
  }
  func.func @transform_1(%arg0: i32, %arg1: i32, %arg2: i32) -> (i32, i32) {
    %c0_i32 = arith.constant 0 : i32
    return %arg2, %arg1 : i32, i32
  }
  func.func @transform_2(%arg0: i32, %arg1: i32, %arg2: i32) -> (i32, i32) {
    %c0_i32 = arith.constant 0 : i32
    %c0_i32_0 = arith.constant 0 : i32
    return %c0_i32, %arg1 : i32, i32
  }
  func.func @transform_3(%arg0: i32, %arg1: i32, %arg2: i32) -> (i32, i32) {
    %c0_i32 = arith.constant 0 : i32
    return %arg0, %arg1 : i32, i32
  }
}

module attributes {stable_mosaic.version = 11 : i64} {
  func.func @_ln_kernel(%arg0: i32, %arg1: memref<8x128xf32, #tpu.memory_space<vmem>>, %arg2: memref<1x128xf32, #tpu.memory_space<vmem>>, %arg3: memref<1x128xf32, #tpu.memory_space<vmem>>, %arg4: memref<8x128xbf16, #tpu.memory_space<vmem>>) attributes {dimension_semantics = [#tpu.dimension_semantics<parallel>], iteration_bounds = array<i64: 1>, scalar_prefetch = 0 : i64, scratch_operands = 0 : i64, tpu.core_type = #tpu.core_type<tc>, window_params = [{transform_indices = @transform_0, window_bounds = array<i64: 8, 128>}, {pipeline_mode = #tpu.pipeline_mode<synchronous>, transform_indices = @transform_1, window_bounds = array<i64: 1, 128>}, {pipeline_mode = #tpu.pipeline_mode<synchronous>, transform_indices = @transform_2, window_bounds = array<i64: 1, 128>}, {transform_indices = @transform_3, window_bounds = array<i64: 8, 128>}]} {
    %c0 = arith.constant 0 : index
    %c0_0 = arith.constant 0 : index
    %0 = vector.load %arg1[%c0, %c0_0] : memref<8x128xf32, #tpu.memory_space<vmem>>, vector<8x128xf32>
    %c0_1 = arith.constant 0 : index
    %c0_2 = arith.constant 0 : index
    %1 = vector.load %arg2[%c0_1, %c0_2] : memref<1x128xf32, #tpu.memory_space<vmem>>, vector<1x128xf32>
    %c0_3 = arith.constant 0 : index
    %c0_4 = arith.constant 0 : index
    %2 = vector.load %arg3[%c0_3, %c0_4] : memref<1x128xf32, #tpu.memory_space<vmem>>, vector<1x128xf32>
    %cst = arith.constant dense<0.000000e+00> : vector<8xf32>
    %3 = vector.multi_reduction <add>, %0, %cst [1] : vector<8x128xf32> to vector<8xf32>
    %4 = vector.shape_cast %3 : vector<8xf32> to vector<8x1xf32>
    %cst_5 = arith.constant 1.280000e+02 : f32
    %5 = vector.broadcast %cst_5 : f32 to vector<8x1xf32>
    %6 = arith.divf %4, %5 : vector<8x1xf32>
    %7 = vector.broadcast %6 : vector<8x1xf32> to vector<8x128xf32>
    %8 = arith.subf %0, %7 : vector<8x128xf32>
    %9 = arith.mulf %8, %8 : vector<8x128xf32>
    %cst_6 = arith.constant dense<0.000000e+00> : vector<8xf32>
    %10 = vector.multi_reduction <add>, %9, %cst_6 [1] : vector<8x128xf32> to vector<8xf32>
    %11 = vector.shape_cast %10 : vector<8xf32> to vector<8x1xf32>
    %cst_7 = arith.constant 1.280000e+02 : f32
    %12 = vector.broadcast %cst_7 : f32 to vector<8x1xf32>
    %13 = arith.divf %11, %12 : vector<8x1xf32>
    %cst_8 = arith.constant 9.99999974E-6 : f32
    %14 = vector.broadcast %cst_8 : f32 to vector<8x1xf32>
    %15 = arith.addf %13, %14 : vector<8x1xf32>
    %16 = math.rsqrt %15 : vector<8x1xf32>
    %17 = vector.broadcast %16 : vector<8x1xf32> to vector<8x128xf32>
    %18 = arith.mulf %8, %17 : vector<8x128xf32>
    %19 = vector.broadcast %1 : vector<1x128xf32> to vector<8x128xf32>
    %20 = arith.mulf %18, %19 : vector<8x128xf32>
    %21 = vector.broadcast %2 : vector<1x128xf32> to vector<8x128xf32>
    %22 = arith.addf %20, %21 : vector<8x128xf32>
    %23 = arith.truncf %22 : vector<8x128xf32> to vector<8x128xbf16>
    %c0_9 = arith.constant 0 : index
    %c0_10 = arith.constant 0 : index
    %24 = vector.load %arg4[%c0_9, %c0_10] : memref<8x128xbf16, #tpu.memory_space<vmem>>, vector<8x128xbf16>
    tpu.vector_store %arg4[%c0_9, %c0_10], %23 {strides = array<i32>} : memref<8x128xbf16, #tpu.memory_space<vmem>>, vector<8x128xbf16>,
    return
  }
  func.func @transform_0(%arg0: i32) -> (i32, i32) {
    %c0_i32 = arith.constant 0 : i32
    %c0_i32_0 = arith.constant 0 : i32
    return %arg0, %c0_i32 : i32, i32
  }
  func.func @transform_1(%arg0: i32) -> (i32, i32) {
    %c0_i32 = arith.constant 0 : i32
    %c0_i32_0 = arith.constant 0 : i32
    %c0_i32_1 = arith.constant 0 : i32
    return %c0_i32, %c0_i32_0 : i32, i32
  }
  func.func @transform_2(%arg0: i32) -> (i32, i32) {
    %c0_i32 = arith.constant 0 : i32
    %c0_i32_0 = arith.constant 0 : i32
    %c0_i32_1 = arith.constant 0 : i32
    return %c0_i32, %c0_i32_0 : i32, i32
  }
  func.func @transform_3(%arg0: i32) -> (i32, i32) {
    %c0_i32 = arith.constant 0 : i32
    %c0_i32_0 = arith.constant 0 : i32
    return %arg0, %c0_i32 : i32, i32
  }
}

module attributes {stable_mosaic.version = 11 : i64} {
  func.func @_mha_kernel(%arg0: i32, %arg1: memref<8x128xbf16, #tpu.memory_space<vmem>>, %arg2: memref<8x384xbf16, #tpu.memory_space<vmem>>, %arg3: memref<128x128xbf16, #tpu.memory_space<vmem>>, %arg4: memref<1x128xf32, #tpu.memory_space<vmem>>, %arg5: memref<8x128xbf16, #tpu.memory_space<vmem>>, %arg6: memref<1x128xf32, #tpu.memory_space<vmem>>, %arg7: memref<1x128xf32, #tpu.memory_space<vmem>>, %arg8: memref<8x128xbf16, #tpu.memory_space<vmem>>, %arg9: memref<8x128xbf16, #tpu.memory_space<vmem>>) attributes {dimension_semantics = [#tpu.dimension_semantics<parallel>], iteration_bounds = array<i64: 1>, scalar_prefetch = 0 : i64, scratch_operands = 1 : i64, tpu.core_type = #tpu.core_type<tc>, window_params = [{transform_indices = @transform_0, window_bounds = array<i64: 8, 128>}, {pipeline_mode = #tpu.pipeline_mode<synchronous>, transform_indices = @transform_1, window_bounds = array<i64: 8, 384>}, {pipeline_mode = #tpu.pipeline_mode<synchronous>, transform_indices = @transform_2, window_bounds = array<i64: 128, 128>}, {pipeline_mode = #tpu.pipeline_mode<synchronous>, transform_indices = @transform_3, window_bounds = array<i64: 1, 128>}, {transform_indices = @transform_4, window_bounds = array<i64: 8, 128>}, {pipeline_mode = #tpu.pipeline_mode<synchronous>, transform_indices = @transform_5, window_bounds = array<i64: 1, 128>}, {pipeline_mode = #tpu.pipeline_mode<synchronous>, transform_indices = @transform_6, window_bounds = array<i64: 1, 128>}, {transform_indices = @transform_7, window_bounds = array<i64: 8, 128>}]} {
    %c8_i32 = arith.constant 8 : i32
    %0 = arith.muli %arg0, %c8_i32 : i32
    %1 = tpu.iota {dimensions = array<i32: 0>} : vector<8x8xi32>
    %2 = vector.broadcast %0 : i32 to vector<8x8xi32>
    %3 = arith.addi %2, %1 : vector<8x8xi32>
    %4 = tpu.iota {dimensions = array<i32: 1>} : vector<8x8xi32>
    %5 = arith.cmpi sle, %4, %3 : vector<8x8xi32>
    %c0 = arith.constant 0 : index
    %c0_0 = arith.constant 0 : index
    %6 = vector.load %arg1[%c0, %c0_0] : memref<8x128xbf16, #tpu.memory_space<vmem>>, vector<8x32xbf16>
    %7 = arith.extf %6 : vector<8x32xbf16> to vector<8x32xf32>
    %cst = arith.constant 0.176776692 : f32
    %8 = vector.broadcast %cst : f32 to vector<8x32xf32>
    %9 = arith.mulf %7, %8 : vector<8x32xf32>
    %10 = arith.truncf %9 : vector<8x32xf32> to vector<8x32xbf16>
    %c0_1 = arith.constant 0 : index
    %c128 = arith.constant 128 : index
    %11 = vector.load %arg2[%c0_1, %c128] : memref<8x384xbf16, #tpu.memory_space<vmem>>, vector<8x32xbf16>
    %c0_2 = arith.constant 0 : index
    %c256 = arith.constant 256 : index
    %12 = vector.load %arg2[%c0_2, %c256] : memref<8x384xbf16, #tpu.memory_space<vmem>>, vector<8x32xbf16>
    %cst_3 = arith.constant dense<0.000000e+00> : vector<8x8xf32>
    %13 = tpu.matmul %10, %11, %cst_3 {dimension_numbers = #tpu.dot_dimension_numbers<[1], [1], [0], [0], [0, 0, 1, 0], [], []>} : vector<8x32xbf16>, vector<8x32xbf16>, vector<8x8xf32> -> vector<8x8xf32>
    %cst_4 = arith.constant -1.000000e+30 : f32
    %14 = vector.broadcast %cst_4 : f32 to vector<8x8xf32>
    %15 = arith.select %5, %13, %14 : vector<8x8xi1>, vector<8x8xf32>
    %cst_5 = arith.constant dense<0xFF800000> : vector<8xf32>
    %16 = vector.multi_reduction <maximumf>, %15, %cst_5 [1] : vector<8x8xf32> to vector<8xf32>
    %17 = vector.shape_cast %16 : vector<8xf32> to vector<8x1xf32>
    %18 = vector.broadcast %17 : vector<8x1xf32> to vector<8x8xf32>
    %19 = arith.subf %15, %18 : vector<8x8xf32>
    %20 = math.exp %19 : vector<8x8xf32>
    %cst_6 = arith.constant dense<0.000000e+00> : vector<8xf32>
    %21 = vector.multi_reduction <add>, %20, %cst_6 [1] : vector<8x8xf32> to vector<8xf32>
    %22 = vector.shape_cast %21 : vector<8xf32> to vector<8x1xf32>
    %23 = tpu.reciprocal %22 {approx = true} : vector<8x1xf32> -> vector<8x1xf32>
    %24 = vector.broadcast %23 : vector<8x1xf32> to vector<8x8xf32>
    %25 = arith.mulf %20, %24 : vector<8x8xf32>
    %26 = arith.truncf %25 : vector<8x8xf32> to vector<8x8xbf16>
    %cst_7 = arith.constant dense<0.000000e+00> : vector<8x32xf32>
    %27 = tpu.matmul %26, %12, %cst_7 {dimension_numbers = #tpu.dot_dimension_numbers<[1], [0], [0], [1], [0, 0, 1, 1], [], []>} : vector<8x8xbf16>, vector<8x32xbf16>, vector<8x32xf32> -> vector<8x32xf32>
    %28 = arith.truncf %27 : vector<8x32xf32> to vector<8x32xbf16>
    %c0_8 = arith.constant 0 : index
    %c0_9 = arith.constant 0 : index
    %29 = vector.load %arg9[%c0_8, %c0_9] : memref<8x128xbf16, #tpu.memory_space<vmem>>, vector<8x32xbf16>
    tpu.vector_store %arg9[%c0_8, %c0_9], %28 {strides = array<i32>} : memref<8x128xbf16, #tpu.memory_space<vmem>>, vector<8x32xbf16>,
    %c0_10 = arith.constant 0 : index
    %c32 = arith.constant 32 : index
    %30 = vector.load %arg1[%c0_10, %c32] : memref<8x128xbf16, #tpu.memory_space<vmem>>, vector<8x32xbf16>
    %31 = arith.extf %30 : vector<8x32xbf16> to vector<8x32xf32>
    %cst_11 = arith.constant 0.176776692 : f32
    %32 = vector.broadcast %cst_11 : f32 to vector<8x32xf32>
    %33 = arith.mulf %31, %32 : vector<8x32xf32>
    %34 = arith.truncf %33 : vector<8x32xf32> to vector<8x32xbf16>
    %c0_12 = arith.constant 0 : index
    %c160 = arith.constant 160 : index
    %35 = vector.load %arg2[%c0_12, %c160] : memref<8x384xbf16, #tpu.memory_space<vmem>>, vector<8x32xbf16>
    %c0_13 = arith.constant 0 : index
    %c288 = arith.constant 288 : index
    %36 = vector.load %arg2[%c0_13, %c288] : memref<8x384xbf16, #tpu.memory_space<vmem>>, vector<8x32xbf16>
    %cst_14 = arith.constant dense<0.000000e+00> : vector<8x8xf32>
    %37 = tpu.matmul %34, %35, %cst_14 {dimension_numbers = #tpu.dot_dimension_numbers<[1], [1], [0], [0], [0, 0, 1, 0], [], []>} : vector<8x32xbf16>, vector<8x32xbf16>, vector<8x8xf32> -> vector<8x8xf32>
    %cst_15 = arith.constant -1.000000e+30 : f32
    %38 = vector.broadcast %cst_15 : f32 to vector<8x8xf32>
    %39 = arith.select %5, %37, %38 : vector<8x8xi1>, vector<8x8xf32>
    %cst_16 = arith.constant dense<0xFF800000> : vector<8xf32>
    %40 = vector.multi_reduction <maximumf>, %39, %cst_16 [1] : vector<8x8xf32> to vector<8xf32>
    %41 = vector.shape_cast %40 : vector<8xf32> to vector<8x1xf32>
    %42 = vector.broadcast %41 : vector<8x1xf32> to vector<8x8xf32>
    %43 = arith.subf %39, %42 : vector<8x8xf32>
    %44 = math.exp %43 : vector<8x8xf32>
    %cst_17 = arith.constant dense<0.000000e+00> : vector<8xf32>
    %45 = vector.multi_reduction <add>, %44, %cst_17 [1] : vector<8x8xf32> to vector<8xf32>
    %46 = vector.shape_cast %45 : vector<8xf32> to vector<8x1xf32>
    %47 = tpu.reciprocal %46 {approx = true} : vector<8x1xf32> -> vector<8x1xf32>
    %48 = vector.broadcast %47 : vector<8x1xf32> to vector<8x8xf32>
    %49 = arith.mulf %44, %48 : vector<8x8xf32>
    %50 = arith.truncf %49 : vector<8x8xf32> to vector<8x8xbf16>
    %cst_18 = arith.constant dense<0.000000e+00> : vector<8x32xf32>
    %51 = tpu.matmul %50, %36, %cst_18 {dimension_numbers = #tpu.dot_dimension_numbers<[1], [0], [0], [1], [0, 0, 1, 1], [], []>} : vector<8x8xbf16>, vector<8x32xbf16>, vector<8x32xf32> -> vector<8x32xf32>
    %52 = arith.truncf %51 : vector<8x32xf32> to vector<8x32xbf16>
    %c0_19 = arith.constant 0 : index
    %c32_20 = arith.constant 32 : index
    %53 = vector.load %arg9[%c0_19, %c32_20] : memref<8x128xbf16, #tpu.memory_space<vmem>>, vector<8x32xbf16>
    tpu.vector_store %arg9[%c0_19, %c32_20], %52 {strides = array<i32>} : memref<8x128xbf16, #tpu.memory_space<vmem>>, vector<8x32xbf16>,
    %c0_21 = arith.constant 0 : index
    %c64 = arith.constant 64 : index
    %54 = vector.load %arg1[%c0_21, %c64] : memref<8x128xbf16, #tpu.memory_space<vmem>>, vector<8x32xbf16>
    %55 = arith.extf %54 : vector<8x32xbf16> to vector<8x32xf32>
    %cst_22 = arith.constant 0.176776692 : f32
    %56 = vector.broadcast %cst_22 : f32 to vector<8x32xf32>
    %57 = arith.mulf %55, %56 : vector<8x32xf32>
    %58 = arith.truncf %57 : vector<8x32xf32> to vector<8x32xbf16>
    %c0_23 = arith.constant 0 : index
    %c192 = arith.constant 192 : index
    %59 = vector.load %arg2[%c0_23, %c192] : memref<8x384xbf16, #tpu.memory_space<vmem>>, vector<8x32xbf16>
    %c0_24 = arith.constant 0 : index
    %c320 = arith.constant 320 : index
    %60 = vector.load %arg2[%c0_24, %c320] : memref<8x384xbf16, #tpu.memory_space<vmem>>, vector<8x32xbf16>
    %cst_25 = arith.constant dense<0.000000e+00> : vector<8x8xf32>
    %61 = tpu.matmul %58, %59, %cst_25 {dimension_numbers = #tpu.dot_dimension_numbers<[1], [1], [0], [0], [0, 0, 1, 0], [], []>} : vector<8x32xbf16>, vector<8x32xbf16>, vector<8x8xf32> -> vector<8x8xf32>
    %cst_26 = arith.constant -1.000000e+30 : f32
    %62 = vector.broadcast %cst_26 : f32 to vector<8x8xf32>
    %63 = arith.select %5, %61, %62 : vector<8x8xi1>, vector<8x8xf32>
    %cst_27 = arith.constant dense<0xFF800000> : vector<8xf32>
    %64 = vector.multi_reduction <maximumf>, %63, %cst_27 [1] : vector<8x8xf32> to vector<8xf32>
    %65 = vector.shape_cast %64 : vector<8xf32> to vector<8x1xf32>
    %66 = vector.broadcast %65 : vector<8x1xf32> to vector<8x8xf32>
    %67 = arith.subf %63, %66 : vector<8x8xf32>
    %68 = math.exp %67 : vector<8x8xf32>
    %cst_28 = arith.constant dense<0.000000e+00> : vector<8xf32>
    %69 = vector.multi_reduction <add>, %68, %cst_28 [1] : vector<8x8xf32> to vector<8xf32>
    %70 = vector.shape_cast %69 : vector<8xf32> to vector<8x1xf32>
    %71 = tpu.reciprocal %70 {approx = true} : vector<8x1xf32> -> vector<8x1xf32>
    %72 = vector.broadcast %71 : vector<8x1xf32> to vector<8x8xf32>
    %73 = arith.mulf %68, %72 : vector<8x8xf32>
    %74 = arith.truncf %73 : vector<8x8xf32> to vector<8x8xbf16>
    %cst_29 = arith.constant dense<0.000000e+00> : vector<8x32xf32>
    %75 = tpu.matmul %74, %60, %cst_29 {dimension_numbers = #tpu.dot_dimension_numbers<[1], [0], [0], [1], [0, 0, 1, 1], [], []>} : vector<8x8xbf16>, vector<8x32xbf16>, vector<8x32xf32> -> vector<8x32xf32>
    %76 = arith.truncf %75 : vector<8x32xf32> to vector<8x32xbf16>
    %c0_30 = arith.constant 0 : index
    %c64_31 = arith.constant 64 : index
    %77 = vector.load %arg9[%c0_30, %c64_31] : memref<8x128xbf16, #tpu.memory_space<vmem>>, vector<8x32xbf16>
    tpu.vector_store %arg9[%c0_30, %c64_31], %76 {strides = array<i32>} : memref<8x128xbf16, #tpu.memory_space<vmem>>, vector<8x32xbf16>,
    %c0_32 = arith.constant 0 : index
    %c96 = arith.constant 96 : index
    %78 = vector.load %arg1[%c0_32, %c96] : memref<8x128xbf16, #tpu.memory_space<vmem>>, vector<8x32xbf16>
    %79 = arith.extf %78 : vector<8x32xbf16> to vector<8x32xf32>
    %cst_33 = arith.constant 0.176776692 : f32
    %80 = vector.broadcast %cst_33 : f32 to vector<8x32xf32>
    %81 = arith.mulf %79, %80 : vector<8x32xf32>
    %82 = arith.truncf %81 : vector<8x32xf32> to vector<8x32xbf16>
    %c0_34 = arith.constant 0 : index
    %c224 = arith.constant 224 : index
    %83 = vector.load %arg2[%c0_34, %c224] : memref<8x384xbf16, #tpu.memory_space<vmem>>, vector<8x32xbf16>
    %c0_35 = arith.constant 0 : index
    %c352 = arith.constant 352 : index
    %84 = vector.load %arg2[%c0_35, %c352] : memref<8x384xbf16, #tpu.memory_space<vmem>>, vector<8x32xbf16>
    %cst_36 = arith.constant dense<0.000000e+00> : vector<8x8xf32>
    %85 = tpu.matmul %82, %83, %cst_36 {dimension_numbers = #tpu.dot_dimension_numbers<[1], [1], [0], [0], [0, 0, 1, 0], [], []>} : vector<8x32xbf16>, vector<8x32xbf16>, vector<8x8xf32> -> vector<8x8xf32>
    %cst_37 = arith.constant -1.000000e+30 : f32
    %86 = vector.broadcast %cst_37 : f32 to vector<8x8xf32>
    %87 = arith.select %5, %85, %86 : vector<8x8xi1>, vector<8x8xf32>
    %cst_38 = arith.constant dense<0xFF800000> : vector<8xf32>
    %88 = vector.multi_reduction <maximumf>, %87, %cst_38 [1] : vector<8x8xf32> to vector<8xf32>
    %89 = vector.shape_cast %88 : vector<8xf32> to vector<8x1xf32>
    %90 = vector.broadcast %89 : vector<8x1xf32> to vector<8x8xf32>
    %91 = arith.subf %87, %90 : vector<8x8xf32>
    %92 = math.exp %91 : vector<8x8xf32>
    %cst_39 = arith.constant dense<0.000000e+00> : vector<8xf32>
    %93 = vector.multi_reduction <add>, %92, %cst_39 [1] : vector<8x8xf32> to vector<8xf32>
    %94 = vector.shape_cast %93 : vector<8xf32> to vector<8x1xf32>
    %95 = tpu.reciprocal %94 {approx = true} : vector<8x1xf32> -> vector<8x1xf32>
    %96 = vector.broadcast %95 : vector<8x1xf32> to vector<8x8xf32>
    %97 = arith.mulf %92, %96 : vector<8x8xf32>
    %98 = arith.truncf %97 : vector<8x8xf32> to vector<8x8xbf16>
    %cst_40 = arith.constant dense<0.000000e+00> : vector<8x32xf32>
    %99 = tpu.matmul %98, %84, %cst_40 {dimension_numbers = #tpu.dot_dimension_numbers<[1], [0], [0], [1], [0, 0, 1, 1], [], []>} : vector<8x8xbf16>, vector<8x32xbf16>, vector<8x32xf32> -> vector<8x32xf32>
    %100 = arith.truncf %99 : vector<8x32xf32> to vector<8x32xbf16>
    %c0_41 = arith.constant 0 : index
    %c96_42 = arith.constant 96 : index
    %101 = vector.load %arg9[%c0_41, %c96_42] : memref<8x128xbf16, #tpu.memory_space<vmem>>, vector<8x32xbf16>
    tpu.vector_store %arg9[%c0_41, %c96_42], %100 {strides = array<i32>} : memref<8x128xbf16, #tpu.memory_space<vmem>>, vector<8x32xbf16>,
    %c0_43 = arith.constant 0 : index
    %c0_44 = arith.constant 0 : index
    %102 = vector.load %arg9[%c0_43, %c0_44] : memref<8x128xbf16, #tpu.memory_space<vmem>>, vector<8x128xbf16>
    %c0_45 = arith.constant 0 : index
    %c0_46 = arith.constant 0 : index
    %103 = vector.load %arg3[%c0_45, %c0_46] : memref<128x128xbf16, #tpu.memory_space<vmem>>, vector<128x128xbf16>
    %cst_47 = arith.constant dense<0.000000e+00> : vector<8x128xf32>
    %104 = tpu.matmul %102, %103, %cst_47 {dimension_numbers = #tpu.dot_dimension_numbers<[1], [0], [0], [1], [0, 0, 1, 1], [], []>} : vector<8x128xbf16>, vector<128x128xbf16>, vector<8x128xf32> -> vector<8x128xf32>
    %c0_48 = arith.constant 0 : index
    %c0_49 = arith.constant 0 : index
    %105 = vector.load %arg4[%c0_48, %c0_49] : memref<1x128xf32, #tpu.memory_space<vmem>>, vector<1x128xf32>
    %106 = vector.broadcast %105 : vector<1x128xf32> to vector<8x128xf32>
    %107 = arith.addf %104, %106 : vector<8x128xf32>
    %c0_50 = arith.constant 0 : index
    %c0_51 = arith.constant 0 : index
    %108 = vector.load %arg5[%c0_50, %c0_51] : memref<8x128xbf16, #tpu.memory_space<vmem>>, vector<8x128xbf16>
    %109 = arith.extf %108 : vector<8x128xbf16> to vector<8x128xf32>
    %110 = arith.addf %107, %109 : vector<8x128xf32>
    %c0_52 = arith.constant 0 : index
    %c0_53 = arith.constant 0 : index
    %111 = vector.load %arg6[%c0_52, %c0_53] : memref<1x128xf32, #tpu.memory_space<vmem>>, vector<1x128xf32>
    %c0_54 = arith.constant 0 : index
    %c0_55 = arith.constant 0 : index
    %112 = vector.load %arg7[%c0_54, %c0_55] : memref<1x128xf32, #tpu.memory_space<vmem>>, vector<1x128xf32>
    %cst_56 = arith.constant dense<0.000000e+00> : vector<8xf32>
    %113 = vector.multi_reduction <add>, %110, %cst_56 [1] : vector<8x128xf32> to vector<8xf32>
    %114 = vector.shape_cast %113 : vector<8xf32> to vector<8x1xf32>
    %cst_57 = arith.constant 1.280000e+02 : f32
    %115 = vector.broadcast %cst_57 : f32 to vector<8x1xf32>
    %116 = arith.divf %114, %115 : vector<8x1xf32>
    %117 = vector.broadcast %116 : vector<8x1xf32> to vector<8x128xf32>
    %118 = arith.subf %110, %117 : vector<8x128xf32>
    %119 = arith.mulf %118, %118 : vector<8x128xf32>
    %cst_58 = arith.constant dense<0.000000e+00> : vector<8xf32>
    %120 = vector.multi_reduction <add>, %119, %cst_58 [1] : vector<8x128xf32> to vector<8xf32>
    %121 = vector.shape_cast %120 : vector<8xf32> to vector<8x1xf32>
    %cst_59 = arith.constant 1.280000e+02 : f32
    %122 = vector.broadcast %cst_59 : f32 to vector<8x1xf32>
    %123 = arith.divf %121, %122 : vector<8x1xf32>
    %cst_60 = arith.constant 9.99999974E-6 : f32
    %124 = vector.broadcast %cst_60 : f32 to vector<8x1xf32>
    %125 = arith.addf %123, %124 : vector<8x1xf32>
    %126 = math.rsqrt %125 : vector<8x1xf32>
    %127 = vector.broadcast %126 : vector<8x1xf32> to vector<8x128xf32>
    %128 = arith.mulf %118, %127 : vector<8x128xf32>
    %129 = vector.broadcast %111 : vector<1x128xf32> to vector<8x128xf32>
    %130 = arith.mulf %128, %129 : vector<8x128xf32>
    %131 = vector.broadcast %112 : vector<1x128xf32> to vector<8x128xf32>
    %132 = arith.addf %130, %131 : vector<8x128xf32>
    %133 = arith.truncf %132 : vector<8x128xf32> to vector<8x128xbf16>
    %c0_61 = arith.constant 0 : index
    %c0_62 = arith.constant 0 : index
    %134 = vector.load %arg8[%c0_61, %c0_62] : memref<8x128xbf16, #tpu.memory_space<vmem>>, vector<8x128xbf16>
    tpu.vector_store %arg8[%c0_61, %c0_62], %133 {strides = array<i32>} : memref<8x128xbf16, #tpu.memory_space<vmem>>, vector<8x128xbf16>,
    return
  }
  func.func @transform_0(%arg0: i32) -> (i32, i32) {
    %c0_i32 = arith.constant 0 : i32
    %c0_i32_0 = arith.constant 0 : i32
    return %arg0, %c0_i32 : i32, i32
  }
  func.func @transform_1(%arg0: i32) -> (i32, i32) {
    %c0_i32 = arith.constant 0 : i32
    %c0_i32_0 = arith.constant 0 : i32
    %c0_i32_1 = arith.constant 0 : i32
    return %c0_i32, %c0_i32_0 : i32, i32
  }
  func.func @transform_2(%arg0: i32) -> (i32, i32) {
    %c0_i32 = arith.constant 0 : i32
    %c0_i32_0 = arith.constant 0 : i32
    %c0_i32_1 = arith.constant 0 : i32
    return %c0_i32, %c0_i32_0 : i32, i32
  }
  func.func @transform_3(%arg0: i32) -> (i32, i32) {
    %c0_i32 = arith.constant 0 : i32
    %c0_i32_0 = arith.constant 0 : i32
    %c0_i32_1 = arith.constant 0 : i32
    return %c0_i32, %c0_i32_0 : i32, i32
  }
  func.func @transform_4(%arg0: i32) -> (i32, i32) {
    %c0_i32 = arith.constant 0 : i32
    %c0_i32_0 = arith.constant 0 : i32
    return %arg0, %c0_i32 : i32, i32
  }
  func.func @transform_5(%arg0: i32) -> (i32, i32) {
    %c0_i32 = arith.constant 0 : i32
    %c0_i32_0 = arith.constant 0 : i32
    %c0_i32_1 = arith.constant 0 : i32
    return %c0_i32, %c0_i32_0 : i32, i32
  }
  func.func @transform_6(%arg0: i32) -> (i32, i32) {
    %c0_i32 = arith.constant 0 : i32
    %c0_i32_0 = arith.constant 0 : i32
    %c0_i32_1 = arith.constant 0 : i32
    return %c0_i32, %c0_i32_0 : i32, i32
  }
  func.func @transform_7(%arg0: i32) -> (i32, i32) {
    %c0_i32 = arith.constant 0 : i32
    %c0_i32_0 = arith.constant 0 : i32
    return %arg0, %c0_i32 : i32, i32
  }
}

module attributes {stable_mosaic.version = 11 : i64} {
  func.func @_linear_kernel(%arg0: i32, %arg1: i32, %arg2: i32, %arg3: memref<8x128xbf16, #tpu.memory_space<vmem>>, %arg4: memref<128x128xbf16, #tpu.memory_space<vmem>>, %arg5: memref<1x128xf32, #tpu.memory_space<vmem>>, %arg6: memref<8x128xbf16, #tpu.memory_space<vmem>>, %arg7: memref<8x128xf32, #tpu.memory_space<vmem>>) attributes {dimension_semantics = [#tpu.dimension_semantics<parallel>, #tpu.dimension_semantics<parallel>, #tpu.dimension_semantics<arbitrary>], iteration_bounds = array<i64: 1, 3, 1>, scalar_prefetch = 0 : i64, scratch_operands = 1 : i64, tpu.core_type = #tpu.core_type<tc>, window_params = [{transform_indices = @transform_0, window_bounds = array<i64: 8, 128>}, {transform_indices = @transform_1, window_bounds = array<i64: 128, 128>}, {transform_indices = @transform_2, window_bounds = array<i64: 1, 128>}, {transform_indices = @transform_3, window_bounds = array<i64: 8, 128>}]} {
    %c0_i32 = arith.constant 0 : i32
    %0 = arith.cmpi eq, %arg2, %c0_i32 : i32
    %1 = arith.extui %0 : i1 to i32
    %c0_i32_0 = arith.constant 0 : i32
    %2 = arith.cmpi ne, %1, %c0_i32_0 : i32
    scf.if %2 {
      %cst_10 = arith.constant 0.000000e+00 : f32
      %12 = vector.broadcast %cst_10 : f32 to vector<8x128xf32>
      %c0_11 = arith.constant 0 : index
      %c0_12 = arith.constant 0 : index
      %13 = vector.load %arg7[%c0_11, %c0_12] : memref<8x128xf32, #tpu.memory_space<vmem>>, vector<8x128xf32>
      tpu.vector_store %arg7[%c0_11, %c0_12], %12 {strides = array<i32>} : memref<8x128xf32, #tpu.memory_space<vmem>>, vector<8x128xf32>,
    } else {
    }
    %c0 = arith.constant 0 : index
    %c0_1 = arith.constant 0 : index
    %3 = vector.load %arg7[%c0, %c0_1] : memref<8x128xf32, #tpu.memory_space<vmem>>, vector<8x128xf32>
    %c0_2 = arith.constant 0 : index
    %c0_3 = arith.constant 0 : index
    %4 = vector.load %arg3[%c0_2, %c0_3] : memref<8x128xbf16, #tpu.memory_space<vmem>>, vector<8x128xbf16>
    %c0_4 = arith.constant 0 : index
    %c0_5 = arith.constant 0 : index
    %5 = vector.load %arg4[%c0_4, %c0_5] : memref<128x128xbf16, #tpu.memory_space<vmem>>, vector<128x128xbf16>
    %cst = arith.constant dense<0.000000e+00> : vector<8x128xf32>
    %6 = tpu.matmul %4, %5, %cst {dimension_numbers = #tpu.dot_dimension_numbers<[1], [0], [0], [1], [0, 0, 1, 1], [], []>} : vector<8x128xbf16>, vector<128x128xbf16>, vector<8x128xf32> -> vector<8x128xf32>
    %7 = arith.addf %3, %6 : vector<8x128xf32>
    %c0_6 = arith.constant 0 : index
    %c0_7 = arith.constant 0 : index
    %8 = vector.load %arg7[%c0_6, %c0_7] : memref<8x128xf32, #tpu.memory_space<vmem>>, vector<8x128xf32>
    tpu.vector_store %arg7[%c0_6, %c0_7], %7 {strides = array<i32>} : memref<8x128xf32, #tpu.memory_space<vmem>>, vector<8x128xf32>,
    %c0_i32_8 = arith.constant 0 : i32
    %9 = arith.cmpi eq, %arg2, %c0_i32_8 : i32
    %10 = arith.extui %9 : i1 to i32
    %c0_i32_9 = arith.constant 0 : i32
    %11 = arith.cmpi ne, %10, %c0_i32_9 : i32
    scf.if %11 {
      %c0_10 = arith.constant 0 : index
      %c0_11 = arith.constant 0 : index
      %12 = vector.load %arg7[%c0_10, %c0_11] : memref<8x128xf32, #tpu.memory_space<vmem>>, vector<8x128xf32>
      %c0_12 = arith.constant 0 : index
      %c0_13 = arith.constant 0 : index
      %13 = vector.load %arg5[%c0_12, %c0_13] : memref<1x128xf32, #tpu.memory_space<vmem>>, vector<1x128xf32>
      %14 = vector.broadcast %13 : vector<1x128xf32> to vector<8x128xf32>
      %15 = arith.addf %12, %14 : vector<8x128xf32>
      %16 = arith.truncf %15 : vector<8x128xf32> to vector<8x128xbf16>
      %c0_14 = arith.constant 0 : index
      %c0_15 = arith.constant 0 : index
      %17 = vector.load %arg6[%c0_14, %c0_15] : memref<8x128xbf16, #tpu.memory_space<vmem>>, vector<8x128xbf16>
      tpu.vector_store %arg6[%c0_14, %c0_15], %16 {strides = array<i32>} : memref<8x128xbf16, #tpu.memory_space<vmem>>, vector<8x128xbf16>,
    } else {
    }
    return
  }
  func.func @transform_0(%arg0: i32, %arg1: i32, %arg2: i32) -> (i32, i32) {
    %c0_i32 = arith.constant 0 : i32
    return %arg0, %arg2 : i32, i32
  }
  func.func @transform_1(%arg0: i32, %arg1: i32, %arg2: i32) -> (i32, i32) {
    %c0_i32 = arith.constant 0 : i32
    return %arg2, %arg1 : i32, i32
  }
  func.func @transform_2(%arg0: i32, %arg1: i32, %arg2: i32) -> (i32, i32) {
    %c0_i32 = arith.constant 0 : i32
    %c0_i32_0 = arith.constant 0 : i32
    return %c0_i32, %arg1 : i32, i32
  }
  func.func @transform_3(%arg0: i32, %arg1: i32, %arg2: i32) -> (i32, i32) {
    %c0_i32 = arith.constant 0 : i32
    return %arg0, %arg1 : i32, i32
  }
}

module attributes {stable_mosaic.version = 11 : i64} {
  func.func @_linear_kernel(%arg0: i32, %arg1: i32, %arg2: i32, %arg3: memref<8x128xbf16, #tpu.memory_space<vmem>>, %arg4: memref<128x128xbf16, #tpu.memory_space<vmem>>, %arg5: memref<1x128xf32, #tpu.memory_space<vmem>>, %arg6: memref<8x128xbf16, #tpu.memory_space<vmem>>, %arg7: memref<8x128xf32, #tpu.memory_space<vmem>>) attributes {dimension_semantics = [#tpu.dimension_semantics<parallel>, #tpu.dimension_semantics<parallel>, #tpu.dimension_semantics<arbitrary>], iteration_bounds = array<i64: 1, 1, 1>, scalar_prefetch = 0 : i64, scratch_operands = 1 : i64, tpu.core_type = #tpu.core_type<tc>, window_params = [{transform_indices = @transform_0, window_bounds = array<i64: 8, 128>}, {transform_indices = @transform_1, window_bounds = array<i64: 128, 128>}, {transform_indices = @transform_2, window_bounds = array<i64: 1, 128>}, {transform_indices = @transform_3, window_bounds = array<i64: 8, 128>}]} {
    %c0_i32 = arith.constant 0 : i32
    %0 = arith.cmpi eq, %arg2, %c0_i32 : i32
    %1 = arith.extui %0 : i1 to i32
    %c0_i32_0 = arith.constant 0 : i32
    %2 = arith.cmpi ne, %1, %c0_i32_0 : i32
    scf.if %2 {
      %cst_10 = arith.constant 0.000000e+00 : f32
      %12 = vector.broadcast %cst_10 : f32 to vector<8x128xf32>
      %c0_11 = arith.constant 0 : index
      %c0_12 = arith.constant 0 : index
      %13 = vector.load %arg7[%c0_11, %c0_12] : memref<8x128xf32, #tpu.memory_space<vmem>>, vector<8x128xf32>
      tpu.vector_store %arg7[%c0_11, %c0_12], %12 {strides = array<i32>} : memref<8x128xf32, #tpu.memory_space<vmem>>, vector<8x128xf32>,
    } else {
    }
    %c0 = arith.constant 0 : index
    %c0_1 = arith.constant 0 : index
    %3 = vector.load %arg7[%c0, %c0_1] : memref<8x128xf32, #tpu.memory_space<vmem>>, vector<8x128xf32>
    %c0_2 = arith.constant 0 : index
    %c0_3 = arith.constant 0 : index
    %4 = vector.load %arg3[%c0_2, %c0_3] : memref<8x128xbf16, #tpu.memory_space<vmem>>, vector<8x128xbf16>
    %c0_4 = arith.constant 0 : index
    %c0_5 = arith.constant 0 : index
    %5 = vector.load %arg4[%c0_4, %c0_5] : memref<128x128xbf16, #tpu.memory_space<vmem>>, vector<128x128xbf16>
    %cst = arith.constant dense<0.000000e+00> : vector<8x128xf32>
    %6 = tpu.matmul %4, %5, %cst {dimension_numbers = #tpu.dot_dimension_numbers<[1], [0], [0], [1], [0, 0, 1, 1], [], []>} : vector<8x128xbf16>, vector<128x128xbf16>, vector<8x128xf32> -> vector<8x128xf32>
    %7 = arith.addf %3, %6 : vector<8x128xf32>
    %c0_6 = arith.constant 0 : index
    %c0_7 = arith.constant 0 : index
    %8 = vector.load %arg7[%c0_6, %c0_7] : memref<8x128xf32, #tpu.memory_space<vmem>>, vector<8x128xf32>
    tpu.vector_store %arg7[%c0_6, %c0_7], %7 {strides = array<i32>} : memref<8x128xf32, #tpu.memory_space<vmem>>, vector<8x128xf32>,
    %c0_i32_8 = arith.constant 0 : i32
    %9 = arith.cmpi eq, %arg2, %c0_i32_8 : i32
    %10 = arith.extui %9 : i1 to i32
    %c0_i32_9 = arith.constant 0 : i32
    %11 = arith.cmpi ne, %10, %c0_i32_9 : i32
    scf.if %11 {
      %c0_10 = arith.constant 0 : index
      %c0_11 = arith.constant 0 : index
      %12 = vector.load %arg7[%c0_10, %c0_11] : memref<8x128xf32, #tpu.memory_space<vmem>>, vector<8x128xf32>
      %c0_12 = arith.constant 0 : index
      %c0_13 = arith.constant 0 : index
      %13 = vector.load %arg5[%c0_12, %c0_13] : memref<1x128xf32, #tpu.memory_space<vmem>>, vector<1x128xf32>
      %14 = vector.broadcast %13 : vector<1x128xf32> to vector<8x128xf32>
      %15 = arith.addf %12, %14 : vector<8x128xf32>
      %16 = arith.truncf %15 : vector<8x128xf32> to vector<8x128xbf16>
      %c0_14 = arith.constant 0 : index
      %c0_15 = arith.constant 0 : index
      %17 = vector.load %arg6[%c0_14, %c0_15] : memref<8x128xbf16, #tpu.memory_space<vmem>>, vector<8x128xbf16>
      tpu.vector_store %arg6[%c0_14, %c0_15], %16 {strides = array<i32>} : memref<8x128xbf16, #tpu.memory_space<vmem>>, vector<8x128xbf16>,
    } else {
    }
    return
  }
  func.func @transform_0(%arg0: i32, %arg1: i32, %arg2: i32) -> (i32, i32) {
    %c0_i32 = arith.constant 0 : i32
    return %arg0, %arg2 : i32, i32
  }
  func.func @transform_1(%arg0: i32, %arg1: i32, %arg2: i32) -> (i32, i32) {
    %c0_i32 = arith.constant 0 : i32
    return %arg2, %arg1 : i32, i32
  }
  func.func @transform_2(%arg0: i32, %arg1: i32, %arg2: i32) -> (i32, i32) {
    %c0_i32 = arith.constant 0 : i32
    %c0_i32_0 = arith.constant 0 : i32
    return %c0_i32, %arg1 : i32, i32
  }
  func.func @transform_3(%arg0: i32, %arg1: i32, %arg2: i32) -> (i32, i32) {
    %c0_i32 = arith.constant 0 : i32
    return %arg0, %arg1 : i32, i32
  }
}

module attributes {stable_mosaic.version = 11 : i64} {
  func.func @_mha_kernel(%arg0: i32, %arg1: memref<8x128xbf16, #tpu.memory_space<vmem>>, %arg2: memref<16x256xbf16, #tpu.memory_space<vmem>>, %arg3: memref<128x128xbf16, #tpu.memory_space<vmem>>, %arg4: memref<1x128xf32, #tpu.memory_space<vmem>>, %arg5: memref<8x128xbf16, #tpu.memory_space<vmem>>, %arg6: memref<1x128xf32, #tpu.memory_space<vmem>>, %arg7: memref<1x128xf32, #tpu.memory_space<vmem>>, %arg8: memref<8x128xbf16, #tpu.memory_space<vmem>>, %arg9: memref<8x128xbf16, #tpu.memory_space<vmem>>) attributes {dimension_semantics = [#tpu.dimension_semantics<parallel>], iteration_bounds = array<i64: 1>, scalar_prefetch = 0 : i64, scratch_operands = 1 : i64, tpu.core_type = #tpu.core_type<tc>, window_params = [{transform_indices = @transform_0, window_bounds = array<i64: 8, 128>}, {pipeline_mode = #tpu.pipeline_mode<synchronous>, transform_indices = @transform_1, window_bounds = array<i64: 16, 256>}, {pipeline_mode = #tpu.pipeline_mode<synchronous>, transform_indices = @transform_2, window_bounds = array<i64: 128, 128>}, {pipeline_mode = #tpu.pipeline_mode<synchronous>, transform_indices = @transform_3, window_bounds = array<i64: 1, 128>}, {transform_indices = @transform_4, window_bounds = array<i64: 8, 128>}, {pipeline_mode = #tpu.pipeline_mode<synchronous>, transform_indices = @transform_5, window_bounds = array<i64: 1, 128>}, {pipeline_mode = #tpu.pipeline_mode<synchronous>, transform_indices = @transform_6, window_bounds = array<i64: 1, 128>}, {transform_indices = @transform_7, window_bounds = array<i64: 8, 128>}]} {
    %c0 = arith.constant 0 : index
    %c0_0 = arith.constant 0 : index
    %0 = vector.load %arg1[%c0, %c0_0] : memref<8x128xbf16, #tpu.memory_space<vmem>>, vector<8x32xbf16>
    %1 = arith.extf %0 : vector<8x32xbf16> to vector<8x32xf32>
    %cst = arith.constant 0.176776692 : f32
    %2 = vector.broadcast %cst : f32 to vector<8x32xf32>
    %3 = arith.mulf %1, %2 : vector<8x32xf32>
    %4 = arith.truncf %3 : vector<8x32xf32> to vector<8x32xbf16>
    %c0_1 = arith.constant 0 : index
    %c0_2 = arith.constant 0 : index
    %5 = vector.load %arg2[%c0_1, %c0_2] : memref<16x256xbf16, #tpu.memory_space<vmem>>, vector<16x32xbf16>
    %c0_3 = arith.constant 0 : index
    %c128 = arith.constant 128 : index
    %6 = vector.load %arg2[%c0_3, %c128] : memref<16x256xbf16, #tpu.memory_space<vmem>>, vector<16x32xbf16>
    %cst_4 = arith.constant dense<0.000000e+00> : vector<8x16xf32>
    %7 = tpu.matmul %4, %5, %cst_4 {dimension_numbers = #tpu.dot_dimension_numbers<[1], [1], [0], [0], [0, 0, 1, 0], [], []>} : vector<8x32xbf16>, vector<16x32xbf16>, vector<8x16xf32> -> vector<8x16xf32>
    %cst_5 = arith.constant dense<0xFF800000> : vector<8xf32>
    %8 = vector.multi_reduction <maximumf>, %7, %cst_5 [1] : vector<8x16xf32> to vector<8xf32>
    %9 = vector.shape_cast %8 : vector<8xf32> to vector<8x1xf32>
    %10 = vector.broadcast %9 : vector<8x1xf32> to vector<8x16xf32>
    %11 = arith.subf %7, %10 : vector<8x16xf32>
    %12 = math.exp %11 : vector<8x16xf32>
    %cst_6 = arith.constant dense<0.000000e+00> : vector<8xf32>
    %13 = vector.multi_reduction <add>, %12, %cst_6 [1] : vector<8x16xf32> to vector<8xf32>
    %14 = vector.shape_cast %13 : vector<8xf32> to vector<8x1xf32>
    %15 = tpu.reciprocal %14 {approx = true} : vector<8x1xf32> -> vector<8x1xf32>
    %16 = vector.broadcast %15 : vector<8x1xf32> to vector<8x16xf32>
    %17 = arith.mulf %12, %16 : vector<8x16xf32>
    %18 = arith.truncf %17 : vector<8x16xf32> to vector<8x16xbf16>
    %cst_7 = arith.constant dense<0.000000e+00> : vector<8x32xf32>
    %19 = tpu.matmul %18, %6, %cst_7 {dimension_numbers = #tpu.dot_dimension_numbers<[1], [0], [0], [1], [0, 0, 1, 1], [], []>} : vector<8x16xbf16>, vector<16x32xbf16>, vector<8x32xf32> -> vector<8x32xf32>
    %20 = arith.truncf %19 : vector<8x32xf32> to vector<8x32xbf16>
    %c0_8 = arith.constant 0 : index
    %c0_9 = arith.constant 0 : index
    %21 = vector.load %arg9[%c0_8, %c0_9] : memref<8x128xbf16, #tpu.memory_space<vmem>>, vector<8x32xbf16>
    tpu.vector_store %arg9[%c0_8, %c0_9], %20 {strides = array<i32>} : memref<8x128xbf16, #tpu.memory_space<vmem>>, vector<8x32xbf16>,
    %c0_10 = arith.constant 0 : index
    %c32 = arith.constant 32 : index
    %22 = vector.load %arg1[%c0_10, %c32] : memref<8x128xbf16, #tpu.memory_space<vmem>>, vector<8x32xbf16>
    %23 = arith.extf %22 : vector<8x32xbf16> to vector<8x32xf32>
    %cst_11 = arith.constant 0.176776692 : f32
    %24 = vector.broadcast %cst_11 : f32 to vector<8x32xf32>
    %25 = arith.mulf %23, %24 : vector<8x32xf32>
    %26 = arith.truncf %25 : vector<8x32xf32> to vector<8x32xbf16>
    %c0_12 = arith.constant 0 : index
    %c32_13 = arith.constant 32 : index
    %27 = vector.load %arg2[%c0_12, %c32_13] : memref<16x256xbf16, #tpu.memory_space<vmem>>, vector<16x32xbf16>
    %c0_14 = arith.constant 0 : index
    %c160 = arith.constant 160 : index
    %28 = vector.load %arg2[%c0_14, %c160] : memref<16x256xbf16, #tpu.memory_space<vmem>>, vector<16x32xbf16>
    %cst_15 = arith.constant dense<0.000000e+00> : vector<8x16xf32>
    %29 = tpu.matmul %26, %27, %cst_15 {dimension_numbers = #tpu.dot_dimension_numbers<[1], [1], [0], [0], [0, 0, 1, 0], [], []>} : vector<8x32xbf16>, vector<16x32xbf16>, vector<8x16xf32> -> vector<8x16xf32>
    %cst_16 = arith.constant dense<0xFF800000> : vector<8xf32>
    %30 = vector.multi_reduction <maximumf>, %29, %cst_16 [1] : vector<8x16xf32> to vector<8xf32>
    %31 = vector.shape_cast %30 : vector<8xf32> to vector<8x1xf32>
    %32 = vector.broadcast %31 : vector<8x1xf32> to vector<8x16xf32>
    %33 = arith.subf %29, %32 : vector<8x16xf32>
    %34 = math.exp %33 : vector<8x16xf32>
    %cst_17 = arith.constant dense<0.000000e+00> : vector<8xf32>
    %35 = vector.multi_reduction <add>, %34, %cst_17 [1] : vector<8x16xf32> to vector<8xf32>
    %36 = vector.shape_cast %35 : vector<8xf32> to vector<8x1xf32>
    %37 = tpu.reciprocal %36 {approx = true} : vector<8x1xf32> -> vector<8x1xf32>
    %38 = vector.broadcast %37 : vector<8x1xf32> to vector<8x16xf32>
    %39 = arith.mulf %34, %38 : vector<8x16xf32>
    %40 = arith.truncf %39 : vector<8x16xf32> to vector<8x16xbf16>
    %cst_18 = arith.constant dense<0.000000e+00> : vector<8x32xf32>
    %41 = tpu.matmul %40, %28, %cst_18 {dimension_numbers = #tpu.dot_dimension_numbers<[1], [0], [0], [1], [0, 0, 1, 1], [], []>} : vector<8x16xbf16>, vector<16x32xbf16>, vector<8x32xf32> -> vector<8x32xf32>
    %42 = arith.truncf %41 : vector<8x32xf32> to vector<8x32xbf16>
    %c0_19 = arith.constant 0 : index
    %c32_20 = arith.constant 32 : index
    %43 = vector.load %arg9[%c0_19, %c32_20] : memref<8x128xbf16, #tpu.memory_space<vmem>>, vector<8x32xbf16>
    tpu.vector_store %arg9[%c0_19, %c32_20], %42 {strides = array<i32>} : memref<8x128xbf16, #tpu.memory_space<vmem>>, vector<8x32xbf16>,
    %c0_21 = arith.constant 0 : index
    %c64 = arith.constant 64 : index
    %44 = vector.load %arg1[%c0_21, %c64] : memref<8x128xbf16, #tpu.memory_space<vmem>>, vector<8x32xbf16>
    %45 = arith.extf %44 : vector<8x32xbf16> to vector<8x32xf32>
    %cst_22 = arith.constant 0.176776692 : f32
    %46 = vector.broadcast %cst_22 : f32 to vector<8x32xf32>
    %47 = arith.mulf %45, %46 : vector<8x32xf32>
    %48 = arith.truncf %47 : vector<8x32xf32> to vector<8x32xbf16>
    %c0_23 = arith.constant 0 : index
    %c64_24 = arith.constant 64 : index
    %49 = vector.load %arg2[%c0_23, %c64_24] : memref<16x256xbf16, #tpu.memory_space<vmem>>, vector<16x32xbf16>
    %c0_25 = arith.constant 0 : index
    %c192 = arith.constant 192 : index
    %50 = vector.load %arg2[%c0_25, %c192] : memref<16x256xbf16, #tpu.memory_space<vmem>>, vector<16x32xbf16>
    %cst_26 = arith.constant dense<0.000000e+00> : vector<8x16xf32>
    %51 = tpu.matmul %48, %49, %cst_26 {dimension_numbers = #tpu.dot_dimension_numbers<[1], [1], [0], [0], [0, 0, 1, 0], [], []>} : vector<8x32xbf16>, vector<16x32xbf16>, vector<8x16xf32> -> vector<8x16xf32>
    %cst_27 = arith.constant dense<0xFF800000> : vector<8xf32>
    %52 = vector.multi_reduction <maximumf>, %51, %cst_27 [1] : vector<8x16xf32> to vector<8xf32>
    %53 = vector.shape_cast %52 : vector<8xf32> to vector<8x1xf32>
    %54 = vector.broadcast %53 : vector<8x1xf32> to vector<8x16xf32>
    %55 = arith.subf %51, %54 : vector<8x16xf32>
    %56 = math.exp %55 : vector<8x16xf32>
    %cst_28 = arith.constant dense<0.000000e+00> : vector<8xf32>
    %57 = vector.multi_reduction <add>, %56, %cst_28 [1] : vector<8x16xf32> to vector<8xf32>
    %58 = vector.shape_cast %57 : vector<8xf32> to vector<8x1xf32>
    %59 = tpu.reciprocal %58 {approx = true} : vector<8x1xf32> -> vector<8x1xf32>
    %60 = vector.broadcast %59 : vector<8x1xf32> to vector<8x16xf32>
    %61 = arith.mulf %56, %60 : vector<8x16xf32>
    %62 = arith.truncf %61 : vector<8x16xf32> to vector<8x16xbf16>
    %cst_29 = arith.constant dense<0.000000e+00> : vector<8x32xf32>
    %63 = tpu.matmul %62, %50, %cst_29 {dimension_numbers = #tpu.dot_dimension_numbers<[1], [0], [0], [1], [0, 0, 1, 1], [], []>} : vector<8x16xbf16>, vector<16x32xbf16>, vector<8x32xf32> -> vector<8x32xf32>
    %64 = arith.truncf %63 : vector<8x32xf32> to vector<8x32xbf16>
    %c0_30 = arith.constant 0 : index
    %c64_31 = arith.constant 64 : index
    %65 = vector.load %arg9[%c0_30, %c64_31] : memref<8x128xbf16, #tpu.memory_space<vmem>>, vector<8x32xbf16>
    tpu.vector_store %arg9[%c0_30, %c64_31], %64 {strides = array<i32>} : memref<8x128xbf16, #tpu.memory_space<vmem>>, vector<8x32xbf16>,
    %c0_32 = arith.constant 0 : index
    %c96 = arith.constant 96 : index
    %66 = vector.load %arg1[%c0_32, %c96] : memref<8x128xbf16, #tpu.memory_space<vmem>>, vector<8x32xbf16>
    %67 = arith.extf %66 : vector<8x32xbf16> to vector<8x32xf32>
    %cst_33 = arith.constant 0.176776692 : f32
    %68 = vector.broadcast %cst_33 : f32 to vector<8x32xf32>
    %69 = arith.mulf %67, %68 : vector<8x32xf32>
    %70 = arith.truncf %69 : vector<8x32xf32> to vector<8x32xbf16>
    %c0_34 = arith.constant 0 : index
    %c96_35 = arith.constant 96 : index
    %71 = vector.load %arg2[%c0_34, %c96_35] : memref<16x256xbf16, #tpu.memory_space<vmem>>, vector<16x32xbf16>
    %c0_36 = arith.constant 0 : index
    %c224 = arith.constant 224 : index
    %72 = vector.load %arg2[%c0_36, %c224] : memref<16x256xbf16, #tpu.memory_space<vmem>>, vector<16x32xbf16>
    %cst_37 = arith.constant dense<0.000000e+00> : vector<8x16xf32>
    %73 = tpu.matmul %70, %71, %cst_37 {dimension_numbers = #tpu.dot_dimension_numbers<[1], [1], [0], [0], [0, 0, 1, 0], [], []>} : vector<8x32xbf16>, vector<16x32xbf16>, vector<8x16xf32> -> vector<8x16xf32>
    %cst_38 = arith.constant dense<0xFF800000> : vector<8xf32>
    %74 = vector.multi_reduction <maximumf>, %73, %cst_38 [1] : vector<8x16xf32> to vector<8xf32>
    %75 = vector.shape_cast %74 : vector<8xf32> to vector<8x1xf32>
    %76 = vector.broadcast %75 : vector<8x1xf32> to vector<8x16xf32>
    %77 = arith.subf %73, %76 : vector<8x16xf32>
    %78 = math.exp %77 : vector<8x16xf32>
    %cst_39 = arith.constant dense<0.000000e+00> : vector<8xf32>
    %79 = vector.multi_reduction <add>, %78, %cst_39 [1] : vector<8x16xf32> to vector<8xf32>
    %80 = vector.shape_cast %79 : vector<8xf32> to vector<8x1xf32>
    %81 = tpu.reciprocal %80 {approx = true} : vector<8x1xf32> -> vector<8x1xf32>
    %82 = vector.broadcast %81 : vector<8x1xf32> to vector<8x16xf32>
    %83 = arith.mulf %78, %82 : vector<8x16xf32>
    %84 = arith.truncf %83 : vector<8x16xf32> to vector<8x16xbf16>
    %cst_40 = arith.constant dense<0.000000e+00> : vector<8x32xf32>
    %85 = tpu.matmul %84, %72, %cst_40 {dimension_numbers = #tpu.dot_dimension_numbers<[1], [0], [0], [1], [0, 0, 1, 1], [], []>} : vector<8x16xbf16>, vector<16x32xbf16>, vector<8x32xf32> -> vector<8x32xf32>
    %86 = arith.truncf %85 : vector<8x32xf32> to vector<8x32xbf16>
    %c0_41 = arith.constant 0 : index
    %c96_42 = arith.constant 96 : index
    %87 = vector.load %arg9[%c0_41, %c96_42] : memref<8x128xbf16, #tpu.memory_space<vmem>>, vector<8x32xbf16>
    tpu.vector_store %arg9[%c0_41, %c96_42], %86 {strides = array<i32>} : memref<8x128xbf16, #tpu.memory_space<vmem>>, vector<8x32xbf16>,
    %c0_43 = arith.constant 0 : index
    %c0_44 = arith.constant 0 : index
    %88 = vector.load %arg9[%c0_43, %c0_44] : memref<8x128xbf16, #tpu.memory_space<vmem>>, vector<8x128xbf16>
    %c0_45 = arith.constant 0 : index
    %c0_46 = arith.constant 0 : index
    %89 = vector.load %arg3[%c0_45, %c0_46] : memref<128x128xbf16, #tpu.memory_space<vmem>>, vector<128x128xbf16>
    %cst_47 = arith.constant dense<0.000000e+00> : vector<8x128xf32>
    %90 = tpu.matmul %88, %89, %cst_47 {dimension_numbers = #tpu.dot_dimension_numbers<[1], [0], [0], [1], [0, 0, 1, 1], [], []>} : vector<8x128xbf16>, vector<128x128xbf16>, vector<8x128xf32> -> vector<8x128xf32>
    %c0_48 = arith.constant 0 : index
    %c0_49 = arith.constant 0 : index
    %91 = vector.load %arg4[%c0_48, %c0_49] : memref<1x128xf32, #tpu.memory_space<vmem>>, vector<1x128xf32>
    %92 = vector.broadcast %91 : vector<1x128xf32> to vector<8x128xf32>
    %93 = arith.addf %90, %92 : vector<8x128xf32>
    %c0_50 = arith.constant 0 : index
    %c0_51 = arith.constant 0 : index
    %94 = vector.load %arg5[%c0_50, %c0_51] : memref<8x128xbf16, #tpu.memory_space<vmem>>, vector<8x128xbf16>
    %95 = arith.extf %94 : vector<8x128xbf16> to vector<8x128xf32>
    %96 = arith.addf %93, %95 : vector<8x128xf32>
    %c0_52 = arith.constant 0 : index
    %c0_53 = arith.constant 0 : index
    %97 = vector.load %arg6[%c0_52, %c0_53] : memref<1x128xf32, #tpu.memory_space<vmem>>, vector<1x128xf32>
    %c0_54 = arith.constant 0 : index
    %c0_55 = arith.constant 0 : index
    %98 = vector.load %arg7[%c0_54, %c0_55] : memref<1x128xf32, #tpu.memory_space<vmem>>, vector<1x128xf32>
    %cst_56 = arith.constant dense<0.000000e+00> : vector<8xf32>
    %99 = vector.multi_reduction <add>, %96, %cst_56 [1] : vector<8x128xf32> to vector<8xf32>
    %100 = vector.shape_cast %99 : vector<8xf32> to vector<8x1xf32>
    %cst_57 = arith.constant 1.280000e+02 : f32
    %101 = vector.broadcast %cst_57 : f32 to vector<8x1xf32>
    %102 = arith.divf %100, %101 : vector<8x1xf32>
    %103 = vector.broadcast %102 : vector<8x1xf32> to vector<8x128xf32>
    %104 = arith.subf %96, %103 : vector<8x128xf32>
    %105 = arith.mulf %104, %104 : vector<8x128xf32>
    %cst_58 = arith.constant dense<0.000000e+00> : vector<8xf32>
    %106 = vector.multi_reduction <add>, %105, %cst_58 [1] : vector<8x128xf32> to vector<8xf32>
    %107 = vector.shape_cast %106 : vector<8xf32> to vector<8x1xf32>
    %cst_59 = arith.constant 1.280000e+02 : f32
    %108 = vector.broadcast %cst_59 : f32 to vector<8x1xf32>
    %109 = arith.divf %107, %108 : vector<8x1xf32>
    %cst_60 = arith.constant 9.99999974E-6 : f32
    %110 = vector.broadcast %cst_60 : f32 to vector<8x1xf32>
    %111 = arith.addf %109, %110 : vector<8x1xf32>
    %112 = math.rsqrt %111 : vector<8x1xf32>
    %113 = vector.broadcast %112 : vector<8x1xf32> to vector<8x128xf32>
    %114 = arith.mulf %104, %113 : vector<8x128xf32>
    %115 = vector.broadcast %97 : vector<1x128xf32> to vector<8x128xf32>
    %116 = arith.mulf %114, %115 : vector<8x128xf32>
    %117 = vector.broadcast %98 : vector<1x128xf32> to vector<8x128xf32>
    %118 = arith.addf %116, %117 : vector<8x128xf32>
    %119 = arith.truncf %118 : vector<8x128xf32> to vector<8x128xbf16>
    %c0_61 = arith.constant 0 : index
    %c0_62 = arith.constant 0 : index
    %120 = vector.load %arg8[%c0_61, %c0_62] : memref<8x128xbf16, #tpu.memory_space<vmem>>, vector<8x128xbf16>
    tpu.vector_store %arg8[%c0_61, %c0_62], %119 {strides = array<i32>} : memref<8x128xbf16, #tpu.memory_space<vmem>>, vector<8x128xbf16>,
    return
  }
  func.func @transform_0(%arg0: i32) -> (i32, i32) {
    %c0_i32 = arith.constant 0 : i32
    %c0_i32_0 = arith.constant 0 : i32
    return %arg0, %c0_i32 : i32, i32
  }
  func.func @transform_1(%arg0: i32) -> (i32, i32) {
    %c0_i32 = arith.constant 0 : i32
    %c0_i32_0 = arith.constant 0 : i32
    %c0_i32_1 = arith.constant 0 : i32
    return %c0_i32, %c0_i32_0 : i32, i32
  }
  func.func @transform_2(%arg0: i32) -> (i32, i32) {
    %c0_i32 = arith.constant 0 : i32
    %c0_i32_0 = arith.constant 0 : i32
    %c0_i32_1 = arith.constant 0 : i32
    return %c0_i32, %c0_i32_0 : i32, i32
  }
  func.func @transform_3(%arg0: i32) -> (i32, i32) {
    %c0_i32 = arith.constant 0 : i32
    %c0_i32_0 = arith.constant 0 : i32
    %c0_i32_1 = arith.constant 0 : i32
    return %c0_i32, %c0_i32_0 : i32, i32
  }
  func.func @transform_4(%arg0: i32) -> (i32, i32) {
    %c0_i32 = arith.constant 0 : i32
    %c0_i32_0 = arith.constant 0 : i32
    return %arg0, %c0_i32 : i32, i32
  }
  func.func @transform_5(%arg0: i32) -> (i32, i32) {
    %c0_i32 = arith.constant 0 : i32
    %c0_i32_0 = arith.constant 0 : i32
    %c0_i32_1 = arith.constant 0 : i32
    return %c0_i32, %c0_i32_0 : i32, i32
  }
  func.func @transform_6(%arg0: i32) -> (i32, i32) {
    %c0_i32 = arith.constant 0 : i32
    %c0_i32_0 = arith.constant 0 : i32
    %c0_i32_1 = arith.constant 0 : i32
    return %c0_i32, %c0_i32_0 : i32, i32
  }
  func.func @transform_7(%arg0: i32) -> (i32, i32) {
    %c0_i32 = arith.constant 0 : i32
    %c0_i32_0 = arith.constant 0 : i32
    return %arg0, %c0_i32 : i32, i32
  }
}

module attributes {stable_mosaic.version = 11 : i64} {
  func.func @_ffn_kernel(%arg0: i32, %arg1: memref<8x128xbf16, #tpu.memory_space<vmem>>, %arg2: memref<128x256xbf16, #tpu.memory_space<vmem>>, %arg3: memref<1x256xf32, #tpu.memory_space<vmem>>, %arg4: memref<256x128xbf16, #tpu.memory_space<vmem>>, %arg5: memref<1x128xf32, #tpu.memory_space<vmem>>, %arg6: memref<8x128xbf16, #tpu.memory_space<vmem>>, %arg7: memref<1x128xf32, #tpu.memory_space<vmem>>, %arg8: memref<1x128xf32, #tpu.memory_space<vmem>>, %arg9: memref<8x128xbf16, #tpu.memory_space<vmem>>) attributes {dimension_semantics = [#tpu.dimension_semantics<parallel>], iteration_bounds = array<i64: 1>, scalar_prefetch = 0 : i64, scratch_operands = 0 : i64, tpu.core_type = #tpu.core_type<tc>, window_params = [{transform_indices = @transform_0, window_bounds = array<i64: 8, 128>}, {pipeline_mode = #tpu.pipeline_mode<synchronous>, transform_indices = @transform_1, window_bounds = array<i64: 128, 256>}, {pipeline_mode = #tpu.pipeline_mode<synchronous>, transform_indices = @transform_2, window_bounds = array<i64: 1, 256>}, {pipeline_mode = #tpu.pipeline_mode<synchronous>, transform_indices = @transform_3, window_bounds = array<i64: 256, 128>}, {pipeline_mode = #tpu.pipeline_mode<synchronous>, transform_indices = @transform_4, window_bounds = array<i64: 1, 128>}, {transform_indices = @transform_5, window_bounds = array<i64: 8, 128>}, {pipeline_mode = #tpu.pipeline_mode<synchronous>, transform_indices = @transform_6, window_bounds = array<i64: 1, 128>}, {pipeline_mode = #tpu.pipeline_mode<synchronous>, transform_indices = @transform_7, window_bounds = array<i64: 1, 128>}, {transform_indices = @transform_8, window_bounds = array<i64: 8, 128>}]} {
    %c0 = arith.constant 0 : index
    %c0_0 = arith.constant 0 : index
    %0 = vector.load %arg1[%c0, %c0_0] : memref<8x128xbf16, #tpu.memory_space<vmem>>, vector<8x128xbf16>
    %cst = arith.constant 0.000000e+00 : f32
    %1 = vector.broadcast %cst : f32 to vector<8x128xf32>
    %c0_1 = arith.constant 0 : index
    %c0_2 = arith.constant 0 : index
    %2 = vector.load %arg2[%c0_1, %c0_2] : memref<128x256xbf16, #tpu.memory_space<vmem>>, vector<128x256xbf16>
    %cst_3 = arith.constant dense<0.000000e+00> : vector<8x256xf32>
    %3 = tpu.matmul %0, %2, %cst_3 {dimension_numbers = #tpu.dot_dimension_numbers<[1], [0], [0], [1], [0, 0, 1, 1], [], []>} : vector<8x128xbf16>, vector<128x256xbf16>, vector<8x256xf32> -> vector<8x256xf32>
    %c0_4 = arith.constant 0 : index
    %c0_5 = arith.constant 0 : index
    %4 = vector.load %arg3[%c0_4, %c0_5] : memref<1x256xf32, #tpu.memory_space<vmem>>, vector<1x256xf32>
    %5 = vector.broadcast %4 : vector<1x256xf32> to vector<8x256xf32>
    %6 = arith.addf %3, %5 : vector<8x256xf32>
    %cst_6 = arith.constant 5.000000e-01 : f32
    %7 = vector.broadcast %cst_6 : f32 to vector<8x256xf32>
    %8 = arith.mulf %7, %6 : vector<8x256xf32>
    %cst_7 = arith.constant 0.707106769 : f32
    %9 = vector.broadcast %cst_7 : f32 to vector<8x256xf32>
    %10 = arith.mulf %6, %9 : vector<8x256xf32>
    %11 = math.erf %10 : vector<8x256xf32>
    %cst_8 = arith.constant 1.000000e+00 : f32
    %12 = vector.broadcast %cst_8 : f32 to vector<8x256xf32>
    %13 = arith.addf %12, %11 : vector<8x256xf32>
    %14 = arith.mulf %8, %13 : vector<8x256xf32>
    %15 = arith.truncf %14 : vector<8x256xf32> to vector<8x256xbf16>
    %c0_9 = arith.constant 0 : index
    %c0_10 = arith.constant 0 : index
    %16 = vector.load %arg4[%c0_9, %c0_10] : memref<256x128xbf16, #tpu.memory_space<vmem>>, vector<256x128xbf16>
    %cst_11 = arith.constant dense<0.000000e+00> : vector<8x128xf32>
    %17 = tpu.matmul %15, %16, %cst_11 {dimension_numbers = #tpu.dot_dimension_numbers<[1], [0], [0], [1], [0, 0, 1, 1], [], []>} : vector<8x256xbf16>, vector<256x128xbf16>, vector<8x128xf32> -> vector<8x128xf32>
    %18 = arith.addf %1, %17 : vector<8x128xf32>
    %c0_12 = arith.constant 0 : index
    %c0_13 = arith.constant 0 : index
    %19 = vector.load %arg5[%c0_12, %c0_13] : memref<1x128xf32, #tpu.memory_space<vmem>>, vector<1x128xf32>
    %20 = vector.broadcast %19 : vector<1x128xf32> to vector<8x128xf32>
    %21 = arith.addf %18, %20 : vector<8x128xf32>
    %c0_14 = arith.constant 0 : index
    %c0_15 = arith.constant 0 : index
    %22 = vector.load %arg6[%c0_14, %c0_15] : memref<8x128xbf16, #tpu.memory_space<vmem>>, vector<8x128xbf16>
    %23 = arith.extf %22 : vector<8x128xbf16> to vector<8x128xf32>
    %24 = arith.addf %21, %23 : vector<8x128xf32>
    %c0_16 = arith.constant 0 : index
    %c0_17 = arith.constant 0 : index
    %25 = vector.load %arg7[%c0_16, %c0_17] : memref<1x128xf32, #tpu.memory_space<vmem>>, vector<1x128xf32>
    %c0_18 = arith.constant 0 : index
    %c0_19 = arith.constant 0 : index
    %26 = vector.load %arg8[%c0_18, %c0_19] : memref<1x128xf32, #tpu.memory_space<vmem>>, vector<1x128xf32>
    %cst_20 = arith.constant dense<0.000000e+00> : vector<8xf32>
    %27 = vector.multi_reduction <add>, %24, %cst_20 [1] : vector<8x128xf32> to vector<8xf32>
    %28 = vector.shape_cast %27 : vector<8xf32> to vector<8x1xf32>
    %cst_21 = arith.constant 1.280000e+02 : f32
    %29 = vector.broadcast %cst_21 : f32 to vector<8x1xf32>
    %30 = arith.divf %28, %29 : vector<8x1xf32>
    %31 = vector.broadcast %30 : vector<8x1xf32> to vector<8x128xf32>
    %32 = arith.subf %24, %31 : vector<8x128xf32>
    %33 = arith.mulf %32, %32 : vector<8x128xf32>
    %cst_22 = arith.constant dense<0.000000e+00> : vector<8xf32>
    %34 = vector.multi_reduction <add>, %33, %cst_22 [1] : vector<8x128xf32> to vector<8xf32>
    %35 = vector.shape_cast %34 : vector<8xf32> to vector<8x1xf32>
    %cst_23 = arith.constant 1.280000e+02 : f32
    %36 = vector.broadcast %cst_23 : f32 to vector<8x1xf32>
    %37 = arith.divf %35, %36 : vector<8x1xf32>
    %cst_24 = arith.constant 9.99999974E-6 : f32
    %38 = vector.broadcast %cst_24 : f32 to vector<8x1xf32>
    %39 = arith.addf %37, %38 : vector<8x1xf32>
    %40 = math.rsqrt %39 : vector<8x1xf32>
    %41 = vector.broadcast %40 : vector<8x1xf32> to vector<8x128xf32>
    %42 = arith.mulf %32, %41 : vector<8x128xf32>
    %43 = vector.broadcast %25 : vector<1x128xf32> to vector<8x128xf32>
    %44 = arith.mulf %42, %43 : vector<8x128xf32>
    %45 = vector.broadcast %26 : vector<1x128xf32> to vector<8x128xf32>
    %46 = arith.addf %44, %45 : vector<8x128xf32>
    %47 = arith.truncf %46 : vector<8x128xf32> to vector<8x128xbf16>
    %c0_25 = arith.constant 0 : index
    %c0_26 = arith.constant 0 : index
    %48 = vector.load %arg9[%c0_25, %c0_26] : memref<8x128xbf16, #tpu.memory_space<vmem>>, vector<8x128xbf16>
    tpu.vector_store %arg9[%c0_25, %c0_26], %47 {strides = array<i32>} : memref<8x128xbf16, #tpu.memory_space<vmem>>, vector<8x128xbf16>,
    return
  }
  func.func @transform_0(%arg0: i32) -> (i32, i32) {
    %c0_i32 = arith.constant 0 : i32
    %c0_i32_0 = arith.constant 0 : i32
    return %arg0, %c0_i32 : i32, i32
  }
  func.func @transform_1(%arg0: i32) -> (i32, i32) {
    %c0_i32 = arith.constant 0 : i32
    %c0_i32_0 = arith.constant 0 : i32
    %c0_i32_1 = arith.constant 0 : i32
    return %c0_i32, %c0_i32_0 : i32, i32
  }
  func.func @transform_2(%arg0: i32) -> (i32, i32) {
    %c0_i32 = arith.constant 0 : i32
    %c0_i32_0 = arith.constant 0 : i32
    %c0_i32_1 = arith.constant 0 : i32
    return %c0_i32, %c0_i32_0 : i32, i32
  }
  func.func @transform_3(%arg0: i32) -> (i32, i32) {
    %c0_i32 = arith.constant 0 : i32
    %c0_i32_0 = arith.constant 0 : i32
    %c0_i32_1 = arith.constant 0 : i32
    return %c0_i32, %c0_i32_0 : i32, i32
  }
  func.func @transform_4(%arg0: i32) -> (i32, i32) {
    %c0_i32 = arith.constant 0 : i32
    %c0_i32_0 = arith.constant 0 : i32
    %c0_i32_1 = arith.constant 0 : i32
    return %c0_i32, %c0_i32_0 : i32, i32
  }
  func.func @transform_5(%arg0: i32) -> (i32, i32) {
    %c0_i32 = arith.constant 0 : i32
    %c0_i32_0 = arith.constant 0 : i32
    return %arg0, %c0_i32 : i32, i32
  }
  func.func @transform_6(%arg0: i32) -> (i32, i32) {
    %c0_i32 = arith.constant 0 : i32
    %c0_i32_0 = arith.constant 0 : i32
    %c0_i32_1 = arith.constant 0 : i32
    return %c0_i32, %c0_i32_0 : i32, i32
  }
  func.func @transform_7(%arg0: i32) -> (i32, i32) {
    %c0_i32 = arith.constant 0 : i32
    %c0_i32_0 = arith.constant 0 : i32
    %c0_i32_1 = arith.constant 0 : i32
    return %c0_i32, %c0_i32_0 : i32, i32
  }
  func.func @transform_8(%arg0: i32) -> (i32, i32) {
    %c0_i32 = arith.constant 0 : i32
    %c0_i32_0 = arith.constant 0 : i32
    return %arg0, %c0_i32 : i32, i32
  }
}

module attributes {stable_mosaic.version = 11 : i64} {
  func.func @_ffn_kernel(%arg0: i32, %arg1: memref<8x128xbf16, #tpu.memory_space<vmem>>, %arg2: memref<128x256xbf16, #tpu.memory_space<vmem>>, %arg3: memref<1x256xf32, #tpu.memory_space<vmem>>, %arg4: memref<256x128xbf16, #tpu.memory_space<vmem>>, %arg5: memref<1x128xf32, #tpu.memory_space<vmem>>, %arg6: memref<8x128xbf16, #tpu.memory_space<vmem>>, %arg7: memref<1x128xf32, #tpu.memory_space<vmem>>, %arg8: memref<1x128xf32, #tpu.memory_space<vmem>>, %arg9: memref<8x128xbf16, #tpu.memory_space<vmem>>) attributes {dimension_semantics = [#tpu.dimension_semantics<parallel>], iteration_bounds = array<i64: 1>, scalar_prefetch = 0 : i64, scratch_operands = 0 : i64, tpu.core_type = #tpu.core_type<tc>, window_params = [{transform_indices = @transform_0, window_bounds = array<i64: 8, 128>}, {pipeline_mode = #tpu.pipeline_mode<synchronous>, transform_indices = @transform_1, window_bounds = array<i64: 128, 256>}, {pipeline_mode = #tpu.pipeline_mode<synchronous>, transform_indices = @transform_2, window_bounds = array<i64: 1, 256>}, {pipeline_mode = #tpu.pipeline_mode<synchronous>, transform_indices = @transform_3, window_bounds = array<i64: 256, 128>}, {pipeline_mode = #tpu.pipeline_mode<synchronous>, transform_indices = @transform_4, window_bounds = array<i64: 1, 128>}, {transform_indices = @transform_5, window_bounds = array<i64: 8, 128>}, {pipeline_mode = #tpu.pipeline_mode<synchronous>, transform_indices = @transform_6, window_bounds = array<i64: 1, 128>}, {pipeline_mode = #tpu.pipeline_mode<synchronous>, transform_indices = @transform_7, window_bounds = array<i64: 1, 128>}, {transform_indices = @transform_8, window_bounds = array<i64: 8, 128>}]} {
    %c0 = arith.constant 0 : index
    %c0_0 = arith.constant 0 : index
    %0 = vector.load %arg1[%c0, %c0_0] : memref<8x128xbf16, #tpu.memory_space<vmem>>, vector<8x128xbf16>
    %cst = arith.constant 0.000000e+00 : f32
    %1 = vector.broadcast %cst : f32 to vector<8x128xf32>
    %c0_1 = arith.constant 0 : index
    %c0_2 = arith.constant 0 : index
    %2 = vector.load %arg2[%c0_1, %c0_2] : memref<128x256xbf16, #tpu.memory_space<vmem>>, vector<128x256xbf16>
    %cst_3 = arith.constant dense<0.000000e+00> : vector<8x256xf32>
    %3 = tpu.matmul %0, %2, %cst_3 {dimension_numbers = #tpu.dot_dimension_numbers<[1], [0], [0], [1], [0, 0, 1, 1], [], []>} : vector<8x128xbf16>, vector<128x256xbf16>, vector<8x256xf32> -> vector<8x256xf32>
    %c0_4 = arith.constant 0 : index
    %c0_5 = arith.constant 0 : index
    %4 = vector.load %arg3[%c0_4, %c0_5] : memref<1x256xf32, #tpu.memory_space<vmem>>, vector<1x256xf32>
    %5 = vector.broadcast %4 : vector<1x256xf32> to vector<8x256xf32>
    %6 = arith.addf %3, %5 : vector<8x256xf32>
    %cst_6 = arith.constant 5.000000e-01 : f32
    %7 = vector.broadcast %cst_6 : f32 to vector<8x256xf32>
    %8 = arith.mulf %7, %6 : vector<8x256xf32>
    %cst_7 = arith.constant 0.707106769 : f32
    %9 = vector.broadcast %cst_7 : f32 to vector<8x256xf32>
    %10 = arith.mulf %6, %9 : vector<8x256xf32>
    %11 = math.erf %10 : vector<8x256xf32>
    %cst_8 = arith.constant 1.000000e+00 : f32
    %12 = vector.broadcast %cst_8 : f32 to vector<8x256xf32>
    %13 = arith.addf %12, %11 : vector<8x256xf32>
    %14 = arith.mulf %8, %13 : vector<8x256xf32>
    %15 = arith.truncf %14 : vector<8x256xf32> to vector<8x256xbf16>
    %c0_9 = arith.constant 0 : index
    %c0_10 = arith.constant 0 : index
    %16 = vector.load %arg4[%c0_9, %c0_10] : memref<256x128xbf16, #tpu.memory_space<vmem>>, vector<256x128xbf16>
    %cst_11 = arith.constant dense<0.000000e+00> : vector<8x128xf32>
    %17 = tpu.matmul %15, %16, %cst_11 {dimension_numbers = #tpu.dot_dimension_numbers<[1], [0], [0], [1], [0, 0, 1, 1], [], []>} : vector<8x256xbf16>, vector<256x128xbf16>, vector<8x128xf32> -> vector<8x128xf32>
    %18 = arith.addf %1, %17 : vector<8x128xf32>
    %c0_12 = arith.constant 0 : index
    %c0_13 = arith.constant 0 : index
    %19 = vector.load %arg5[%c0_12, %c0_13] : memref<1x128xf32, #tpu.memory_space<vmem>>, vector<1x128xf32>
    %20 = vector.broadcast %19 : vector<1x128xf32> to vector<8x128xf32>
    %21 = arith.addf %18, %20 : vector<8x128xf32>
    %c0_14 = arith.constant 0 : index
    %c0_15 = arith.constant 0 : index
    %22 = vector.load %arg6[%c0_14, %c0_15] : memref<8x128xbf16, #tpu.memory_space<vmem>>, vector<8x128xbf16>
    %23 = arith.extf %22 : vector<8x128xbf16> to vector<8x128xf32>
    %24 = arith.addf %21, %23 : vector<8x128xf32>
    %c0_16 = arith.constant 0 : index
    %c0_17 = arith.constant 0 : index
    %25 = vector.load %arg7[%c0_16, %c0_17] : memref<1x128xf32, #tpu.memory_space<vmem>>, vector<1x128xf32>
    %c0_18 = arith.constant 0 : index
    %c0_19 = arith.constant 0 : index
    %26 = vector.load %arg8[%c0_18, %c0_19] : memref<1x128xf32, #tpu.memory_space<vmem>>, vector<1x128xf32>
    %cst_20 = arith.constant dense<0.000000e+00> : vector<8xf32>
    %27 = vector.multi_reduction <add>, %24, %cst_20 [1] : vector<8x128xf32> to vector<8xf32>
    %28 = vector.shape_cast %27 : vector<8xf32> to vector<8x1xf32>
    %cst_21 = arith.constant 1.280000e+02 : f32
    %29 = vector.broadcast %cst_21 : f32 to vector<8x1xf32>
    %30 = arith.divf %28, %29 : vector<8x1xf32>
    %31 = vector.broadcast %30 : vector<8x1xf32> to vector<8x128xf32>
    %32 = arith.subf %24, %31 : vector<8x128xf32>
    %33 = arith.mulf %32, %32 : vector<8x128xf32>
    %cst_22 = arith.constant dense<0.000000e+00> : vector<8xf32>
    %34 = vector.multi_reduction <add>, %33, %cst_22 [1] : vector<8x128xf32> to vector<8xf32>
    %35 = vector.shape_cast %34 : vector<8xf32> to vector<8x1xf32>
    %cst_23 = arith.constant 1.280000e+02 : f32
    %36 = vector.broadcast %cst_23 : f32 to vector<8x1xf32>
    %37 = arith.divf %35, %36 : vector<8x1xf32>
    %cst_24 = arith.constant 9.99999974E-6 : f32
    %38 = vector.broadcast %cst_24 : f32 to vector<8x1xf32>
    %39 = arith.addf %37, %38 : vector<8x1xf32>
    %40 = math.rsqrt %39 : vector<8x1xf32>
    %41 = vector.broadcast %40 : vector<8x1xf32> to vector<8x128xf32>
    %42 = arith.mulf %32, %41 : vector<8x128xf32>
    %43 = vector.broadcast %25 : vector<1x128xf32> to vector<8x128xf32>
    %44 = arith.mulf %42, %43 : vector<8x128xf32>
    %45 = vector.broadcast %26 : vector<1x128xf32> to vector<8x128xf32>
    %46 = arith.addf %44, %45 : vector<8x128xf32>
    %47 = arith.truncf %46 : vector<8x128xf32> to vector<8x128xbf16>
    %c0_25 = arith.constant 0 : index
    %c0_26 = arith.constant 0 : index
    %48 = vector.load %arg9[%c0_25, %c0_26] : memref<8x128xbf16, #tpu.memory_space<vmem>>, vector<8x128xbf16>
    tpu.vector_store %arg9[%c0_25, %c0_26], %47 {strides = array<i32>} : memref<8x128xbf16, #tpu.memory_space<vmem>>, vector<8x128xbf16>,
    return
  }
  func.func @transform_0(%arg0: i32) -> (i32, i32) {
    %c0_i32 = arith.constant 0 : i32
    %c0_i32_0 = arith.constant 0 : i32
    return %arg0, %c0_i32 : i32, i32
  }
  func.func @transform_1(%arg0: i32) -> (i32, i32) {
    %c0_i32 = arith.constant 0 : i32
    %c0_i32_0 = arith.constant 0 : i32
    %c0_i32_1 = arith.constant 0 : i32
    return %c0_i32, %c0_i32_0 : i32, i32
  }
  func.func @transform_2(%arg0: i32) -> (i32, i32) {
    %c0_i32 = arith.constant 0 : i32
    %c0_i32_0 = arith.constant 0 : i32
    %c0_i32_1 = arith.constant 0 : i32
    return %c0_i32, %c0_i32_0 : i32, i32
  }
  func.func @transform_3(%arg0: i32) -> (i32, i32) {
    %c0_i32 = arith.constant 0 : i32
    %c0_i32_0 = arith.constant 0 : i32
    %c0_i32_1 = arith.constant 0 : i32
    return %c0_i32, %c0_i32_0 : i32, i32
  }
  func.func @transform_4(%arg0: i32) -> (i32, i32) {
    %c0_i32 = arith.constant 0 : i32
    %c0_i32_0 = arith.constant 0 : i32
    %c0_i32_1 = arith.constant 0 : i32
    return %c0_i32, %c0_i32_0 : i32, i32
  }
  func.func @transform_5(%arg0: i32) -> (i32, i32) {
    %c0_i32 = arith.constant 0 : i32
    %c0_i32_0 = arith.constant 0 : i32
    return %arg0, %c0_i32 : i32, i32
  }
  func.func @transform_6(%arg0: i32) -> (i32, i32) {
    %c0_i32 = arith.constant 0 : i32
    %c0_i32_0 = arith.constant 0 : i32
    %c0_i32_1 = arith.constant 0 : i32
    return %c0_i32, %c0_i32_0 : i32, i32
  }
  func.func @transform_7(%arg0: i32) -> (i32, i32) {
    %c0_i32 = arith.constant 0 : i32
    %c0_i32_0 = arith.constant 0 : i32
    %c0_i32_1 = arith.constant 0 : i32
    return %c0_i32, %c0_i32_0 : i32, i32
  }
  func.func @transform_8(%arg0: i32) -> (i32, i32) {
    %c0_i32 = arith.constant 0 : i32
    %c0_i32_0 = arith.constant 0 : i32
    return %arg0, %c0_i32 : i32, i32
  }
}

</mosaic_0001>

<llo_original>
// kernel: fwd.21
$region0: #{fwd.21}
  #allocation0 [shape = 'u32[]', space=smem, size = 0x4, offset = 0x4, fixed_abs, tag = 'smem constant byte address 0x4 - core index']
  #allocation1 [shape = 'u32[72,128]{1,0:T(1,128)}', space=vmem, size = 0x9000, scoped, tag = 'internal scratch']
  #allocation2 [shape = 'f32[16,128]{1,0:T(8,128)}', space=vmem, size = 0x2000, scoped, tag = 'scratch operand']
  %s0 = inlined_call_operand.vmem [shape: bf16[16,128], index: 0, kind: input, shape index: {}]
  %s1 = inlined_call_operand.vmem [shape: bf16[128,384], index: 1, kind: input, shape index: {}]
  %s2 = inlined_call_operand.vmem [shape: f32[1,384], index: 2, kind: input, shape index: {}]
  %s3 = inlined_call_operand.vmem [shape: bf16[16,384], index: 3, kind: output, shape index: {}]
  %s4 = sld [smem:[#allocation0]]
  $region131: #{fwd.21} parent=0
    _
  %s6 = ssub.s32 1, %s4
  %s7 = scalar_select 0, %s6, %s4
  $region1: #{fwd.21} parent=0
    #allocation3 [shape = 'u8[65536]{0}', space=vmem, size = 0x10000, scoped, tag = 'input window, operand 1']
    #allocation4 [shape = 'u8[8192]{0}', space=vmem, size = 0x2000, scoped, tag = 'output window, operand 0']
    loop: start=0, step=1, limit=5
    $region2: #{fwd.21} parent=1 // loop_pre_header
      _
    $region3: #{fwd.21} parent=1 // loop_header
      %s9 = sphi 0, %s13
      %p10 = scmp.ge.s32.totalorder %s9, 5
      %s16 = sphi 0, %s35
      %s17 = sphi 0, %s31
      %s18 = sphi 0, %s27
      %s19 = sphi 0, %s16
      %s20 = sphi 0, %s17
      %s21 = sphi 0, %s18
      %s22 = sphi 0, %s19
      %s23 = sphi 0, %s20
      %s24 = sphi 0, %s21
      %s40 = sphi 0, %s42
      %s43 = sphi 0, %s40
      %s44 = sphi 0, %s43
      %s60 = sphi 0, %s44
      %s68 = sphi 0, %s70
      %s71 = sphi 0, %s68
      %s72 = sphi 0, %s71
      %s88 = sphi 0, %s72
      %s94 = sphi 0, %s96
      %s97 = sphi 0, %s94
      %s98 = sphi 0, %s97
      %s114 = sphi 0, %s98
      %s122 = sphi 0, %s124
      %s125 = sphi 0, %s122
      %s126 = sphi 0, %s125
      %s142 = sphi 0, %s126
    $region4: #{fwd.21} parent=1 // loop_header_branch
      %12 = sbr.rel (%p10) target = $region8
    $region5: #{fwd.21} parent=1 // loop_body
      %s14 = ssub.s32 %s9, 1
      %s15 = ssub.s32 %s9, 2
      %s25 = sadd.s32 1, %s18
      %p26 = scmp.ge.s32.totalorder %s25, 1
      %s27 = scalar_select %p26, 0, %s25
      %s28 = sadd.s32 1, %s17
      %s29 = scalar_select %p26, %s28, %s17
      %p30 = scmp.ge.s32.totalorder %s29, 3
      %s31 = scalar_select %p30, 0, %s29
      %s32 = sadd.s32 1, %s16
      %s33 = scalar_select %p30, %s32, %s16
      %p34 = scmp.ge.s32.totalorder %s33, 1
      %s35 = scalar_select %p34, 0, %s33
      %s36 = ssub.s32 %s16, %s35
      %s37 = ssub.s32 %s18, %s27
      %s38 = sor.u32 %s36, %s37
      %p39 = scmp.eq.s32.totalorder %s38, 0
      %s41 = sadd.s32 %s40, 1
      %s42 = scalar_select %p39, %s40, %s41
      %p45 = pneg %p39
      %p46 = scmp.eq.s32.totalorder %s9, 2
      %p47 = por %p45, %p46
      %p48 = scmp.ne.s32.totalorder %s40, %s43
      %p49 = scmp.eq.s32.totalorder %s9, 0
      %p50 = por %p48, %p49
      %p51 = scmp.ne.s32.totalorder %s40, %s43
      %p52 = scmp.eq.s32.totalorder %s14, 2
      %p53 = por %p51, %p52
      %p54 = scmp.ne.s32.totalorder %s43, %s44
      %p55 = scmp.eq.s32.totalorder %s14, 0
      %p56 = por %p54, %p55
      %p57 = scmp.ne.s32.totalorder %s43, %s44
      %p58 = scmp.eq.s32.totalorder %s15, 2
      %p59 = por %p57, %p58
      %p61 = scmp.ne.s32.totalorder %s44, %s60
      %p62 = scmp.eq.s32.totalorder %s15, 0
      %p63 = por %p61, %p62
      %s64 = ssub.s32 %s18, %s27
      %s65 = ssub.s32 %s17, %s31
      %s66 = sor.u32 %s64, %s65
      %p67 = scmp.eq.s32.totalorder %s66, 0
      %s69 = sadd.s32 %s68, 1
      %s70 = scalar_select %p67, %s68, %s69
      %p73 = pneg %p67
      %p74 = scmp.eq.s32.totalorder %s9, 2
      %p75 = por %p73, %p74
      %p76 = scmp.ne.s32.totalorder %s68, %s71
      %p77 = scmp.eq.s32.totalorder %s9, 0
      %p78 = por %p76, %p77
      %p79 = scmp.ne.s32.totalorder %s68, %s71
      %p80 = scmp.eq.s32.totalorder %s14, 2
      %p81 = por %p79, %p80
      %p82 = scmp.ne.s32.totalorder %s71, %s72
      %p83 = scmp.eq.s32.totalorder %s14, 0
      %p84 = por %p82, %p83
      %p85 = scmp.ne.s32.totalorder %s71, %s72
      %p86 = scmp.eq.s32.totalorder %s15, 2
      %p87 = por %p85, %p86
      %p89 = scmp.ne.s32.totalorder %s72, %s88
      %p90 = scmp.eq.s32.totalorder %s15, 0
      %p91 = por %p89, %p90
      %s92 = ssub.s32 %s17, %s31
      %p93 = scmp.eq.s32.totalorder %s92, 0
      %s95 = sadd.s32 %s94, 1
      %s96 = scalar_select %p93, %s94, %s95
      %p99 = pneg %p93
      %p100 = scmp.eq.s32.totalorder %s9, 2
      %p101 = por %p99, %p100
      %p102 = scmp.ne.s32.totalorder %s94, %s97
      %p103 = scmp.eq.s32.totalorder %s9, 0
      %p104 = por %p102, %p103
      %p105 = scmp.ne.s32.totalorder %s94, %s97
      %p106 = scmp.eq.s32.totalorder %s14, 2
      %p107 = por %p105, %p106
      %p108 = scmp.ne.s32.totalorder %s97, %s98
      %p109 = scmp.eq.s32.totalorder %s14, 0
      %p110 = por %p108, %p109
      %p111 = scmp.ne.s32.totalorder %s97, %s98
      %p112 = scmp.eq.s32.totalorder %s15, 2
      %p113 = por %p111, %p112
      %p115 = scmp.ne.s32.totalorder %s98, %s114
      %p116 = scmp.eq.s32.totalorder %s15, 0
      %p117 = por %p115, %p116
      %s118 = ssub.s32 %s16, %s35
      %s119 = ssub.s32 %s17, %s31
      %s120 = sor.u32 %s118, %s119
      %p121 = scmp.eq.s32.totalorder %s120, 0
      %s123 = sadd.s32 %s122, 1
      %s124 = scalar_select %p121, %s122, %s123
      %p127 = pneg %p121
      %p128 = scmp.eq.s32.totalorder %s9, 2
      %p129 = por %p127, %p128
      %p130 = scmp.ne.s32.totalorder %s122, %s125
      %p131 = scmp.eq.s32.totalorder %s9, 0
      %p132 = por %p130, %p131
      %p133 = scmp.ne.s32.totalorder %s122, %s125
      %p134 = scmp.eq.s32.totalorder %s14, 2
      %p135 = por %p133, %p134
      %p136 = scmp.ne.s32.totalorder %s125, %s126
      %p137 = scmp.eq.s32.totalorder %s14, 0
      %p138 = por %p136, %p137
      %p139 = scmp.ne.s32.totalorder %s125, %s126
      %p140 = scmp.eq.s32.totalorder %s15, 2
      %p141 = por %p139, %p140
      %p143 = scmp.ne.s32.totalorder %s126, %s142
      %p144 = scmp.eq.s32.totalorder %s15, 0
      %p145 = por %p143, %p144
      %p146 = scmp.le.s32.totalorder 1, %s9
      %p147 = scmp.lt.s32.totalorder %s9, 4
      %p148 = pnand %p146, %p147
      %p149 = pneg %p148
      // Predicated region
      $region9: #{fwd.21} parent=5 // pred_check
        _
      $region10: #{fwd.21} parent=5 // pred_check_branch
        %151 = sbr.rel (%p148) target = $region12
      $region11: #{fwd.21} parent=5 // pred_region
        %s152 = ssub.s32 %s9, 1
        // Predicated region
        $region13: #{fwd.21} parent=11 // pred_check
          %p153 = pneg %p56
        $region14: #{fwd.21} parent=11 // pred_check_branch
          %155 = sbr.rel (%p153) target = $region16
        $region15: #{fwd.21} parent=11 // pred_region
          %s156 = smul.u32 2, %s19
          %p157 = scmp.lt.s32.totalorder %s156, 1
          %s158 = scalar_select %p157, %s156, 1
          %p159 = scmp.lt.s32.totalorder %s21, 0
          %s160 = scalar_select %p159, %s21, 0
          %s161 = sadd.s32 %s160, %s158
          %s162 = smul.addr %s161, 4
          %s163 = scalar_lea.vmem %s0, %s162
          %s164 = smul.u32 2, %s19
        $region16: #{fwd.21} parent=11 // pred_fallthru
          _
      $region12: #{fwd.21} parent=5 // pred_fallthru
        _
      %p165 = scmp.lt.s32.totalorder %s9, 3
      // Predicated region
      $region17: #{fwd.21} parent=5 // pred_check
        %p166 = pneg %p165
      $region18: #{fwd.21} parent=5 // pred_check_branch
        %168 = sbr.rel (%p166) target = $region20
      $region19: #{fwd.21} parent=5 // pred_region
        // Predicated region
        $region21: #{fwd.21} parent=19 // pred_check
          %p169 = pneg %p78
        $region22: #{fwd.21} parent=19 // pred_check_branch
          %171 = sbr.rel (%p169) target = $region24
        $region23: #{fwd.21} parent=19 // pred_region
          %s172 = sand.u32 %s68, 1
          %s173 = sand.u32 %s68, 1
          %s174 = smul.addr %s173, 64
          %s175 = scalar_lea.vmem [#allocation3], %s174
          %s176 = smul.u32 16, %s18
          %s177 = smul.addr %s176, 3
          %s178 = sadd.s32 %s17, %s177
          %s179 = smul.addr %s178, 4
          %s180 = scalar_lea.vmem %s1, %s179
          // Predicated region
          $region25: #{fwd.21} parent=23 // pred_check
            _
          $region26: #{fwd.21} parent=23 // pred_check_branch
            %182 = sbr.rel (0) target = $region28
          $region27: #{fwd.21} parent=23 // pred_region
            // Predicated region
            $region29: #{fwd.21} parent=27 // pred_check
              _
            $region30: #{fwd.21} parent=27 // pred_check_branch
              %184 = sbr.rel target = $region32
            $region31: #{fwd.21} parent=27 // pred_region
              // Predicated region
              $region44: #{fwd.21} parent=31 // pred_check
                _
              $region45: #{fwd.21} parent=31 // pred_check_branch
                %230 = sbr.rel (0) target = $region47
              $region46: #{fwd.21} parent=31 // pred_region
                loop: start=0, step=1, limit=1
                $region48: #{fwd.21} parent=46 // loop_pre_header
                  _
                $region49: #{fwd.21} parent=46 // loop_header
                  %s232 = sphi 0, %s236
                  %p233 = scmp.ge.s32.totalorder %s232, 1
                  %s237 = sphi %s180, %s180
                  %s238 = sphi %s175, %s175
                $region50: #{fwd.21} parent=46 // loop_header_branch
                  %235 = sbr.rel (%p233) target = $region54
                $region51: #{fwd.21} parent=46 // loop_body
                  _
                $region52: #{fwd.21} parent=46 // loop_footer
                  %s236 = sadd.s32 1, %s232
                $region53: #{fwd.21} parent=46 // loop_footer_branch
                  %231 = sbr.rel target = $region49
                $region54: #{fwd.21} parent=46 // loop_exit
                  _
                %s240 = ssub.s32 16, 1
                loop: start=0, step=1, limit=1
                $region55: #{fwd.21} parent=46 // loop_pre_header
                  _
                $region56: #{fwd.21} parent=46 // loop_header
                  %s242 = sphi 0, %s246
                  %p243 = scmp.ge.s32.totalorder %s242, 1
                  %s247 = sphi %s180, %s180
                  %s248 = sphi %s175, %s175
                $region57: #{fwd.21} parent=46 // loop_header_branch
                  %245 = sbr.rel (%p243) target = $region61
                $region58: #{fwd.21} parent=46 // loop_body
                  %v249 = vld [vmem:[%s247] sm:%s240]
                  %250 = vst [vmem:[%s248] sm:%s240] %v249
                  %v251 = vld [vmem:[%s247 + $0xc] sm:%s240]
                  %252 = vst [vmem:[%s248 + $0x4] sm:%s240] %v251
                  %v253 = vld [vmem:[%s247 + $0x18] sm:%s240]
                  %254 = vst [vmem:[%s248 + $0x8] sm:%s240] %v253
                  %v255 = vld [vmem:[%s247 + $0x24] sm:%s240]
                  %256 = vst [vmem:[%s248 + $0xc] sm:%s240] %v255
                  %v257 = vld [vmem:[%s247 + $0x30] sm:%s240]
                  %258 = vst [vmem:[%s248 + $0x10] sm:%s240] %v257
                  %v259 = vld [vmem:[%s247 + $0x3c] sm:%s240]
                  %260 = vst [vmem:[%s248 + $0x14] sm:%s240] %v259
                  %v261 = vld [vmem:[%s247 + $0x48] sm:%s240]
                  %262 = vst [vmem:[%s248 + $0x18] sm:%s240] %v261
                  %v263 = vld [vmem:[%s247 + $0x54] sm:%s240]
                  %264 = vst [vmem:[%s248 + $0x1c] sm:%s240] %v263
                  %v265 = vld [vmem:[%s247 + $0x60] sm:%s240]
                  %266 = vst [vmem:[%s248 + $0x20] sm:%s240] %v265
                  %v267 = vld [vmem:[%s247 + $0x6c] sm:%s240]
                  %268 = vst [vmem:[%s248 + $0x24] sm:%s240] %v267
                  %v269 = vld [vmem:[%s247 + $0x78] sm:%s240]
                  %270 = vst [vmem:[%s248 + $0x28] sm:%s240] %v269
                  %v271 = vld [vmem:[%s247 + $0x84] sm:%s240]
                  %272 = vst [vmem:[%s248 + $0x2c] sm:%s240] %v271
                  %v273 = vld [vmem:[%s247 + $0x90] sm:%s240]
                  %274 = vst [vmem:[%s248 + $0x30] sm:%s240] %v273
                  %v275 = vld [vmem:[%s247 + $0x9c] sm:%s240]
                  %276 = vst [vmem:[%s248 + $0x34] sm:%s240] %v275
                  %v277 = vld [vmem:[%s247 + $0xa8] sm:%s240]
                  %278 = vst [vmem:[%s248 + $0x38] sm:%s240] %v277
                  %v279 = vld [vmem:[%s247 + $0xb4] sm:%s240]
                  %280 = vst [vmem:[%s248 + $0x3c] sm:%s240] %v279
                $region59: #{fwd.21} parent=46 // loop_footer
                  %s246 = sadd.s32 1, %s242
                $region60: #{fwd.21} parent=46 // loop_footer_branch
                  %241 = sbr.rel target = $region56
                $region61: #{fwd.21} parent=46 // loop_exit
                  _
              $region47: #{fwd.21} parent=31 // pred_fallthru
                _
            $region32: #{fwd.21} parent=27 // pred_fallthru
              _
            // Predicated region
            $region33: #{fwd.21} parent=27 // pred_check
              _
            $region34: #{fwd.21} parent=27 // pred_check_branch
              %186 = sbr.rel (0) target = $region36
            $region35: #{fwd.21} parent=27 // pred_region
              %s188 = ssub.s32 16, 1
              loop: start=0, step=1, limit=1
              $region37: #{fwd.21} parent=35 // loop_pre_header
                _
              $region38: #{fwd.21} parent=35 // loop_header
                %s190 = sphi 0, %s194
                %p191 = scmp.ge.s32.totalorder %s190, 1
                %s195 = sphi %s180, %s180
                %s196 = sphi %s175, %s175
              $region39: #{fwd.21} parent=35 // loop_header_branch
                %193 = sbr.rel (%p191) target = $region43
              $region40: #{fwd.21} parent=35 // loop_body
                %v197 = vld [vmem:[%s195] sm:%s188]
                %198 = vst [vmem:[%s196] sm:%s188] %v197
                %v199 = vld [vmem:[%s195 + $0xc] sm:%s188]
                %200 = vst [vmem:[%s196 + $0x4] sm:%s188] %v199
                %v201 = vld [vmem:[%s195 + $0x18] sm:%s188]
                %202 = vst [vmem:[%s196 + $0x8] sm:%s188] %v201
                %v203 = vld [vmem:[%s195 + $0x24] sm:%s188]
                %204 = vst [vmem:[%s196 + $0xc] sm:%s188] %v203
                %v205 = vld [vmem:[%s195 + $0x30] sm:%s188]
                %206 = vst [vmem:[%s196 + $0x10] sm:%s188] %v205
                %v207 = vld [vmem:[%s195 + $0x3c] sm:%s188]
                %208 = vst [vmem:[%s196 + $0x14] sm:%s188] %v207
                %v209 = vld [vmem:[%s195 + $0x48] sm:%s188]
                %210 = vst [vmem:[%s196 + $0x18] sm:%s188] %v209
                %v211 = vld [vmem:[%s195 + $0x54] sm:%s188]
                %212 = vst [vmem:[%s196 + $0x1c] sm:%s188] %v211
                %v213 = vld [vmem:[%s195 + $0x60] sm:%s188]
                %214 = vst [vmem:[%s196 + $0x20] sm:%s188] %v213
                %v215 = vld [vmem:[%s195 + $0x6c] sm:%s188]
                %216 = vst [vmem:[%s196 + $0x24] sm:%s188] %v215
                %v217 = vld [vmem:[%s195 + $0x78] sm:%s188]
                %218 = vst [vmem:[%s196 + $0x28] sm:%s188] %v217
                %v219 = vld [vmem:[%s195 + $0x84] sm:%s188]
                %220 = vst [vmem:[%s196 + $0x2c] sm:%s188] %v219
                %v221 = vld [vmem:[%s195 + $0x90] sm:%s188]
                %222 = vst [vmem:[%s196 + $0x30] sm:%s188] %v221
                %v223 = vld [vmem:[%s195 + $0x9c] sm:%s188]
                %224 = vst [vmem:[%s196 + $0x34] sm:%s188] %v223
                %v225 = vld [vmem:[%s195 + $0xa8] sm:%s188]
                %226 = vst [vmem:[%s196 + $0x38] sm:%s188] %v225
                %v227 = vld [vmem:[%s195 + $0xb4] sm:%s188]
                %228 = vst [vmem:[%s196 + $0x3c] sm:%s188] %v227
              $region41: #{fwd.21} parent=35 // loop_footer
                %s194 = sadd.s32 1, %s190
              $region42: #{fwd.21} parent=35 // loop_footer_branch
                %189 = sbr.rel target = $region38
              $region43: #{fwd.21} parent=35 // loop_exit
                _
            $region36: #{fwd.21} parent=27 // pred_fallthru
              _
          $region28: #{fwd.21} parent=23 // pred_fallthru
            _
          %281 = vnop
        $region24: #{fwd.21} parent=19 // pred_fallthru
          _
        // Predicated region
        $region62: #{fwd.21} parent=19 // pred_check
          %p282 = pneg %p104
        $region63: #{fwd.21} parent=19 // pred_check_branch
          %284 = sbr.rel (%p282) target = $region65
        $region64: #{fwd.21} parent=19 // pred_region
          %p285 = scmp.lt.s32.totalorder %s17, 2
          %s286 = scalar_select %p285, %s17, 2
          %s287 = scalar_lea.vmem %s2, %s286
        $region65: #{fwd.21} parent=19 // pred_fallthru
          _
      $region20: #{fwd.21} parent=5 // pred_fallthru
        _
      %p288 = scmp.le.s32.totalorder 1, %s9
      %p289 = scmp.lt.s32.totalorder %s9, 4
      %p290 = pnand %p288, %p289
      %p291 = pneg %p290
      // Predicated region
      $region66: #{fwd.21} parent=5 // pred_check
        _
      $region67: #{fwd.21} parent=5 // pred_check_branch
        %293 = sbr.rel (%p290) target = $region69
      $region68: #{fwd.21} parent=5 // pred_region
        %s294 = ssub.s32 %s9, 1
        %s295 = sand.u32 %s71, 1
        %s296 = sand.u32 %s71, 1
        %s297 = smul.addr %s296, 64
        %s298 = scalar_lea.vmem [#allocation3], %s297
        // Predicated region
        $region70: #{fwd.21} parent=68 // pred_check
          %p299 = pneg %p84
        $region71: #{fwd.21} parent=68 // pred_check_branch
          %301 = sbr.rel (%p299) target = $region73
        $region72: #{fwd.21} parent=68 // pred_region
          _
        $region73: #{fwd.21} parent=68 // pred_fallthru
          _
        %s302 = smul.u32 2, %s19
        %p303 = scmp.lt.s32.totalorder %s302, 1
        %s304 = scalar_select %p303, %s302, 1
        %p305 = scmp.lt.s32.totalorder %s21, 0
        %s306 = scalar_select %p305, %s21, 0
        %s307 = sadd.s32 %s306, %s304
        %s308 = smul.addr %s307, 4
        %s309 = scalar_lea.vmem %s0, %s308
        %p310 = pneg %p56
        %p311 = pneg %p53
        %s312 = sand.u32 %s71, 1
        %s313 = sand.u32 %s71, 1
        %s314 = smul.addr %s313, 64
        %s315 = scalar_lea.vmem [#allocation3], %s314
        %p316 = pneg %p84
        %p317 = pneg %p81
        %p318 = scmp.lt.s32.totalorder %s20, 2
        %s319 = scalar_select %p318, %s20, 2
        %s320 = scalar_lea.vmem %s2, %s319
        %p321 = pneg %p110
        %p322 = pneg %p107
        %p323 = pneg %p138
        %p324 = pneg %p135
        %s325 = sand.u32 %s125, 1
        %s326 = sand.u32 %s125, 1
        %s327 = smul.addr %s326, 8
        %s328 = scalar_lea.vmem [#allocation4], %s327
        %s329 = smul.u32 2, %s19
        %p330 = scmp.lt.s32.totalorder %s329, 1
        %s331 = scalar_select %p330, %s329, 1
        %p332 = scmp.lt.s32.totalorder %s21, 0
        %s333 = scalar_select %p332, %s21, 0
        %s334 = sadd.s32 %s333, %s331
        %s335 = smul.addr %s334, 4
        %s336 = scalar_lea.vmem %s0, %s335
        %s337 = smul.u32 2, %s19
        %s338 = smul.u32 16, %s21
        %p339 = scmp.lt.s32.totalorder %s20, 2
        %s340 = scalar_select %p339, %s20, 2
        %s341 = scalar_lea.vmem %s2, %s340
        %s342 = smul.u32 2, %s19
        %p343 = scmp.eq.s32.totalorder %s21, 0
        // Predicated region
        $region74: #{fwd.21} parent=68 // pred_check
          %p344 = pneg %p343
        $region75: #{fwd.21} parent=68 // pred_check_branch
          %346 = sbr.rel (%p344) target = $region77
        $region76: #{fwd.21} parent=68 // pred_region
          %347 = vst [vmem:[#allocation2] sm:$0xff] 0.0
          %348 = vst [vmem:[#allocation2 + $0x8] sm:$0xff] 0.0
        $region77: #{fwd.21} parent=68 // pred_fallthru
          _
        %v349 = vld [vmem:[#allocation2] sm:$0xff]
        %v350 = vld [vmem:[#allocation2 + $0x8] sm:$0xff]
        %v351 = vld [vmem:[%s336] sm:$0xf]
        %v352 = vld [vmem:[%s336 + $0x4] sm:$0xf]
        %v353 = vld [vmem:[%s298] sm:$0xf]
        %v354 = vld [vmem:[%s298 + $0x4] sm:$0xf]
        %v355 = vld [vmem:[%s298 + $0x8] sm:$0xf]
        %v356 = vld [vmem:[%s298 + $0xc] sm:$0xf]
        %v357 = vld [vmem:[%s298 + $0x10] sm:$0xf]
        %v358 = vld [vmem:[%s298 + $0x14] sm:$0xf]
        %v359 = vld [vmem:[%s298 + $0x18] sm:$0xf]
        %v360 = vld [vmem:[%s298 + $0x1c] sm:$0xf]
        %v361 = vld [vmem:[%s298 + $0x20] sm:$0xf]
        %v362 = vld [vmem:[%s298 + $0x24] sm:$0xf]
        %v363 = vld [vmem:[%s298 + $0x28] sm:$0xf]
        %v364 = vld [vmem:[%s298 + $0x2c] sm:$0xf]
        %v365 = vld [vmem:[%s298 + $0x30] sm:$0xf]
        %v366 = vld [vmem:[%s298 + $0x34] sm:$0xf]
        %v367 = vld [vmem:[%s298 + $0x38] sm:$0xf]
        %v368 = vld [vmem:[%s298 + $0x3c] sm:$0xf]
        %v371 = vunpack.c.l.b16 %v351
        %v372 = vunpack.c.l.b16 %v352
        %v373 = vpack.c.b16 %v372, %v371
        %v391 = vunpack.c.l.b16 %v353
        %v392 = vunpack.c.l.b16 %v354
        %v393 = vunpack.c.l.b16 %v355
        %v394 = vunpack.c.l.b16 %v356
        %v395 = vunpack.c.l.b16 %v357
        %v396 = vunpack.c.l.b16 %v358
        %v397 = vunpack.c.l.b16 %v359
        %v398 = vunpack.c.l.b16 %v360
        %v399 = vunpack.c.l.b16 %v361
        %v400 = vunpack.c.l.b16 %v362
        %v401 = vunpack.c.l.b16 %v363
        %v402 = vunpack.c.l.b16 %v364
        %v403 = vunpack.c.l.b16 %v365
        %v404 = vunpack.c.l.b16 %v366
        %v405 = vunpack.c.l.b16 %v367
        %v406 = vunpack.c.l.b16 %v368
        %v407 = vpack.c.b16 %v392, %v391
        %v408 = vpack.c.b16 %v394, %v393
        %v409 = vpack.c.b16 %v396, %v395
        %v410 = vpack.c.b16 %v398, %v397
        %v411 = vpack.c.b16 %v400, %v399
        %v412 = vpack.c.b16 %v402, %v401
        %v413 = vpack.c.b16 %v404, %v403
        %v414 = vpack.c.b16 %v406, %v405
        %423 = vmatpush.bf16.msra.mxu0 %v414
        %424 = vmatpush.bf16.msra.mxu0 %v413
        %425 = vmatpush.bf16.msra.mxu0 %v412
        %426 = vmatpush.bf16.msra.mxu0 %v411
        %427 = vmatpush.bf16.msra.mxu0 %v410
        %428 = vmatpush.bf16.msra.mxu0 %v409
        %429 = vmatpush.bf16.msra.mxu0 %v408
        %430 = vmatpush.bf16.msra.mxu0 %v407
        %431 = vmatmul.bf16.gmra.mxu0 %v373
        %v432 = vpop.f32.mrf.mxu0
        %v433 = vadd.f32 0.0, %v432
        %v434 = vpop.f32.mrf.mxu0
        %v435 = vadd.f32 0.0, %v434
        %436 = vdwg.mxu0
        %v437 = vadd.f32 %v349, %v433
        %v438 = vadd.f32 %v350, %v435
        %439 = vst [vmem:[#allocation2] sm:$0xff] %v437
        %440 = vst [vmem:[#allocation2 + $0x8] sm:$0xff] %v438
        // Predicated region
        $region78: #{fwd.21} parent=68 // pred_check
          %p441 = pneg %p343
        $region79: #{fwd.21} parent=68 // pred_check_branch
          %443 = sbr.rel (%p441) target = $region81
        $region80: #{fwd.21} parent=68 // pred_region
          %v444 = vld [vmem:[#allocation2] sm:$0xff]
          %v445 = vld [vmem:[#allocation2 + $0x8] sm:$0xff]
          %v446 = vld [vmem:[%s341] sm:$0x1]
          %v448 = vperm.slane %v446, 0
          %v450 = vadd.f32 %v444, %v448
          %v451 = vadd.f32 %v445, %v448
          %v452 = vpack.c.bf16 %v450, %v450
          %v453 = vpack.c.bf16 %v451, %v451
          %454 = vst [vmem:[%s328] sm:$0xf] %v452
          %455 = vst [vmem:[%s328 + $0x4] sm:$0xf] %v453
        $region81: #{fwd.21} parent=68 // pred_fallthru
          _
        %s456 = sand.u32 %s125, 1
        %s457 = sand.u32 %s125, 1
        %s458 = smul.addr %s457, 8
        %s459 = scalar_lea.vmem [#allocation4], %s458
        // Predicated region
        $region82: #{fwd.21} parent=68 // pred_check
          %p460 = pneg %p135
        $region83: #{fwd.21} parent=68 // pred_check_branch
          %462 = sbr.rel (%p460) target = $region85
        $region84: #{fwd.21} parent=68 // pred_region
          %s463 = smul.u32 2, %s19
          %s464 = smul.addr %s463, 3
          %s465 = sadd.s32 %s20, %s464
          %s466 = smul.addr %s465, 4
          %s467 = scalar_lea.vmem %s3, %s466
          // Predicated region
          $region86: #{fwd.21} parent=84 // pred_check
            _
          $region87: #{fwd.21} parent=84 // pred_check_branch
            %469 = sbr.rel (0) target = $region89
          $region88: #{fwd.21} parent=84 // pred_region
            // Predicated region
            $region90: #{fwd.21} parent=88 // pred_check
              _
            $region91: #{fwd.21} parent=88 // pred_check_branch
              %471 = sbr.rel target = $region93
            $region92: #{fwd.21} parent=88 // pred_region
              // Predicated region
              $region105: #{fwd.21} parent=92 // pred_check
                _
              $region106: #{fwd.21} parent=92 // pred_check_branch
                %489 = sbr.rel (0) target = $region108
              $region107: #{fwd.21} parent=92 // pred_region
                loop: start=0, step=1, limit=1
                $region109: #{fwd.21} parent=107 // loop_pre_header
                  _
                $region110: #{fwd.21} parent=107 // loop_header
                  %s491 = sphi 0, %s495
                  %p492 = scmp.ge.s32.totalorder %s491, 1
                  %s496 = sphi %s459, %s459
                  %s497 = sphi %s467, %s467
                $region111: #{fwd.21} parent=107 // loop_header_branch
                  %494 = sbr.rel (%p492) target = $region115
                $region112: #{fwd.21} parent=107 // loop_body
                  _
                $region113: #{fwd.21} parent=107 // loop_footer
                  %s495 = sadd.s32 1, %s491
                $region114: #{fwd.21} parent=107 // loop_footer_branch
                  %490 = sbr.rel target = $region110
                $region115: #{fwd.21} parent=107 // loop_exit
                  _
                %s499 = ssub.s32 16, 1
                loop: start=0, step=1, limit=1
                $region116: #{fwd.21} parent=107 // loop_pre_header
                  _
                $region117: #{fwd.21} parent=107 // loop_header
                  %s501 = sphi 0, %s505
                  %p502 = scmp.ge.s32.totalorder %s501, 1
                  %s506 = sphi %s459, %s459
                  %s507 = sphi %s467, %s467
                $region118: #{fwd.21} parent=107 // loop_header_branch
                  %504 = sbr.rel (%p502) target = $region122
                $region119: #{fwd.21} parent=107 // loop_body
                  %v508 = vld [vmem:[%s506] sm:%s499]
                  %509 = vst [vmem:[%s507] sm:%s499] %v508
                  %v510 = vld [vmem:[%s506 + $0x4] sm:%s499]
                  %511 = vst [vmem:[%s507 + $0xc] sm:%s499] %v510
                $region120: #{fwd.21} parent=107 // loop_footer
                  %s505 = sadd.s32 1, %s501
                $region121: #{fwd.21} parent=107 // loop_footer_branch
                  %500 = sbr.rel target = $region117
                $region122: #{fwd.21} parent=107 // loop_exit
                  _
              $region108: #{fwd.21} parent=92 // pred_fallthru
                _
            $region93: #{fwd.21} parent=88 // pred_fallthru
              _
            // Predicated region
            $region94: #{fwd.21} parent=88 // pred_check
              _
            $region95: #{fwd.21} parent=88 // pred_check_branch
              %473 = sbr.rel (0) target = $region97
            $region96: #{fwd.21} parent=88 // pred_region
              %s475 = ssub.s32 16, 1
              loop: start=0, step=1, limit=1
              $region98: #{fwd.21} parent=96 // loop_pre_header
                _
              $region99: #{fwd.21} parent=96 // loop_header
                %s477 = sphi 0, %s481
                %p478 = scmp.ge.s32.totalorder %s477, 1
                %s482 = sphi %s459, %s459
                %s483 = sphi %s467, %s467
              $region100: #{fwd.21} parent=96 // loop_header_branch
                %480 = sbr.rel (%p478) target = $region104
              $region101: #{fwd.21} parent=96 // loop_body
                %v484 = vld [vmem:[%s482] sm:%s475]
                %485 = vst [vmem:[%s483] sm:%s475] %v484
                %v486 = vld [vmem:[%s482 + $0x4] sm:%s475]
                %487 = vst [vmem:[%s483 + $0xc] sm:%s475] %v486
              $region102: #{fwd.21} parent=96 // loop_footer
                %s481 = sadd.s32 1, %s477
              $region103: #{fwd.21} parent=96 // loop_footer_branch
                %476 = sbr.rel target = $region99
              $region104: #{fwd.21} parent=96 // loop_exit
                _
            $region97: #{fwd.21} parent=88 // pred_fallthru
              _
          $region89: #{fwd.21} parent=84 // pred_fallthru
            _
          %512 = vnop
        $region85: #{fwd.21} parent=68 // pred_fallthru
          _
      $region69: #{fwd.21} parent=5 // pred_fallthru
        _
      %p513 = scmp.le.s32.totalorder 2, %s9
      // Predicated region
      $region123: #{fwd.21} parent=5 // pred_check
        %p514 = pneg %p513
      $region124: #{fwd.21} parent=5 // pred_check_branch
        %516 = sbr.rel (%p514) target = $region126
      $region125: #{fwd.21} parent=5 // pred_region
        %s517 = ssub.s32 %s9, 2
        // Predicated region
        $region127: #{fwd.21} parent=125 // pred_check
          %p518 = pneg %p141
        $region128: #{fwd.21} parent=125 // pred_check_branch
          %520 = sbr.rel (%p518) target = $region130
        $region129: #{fwd.21} parent=125 // pred_region
          %s521 = sand.u32 %s126, 1
          %s522 = sand.u32 %s126, 1
          %s523 = smul.addr %s522, 8
          %s524 = scalar_lea.vmem [#allocation4], %s523
        $region130: #{fwd.21} parent=125 // pred_fallthru
          _
      $region126: #{fwd.21} parent=5 // pred_fallthru
        _
    $region6: #{fwd.21} parent=1 // loop_footer
      %s13 = sadd.s32 1, %s9
    $region7: #{fwd.21} parent=1 // loop_footer_branch
      %8 = sbr.rel target = $region3
    $region8: #{fwd.21} parent=1 // loop_exit
      _

// kernel: fwd.20
$region0: #{fwd.20}
  #allocation0 [shape = 'u32[]', space=smem, size = 0x4, offset = 0x4, fixed_abs, tag = 'smem constant byte address 0x4 - core index']
  #allocation1 [shape = 'u32[72,128]{1,0:T(1,128)}', space=vmem, size = 0x9000, scoped, tag = 'internal scratch']
  %s0 = inlined_call_operand.vmem [shape: f32[16,128], index: 0, kind: input, shape index: {}]
  %s1 = inlined_call_operand.vmem [shape: f32[1,128], index: 1, kind: input, shape index: {}]
  %s2 = inlined_call_operand.vmem [shape: f32[1,128], index: 2, kind: input, shape index: {}]
  %s3 = inlined_call_operand.vmem [shape: bf16[16,128], index: 3, kind: output, shape index: {}]
  %s4 = sld [smem:[#allocation0]]
  $region22: #{fwd.20} parent=0
    _
  %s6 = ssub.s32 1, %s4
  %s7 = scalar_select 0, %s6, %s4
  // Predicated region
  $region2: #{fwd.20} parent=0 // pred_check
    _
  $region3: #{fwd.20} parent=0 // pred_check_branch
    %9 = sbr.rel (0) target = $region5
  $region4: #{fwd.20} parent=0 // pred_region
    _
  $region5: #{fwd.20} parent=0 // pred_fallthru
    _
  // Predicated region
  $region6: #{fwd.20} parent=0 // pred_check
    _
  $region7: #{fwd.20} parent=0 // pred_check_branch
    %11 = sbr.rel (0) target = $region9
  $region8: #{fwd.20} parent=0 // pred_region
    _
  $region9: #{fwd.20} parent=0 // pred_fallthru
    _
  // Predicated region
  $region10: #{fwd.20} parent=0 // pred_check
    _
  $region11: #{fwd.20} parent=0 // pred_check_branch
    %13 = sbr.rel (0) target = $region13
  $region12: #{fwd.20} parent=0 // pred_region
    _
  $region13: #{fwd.20} parent=0 // pred_fallthru
    _
  %v14 = vld [vmem:[%s0] sm:$0xff]
  %v15 = vld [vmem:[%s0 + $0x8] sm:$0xff]
  %v16 = vld [vmem:[%s1] sm:$0x1]
  %v17 = vld [vmem:[%s2] sm:$0x1]
  %18 = vadd.xlane.f32.xlu0 %v14
  %v19 = vpop.xlane.xlu0 %18
  %20 = vadd.xlane.f32.xlu0 %v15
  %v21 = vpop.xlane.xlu0 %20
  %v22 = vrcp.pop 128.0
  %v23 = vmul.f32 128.0, %v22
  %v24 = vsub.f32 1.0, %v23
  %v25 = vmul.f32 %v22, %v24
  %v26 = vadd.f32 %v22, %v25
  %vm27 = vweird.f32 %v22
  %v28 = vsel %vm27, %v22, %v26
  %v29 = vmul.f32 %v19, %v28
  %v30 = vmul.f32 %v21, %v28
  %v31 = vsub.f32 %v14, %v29
  %v32 = vsub.f32 %v15, %v30
  %v33 = vmul.f32 %v31, %v31
  %v34 = vmul.f32 %v32, %v32
  %35 = vadd.xlane.f32.xlu0 %v33
  %v36 = vpop.xlane.xlu0 %35
  %37 = vadd.xlane.f32.xlu0 %v34
  %v38 = vpop.xlane.xlu0 %37
  %v39 = vmul.f32 %v36, %v28
  %v40 = vmul.f32 %v38, %v28
  %v41 = vadd.f32 %v39, 1e-05
  %v42 = vadd.f32 %v40, 1e-05
  %v43 = vrsqrt.pop %v41
  %v44 = vmul.f32 %v43, %v41
  %v45 = vmul.f32 %v44, %v43
  %v46 = vmul.f32 0.5, %v45
  %v47 = vsub.f32 1.5, %v46
  %v48 = vmul.f32 %v43, %v47
  %vm49 = vweird.f32 %v41
  %vm50 = vweird.f32 %v43
  %vm51 = vmor %vm49, %vm50
  %v52 = vsel %vm51, %v43, %v48
  %v53 = vrsqrt.pop %v42
  %v54 = vmul.f32 %v53, %v42
  %v55 = vmul.f32 %v54, %v53
  %v56 = vmul.f32 0.5, %v55
  %v57 = vsub.f32 1.5, %v56
  %v58 = vmul.f32 %v53, %v57
  %vm59 = vweird.f32 %v42
  %vm60 = vweird.f32 %v53
  %vm61 = vmor %vm59, %vm60
  %v62 = vsel %vm61, %v53, %v58
  %v63 = vmul.f32 %v31, %v52
  %v64 = vmul.f32 %v32, %v62
  %v66 = vperm.slane %v16, 0
  %v68 = vmul.f32 %v63, %v66
  %v69 = vmul.f32 %v64, %v66
  %v71 = vperm.slane %v17, 0
  %v73 = vadd.f32 %v68, %v71
  %v74 = vadd.f32 %v69, %v71
  %v75 = vpack.c.bf16 %v73, %v73
  %v76 = vpack.c.bf16 %v74, %v74
  %77 = vst [vmem:[%s3] sm:$0xf] %v75
  %78 = vst [vmem:[%s3 + $0x4] sm:$0xf] %v76
  // Predicated region
  $region14: #{fwd.20} parent=0 // pred_check
    _
  $region15: #{fwd.20} parent=0 // pred_check_branch
    %80 = sbr.rel (0) target = $region17
  $region16: #{fwd.20} parent=0 // pred_region
    _
  $region17: #{fwd.20} parent=0 // pred_fallthru
    _
  // Predicated region
  $region18: #{fwd.20} parent=0 // pred_check
    _
  $region19: #{fwd.20} parent=0 // pred_check_branch
    %82 = sbr.rel (0) target = $region21
  $region20: #{fwd.20} parent=0 // pred_region
    _
  $region21: #{fwd.20} parent=0 // pred_fallthru
    _

// kernel: fwd.22
$region0: #{fwd.22}
  #allocation0 [shape = 'u32[]', space=smem, size = 0x4, offset = 0x4, fixed_abs, tag = 'smem constant byte address 0x4 - core index']
  #allocation1 [shape = 'u32[72,128]{1,0:T(1,128)}', space=vmem, size = 0x9000, scoped, tag = 'internal scratch']
  #allocation2 [shape = 'bf16[16,128]{1,0:T(8,128)(2,1)}', space=vmem, size = 0x1000, scoped, tag = 'scratch operand']
  %s0 = inlined_call_operand.vmem [shape: bf16[16,384], index: 0, kind: input, shape index: {}, may-alias: {0,1}]
  %s1 = inlined_call_operand.vmem [shape: bf16[16,384], index: 1, kind: input, shape index: {}, may-alias: {0,1}]
  %s2 = inlined_call_operand.vmem [shape: bf16[128,128], index: 2, kind: input, shape index: {}]
  %s3 = inlined_call_operand.vmem [shape: f32[1,128], index: 3, kind: input, shape index: {}]
  %s4 = inlined_call_operand.vmem [shape: bf16[16,128], index: 4, kind: input, shape index: {}]
  %s5 = inlined_call_operand.vmem [shape: f32[1,128], index: 5, kind: input, shape index: {}]
  %s6 = inlined_call_operand.vmem [shape: f32[1,128], index: 6, kind: input, shape index: {}]
  %s7 = inlined_call_operand.vmem [shape: bf16[16,128], index: 7, kind: output, shape index: {}]
  %s8 = sld [smem:[#allocation0]]
  $region79: #{fwd.22} parent=0
    _
  %s10 = ssub.s32 1, %s8
  %s11 = scalar_select 0, %s10, %s8
  $region1: #{fwd.22} parent=0
    #allocation3 [shape = 'u8[4096]{0}', space=vmem, size = 0x1000, scoped, tag = 'input window, operand 0, single buffered']
    // Predicated region
    $region2: #{fwd.22} parent=1 // pred_check
      _
    $region3: #{fwd.22} parent=1 // pred_check_branch
      %13 = sbr.rel (0) target = $region5
    $region4: #{fwd.22} parent=1 // pred_region
      // Predicated region
      $region6: #{fwd.22} parent=4 // pred_check
        _
      $region7: #{fwd.22} parent=4 // pred_check_branch
        %15 = sbr.rel (0) target = $region9
      $region8: #{fwd.22} parent=4 // pred_region
        // Predicated region
        $region10: #{fwd.22} parent=8 // pred_check
          _
        $region11: #{fwd.22} parent=8 // pred_check_branch
          %17 = sbr.rel target = $region13
        $region12: #{fwd.22} parent=8 // pred_region
          // Predicated region
          $region25: #{fwd.22} parent=12 // pred_check
            _
          $region26: #{fwd.22} parent=12 // pred_check_branch
            %35 = sbr.rel (0) target = $region28
          $region27: #{fwd.22} parent=12 // pred_region
            loop: start=0, step=1, limit=1
            $region29: #{fwd.22} parent=27 // loop_pre_header
              _
            $region30: #{fwd.22} parent=27 // loop_header
              %s37 = sphi 0, %s41
              %p38 = scmp.ge.s32.totalorder %s37, 1
              %s42 = sphi %s0, %s0
              %s43 = sphi [#allocation3], [#allocation3]
            $region31: #{fwd.22} parent=27 // loop_header_branch
              %40 = sbr.rel (%p38) target = $region35
            $region32: #{fwd.22} parent=27 // loop_body
              _
            $region33: #{fwd.22} parent=27 // loop_footer
              %s41 = sadd.s32 1, %s37
            $region34: #{fwd.22} parent=27 // loop_footer_branch
              %36 = sbr.rel target = $region30
            $region35: #{fwd.22} parent=27 // loop_exit
              _
            %s45 = ssub.s32 16, 1
            loop: start=0, step=1, limit=1
            $region36: #{fwd.22} parent=27 // loop_pre_header
              _
            $region37: #{fwd.22} parent=27 // loop_header
              %s47 = sphi 0, %s51
              %p48 = scmp.ge.s32.totalorder %s47, 1
              %s52 = sphi %s0, %s0
              %s53 = sphi [#allocation3], [#allocation3]
            $region38: #{fwd.22} parent=27 // loop_header_branch
              %50 = sbr.rel (%p48) target = $region42
            $region39: #{fwd.22} parent=27 // loop_body
              %v54 = vld [vmem:[%s52] sm:%s45]
              %55 = vst [vmem:[%s53] sm:%s45] %v54
              %v56 = vld [vmem:[%s52 + $0xc] sm:%s45]
              %57 = vst [vmem:[%s53 + $0x4] sm:%s45] %v56
            $region40: #{fwd.22} parent=27 // loop_footer
              %s51 = sadd.s32 1, %s47
            $region41: #{fwd.22} parent=27 // loop_footer_branch
              %46 = sbr.rel target = $region37
            $region42: #{fwd.22} parent=27 // loop_exit
              _
          $region28: #{fwd.22} parent=12 // pred_fallthru
            _
        $region13: #{fwd.22} parent=8 // pred_fallthru
          _
        // Predicated region
        $region14: #{fwd.22} parent=8 // pred_check
          _
        $region15: #{fwd.22} parent=8 // pred_check_branch
          %19 = sbr.rel (0) target = $region17
        $region16: #{fwd.22} parent=8 // pred_region
          %s21 = ssub.s32 16, 1
          loop: start=0, step=1, limit=1
          $region18: #{fwd.22} parent=16 // loop_pre_header
            _
          $region19: #{fwd.22} parent=16 // loop_header
            %s23 = sphi 0, %s27
            %p24 = scmp.ge.s32.totalorder %s23, 1
            %s28 = sphi %s0, %s0
            %s29 = sphi [#allocation3], [#allocation3]
          $region20: #{fwd.22} parent=16 // loop_header_branch
            %26 = sbr.rel (%p24) target = $region24
          $region21: #{fwd.22} parent=16 // loop_body
            %v30 = vld [vmem:[%s28] sm:%s21]
            %31 = vst [vmem:[%s29] sm:%s21] %v30
            %v32 = vld [vmem:[%s28 + $0xc] sm:%s21]
            %33 = vst [vmem:[%s29 + $0x4] sm:%s21] %v32
          $region22: #{fwd.22} parent=16 // loop_footer
            %s27 = sadd.s32 1, %s23
          $region23: #{fwd.22} parent=16 // loop_footer_branch
            %22 = sbr.rel target = $region19
          $region24: #{fwd.22} parent=16 // loop_exit
            _
        $region17: #{fwd.22} parent=8 // pred_fallthru
          _
      $region9: #{fwd.22} parent=4 // pred_fallthru
        _
      %58 = vnop
    $region5: #{fwd.22} parent=1 // pred_fallthru
      _
    // Predicated region
    $region43: #{fwd.22} parent=1 // pred_check
      _
    $region44: #{fwd.22} parent=1 // pred_check_branch
      %60 = sbr.rel (0) target = $region46
    $region45: #{fwd.22} parent=1 // pred_region
      _
    $region46: #{fwd.22} parent=1 // pred_fallthru
      _
    // Predicated region
    $region47: #{fwd.22} parent=1 // pred_check
      _
    $region48: #{fwd.22} parent=1 // pred_check_branch
      %62 = sbr.rel (0) target = $region50
    $region49: #{fwd.22} parent=1 // pred_region
      _
    $region50: #{fwd.22} parent=1 // pred_fallthru
      _
    // Predicated region
    $region51: #{fwd.22} parent=1 // pred_check
      _
    $region52: #{fwd.22} parent=1 // pred_check_branch
      %64 = sbr.rel (0) target = $region54
    $region53: #{fwd.22} parent=1 // pred_region
      _
    $region54: #{fwd.22} parent=1 // pred_fallthru
      _
    // Predicated region
    $region55: #{fwd.22} parent=1 // pred_check
      _
    $region56: #{fwd.22} parent=1 // pred_check_branch
      %66 = sbr.rel (0) target = $region58
    $region57: #{fwd.22} parent=1 // pred_region
      _
    $region58: #{fwd.22} parent=1 // pred_fallthru
      _
    // Predicated region
    $region59: #{fwd.22} parent=1 // pred_check
      _
    $region60: #{fwd.22} parent=1 // pred_check_branch
      %68 = sbr.rel (0) target = $region62
    $region61: #{fwd.22} parent=1 // pred_region
      _
    $region62: #{fwd.22} parent=1 // pred_fallthru
      _
    // Predicated region
    $region63: #{fwd.22} parent=1 // pred_check
      _
    $region64: #{fwd.22} parent=1 // pred_check_branch
      %70 = sbr.rel (0) target = $region66
    $region65: #{fwd.22} parent=1 // pred_region
      _
    $region66: #{fwd.22} parent=1 // pred_fallthru
      _
    // Predicated region
    $region67: #{fwd.22} parent=1 // pred_check
      _
    $region68: #{fwd.22} parent=1 // pred_check_branch
      %72 = sbr.rel (0) target = $region70
    $region69: #{fwd.22} parent=1 // pred_region
      _
    $region70: #{fwd.22} parent=1 // pred_fallthru
      _
    %v74 = vld [vmem:[#allocation3] sm:$0xf]
    %v75 = vld [vmem:[#allocation3 + $0x4] sm:$0xf]
    %v76 = vunpack.c.l.bf16 %v74
    %v77 = vunpack.c.l.bf16 %v75
    %v78 = vmul.f32 %v76, 0.17677669
    %v79 = vmul.f32 %v77, 0.17677669
    %v80 = vpack.c.bf16 %v79, %v78
    %v81 = vld [vmem:[%s1 + $0x4] sm:$0xf]
    %v82 = vld [vmem:[%s1 + $0x10] sm:$0xf]
    %v83 = vld [vmem:[%s1 + $0x8] sm:$0xf]
    %v84 = vld [vmem:[%s1 + $0x14] sm:$0xf]
    %v87 = vunpack.c.l.b16 %v81
    %v88 = vunpack.c.l.b16 %v82
    %v89 = vpack.c.b16 %v88, %v87
    %vm90 = vcmask 261120
    %v92 = vsel %vm90, %v80, 0
    %v95 = vsel %vm90, %v89, 0
    %97 = vmatpush.bf16.xpose.msra.mxu0 0
    %98 = vmatpush.bf16.xpose.msra.mxu0 0
    %99 = vmatpush.bf16.xpose.msra.mxu0 0
    %100 = vmatpush.bf16.xpose.msra.mxu0 0
    %101 = vmatpush.bf16.xpose.msra.mxu0 0
    %102 = vmatpush.bf16.xpose.msra.mxu0 0
    %103 = vmatpush.bf16.xpose.msra.mxu0 0
    %104 = vmatpush.bf16.xpose.msra.mxu0 %v95
    %105 = vmatmul.bf16.gmra.mxu0 %v92
    %v106 = vpop.f32.mrf.mxu0
    %v107 = vadd.f32 0.0, %v106
    %v108 = vpop.f32.mrf.mxu0
    %v109 = vadd.f32 0.0, %v108
    %110 = vdwg.mxu0
    %vm111 = vcmask 130048
    %v112 = vsel %vm111, %v107, -inf
    %113 = vmax.xlane.f32.xlu0 %v112
    %v114 = vpop.xlane.xlu0 %113
    %v115 = vsel %vm111, %v109, -inf
    %116 = vmax.xlane.f32.xlu0 %v115
    %v117 = vpop.xlane.xlu0 %116
    %v118 = vsub.f32 %v107, %v114
    %v119 = vsub.f32 %v109, %v117
    %v120 = vmul.f32 %v118, 1.442695
    %v121 = vpow.pop %v120
    %v122 = vmul.f32 %v119, 1.442695
    %v123 = vpow.pop %v122
    %v124 = vsel %vm111, %v121, 0.0
    %125 = vadd.xlane.f32.xlu0 %v124
    %v126 = vpop.xlane.xlu0 %125
    %v127 = vsel %vm111, %v123, 0.0
    %128 = vadd.xlane.f32.xlu0 %v127
    %v129 = vpop.xlane.xlu0 %128
    %v130 = vrcp.pop %v126
    %v131 = vrcp.pop %v129
    %v132 = vmul.f32 %v121, %v130
    %v133 = vmul.f32 %v123, %v131
    %v134 = vpack.c.bf16 %v133, %v132
    %v137 = vunpack.c.l.b16 %v83
    %v138 = vunpack.c.l.b16 %v84
    %v139 = vpack.c.b16 %v138, %v137
    %v142 = vsel %vm111, %v134, 0
    %144 = vmatpush.bf16.msra.mxu0 0
    %145 = vmatpush.bf16.msra.mxu0 0
    %146 = vmatpush.bf16.msra.mxu0 0
    %147 = vmatpush.bf16.msra.mxu0 0
    %148 = vmatpush.bf16.msra.mxu0 0
    %149 = vmatpush.bf16.msra.mxu0 0
    %150 = vmatpush.bf16.msra.mxu0 0
    %151 = vmatpush.bf16.msra.mxu0 %v139
    %152 = vmatmul.bf16.gmra.mxu0 %v142
    %v153 = vpop.f32.mrf.mxu0
    %v154 = vadd.f32 0.0, %v153
    %v155 = vpop.f32.mrf.mxu0
    %v156 = vadd.f32 0.0, %v155
    %157 = vdwg.mxu0
    %v158 = vpack.c.bf16 %v154, %v154
    %v159 = vpack.c.bf16 %v156, %v156
    %vm160 = vcmask 257024
    %161 = vst.msk [vmem:[#allocation2] sm:$0xf] %vm160, %v158
    %162 = vst.msk [vmem:[#allocation2 + $0x4] sm:$0xf] %vm160, %v159
    %v163 = vld [vmem:[#allocation3] sm:$0xf]
    %v164 = vld [vmem:[#allocation3 + $0x4] sm:$0xf]
    %v165 = vunpack.c.l.bf16 %v163
    %v166 = vunpack.c.l.bf16 %v164
    %v167 = vmul.f32 %v165, 0.17677669
    %v168 = vmul.f32 %v166, 0.17677669
    %v169 = vpack.c.bf16 %v168, %v167
    %v170 = vld [vmem:[%s1 + $0x4] sm:$0xf]
    %v171 = vld [vmem:[%s1 + $0x10] sm:$0xf]
    %v172 = vld [vmem:[%s1 + $0x8] sm:$0xf]
    %v173 = vld [vmem:[%s1 + $0x14] sm:$0xf]
    %175 = vrot.lane.b32.xlu0 %v169, 96
    %v176 = vpop.permute.xlu0 %175
    %v179 = vunpack.c.l.b16 %v170
    %v180 = vunpack.c.l.b16 %v171
    %v181 = vpack.c.b16 %v180, %v179
    %182 = vrot.lane.b32.xlu0 %v181, 96
    %v183 = vpop.permute.xlu0 %182
    %v185 = vsel %vm90, %v176, 0
    %v188 = vsel %vm90, %v183, 0
    %190 = vmatpush.bf16.xpose.msra.mxu0 0
    %191 = vmatpush.bf16.xpose.msra.mxu0 0
    %192 = vmatpush.bf16.xpose.msra.mxu0 0
    %193 = vmatpush.bf16.xpose.msra.mxu0 0
    %194 = vmatpush.bf16.xpose.msra.mxu0 0
    %195 = vmatpush.bf16.xpose.msra.mxu0 0
    %196 = vmatpush.bf16.xpose.msra.mxu0 0
    %197 = vmatpush.bf16.xpose.msra.mxu0 %v188
    %198 = vmatmul.bf16.gmra.mxu0 %v185
    %v199 = vpop.f32.mrf.mxu0
    %v200 = vadd.f32 0.0, %v199
    %v201 = vpop.f32.mrf.mxu0
    %v202 = vadd.f32 0.0, %v201
    %203 = vdwg.mxu0
    %v204 = vsel %vm111, %v200, -inf
    %205 = vmax.xlane.f32.xlu0 %v204
    %v206 = vpop.xlane.xlu0 %205
    %v207 = vsel %vm111, %v202, -inf
    %208 = vmax.xlane.f32.xlu0 %v207
    %v209 = vpop.xlane.xlu0 %208
    %v210 = vsub.f32 %v200, %v206
    %v211 = vsub.f32 %v202, %v209
    %v212 = vmul.f32 %v210, 1.442695
    %v213 = vpow.pop %v212
    %v214 = vmul.f32 %v211, 1.442695
    %v215 = vpow.pop %v214
    %v216 = vsel %vm111, %v213, 0.0
    %217 = vadd.xlane.f32.xlu0 %v216
    %v218 = vpop.xlane.xlu0 %217
    %v219 = vsel %vm111, %v215, 0.0
    %220 = vadd.xlane.f32.xlu0 %v219
    %v221 = vpop.xlane.xlu0 %220
    %v222 = vrcp.pop %v218
    %v223 = vrcp.pop %v221
    %v224 = vmul.f32 %v213, %v222
    %v225 = vmul.f32 %v215, %v223
    %v226 = vpack.c.bf16 %v225, %v224
    %v229 = vunpack.c.l.b16 %v172
    %v230 = vunpack.c.l.b16 %v173
    %v231 = vpack.c.b16 %v230, %v229
    %232 = vrot.lane.b32.xlu0 %v231, 96
    %v233 = vpop.permute.xlu0 %232
    %v236 = vsel %vm111, %v226, 0
    %238 = vmatpush.bf16.msra.mxu0 0
    %239 = vmatpush.bf16.msra.mxu0 0
    %240 = vmatpush.bf16.msra.mxu0 0
    %241 = vmatpush.bf16.msra.mxu0 0
    %242 = vmatpush.bf16.msra.mxu0 0
    %243 = vmatpush.bf16.msra.mxu0 0
    %244 = vmatpush.bf16.msra.mxu0 0
    %245 = vmatpush.bf16.msra.mxu0 %v233
    %246 = vmatmul.bf16.gmra.mxu0 %v236
    %v247 = vpop.f32.mrf.mxu0
    %v248 = vadd.f32 0.0, %v247
    %v249 = vpop.f32.mrf.mxu0
    %v250 = vadd.f32 0.0, %v249
    %251 = vdwg.mxu0
    %v252 = vpack.c.bf16 %v248, %v248
    %v253 = vpack.c.bf16 %v250, %v250
    %256 = vrot.lane.b32.xlu0 %v252, 32
    %v257 = vpop.permute.xlu0 %256
    %258 = vrot.lane.b32.xlu0 %v253, 32
    %v259 = vpop.permute.xlu0 %258
    %vm262 = vcmask 519424
    %263 = vst.msk [vmem:[#allocation2] sm:$0xf] %vm262, %v257
    %264 = vst.msk [vmem:[#allocation2 + $0x4] sm:$0xf] %vm262, %v259
    %v265 = vld [vmem:[#allocation3] sm:$0xf]
    %v266 = vld [vmem:[#allocation3 + $0x4] sm:$0xf]
    %v267 = vunpack.c.l.bf16 %v265
    %v268 = vunpack.c.l.bf16 %v266
    %v269 = vmul.f32 %v267, 0.17677669
    %v270 = vmul.f32 %v268, 0.17677669
    %v271 = vpack.c.bf16 %v270, %v269
    %v272 = vld [vmem:[%s1 + $0x4] sm:$0xf]
    %v273 = vld [vmem:[%s1 + $0x10] sm:$0xf]
    %v274 = vld [vmem:[%s1 + $0x8] sm:$0xf]
    %v275 = vld [vmem:[%s1 + $0x14] sm:$0xf]
    %277 = vrot.lane.b32.xlu0 %v271, 64
    %v278 = vpop.permute.xlu0 %277
    %v281 = vunpack.c.l.b16 %v272
    %v282 = vunpack.c.l.b16 %v273
    %v283 = vpack.c.b16 %v282, %v281
    %284 = vrot.lane.b32.xlu0 %v283, 64
    %v285 = vpop.permute.xlu0 %284
    %v287 = vsel %vm90, %v278, 0
    %v290 = vsel %vm90, %v285, 0
    %292 = vmatpush.bf16.xpose.msra.mxu0 0
    %293 = vmatpush.bf16.xpose.msra.mxu0 0
    %294 = vmatpush.bf16.xpose.msra.mxu0 0
    %295 = vmatpush.bf16.xpose.msra.mxu0 0
    %296 = vmatpush.bf16.xpose.msra.mxu0 0
    %297 = vmatpush.bf16.xpose.msra.mxu0 0
    %298 = vmatpush.bf16.xpose.msra.mxu0 0
    %299 = vmatpush.bf16.xpose.msra.mxu0 %v290
    %300 = vmatmul.bf16.gmra.mxu0 %v287
    %v301 = vpop.f32.mrf.mxu0
    %v302 = vadd.f32 0.0, %v301
    %v303 = vpop.f32.mrf.mxu0
    %v304 = vadd.f32 0.0, %v303
    %305 = vdwg.mxu0
    %v306 = vsel %vm111, %v302, -inf
    %307 = vmax.xlane.f32.xlu0 %v306
    %v308 = vpop.xlane.xlu0 %307
    %v309 = vsel %vm111, %v304, -inf
    %310 = vmax.xlane.f32.xlu0 %v309
    %v311 = vpop.xlane.xlu0 %310
    %v312 = vsub.f32 %v302, %v308
    %v313 = vsub.f32 %v304, %v311
    %v314 = vmul.f32 %v312, 1.442695
    %v315 = vpow.pop %v314
    %v316 = vmul.f32 %v313, 1.442695
    %v317 = vpow.pop %v316
    %v318 = vsel %vm111, %v315, 0.0
    %319 = vadd.xlane.f32.xlu0 %v318
    %v320 = vpop.xlane.xlu0 %319
    %v321 = vsel %vm111, %v317, 0.0
    %322 = vadd.xlane.f32.xlu0 %v321
    %v323 = vpop.xlane.xlu0 %322
    %v324 = vrcp.pop %v320
    %v325 = vrcp.pop %v323
    %v326 = vmul.f32 %v315, %v324
    %v327 = vmul.f32 %v317, %v325
    %v328 = vpack.c.bf16 %v327, %v326
    %v331 = vunpack.c.l.b16 %v274
    %v332 = vunpack.c.l.b16 %v275
    %v333 = vpack.c.b16 %v332, %v331
    %334 = vrot.lane.b32.xlu0 %v333, 64
    %v335 = vpop.permute.xlu0 %334
    %v338 = vsel %vm111, %v328, 0
    %340 = vmatpush.bf16.msra.mxu0 0
    %341 = vmatpush.bf16.msra.mxu0 0
    %342 = vmatpush.bf16.msra.mxu0 0
    %343 = vmatpush.bf16.msra.mxu0 0
    %344 = vmatpush.bf16.msra.mxu0 0
    %345 = vmatpush.bf16.msra.mxu0 0
    %346 = vmatpush.bf16.msra.mxu0 0
    %347 = vmatpush.bf16.msra.mxu0 %v335
    %348 = vmatmul.bf16.gmra.mxu0 %v338
    %v349 = vpop.f32.mrf.mxu0
    %v350 = vadd.f32 0.0, %v349
    %v351 = vpop.f32.mrf.mxu0
    %v352 = vadd.f32 0.0, %v351
    %353 = vdwg.mxu0
    %v354 = vpack.c.bf16 %v350, %v350
    %v355 = vpack.c.bf16 %v352, %v352
    %358 = vrot.lane.b32.xlu0 %v354, 64
    %v359 = vpop.permute.xlu0 %358
    %360 = vrot.lane.b32.xlu0 %v355, 64
    %v361 = vpop.permute.xlu0 %360
    %vm364 = vcmask 781824
    %365 = vst.msk [vmem:[#allocation2] sm:$0xf] %vm364, %v359
    %366 = vst.msk [vmem:[#allocation2 + $0x4] sm:$0xf] %vm364, %v361
    %v367 = vld [vmem:[#allocation3] sm:$0xf]
    %v368 = vld [vmem:[#allocation3 + $0x4] sm:$0xf]
    %v369 = vunpack.c.l.bf16 %v367
    %v370 = vunpack.c.l.bf16 %v368
    %v371 = vmul.f32 %v369, 0.17677669
    %v372 = vmul.f32 %v370, 0.17677669
    %v373 = vpack.c.bf16 %v372, %v371
    %v374 = vld [vmem:[%s1 + $0x4] sm:$0xf]
    %v375 = vld [vmem:[%s1 + $0x10] sm:$0xf]
    %v376 = vld [vmem:[%s1 + $0x8] sm:$0xf]
    %v377 = vld [vmem:[%s1 + $0x14] sm:$0xf]
    %379 = vrot.lane.b32.xlu0 %v373, 32
    %v380 = vpop.permute.xlu0 %379
    %v383 = vunpack.c.l.b16 %v374
    %v384 = vunpack.c.l.b16 %v375
    %v385 = vpack.c.b16 %v384, %v383
    %386 = vrot.lane.b32.xlu0 %v385, 32
    %v387 = vpop.permute.xlu0 %386
    %v389 = vsel %vm90, %v380, 0
    %v392 = vsel %vm90, %v387, 0
    %394 = vmatpush.bf16.xpose.msra.mxu0 0
    %395 = vmatpush.bf16.xpose.msra.mxu0 0
    %396 = vmatpush.bf16.xpose.msra.mxu0 0
    %397 = vmatpush.bf16.xpose.msra.mxu0 0
    %398 = vmatpush.bf16.xpose.msra.mxu0 0
    %399 = vmatpush.bf16.xpose.msra.mxu0 0
    %400 = vmatpush.bf16.xpose.msra.mxu0 0
    %401 = vmatpush.bf16.xpose.msra.mxu0 %v392
    %402 = vmatmul.bf16.gmra.mxu0 %v389
    %v403 = vpop.f32.mrf.mxu0
    %v404 = vadd.f32 0.0, %v403
    %v405 = vpop.f32.mrf.mxu0
    %v406 = vadd.f32 0.0, %v405
    %407 = vdwg.mxu0
    %v408 = vsel %vm111, %v404, -inf
    %409 = vmax.xlane.f32.xlu0 %v408
    %v410 = vpop.xlane.xlu0 %409
    %v411 = vsel %vm111, %v406, -inf
    %412 = vmax.xlane.f32.xlu0 %v411
    %v413 = vpop.xlane.xlu0 %412
    %v414 = vsub.f32 %v404, %v410
    %v415 = vsub.f32 %v406, %v413
    %v416 = vmul.f32 %v414, 1.442695
    %v417 = vpow.pop %v416
    %v418 = vmul.f32 %v415, 1.442695
    %v419 = vpow.pop %v418
    %v420 = vsel %vm111, %v417, 0.0
    %421 = vadd.xlane.f32.xlu0 %v420
    %v422 = vpop.xlane.xlu0 %421
    %v423 = vsel %vm111, %v419, 0.0
    %424 = vadd.xlane.f32.xlu0 %v423
    %v425 = vpop.xlane.xlu0 %424
    %v426 = vrcp.pop %v422
    %v427 = vrcp.pop %v425
    %v428 = vmul.f32 %v417, %v426
    %v429 = vmul.f32 %v419, %v427
    %v430 = vpack.c.bf16 %v429, %v428
    %v433 = vunpack.c.l.b16 %v376
    %v434 = vunpack.c.l.b16 %v377
    %v435 = vpack.c.b16 %v434, %v433
    %436 = vrot.lane.b32.xlu0 %v435, 32
    %v437 = vpop.permute.xlu0 %436
    %v440 = vsel %vm111, %v430, 0
    %442 = vmatpush.bf16.msra.mxu0 0
    %443 = vmatpush.bf16.msra.mxu0 0
    %444 = vmatpush.bf16.msra.mxu0 0
    %445 = vmatpush.bf16.msra.mxu0 0
    %446 = vmatpush.bf16.msra.mxu0 0
    %447 = vmatpush.bf16.msra.mxu0 0
    %448 = vmatpush.bf16.msra.mxu0 0
    %449 = vmatpush.bf16.msra.mxu0 %v437
    %450 = vmatmul.bf16.gmra.mxu0 %v440
    %v451 = vpop.f32.mrf.mxu0
    %v452 = vadd.f32 0.0, %v451
    %v453 = vpop.f32.mrf.mxu0
    %v454 = vadd.f32 0.0, %v453
    %455 = vdwg.mxu0
    %v456 = vpack.c.bf16 %v452, %v452
    %v457 = vpack.c.bf16 %v454, %v454
    %460 = vrot.lane.b32.xlu0 %v456, 96
    %v461 = vpop.permute.xlu0 %460
    %462 = vrot.lane.b32.xlu0 %v457, 96
    %v463 = vpop.permute.xlu0 %462
    %vm466 = vcmask 1044224
    %467 = vst.msk [vmem:[#allocation2] sm:$0xf] %vm466, %v461
    %468 = vst.msk [vmem:[#allocation2 + $0x4] sm:$0xf] %vm466, %v463
    %v469 = vld [vmem:[#allocation2] sm:$0xf]
    %v470 = vld [vmem:[#allocation2 + $0x4] sm:$0xf]
    %v471 = vld [vmem:[%s2] sm:$0xf]
    %v472 = vld [vmem:[%s2 + $0x4] sm:$0xf]
    %v473 = vld [vmem:[%s2 + $0x8] sm:$0xf]
    %v474 = vld [vmem:[%s2 + $0xc] sm:$0xf]
    %v475 = vld [vmem:[%s2 + $0x10] sm:$0xf]
    %v476 = vld [vmem:[%s2 + $0x14] sm:$0xf]
    %v477 = vld [vmem:[%s2 + $0x18] sm:$0xf]
    %v478 = vld [vmem:[%s2 + $0x1c] sm:$0xf]
    %v479 = vld [vmem:[%s2 + $0x20] sm:$0xf]
    %v480 = vld [vmem:[%s2 + $0x24] sm:$0xf]
    %v481 = vld [vmem:[%s2 + $0x28] sm:$0xf]
    %v482 = vld [vmem:[%s2 + $0x2c] sm:$0xf]
    %v483 = vld [vmem:[%s2 + $0x30] sm:$0xf]
    %v484 = vld [vmem:[%s2 + $0x34] sm:$0xf]
    %v485 = vld [vmem:[%s2 + $0x38] sm:$0xf]
    %v486 = vld [vmem:[%s2 + $0x3c] sm:$0xf]
    %v487 = vld [vmem:[%s3] sm:$0x1]
    %v489 = vperm.slane %v487, 0
    %v493 = vunpack.c.l.b16 %v469
    %v494 = vunpack.c.l.b16 %v470
    %v495 = vpack.c.b16 %v494, %v493
    %v513 = vunpack.c.l.b16 %v471
    %v514 = vunpack.c.l.b16 %v472
    %v515 = vunpack.c.l.b16 %v473
    %v516 = vunpack.c.l.b16 %v474
    %v517 = vunpack.c.l.b16 %v475
    %v518 = vunpack.c.l.b16 %v476
    %v519 = vunpack.c.l.b16 %v477
    %v520 = vunpack.c.l.b16 %v478
    %v521 = vunpack.c.l.b16 %v479
    %v522 = vunpack.c.l.b16 %v480
    %v523 = vunpack.c.l.b16 %v481
    %v524 = vunpack.c.l.b16 %v482
    %v525 = vunpack.c.l.b16 %v483
    %v526 = vunpack.c.l.b16 %v484
    %v527 = vunpack.c.l.b16 %v485
    %v528 = vunpack.c.l.b16 %v486
    %v529 = vpack.c.b16 %v514, %v513
    %v530 = vpack.c.b16 %v516, %v515
    %v531 = vpack.c.b16 %v518, %v517
    %v532 = vpack.c.b16 %v520, %v519
    %v533 = vpack.c.b16 %v522, %v521
    %v534 = vpack.c.b16 %v524, %v523
    %v535 = vpack.c.b16 %v526, %v525
    %v536 = vpack.c.b16 %v528, %v527
    %545 = vmatpush.bf16.msra.mxu0 %v536
    %546 = vmatpush.bf16.msra.mxu0 %v535
    %547 = vmatpush.bf16.msra.mxu0 %v534
    %548 = vmatpush.bf16.msra.mxu0 %v533
    %549 = vmatpush.bf16.msra.mxu0 %v532
    %550 = vmatpush.bf16.msra.mxu0 %v531
    %551 = vmatpush.bf16.msra.mxu0 %v530
    %552 = vmatpush.bf16.msra.mxu0 %v529
    %553 = vmatmul.bf16.gmra.mxu0 %v495
    %v554 = vpop.f32.mrf.mxu0
    %v555 = vadd.f32 %v489, %v554
    %v556 = vpop.f32.mrf.mxu0
    %v557 = vadd.f32 %v489, %v556
    %558 = vdwg.mxu0
    %v559 = vld [vmem:[%s4] sm:$0xf]
    %v560 = vld [vmem:[%s4 + $0x4] sm:$0xf]
    %v561 = vunpack.c.l.bf16 %v559
    %v562 = vunpack.c.l.bf16 %v560
    %v563 = vadd.f32 %v555, %v561
    %v564 = vadd.f32 %v557, %v562
    %v565 = vld [vmem:[%s5] sm:$0x1]
    %v566 = vld [vmem:[%s6] sm:$0x1]
    %567 = vadd.xlane.f32.xlu0 %v563
    %v568 = vpop.xlane.xlu0 %567
    %569 = vadd.xlane.f32.xlu0 %v564
    %v570 = vpop.xlane.xlu0 %569
    %v571 = vrcp.pop 128.0
    %v572 = vmul.f32 128.0, %v571
    %v573 = vsub.f32 1.0, %v572
    %v574 = vmul.f32 %v571, %v573
    %v575 = vadd.f32 %v571, %v574
    %vm576 = vweird.f32 %v571
    %v577 = vsel %vm576, %v571, %v575
    %v578 = vmul.f32 %v568, %v577
    %v579 = vmul.f32 %v570, %v577
    %v580 = vsub.f32 %v563, %v578
    %v581 = vsub.f32 %v564, %v579
    %v582 = vmul.f32 %v580, %v580
    %v583 = vmul.f32 %v581, %v581
    %584 = vadd.xlane.f32.xlu0 %v582
    %v585 = vpop.xlane.xlu0 %584
    %586 = vadd.xlane.f32.xlu0 %v583
    %v587 = vpop.xlane.xlu0 %586
    %v588 = vmul.f32 %v585, %v577
    %v589 = vmul.f32 %v587, %v577
    %v590 = vadd.f32 %v588, 1e-05
    %v591 = vadd.f32 %v589, 1e-05
    %v592 = vrsqrt.pop %v590
    %v593 = vmul.f32 %v592, %v590
    %v594 = vmul.f32 %v593, %v592
    %v595 = vmul.f32 0.5, %v594
    %v596 = vsub.f32 1.5, %v595
    %v597 = vmul.f32 %v592, %v596
    %vm598 = vweird.f32 %v590
    %vm599 = vweird.f32 %v592
    %vm600 = vmor %vm598, %vm599
    %v601 = vsel %vm600, %v592, %v597
    %v602 = vrsqrt.pop %v591
    %v603 = vmul.f32 %v602, %v591
    %v604 = vmul.f32 %v603, %v602
    %v605 = vmul.f32 0.5, %v604
    %v606 = vsub.f32 1.5, %v605
    %v607 = vmul.f32 %v602, %v606
    %vm608 = vweird.f32 %v591
    %vm609 = vweird.f32 %v602
    %vm610 = vmor %vm608, %vm609
    %v611 = vsel %vm610, %v602, %v607
    %v612 = vmul.f32 %v580, %v601
    %v613 = vmul.f32 %v581, %v611
    %v615 = vperm.slane %v565, 0
    %v617 = vmul.f32 %v612, %v615
    %v618 = vmul.f32 %v613, %v615
    %v620 = vperm.slane %v566, 0
    %v622 = vadd.f32 %v617, %v620
    %v623 = vadd.f32 %v618, %v620
    %v624 = vpack.c.bf16 %v622, %v622
    %v625 = vpack.c.bf16 %v623, %v623
    %626 = vst [vmem:[%s7] sm:$0xf] %v624
    %627 = vst [vmem:[%s7 + $0x4] sm:$0xf] %v625
    // Predicated region
    $region71: #{fwd.22} parent=1 // pred_check
      _
    $region72: #{fwd.22} parent=1 // pred_check_branch
      %629 = sbr.rel (0) target = $region74
    $region73: #{fwd.22} parent=1 // pred_region
      _
    $region74: #{fwd.22} parent=1 // pred_fallthru
      _
    // Predicated region
    $region75: #{fwd.22} parent=1 // pred_check
      _
    $region76: #{fwd.22} parent=1 // pred_check_branch
      %631 = sbr.rel (0) target = $region78
    $region77: #{fwd.22} parent=1 // pred_region
      _
    $region78: #{fwd.22} parent=1 // pred_fallthru
      _

// kernel: fwd.23
$region0: #{fwd.23}
  #allocation0 [shape = 'u32[]', space=smem, size = 0x4, offset = 0x4, fixed_abs, tag = 'smem constant byte address 0x4 - core index']
  #allocation1 [shape = 'u32[72,128]{1,0:T(1,128)}', space=vmem, size = 0x9000, scoped, tag = 'internal scratch']
  %s0 = inlined_call_operand.vmem [shape: bf16[16,128], index: 0, kind: input, shape index: {}, may-alias: {0,5}]
  %s1 = inlined_call_operand.hbm [shape: bf16[128,256], index: 1, kind: input, shape index: {}]
  %s2 = inlined_call_operand.vmem [shape: f32[1,256], index: 2, kind: input, shape index: {}]
  %s3 = inlined_call_operand.hbm [shape: bf16[256,128], index: 3, kind: input, shape index: {}]
  %s4 = inlined_call_operand.vmem [shape: f32[1,128], index: 4, kind: input, shape index: {}]
  %s5 = inlined_call_operand.vmem [shape: bf16[16,128], index: 5, kind: input, shape index: {}, may-alias: {0,5}]
  %s6 = inlined_call_operand.vmem [shape: f32[1,128], index: 6, kind: input, shape index: {}]
  %s7 = inlined_call_operand.vmem [shape: f32[1,128], index: 7, kind: input, shape index: {}]
  %s8 = inlined_call_operand.vmem [shape: bf16[16,128], index: 8, kind: output, shape index: {}]
  %s9 = sld [smem:[#allocation0]]
  $region50: #{fwd.23} parent=0
    _
  %s11 = ssub.s32 1, %s9
  %s12 = scalar_select 0, %s11, %s9
  $region1: #{fwd.23} parent=0
    #allocation2 [shape = 'u8[65536]{0}', space=vmem, size = 0x10000, scoped, tag = 'input window, operand 1, single buffered']
    #allocation3 [shape = 's32[1]{0}', space=sflag, size = 0x4, scoped, tag = 'scoped memory for fwd.23']
    #allocation4 [shape = 'u8[65536]{0}', space=vmem, size = 0x10000, scoped, tag = 'input window, operand 3, single buffered']
    #allocation5 [shape = 's32[1]{0}', space=sflag, size = 0x4, scoped, tag = 'scoped memory for fwd.23']
    %13 = vsyncpa [#allocation3], 0
    %14 = vsyncpa [#allocation5], 0
    // Predicated region
    $region2: #{fwd.23} parent=1 // pred_check
      _
    $region3: #{fwd.23} parent=1 // pred_check_branch
      %16 = sbr.rel (0) target = $region5
    $region4: #{fwd.23} parent=1 // pred_region
      _
    $region5: #{fwd.23} parent=1 // pred_fallthru
      _
    // Predicated region
    $region6: #{fwd.23} parent=1 // pred_check
      _
    $region7: #{fwd.23} parent=1 // pred_check_branch
      %18 = sbr.rel (0) target = $region9
    $region8: #{fwd.23} parent=1 // pred_region
      %20 = vsyncadd [#allocation3], 0
      %s21 = sshll.u32 %s1, 4
      %s22 = int_to_ptr.hbm [resolvable:$true] %s21
      %s23 = sshll.u32 [#allocation2], 4
      %s24 = int_to_ptr.vmem [resolvable:$true] %s23
      %29 = dma.hbm_to_vmem [thread:$0]  %s22, 2048, %s24, [#allocation3], 128, 128, 8
    $region9: #{fwd.23} parent=1 // pred_fallthru
      _
    // Predicated region
    $region10: #{fwd.23} parent=1 // pred_check
      _
    $region11: #{fwd.23} parent=1 // pred_check_branch
      %31 = sbr.rel (0) target = $region13
    $region12: #{fwd.23} parent=1 // pred_region
      _
    $region13: #{fwd.23} parent=1 // pred_fallthru
      _
    // Predicated region
    $region14: #{fwd.23} parent=1 // pred_check
      _
    $region15: #{fwd.23} parent=1 // pred_check_branch
      %33 = sbr.rel (0) target = $region17
    $region16: #{fwd.23} parent=1 // pred_region
      %35 = vsyncadd [#allocation5], 0
      %s36 = sshll.u32 %s3, 4
      %s37 = int_to_ptr.hbm [resolvable:$true] %s36
      %s38 = sshll.u32 [#allocation4], 4
      %s39 = int_to_ptr.vmem [resolvable:$true] %s38
      %44 = dma.hbm_to_vmem [thread:$0]  %s37, 2048, %s39, [#allocation5], 64, 64, 4
    $region17: #{fwd.23} parent=1 // pred_fallthru
      _
    // Predicated region
    $region18: #{fwd.23} parent=1 // pred_check
      _
    $region19: #{fwd.23} parent=1 // pred_check_branch
      %46 = sbr.rel (0) target = $region21
    $region20: #{fwd.23} parent=1 // pred_region
      _
    $region21: #{fwd.23} parent=1 // pred_fallthru
      _
    // Predicated region
    $region22: #{fwd.23} parent=1 // pred_check
      _
    $region23: #{fwd.23} parent=1 // pred_check_branch
      %48 = sbr.rel (0) target = $region25
    $region24: #{fwd.23} parent=1 // pred_region
      _
    $region25: #{fwd.23} parent=1 // pred_fallthru
      _
    // Predicated region
    $region26: #{fwd.23} parent=1 // pred_check
      _
    $region27: #{fwd.23} parent=1 // pred_check_branch
      %50 = sbr.rel (0) target = $region29
    $region28: #{fwd.23} parent=1 // pred_region
      _
    $region29: #{fwd.23} parent=1 // pred_fallthru
      _
    // Predicated region
    $region30: #{fwd.23} parent=1 // pred_check
      _
    $region31: #{fwd.23} parent=1 // pred_check_branch
      %52 = sbr.rel (0) target = $region33
    $region32: #{fwd.23} parent=1 // pred_region
      _
    $region33: #{fwd.23} parent=1 // pred_fallthru
      _
    // Predicated region
    $region34: #{fwd.23} parent=1 // pred_check
      _
    $region35: #{fwd.23} parent=1 // pred_check_branch
      %54 = sbr.rel (0) target = $region37
    $region36: #{fwd.23} parent=1 // pred_region
      %56 = dma.done [#allocation3], 2048
    $region37: #{fwd.23} parent=1 // pred_fallthru
      _
    // Predicated region
    $region38: #{fwd.23} parent=1 // pred_check
      _
    $region39: #{fwd.23} parent=1 // pred_check_branch
      %58 = sbr.rel (0) target = $region41
    $region40: #{fwd.23} parent=1 // pred_region
      %60 = dma.done [#allocation5], 2048
    $region41: #{fwd.23} parent=1 // pred_fallthru
      _
    %v61 = vld [vmem:[%s0] sm:$0xf]
    %v62 = vld [vmem:[%s0 + $0x4] sm:$0xf]
    %v63 = vld [vmem:[#allocation2] sm:$0xff]
    %v64 = vld [vmem:[#allocation2 + $0x8] sm:$0xff]
    %v65 = vld [vmem:[#allocation2 + $0x10] sm:$0xff]
    %v66 = vld [vmem:[#allocation2 + $0x18] sm:$0xff]
    %v67 = vld [vmem:[#allocation2 + $0x20] sm:$0xff]
    %v68 = vld [vmem:[#allocation2 + $0x28] sm:$0xff]
    %v69 = vld [vmem:[#allocation2 + $0x30] sm:$0xff]
    %v70 = vld [vmem:[#allocation2 + $0x38] sm:$0xff]
    %v71 = vld [vmem:[#allocation2 + $0x40] sm:$0xff]
    %v72 = vld [vmem:[#allocation2 + $0x48] sm:$0xff]
    %v73 = vld [vmem:[#allocation2 + $0x50] sm:$0xff]
    %v74 = vld [vmem:[#allocation2 + $0x58] sm:$0xff]
    %v75 = vld [vmem:[#allocation2 + $0x60] sm:$0xff]
    %v76 = vld [vmem:[#allocation2 + $0x68] sm:$0xff]
    %v77 = vld [vmem:[#allocation2 + $0x70] sm:$0xff]
    %v78 = vld [vmem:[#allocation2 + $0x78] sm:$0xff]
    %v79 = vld [vmem:[%s2] sm:$0x3]
    %v81 = vperm.slane %v79, 0
    %v82 = vperm.slane %v79, 1
    %v87 = vunpack.c.l.b16 %v61
    %v88 = vunpack.c.l.b16 %v62
    %v89 = vpack.c.b16 %v88, %v87
    %v107 = vunpack.c.l.b16 %v63
    %v108 = vunpack.c.h.b16 %v63
    %v109 = vunpack.c.l.b16 %v64
    %v110 = vunpack.c.h.b16 %v64
    %v111 = vunpack.c.l.b16 %v65
    %v112 = vunpack.c.h.b16 %v65
    %v113 = vunpack.c.l.b16 %v66
    %v114 = vunpack.c.h.b16 %v66
    %v115 = vunpack.c.l.b16 %v67
    %v116 = vunpack.c.h.b16 %v67
    %v117 = vunpack.c.l.b16 %v68
    %v118 = vunpack.c.h.b16 %v68
    %v119 = vunpack.c.l.b16 %v69
    %v120 = vunpack.c.h.b16 %v69
    %v121 = vunpack.c.l.b16 %v70
    %v122 = vunpack.c.h.b16 %v70
    %v123 = vunpack.c.l.b16 %v71
    %v124 = vunpack.c.h.b16 %v71
    %v125 = vunpack.c.l.b16 %v72
    %v126 = vunpack.c.h.b16 %v72
    %v127 = vunpack.c.l.b16 %v73
    %v128 = vunpack.c.h.b16 %v73
    %v129 = vunpack.c.l.b16 %v74
    %v130 = vunpack.c.h.b16 %v74
    %v131 = vunpack.c.l.b16 %v75
    %v132 = vunpack.c.h.b16 %v75
    %v133 = vunpack.c.l.b16 %v76
    %v134 = vunpack.c.h.b16 %v76
    %v135 = vunpack.c.l.b16 %v77
    %v136 = vunpack.c.h.b16 %v77
    %v137 = vunpack.c.l.b16 %v78
    %v138 = vunpack.c.h.b16 %v78
    %v139 = vpack.c.b16 %v109, %v107
    %v140 = vpack.c.b16 %v110, %v108
    %v141 = vpack.c.b16 %v113, %v111
    %v142 = vpack.c.b16 %v114, %v112
    %v143 = vpack.c.b16 %v117, %v115
    %v144 = vpack.c.b16 %v118, %v116
    %v145 = vpack.c.b16 %v121, %v119
    %v146 = vpack.c.b16 %v122, %v120
    %v147 = vpack.c.b16 %v125, %v123
    %v148 = vpack.c.b16 %v126, %v124
    %v149 = vpack.c.b16 %v129, %v127
    %v150 = vpack.c.b16 %v130, %v128
    %v151 = vpack.c.b16 %v133, %v131
    %v152 = vpack.c.b16 %v134, %v132
    %v153 = vpack.c.b16 %v137, %v135
    %v154 = vpack.c.b16 %v138, %v136
    %171 = vmatpush.bf16.msra.mxu0 %v153
    %172 = vmatpush.bf16.msra.mxu0 %v151
    %173 = vmatpush.bf16.msra.mxu0 %v149
    %174 = vmatpush.bf16.msra.mxu0 %v147
    %175 = vmatpush.bf16.msra.mxu0 %v145
    %176 = vmatpush.bf16.msra.mxu0 %v143
    %177 = vmatpush.bf16.msra.mxu0 %v141
    %178 = vmatpush.bf16.msra.mxu0 %v139
    %179 = vmatmul.bf16.gmra.mxu0 %v89
    %v180 = vpop.f32.mrf.mxu0
    %v181 = vadd.f32 %v81, %v180
    %v182 = vpop.f32.mrf.mxu0
    %v183 = vadd.f32 %v81, %v182
    %184 = vdwg.mxu0
    %185 = vmatpush.bf16.msra.mxu0 %v154
    %186 = vmatpush.bf16.msra.mxu0 %v152
    %187 = vmatpush.bf16.msra.mxu0 %v150
    %188 = vmatpush.bf16.msra.mxu0 %v148
    %189 = vmatpush.bf16.msra.mxu0 %v146
    %190 = vmatpush.bf16.msra.mxu0 %v144
    %191 = vmatpush.bf16.msra.mxu0 %v142
    %192 = vmatpush.bf16.msra.mxu0 %v140
    %193 = vmatmul.bf16.gmra.mxu0 %v89
    %v194 = vpop.f32.mrf.mxu0
    %v195 = vadd.f32 %v82, %v194
    %v196 = vpop.f32.mrf.mxu0
    %v197 = vadd.f32 %v82, %v196
    %198 = vdwg.mxu0
    %v199 = vmul.f32 %v181, 0.5
    %v200 = vmul.f32 %v195, 0.5
    %v201 = vmul.f32 %v183, 0.5
    %v202 = vmul.f32 %v197, 0.5
    %v203 = vmul.f32 %v181, 0.70710677
    %v204 = vmul.f32 %v195, 0.70710677
    %v205 = vmul.f32 %v183, 0.70710677
    %v206 = vmul.f32 %v197, 0.70710677
    %v207 = vmul.f32 %v203, %v203
    %v208 = vmin.f32 16.0, %v207
    %v209 = vmul.f32 %v208, 2.1237322e-06
    %v210 = vadd.f32 %v209, 0.00028619796
    %v211 = vmul.f32 %v208, %v210
    %v212 = vadd.f32 %v211, 0.0036580483
    %v213 = vmul.f32 %v208, %v212
    %v214 = vadd.f32 %v213, 0.05243302
    %v215 = vmul.f32 %v208, %v214
    %v216 = vadd.f32 %v215, 0.18741608
    %v217 = vmul.f32 %v208, %v216
    %v218 = vadd.f32 %v217, 1.1283791
    %v219 = vmul.f32 %v203, %v218
    %v220 = vmul.f32 %v208, 3.8918573e-05
    %v221 = vadd.f32 %v220, 0.001143296
    %v222 = vmul.f32 %v208, %v221
    %v223 = vadd.f32 %v222, 0.014752088
    %v224 = vmul.f32 %v208, %v223
    %v225 = vadd.f32 %v224, 0.112945676
    %v226 = vmul.f32 %v208, %v225
    %v227 = vadd.f32 %v226, 0.4994258
    %v228 = vmul.f32 %v208, %v227
    %v229 = vadd.f32 %v228, 1.0
    %v230 = vrcp.pop %v229
    %v231 = vmul.f32 %v229, %v230
    %v232 = vsub.f32 1.0, %v231
    %v233 = vmul.f32 %v230, %v232
    %v234 = vadd.f32 %v230, %v233
    %vm235 = vweird.f32 %v229
    %vm236 = vweird.f32 %v230
    %vm237 = vmor %vm235, %vm236
    %v238 = vsel %vm237, %v230, %v234
    %v239 = vand.u32 2147483647, %v229
    %vm240 = vcmp.eq.f32.partialorder %v239, 8.507059e+37
    %v241 = vand.u32 %v229, 2147483648
    %v242 = vor.u32 1.1754944e-38, %v241
    %v243 = vsel %vm240, %v242, %v238
    %v244 = vmul.f32 %v219, %v243
    %v245 = vmin.f32 %v244, 1.0
    %v246 = vmax.f32 %v245, -1.0
    %v247 = vmul.f32 %v204, %v204
    %v248 = vmin.f32 16.0, %v247
    %v249 = vmul.f32 %v248, 2.1237322e-06
    %v250 = vadd.f32 %v249, 0.00028619796
    %v251 = vmul.f32 %v248, %v250
    %v252 = vadd.f32 %v251, 0.0036580483
    %v253 = vmul.f32 %v248, %v252
    %v254 = vadd.f32 %v253, 0.05243302
    %v255 = vmul.f32 %v248, %v254
    %v256 = vadd.f32 %v255, 0.18741608
    %v257 = vmul.f32 %v248, %v256
    %v258 = vadd.f32 %v257, 1.1283791
    %v259 = vmul.f32 %v204, %v258
    %v260 = vmul.f32 %v248, 3.8918573e-05
    %v261 = vadd.f32 %v260, 0.001143296
    %v262 = vmul.f32 %v248, %v261
    %v263 = vadd.f32 %v262, 0.014752088
    %v264 = vmul.f32 %v248, %v263
    %v265 = vadd.f32 %v264, 0.112945676
    %v266 = vmul.f32 %v248, %v265
    %v267 = vadd.f32 %v266, 0.4994258
    %v268 = vmul.f32 %v248, %v267
    %v269 = vadd.f32 %v268, 1.0
    %v270 = vrcp.pop %v269
    %v271 = vmul.f32 %v269, %v270
    %v272 = vsub.f32 1.0, %v271
    %v273 = vmul.f32 %v270, %v272
    %v274 = vadd.f32 %v270, %v273
    %vm275 = vweird.f32 %v269
    %vm276 = vweird.f32 %v270
    %vm277 = vmor %vm275, %vm276
    %v278 = vsel %vm277, %v270, %v274
    %v279 = vand.u32 2147483647, %v269
    %vm280 = vcmp.eq.f32.partialorder %v279, 8.507059e+37
    %v281 = vand.u32 %v269, 2147483648
    %v282 = vor.u32 1.1754944e-38, %v281
    %v283 = vsel %vm280, %v282, %v278
    %v284 = vmul.f32 %v259, %v283
    %v285 = vmin.f32 %v284, 1.0
    %v286 = vmax.f32 %v285, -1.0
    %v287 = vmul.f32 %v205, %v205
    %v288 = vmin.f32 16.0, %v287
    %v289 = vmul.f32 %v288, 2.1237322e-06
    %v290 = vadd.f32 %v289, 0.00028619796
    %v291 = vmul.f32 %v288, %v290
    %v292 = vadd.f32 %v291, 0.0036580483
    %v293 = vmul.f32 %v288, %v292
    %v294 = vadd.f32 %v293, 0.05243302
    %v295 = vmul.f32 %v288, %v294
    %v296 = vadd.f32 %v295, 0.18741608
    %v297 = vmul.f32 %v288, %v296
    %v298 = vadd.f32 %v297, 1.1283791
    %v299 = vmul.f32 %v205, %v298
    %v300 = vmul.f32 %v288, 3.8918573e-05
    %v301 = vadd.f32 %v300, 0.001143296
    %v302 = vmul.f32 %v288, %v301
    %v303 = vadd.f32 %v302, 0.014752088
    %v304 = vmul.f32 %v288, %v303
    %v305 = vadd.f32 %v304, 0.112945676
    %v306 = vmul.f32 %v288, %v305
    %v307 = vadd.f32 %v306, 0.4994258
    %v308 = vmul.f32 %v288, %v307
    %v309 = vadd.f32 %v308, 1.0
    %v310 = vrcp.pop %v309
    %v311 = vmul.f32 %v309, %v310
    %v312 = vsub.f32 1.0, %v311
    %v313 = vmul.f32 %v310, %v312
    %v314 = vadd.f32 %v310, %v313
    %vm315 = vweird.f32 %v309
    %vm316 = vweird.f32 %v310
    %vm317 = vmor %vm315, %vm316
    %v318 = vsel %vm317, %v310, %v314
    %v319 = vand.u32 2147483647, %v309
    %vm320 = vcmp.eq.f32.partialorder %v319, 8.507059e+37
    %v321 = vand.u32 %v309, 2147483648
    %v322 = vor.u32 1.1754944e-38, %v321
    %v323 = vsel %vm320, %v322, %v318
    %v324 = vmul.f32 %v299, %v323
    %v325 = vmin.f32 %v324, 1.0
    %v326 = vmax.f32 %v325, -1.0
    %v327 = vmul.f32 %v206, %v206
    %v328 = vmin.f32 16.0, %v327
    %v329 = vmul.f32 %v328, 2.1237322e-06
    %v330 = vadd.f32 %v329, 0.00028619796
    %v331 = vmul.f32 %v328, %v330
    %v332 = vadd.f32 %v331, 0.0036580483
    %v333 = vmul.f32 %v328, %v332
    %v334 = vadd.f32 %v333, 0.05243302
    %v335 = vmul.f32 %v328, %v334
    %v336 = vadd.f32 %v335, 0.18741608
    %v337 = vmul.f32 %v328, %v336
    %v338 = vadd.f32 %v337, 1.1283791
    %v339 = vmul.f32 %v206, %v338
    %v340 = vmul.f32 %v328, 3.8918573e-05
    %v341 = vadd.f32 %v340, 0.001143296
    %v342 = vmul.f32 %v328, %v341
    %v343 = vadd.f32 %v342, 0.014752088
    %v344 = vmul.f32 %v328, %v343
    %v345 = vadd.f32 %v344, 0.112945676
    %v346 = vmul.f32 %v328, %v345
    %v347 = vadd.f32 %v346, 0.4994258
    %v348 = vmul.f32 %v328, %v347
    %v349 = vadd.f32 %v348, 1.0
    %v350 = vrcp.pop %v349
    %v351 = vmul.f32 %v349, %v350
    %v352 = vsub.f32 1.0, %v351
    %v353 = vmul.f32 %v350, %v352
    %v354 = vadd.f32 %v350, %v353
    %vm355 = vweird.f32 %v349
    %vm356 = vweird.f32 %v350
    %vm357 = vmor %vm355, %vm356
    %v358 = vsel %vm357, %v350, %v354
    %v359 = vand.u32 2147483647, %v349
    %vm360 = vcmp.eq.f32.partialorder %v359, 8.507059e+37
    %v361 = vand.u32 %v349, 2147483648
    %v362 = vor.u32 1.1754944e-38, %v361
    %v363 = vsel %vm360, %v362, %v358
    %v364 = vmul.f32 %v339, %v363
    %v365 = vmin.f32 %v364, 1.0
    %v366 = vmax.f32 %v365, -1.0
    %v367 = vadd.f32 %v246, 1.0
    %v368 = vadd.f32 %v286, 1.0
    %v369 = vadd.f32 %v326, 1.0
    %v370 = vadd.f32 %v366, 1.0
    %v371 = vmul.f32 %v199, %v367
    %v372 = vmul.f32 %v200, %v368
    %v373 = vmul.f32 %v201, %v369
    %v374 = vmul.f32 %v202, %v370
    %v375 = vpack.c.bf16 %v373, %v371
    %v376 = vpack.c.bf16 %v374, %v372
    %v377 = vld [vmem:[#allocation4] sm:$0xf]
    %v378 = vld [vmem:[#allocation4 + $0x4] sm:$0xf]
    %v379 = vld [vmem:[#allocation4 + $0x8] sm:$0xf]
    %v380 = vld [vmem:[#allocation4 + $0xc] sm:$0xf]
    %v381 = vld [vmem:[#allocation4 + $0x10] sm:$0xf]
    %v382 = vld [vmem:[#allocation4 + $0x14] sm:$0xf]
    %v383 = vld [vmem:[#allocation4 + $0x18] sm:$0xf]
    %v384 = vld [vmem:[#allocation4 + $0x1c] sm:$0xf]
    %v385 = vld [vmem:[#allocation4 + $0x20] sm:$0xf]
    %v386 = vld [vmem:[#allocation4 + $0x24] sm:$0xf]
    %v387 = vld [vmem:[#allocation4 + $0x28] sm:$0xf]
    %v388 = vld [vmem:[#allocation4 + $0x2c] sm:$0xf]
    %v389 = vld [vmem:[#allocation4 + $0x30] sm:$0xf]
    %v390 = vld [vmem:[#allocation4 + $0x34] sm:$0xf]
    %v391 = vld [vmem:[#allocation4 + $0x38] sm:$0xf]
    %v392 = vld [vmem:[#allocation4 + $0x3c] sm:$0xf]
    %v393 = vld [vmem:[#allocation4 + $0x40] sm:$0xf]
    %v394 = vld [vmem:[#allocation4 + $0x44] sm:$0xf]
    %v395 = vld [vmem:[#allocation4 + $0x48] sm:$0xf]
    %v396 = vld [vmem:[#allocation4 + $0x4c] sm:$0xf]
    %v397 = vld [vmem:[#allocation4 + $0x50] sm:$0xf]
    %v398 = vld [vmem:[#allocation4 + $0x54] sm:$0xf]
    %v399 = vld [vmem:[#allocation4 + $0x58] sm:$0xf]
    %v400 = vld [vmem:[#allocation4 + $0x5c] sm:$0xf]
    %v401 = vld [vmem:[#allocation4 + $0x60] sm:$0xf]
    %v402 = vld [vmem:[#allocation4 + $0x64] sm:$0xf]
    %v403 = vld [vmem:[#allocation4 + $0x68] sm:$0xf]
    %v404 = vld [vmem:[#allocation4 + $0x6c] sm:$0xf]
    %v405 = vld [vmem:[#allocation4 + $0x70] sm:$0xf]
    %v406 = vld [vmem:[#allocation4 + $0x74] sm:$0xf]
    %v407 = vld [vmem:[#allocation4 + $0x78] sm:$0xf]
    %v408 = vld [vmem:[#allocation4 + $0x7c] sm:$0xf]
    %v409 = vld [vmem:[%s4] sm:$0x1]
    %v411 = vperm.slane %v409, 0
    %v445 = vunpack.c.l.b16 %v377
    %v446 = vunpack.c.l.b16 %v378
    %v447 = vunpack.c.l.b16 %v379
    %v448 = vunpack.c.l.b16 %v380
    %v449 = vunpack.c.l.b16 %v381
    %v450 = vunpack.c.l.b16 %v382
    %v451 = vunpack.c.l.b16 %v383
    %v452 = vunpack.c.l.b16 %v384
    %v453 = vunpack.c.l.b16 %v385
    %v454 = vunpack.c.l.b16 %v386
    %v455 = vunpack.c.l.b16 %v387
    %v456 = vunpack.c.l.b16 %v388
    %v457 = vunpack.c.l.b16 %v389
    %v458 = vunpack.c.l.b16 %v390
    %v459 = vunpack.c.l.b16 %v391
    %v460 = vunpack.c.l.b16 %v392
    %v461 = vunpack.c.l.b16 %v393
    %v462 = vunpack.c.l.b16 %v394
    %v463 = vunpack.c.l.b16 %v395
    %v464 = vunpack.c.l.b16 %v396
    %v465 = vunpack.c.l.b16 %v397
    %v466 = vunpack.c.l.b16 %v398
    %v467 = vunpack.c.l.b16 %v399
    %v468 = vunpack.c.l.b16 %v400
    %v469 = vunpack.c.l.b16 %v401
    %v470 = vunpack.c.l.b16 %v402
    %v471 = vunpack.c.l.b16 %v403
    %v472 = vunpack.c.l.b16 %v404
    %v473 = vunpack.c.l.b16 %v405
    %v474 = vunpack.c.l.b16 %v406
    %v475 = vunpack.c.l.b16 %v407
    %v476 = vunpack.c.l.b16 %v408
    %v477 = vpack.c.b16 %v446, %v445
    %v478 = vpack.c.b16 %v448, %v447
    %v479 = vpack.c.b16 %v450, %v449
    %v480 = vpack.c.b16 %v452, %v451
    %v481 = vpack.c.b16 %v454, %v453
    %v482 = vpack.c.b16 %v456, %v455
    %v483 = vpack.c.b16 %v458, %v457
    %v484 = vpack.c.b16 %v460, %v459
    %v485 = vpack.c.b16 %v462, %v461
    %v486 = vpack.c.b16 %v464, %v463
    %v487 = vpack.c.b16 %v466, %v465
    %v488 = vpack.c.b16 %v468, %v467
    %v489 = vpack.c.b16 %v470, %v469
    %v490 = vpack.c.b16 %v472, %v471
    %v491 = vpack.c.b16 %v474, %v473
    %v492 = vpack.c.b16 %v476, %v475
    %509 = vmatpush.bf16.msra.mxu0 %v484
    %510 = vmatpush.bf16.msra.mxu0 %v483
    %511 = vmatpush.bf16.msra.mxu0 %v482
    %512 = vmatpush.bf16.msra.mxu0 %v481
    %513 = vmatpush.bf16.msra.mxu0 %v480
    %514 = vmatpush.bf16.msra.mxu0 %v479
    %515 = vmatpush.bf16.msra.mxu0 %v478
    %516 = vmatpush.bf16.msra.mxu0 %v477
    %517 = vmatmul.bf16.gmra.mxu0 %v375
    %v518 = vpop.f32.mrf.mxu0
    %v519 = vadd.f32 %v411, %v518
    %v520 = vpop.f32.mrf.mxu0
    %v521 = vadd.f32 %v411, %v520
    %522 = vdwg.mxu0
    %523 = vmatpush.bf16.msra.mxu0 %v492
    %524 = vmatpush.bf16.msra.mxu0 %v491
    %525 = vmatpush.bf16.msra.mxu0 %v490
    %526 = vmatpush.bf16.msra.mxu0 %v489
    %527 = vmatpush.bf16.msra.mxu0 %v488
    %528 = vmatpush.bf16.msra.mxu0 %v487
    %529 = vmatpush.bf16.msra.mxu0 %v486
    %530 = vmatpush.bf16.msra.mxu0 %v485
    %531 = vmatmul.bf16.gmra.mxu0 %v376
    %v532 = vpop.f32.mrf.mxu0
    %v533 = vadd.f32 %v519, %v532
    %v534 = vpop.f32.mrf.mxu0
    %v535 = vadd.f32 %v521, %v534
    %536 = vdwg.mxu0
    %v537 = vld [vmem:[%s5] sm:$0xf]
    %v538 = vld [vmem:[%s5 + $0x4] sm:$0xf]
    %v539 = vunpack.c.l.bf16 %v537
    %v540 = vunpack.c.l.bf16 %v538
    %v541 = vadd.f32 %v533, %v539
    %v542 = vadd.f32 %v535, %v540
    %v543 = vld [vmem:[%s6] sm:$0x1]
    %v544 = vld [vmem:[%s7] sm:$0x1]
    %545 = vadd.xlane.f32.xlu0 %v541
    %v546 = vpop.xlane.xlu0 %545
    %547 = vadd.xlane.f32.xlu0 %v542
    %v548 = vpop.xlane.xlu0 %547
    %v549 = vrcp.pop 128.0
    %v550 = vmul.f32 128.0, %v549
    %v551 = vsub.f32 1.0, %v550
    %v552 = vmul.f32 %v549, %v551
    %v553 = vadd.f32 %v549, %v552
    %vm554 = vweird.f32 %v549
    %v555 = vsel %vm554, %v549, %v553
    %v556 = vmul.f32 %v546, %v555
    %v557 = vmul.f32 %v548, %v555
    %v558 = vsub.f32 %v541, %v556
    %v559 = vsub.f32 %v542, %v557
    %v560 = vmul.f32 %v558, %v558
    %v561 = vmul.f32 %v559, %v559
    %562 = vadd.xlane.f32.xlu0 %v560
    %v563 = vpop.xlane.xlu0 %562
    %564 = vadd.xlane.f32.xlu0 %v561
    %v565 = vpop.xlane.xlu0 %564
    %v566 = vmul.f32 %v563, %v555
    %v567 = vmul.f32 %v565, %v555
    %v568 = vadd.f32 %v566, 1e-05
    %v569 = vadd.f32 %v567, 1e-05
    %v570 = vrsqrt.pop %v568
    %v571 = vmul.f32 %v570, %v568
    %v572 = vmul.f32 %v571, %v570
    %v573 = vmul.f32 0.5, %v572
    %v574 = vsub.f32 1.5, %v573
    %v575 = vmul.f32 %v570, %v574
    %vm576 = vweird.f32 %v568
    %vm577 = vweird.f32 %v570
    %vm578 = vmor %vm576, %vm577
    %v579 = vsel %vm578, %v570, %v575
    %v580 = vrsqrt.pop %v569
    %v581 = vmul.f32 %v580, %v569
    %v582 = vmul.f32 %v581, %v580
    %v583 = vmul.f32 0.5, %v582
    %v584 = vsub.f32 1.5, %v583
    %v585 = vmul.f32 %v580, %v584
    %vm586 = vweird.f32 %v569
    %vm587 = vweird.f32 %v580
    %vm588 = vmor %vm586, %vm587
    %v589 = vsel %vm588, %v580, %v585
    %v590 = vmul.f32 %v558, %v579
    %v591 = vmul.f32 %v559, %v589
    %v593 = vperm.slane %v543, 0
    %v595 = vmul.f32 %v590, %v593
    %v596 = vmul.f32 %v591, %v593
    %v598 = vperm.slane %v544, 0
    %v600 = vadd.f32 %v595, %v598
    %v601 = vadd.f32 %v596, %v598
    %v602 = vpack.c.bf16 %v600, %v600
    %v603 = vpack.c.bf16 %v601, %v601
    %604 = vst [vmem:[%s8] sm:$0xf] %v602
    %605 = vst [vmem:[%s8 + $0x4] sm:$0xf] %v603
    // Predicated region
    $region42: #{fwd.23} parent=1 // pred_check
      _
    $region43: #{fwd.23} parent=1 // pred_check_branch
      %607 = sbr.rel (0) target = $region45
    $region44: #{fwd.23} parent=1 // pred_region
      _
    $region45: #{fwd.23} parent=1 // pred_fallthru
      _
    // Predicated region
    $region46: #{fwd.23} parent=1 // pred_check
      _
    $region47: #{fwd.23} parent=1 // pred_check_branch
      %609 = sbr.rel (0) target = $region49
    $region48: #{fwd.23} parent=1 // pred_region
      _
    $region49: #{fwd.23} parent=1 // pred_fallthru
      _
    %610 = vsyncpa [#allocation3], 1
    %611 = vsyncpa [#allocation5], 1

// kernel: fwd.24
$region0: #{fwd.24}
  #allocation0 [shape = 'u32[]', space=smem, size = 0x4, offset = 0x4, fixed_abs, tag = 'smem constant byte address 0x4 - core index']
  #allocation1 [shape = 'u32[72,128]{1,0:T(1,128)}', space=vmem, size = 0x9000, scoped, tag = 'internal scratch']
  #allocation2 [shape = 'f32[16,128]{1,0:T(8,128)}', space=vmem, size = 0x2000, scoped, tag = 'scratch operand']
  %s0 = inlined_call_operand.vmem [shape: bf16[16,128], index: 0, kind: input, shape index: {}]
  %s1 = inlined_call_operand.hbm [shape: bf16[128,384], index: 1, kind: input, shape index: {}]
  %s2 = inlined_call_operand.vmem [shape: f32[1,384], index: 2, kind: input, shape index: {}]
  %s3 = inlined_call_operand.vmem [shape: bf16[16,384], index: 3, kind: output, shape index: {}]
  %s4 = sld [smem:[#allocation0]]
  $region94: #{fwd.24} parent=0
    _
  %s6 = ssub.s32 1, %s4
  %s7 = scalar_select 0, %s6, %s4
  $region1: #{fwd.24} parent=0
    #allocation3 [shape = 'u8[65536]{0}', space=vmem, size = 0x10000, scoped, tag = 'input window, operand 1']
    #allocation4 [shape = 's32[2]{0}', space=sflag, size = 0x8, scoped, tag = 'scoped memory for fwd.24']
    #allocation5 [shape = 'u8[8192]{0}', space=vmem, size = 0x2000, scoped, tag = 'output window, operand 0']
    %8 = vsyncpa [#allocation4], 0
    %s9 = scalar_lea.sflag [#allocation4], 1
    %10 = vsyncpa %s9, 0
    loop: start=0, step=1, limit=5
    $region2: #{fwd.24} parent=1 // loop_pre_header
      _
    $region3: #{fwd.24} parent=1 // loop_header
      %s12 = sphi 0, %s16
      %p13 = scmp.ge.s32.totalorder %s12, 5
      %s19 = sphi 0, %s38
      %s20 = sphi 0, %s34
      %s21 = sphi 0, %s30
      %s22 = sphi 0, %s19
      %s23 = sphi 0, %s20
      %s24 = sphi 0, %s21
      %s25 = sphi 0, %s22
      %s26 = sphi 0, %s23
      %s27 = sphi 0, %s24
      %s43 = sphi 0, %s45
      %s46 = sphi 0, %s43
      %s47 = sphi 0, %s46
      %s63 = sphi 0, %s47
      %s71 = sphi 0, %s73
      %s74 = sphi 0, %s71
      %s75 = sphi 0, %s74
      %s91 = sphi 0, %s75
      %s97 = sphi 0, %s99
      %s100 = sphi 0, %s97
      %s101 = sphi 0, %s100
      %s117 = sphi 0, %s101
      %s125 = sphi 0, %s127
      %s128 = sphi 0, %s125
      %s129 = sphi 0, %s128
      %s145 = sphi 0, %s129
    $region4: #{fwd.24} parent=1 // loop_header_branch
      %15 = sbr.rel (%p13) target = $region8
    $region5: #{fwd.24} parent=1 // loop_body
      %s17 = ssub.s32 %s12, 1
      %s18 = ssub.s32 %s12, 2
      %s28 = sadd.s32 1, %s21
      %p29 = scmp.ge.s32.totalorder %s28, 1
      %s30 = scalar_select %p29, 0, %s28
      %s31 = sadd.s32 1, %s20
      %s32 = scalar_select %p29, %s31, %s20
      %p33 = scmp.ge.s32.totalorder %s32, 3
      %s34 = scalar_select %p33, 0, %s32
      %s35 = sadd.s32 1, %s19
      %s36 = scalar_select %p33, %s35, %s19
      %p37 = scmp.ge.s32.totalorder %s36, 1
      %s38 = scalar_select %p37, 0, %s36
      %s39 = ssub.s32 %s19, %s38
      %s40 = ssub.s32 %s21, %s30
      %s41 = sor.u32 %s39, %s40
      %p42 = scmp.eq.s32.totalorder %s41, 0
      %s44 = sadd.s32 %s43, 1
      %s45 = scalar_select %p42, %s43, %s44
      %p48 = pneg %p42
      %p49 = scmp.eq.s32.totalorder %s12, 2
      %p50 = por %p48, %p49
      %p51 = scmp.ne.s32.totalorder %s43, %s46
      %p52 = scmp.eq.s32.totalorder %s12, 0
      %p53 = por %p51, %p52
      %p54 = scmp.ne.s32.totalorder %s43, %s46
      %p55 = scmp.eq.s32.totalorder %s17, 2
      %p56 = por %p54, %p55
      %p57 = scmp.ne.s32.totalorder %s46, %s47
      %p58 = scmp.eq.s32.totalorder %s17, 0
      %p59 = por %p57, %p58
      %p60 = scmp.ne.s32.totalorder %s46, %s47
      %p61 = scmp.eq.s32.totalorder %s18, 2
      %p62 = por %p60, %p61
      %p64 = scmp.ne.s32.totalorder %s47, %s63
      %p65 = scmp.eq.s32.totalorder %s18, 0
      %p66 = por %p64, %p65
      %s67 = ssub.s32 %s21, %s30
      %s68 = ssub.s32 %s20, %s34
      %s69 = sor.u32 %s67, %s68
      %p70 = scmp.eq.s32.totalorder %s69, 0
      %s72 = sadd.s32 %s71, 1
      %s73 = scalar_select %p70, %s71, %s72
      %p76 = pneg %p70
      %p77 = scmp.eq.s32.totalorder %s12, 2
      %p78 = por %p76, %p77
      %p79 = scmp.ne.s32.totalorder %s71, %s74
      %p80 = scmp.eq.s32.totalorder %s12, 0
      %p81 = por %p79, %p80
      %p82 = scmp.ne.s32.totalorder %s71, %s74
      %p83 = scmp.eq.s32.totalorder %s17, 2
      %p84 = por %p82, %p83
      %p85 = scmp.ne.s32.totalorder %s74, %s75
      %p86 = scmp.eq.s32.totalorder %s17, 0
      %p87 = por %p85, %p86
      %p88 = scmp.ne.s32.totalorder %s74, %s75
      %p89 = scmp.eq.s32.totalorder %s18, 2
      %p90 = por %p88, %p89
      %p92 = scmp.ne.s32.totalorder %s75, %s91
      %p93 = scmp.eq.s32.totalorder %s18, 0
      %p94 = por %p92, %p93
      %s95 = ssub.s32 %s20, %s34
      %p96 = scmp.eq.s32.totalorder %s95, 0
      %s98 = sadd.s32 %s97, 1
      %s99 = scalar_select %p96, %s97, %s98
      %p102 = pneg %p96
      %p103 = scmp.eq.s32.totalorder %s12, 2
      %p104 = por %p102, %p103
      %p105 = scmp.ne.s32.totalorder %s97, %s100
      %p106 = scmp.eq.s32.totalorder %s12, 0
      %p107 = por %p105, %p106
      %p108 = scmp.ne.s32.totalorder %s97, %s100
      %p109 = scmp.eq.s32.totalorder %s17, 2
      %p110 = por %p108, %p109
      %p111 = scmp.ne.s32.totalorder %s100, %s101
      %p112 = scmp.eq.s32.totalorder %s17, 0
      %p113 = por %p111, %p112
      %p114 = scmp.ne.s32.totalorder %s100, %s101
      %p115 = scmp.eq.s32.totalorder %s18, 2
      %p116 = por %p114, %p115
      %p118 = scmp.ne.s32.totalorder %s101, %s117
      %p119 = scmp.eq.s32.totalorder %s18, 0
      %p120 = por %p118, %p119
      %s121 = ssub.s32 %s19, %s38
      %s122 = ssub.s32 %s20, %s34
      %s123 = sor.u32 %s121, %s122
      %p124 = scmp.eq.s32.totalorder %s123, 0
      %s126 = sadd.s32 %s125, 1
      %s127 = scalar_select %p124, %s125, %s126
      %p130 = pneg %p124
      %p131 = scmp.eq.s32.totalorder %s12, 2
      %p132 = por %p130, %p131
      %p133 = scmp.ne.s32.totalorder %s125, %s128
      %p134 = scmp.eq.s32.totalorder %s12, 0
      %p135 = por %p133, %p134
      %p136 = scmp.ne.s32.totalorder %s125, %s128
      %p137 = scmp.eq.s32.totalorder %s17, 2
      %p138 = por %p136, %p137
      %p139 = scmp.ne.s32.totalorder %s128, %s129
      %p140 = scmp.eq.s32.totalorder %s17, 0
      %p141 = por %p139, %p140
      %p142 = scmp.ne.s32.totalorder %s128, %s129
      %p143 = scmp.eq.s32.totalorder %s18, 2
      %p144 = por %p142, %p143
      %p146 = scmp.ne.s32.totalorder %s129, %s145
      %p147 = scmp.eq.s32.totalorder %s18, 0
      %p148 = por %p146, %p147
      %p149 = scmp.le.s32.totalorder 1, %s12
      %p150 = scmp.lt.s32.totalorder %s12, 4
      %p151 = pnand %p149, %p150
      %p152 = pneg %p151
      // Predicated region
      $region9: #{fwd.24} parent=5 // pred_check
        _
      $region10: #{fwd.24} parent=5 // pred_check_branch
        %154 = sbr.rel (%p151) target = $region12
      $region11: #{fwd.24} parent=5 // pred_region
        %s155 = ssub.s32 %s12, 1
        // Predicated region
        $region13: #{fwd.24} parent=11 // pred_check
          %p156 = pneg %p59
        $region14: #{fwd.24} parent=11 // pred_check_branch
          %158 = sbr.rel (%p156) target = $region16
        $region15: #{fwd.24} parent=11 // pred_region
          %s159 = smul.u32 2, %s22
          %p160 = scmp.lt.s32.totalorder %s159, 1
          %s161 = scalar_select %p160, %s159, 1
          %p162 = scmp.lt.s32.totalorder %s24, 0
          %s163 = scalar_select %p162, %s24, 0
          %s164 = sadd.s32 %s163, %s161
          %s165 = smul.addr %s164, 4
          %s166 = scalar_lea.vmem %s0, %s165
          %s167 = smul.u32 2, %s22
        $region16: #{fwd.24} parent=11 // pred_fallthru
          _
      $region12: #{fwd.24} parent=5 // pred_fallthru
        _
      %p168 = scmp.lt.s32.totalorder %s12, 3
      // Predicated region
      $region17: #{fwd.24} parent=5 // pred_check
        %p169 = pneg %p168
      $region18: #{fwd.24} parent=5 // pred_check_branch
        %171 = sbr.rel (%p169) target = $region20
      $region19: #{fwd.24} parent=5 // pred_region
        // Predicated region
        $region21: #{fwd.24} parent=19 // pred_check
          %p172 = pneg %p81
        $region22: #{fwd.24} parent=19 // pred_check_branch
          %174 = sbr.rel (%p172) target = $region24
        $region23: #{fwd.24} parent=19 // pred_region
          %s175 = sand.u32 %s71, 1
          %s176 = scalar_lea.sflag [#allocation4], %s175
          %s177 = sand.u32 %s71, 1
          %s178 = smul.addr %s177, 64
          %s179 = scalar_lea.vmem [#allocation3], %s178
          %s180 = smul.u32 16, %s21
          %182 = vsyncadd %s176, 0
          %s183 = smul.addr %s180, 3
          %s184 = sadd.s32 %s20, %s183
          %s185 = smul.addr %s184, 4
          %s186 = scalar_lea.hbm %s1, %s185
          %s187 = sshll.u32 %s186, 4
          %s188 = int_to_ptr.hbm [resolvable:$true] %s187
          %s189 = sshll.u32 %s179, 4
          %s190 = int_to_ptr.vmem [resolvable:$true] %s189
          %195 = dma.hbm_to_vmem [thread:$0]  %s188, 1024, %s190, %s176, 192, 64, 4
        $region24: #{fwd.24} parent=19 // pred_fallthru
          _
        // Predicated region
        $region25: #{fwd.24} parent=19 // pred_check
          %p196 = pneg %p107
        $region26: #{fwd.24} parent=19 // pred_check_branch
          %198 = sbr.rel (%p196) target = $region28
        $region27: #{fwd.24} parent=19 // pred_region
          %p199 = scmp.lt.s32.totalorder %s20, 2
          %s200 = scalar_select %p199, %s20, 2
          %s201 = scalar_lea.vmem %s2, %s200
        $region28: #{fwd.24} parent=19 // pred_fallthru
          _
      $region20: #{fwd.24} parent=5 // pred_fallthru
        _
      %p202 = scmp.le.s32.totalorder 1, %s12
      %p203 = scmp.lt.s32.totalorder %s12, 4
      %p204 = pnand %p202, %p203
      %p205 = pneg %p204
      // Predicated region
      $region29: #{fwd.24} parent=5 // pred_check
        _
      $region30: #{fwd.24} parent=5 // pred_check_branch
        %207 = sbr.rel (%p204) target = $region32
      $region31: #{fwd.24} parent=5 // pred_region
        %s208 = ssub.s32 %s12, 1
        %s209 = sand.u32 %s74, 1
        %s210 = scalar_lea.sflag [#allocation4], %s209
        %s211 = sand.u32 %s74, 1
        %s212 = smul.addr %s211, 64
        %s213 = scalar_lea.vmem [#allocation3], %s212
        // Predicated region
        $region33: #{fwd.24} parent=31 // pred_check
          %p214 = pneg %p87
        $region34: #{fwd.24} parent=31 // pred_check_branch
          %216 = sbr.rel (%p214) target = $region36
        $region35: #{fwd.24} parent=31 // pred_region
          %218 = dma.done %s210, 1024
        $region36: #{fwd.24} parent=31 // pred_fallthru
          _
        %s219 = smul.u32 2, %s22
        %p220 = scmp.lt.s32.totalorder %s219, 1
        %s221 = scalar_select %p220, %s219, 1
        %p222 = scmp.lt.s32.totalorder %s24, 0
        %s223 = scalar_select %p222, %s24, 0
        %s224 = sadd.s32 %s223, %s221
        %s225 = smul.addr %s224, 4
        %s226 = scalar_lea.vmem %s0, %s225
        %p227 = pneg %p59
        %p228 = pneg %p56
        %s229 = sand.u32 %s74, 1
        %s230 = scalar_lea.sflag [#allocation4], %s229
        %s231 = sand.u32 %s74, 1
        %s232 = smul.addr %s231, 64
        %s233 = scalar_lea.vmem [#allocation3], %s232
        %p234 = pneg %p87
        %p235 = pneg %p84
        %p236 = scmp.lt.s32.totalorder %s23, 2
        %s237 = scalar_select %p236, %s23, 2
        %s238 = scalar_lea.vmem %s2, %s237
        %p239 = pneg %p113
        %p240 = pneg %p110
        %p241 = pneg %p141
        %p242 = pneg %p138
        %s243 = sand.u32 %s128, 1
        %s244 = sand.u32 %s128, 1
        %s245 = smul.addr %s244, 8
        %s246 = scalar_lea.vmem [#allocation5], %s245
        %s247 = smul.u32 2, %s22
        %p248 = scmp.lt.s32.totalorder %s247, 1
        %s249 = scalar_select %p248, %s247, 1
        %p250 = scmp.lt.s32.totalorder %s24, 0
        %s251 = scalar_select %p250, %s24, 0
        %s252 = sadd.s32 %s251, %s249
        %s253 = smul.addr %s252, 4
        %s254 = scalar_lea.vmem %s0, %s253
        %s255 = smul.u32 2, %s22
        %s256 = smul.u32 16, %s24
        %p257 = scmp.lt.s32.totalorder %s23, 2
        %s258 = scalar_select %p257, %s23, 2
        %s259 = scalar_lea.vmem %s2, %s258
        %s260 = smul.u32 2, %s22
        %p261 = scmp.eq.s32.totalorder %s24, 0
        // Predicated region
        $region37: #{fwd.24} parent=31 // pred_check
          %p262 = pneg %p261
        $region38: #{fwd.24} parent=31 // pred_check_branch
          %264 = sbr.rel (%p262) target = $region40
        $region39: #{fwd.24} parent=31 // pred_region
          %265 = vst [vmem:[#allocation2] sm:$0xff] 0.0
          %266 = vst [vmem:[#allocation2 + $0x8] sm:$0xff] 0.0
        $region40: #{fwd.24} parent=31 // pred_fallthru
          _
        %v267 = vld [vmem:[#allocation2] sm:$0xff]
        %v268 = vld [vmem:[#allocation2 + $0x8] sm:$0xff]
        %v269 = vld [vmem:[%s254] sm:$0xf]
        %v270 = vld [vmem:[%s254 + $0x4] sm:$0xf]
        %v271 = vld [vmem:[%s213] sm:$0xf]
        %v272 = vld [vmem:[%s213 + $0x4] sm:$0xf]
        %v273 = vld [vmem:[%s213 + $0x8] sm:$0xf]
        %v274 = vld [vmem:[%s213 + $0xc] sm:$0xf]
        %v275 = vld [vmem:[%s213 + $0x10] sm:$0xf]
        %v276 = vld [vmem:[%s213 + $0x14] sm:$0xf]
        %v277 = vld [vmem:[%s213 + $0x18] sm:$0xf]
        %v278 = vld [vmem:[%s213 + $0x1c] sm:$0xf]
        %v279 = vld [vmem:[%s213 + $0x20] sm:$0xf]
        %v280 = vld [vmem:[%s213 + $0x24] sm:$0xf]
        %v281 = vld [vmem:[%s213 + $0x28] sm:$0xf]
        %v282 = vld [vmem:[%s213 + $0x2c] sm:$0xf]
        %v283 = vld [vmem:[%s213 + $0x30] sm:$0xf]
        %v284 = vld [vmem:[%s213 + $0x34] sm:$0xf]
        %v285 = vld [vmem:[%s213 + $0x38] sm:$0xf]
        %v286 = vld [vmem:[%s213 + $0x3c] sm:$0xf]
        %v289 = vunpack.c.l.b16 %v269
        %v290 = vunpack.c.l.b16 %v270
        %v291 = vpack.c.b16 %v290, %v289
        %v309 = vunpack.c.l.b16 %v271
        %v310 = vunpack.c.l.b16 %v272
        %v311 = vunpack.c.l.b16 %v273
        %v312 = vunpack.c.l.b16 %v274
        %v313 = vunpack.c.l.b16 %v275
        %v314 = vunpack.c.l.b16 %v276
        %v315 = vunpack.c.l.b16 %v277
        %v316 = vunpack.c.l.b16 %v278
        %v317 = vunpack.c.l.b16 %v279
        %v318 = vunpack.c.l.b16 %v280
        %v319 = vunpack.c.l.b16 %v281
        %v320 = vunpack.c.l.b16 %v282
        %v321 = vunpack.c.l.b16 %v283
        %v322 = vunpack.c.l.b16 %v284
        %v323 = vunpack.c.l.b16 %v285
        %v324 = vunpack.c.l.b16 %v286
        %v325 = vpack.c.b16 %v310, %v309
        %v326 = vpack.c.b16 %v312, %v311
        %v327 = vpack.c.b16 %v314, %v313
        %v328 = vpack.c.b16 %v316, %v315
        %v329 = vpack.c.b16 %v318, %v317
        %v330 = vpack.c.b16 %v320, %v319
        %v331 = vpack.c.b16 %v322, %v321
        %v332 = vpack.c.b16 %v324, %v323
        %341 = vmatpush.bf16.msra.mxu0 %v332
        %342 = vmatpush.bf16.msra.mxu0 %v331
        %343 = vmatpush.bf16.msra.mxu0 %v330
        %344 = vmatpush.bf16.msra.mxu0 %v329
        %345 = vmatpush.bf16.msra.mxu0 %v328
        %346 = vmatpush.bf16.msra.mxu0 %v327
        %347 = vmatpush.bf16.msra.mxu0 %v326
        %348 = vmatpush.bf16.msra.mxu0 %v325
        %349 = vmatmul.bf16.gmra.mxu0 %v291
        %v350 = vpop.f32.mrf.mxu0
        %v351 = vadd.f32 0.0, %v350
        %v352 = vpop.f32.mrf.mxu0
        %v353 = vadd.f32 0.0, %v352
        %354 = vdwg.mxu0
        %v355 = vadd.f32 %v267, %v351
        %v356 = vadd.f32 %v268, %v353
        %357 = vst [vmem:[#allocation2] sm:$0xff] %v355
        %358 = vst [vmem:[#allocation2 + $0x8] sm:$0xff] %v356
        // Predicated region
        $region41: #{fwd.24} parent=31 // pred_check
          %p359 = pneg %p261
        $region42: #{fwd.24} parent=31 // pred_check_branch
          %361 = sbr.rel (%p359) target = $region44
        $region43: #{fwd.24} parent=31 // pred_region
          %v362 = vld [vmem:[#allocation2] sm:$0xff]
          %v363 = vld [vmem:[#allocation2 + $0x8] sm:$0xff]
          %v364 = vld [vmem:[%s259] sm:$0x1]
          %v366 = vperm.slane %v364, 0
          %v368 = vadd.f32 %v362, %v366
          %v369 = vadd.f32 %v363, %v366
          %v370 = vpack.c.bf16 %v368, %v368
          %v371 = vpack.c.bf16 %v369, %v369
          %372 = vst [vmem:[%s246] sm:$0xf] %v370
          %373 = vst [vmem:[%s246 + $0x4] sm:$0xf] %v371
        $region44: #{fwd.24} parent=31 // pred_fallthru
          _
        %s374 = sand.u32 %s128, 1
        %s375 = sand.u32 %s128, 1
        %s376 = smul.addr %s375, 8
        %s377 = scalar_lea.vmem [#allocation5], %s376
        // Predicated region
        $region45: #{fwd.24} parent=31 // pred_check
          %p378 = pneg %p138
        $region46: #{fwd.24} parent=31 // pred_check_branch
          %380 = sbr.rel (%p378) target = $region48
        $region47: #{fwd.24} parent=31 // pred_region
          %s381 = smul.u32 2, %s22
          %s382 = smul.addr %s381, 3
          %s383 = sadd.s32 %s23, %s382
          %s384 = smul.addr %s383, 4
          %s385 = scalar_lea.vmem %s3, %s384
          // Predicated region
          $region49: #{fwd.24} parent=47 // pred_check
            _
          $region50: #{fwd.24} parent=47 // pred_check_branch
            %387 = sbr.rel (0) target = $region52
          $region51: #{fwd.24} parent=47 // pred_region
            // Predicated region
            $region53: #{fwd.24} parent=51 // pred_check
              _
            $region54: #{fwd.24} parent=51 // pred_check_branch
              %389 = sbr.rel target = $region56
            $region55: #{fwd.24} parent=51 // pred_region
              // Predicated region
              $region68: #{fwd.24} parent=55 // pred_check
                _
              $region69: #{fwd.24} parent=55 // pred_check_branch
                %407 = sbr.rel (0) target = $region71
              $region70: #{fwd.24} parent=55 // pred_region
                loop: start=0, step=1, limit=1
                $region72: #{fwd.24} parent=70 // loop_pre_header
                  _
                $region73: #{fwd.24} parent=70 // loop_header
                  %s409 = sphi 0, %s413
                  %p410 = scmp.ge.s32.totalorder %s409, 1
                  %s414 = sphi %s377, %s377
                  %s415 = sphi %s385, %s385
                $region74: #{fwd.24} parent=70 // loop_header_branch
                  %412 = sbr.rel (%p410) target = $region78
                $region75: #{fwd.24} parent=70 // loop_body
                  _
                $region76: #{fwd.24} parent=70 // loop_footer
                  %s413 = sadd.s32 1, %s409
                $region77: #{fwd.24} parent=70 // loop_footer_branch
                  %408 = sbr.rel target = $region73
                $region78: #{fwd.24} parent=70 // loop_exit
                  _
                %s417 = ssub.s32 16, 1
                loop: start=0, step=1, limit=1
                $region79: #{fwd.24} parent=70 // loop_pre_header
                  _
                $region80: #{fwd.24} parent=70 // loop_header
                  %s419 = sphi 0, %s423
                  %p420 = scmp.ge.s32.totalorder %s419, 1
                  %s424 = sphi %s377, %s377
                  %s425 = sphi %s385, %s385
                $region81: #{fwd.24} parent=70 // loop_header_branch
                  %422 = sbr.rel (%p420) target = $region85
                $region82: #{fwd.24} parent=70 // loop_body
                  %v426 = vld [vmem:[%s424] sm:%s417]
                  %427 = vst [vmem:[%s425] sm:%s417] %v426
                  %v428 = vld [vmem:[%s424 + $0x4] sm:%s417]
                  %429 = vst [vmem:[%s425 + $0xc] sm:%s417] %v428
                $region83: #{fwd.24} parent=70 // loop_footer
                  %s423 = sadd.s32 1, %s419
                $region84: #{fwd.24} parent=70 // loop_footer_branch
                  %418 = sbr.rel target = $region80
                $region85: #{fwd.24} parent=70 // loop_exit
                  _
              $region71: #{fwd.24} parent=55 // pred_fallthru
                _
            $region56: #{fwd.24} parent=51 // pred_fallthru
              _
            // Predicated region
            $region57: #{fwd.24} parent=51 // pred_check
              _
            $region58: #{fwd.24} parent=51 // pred_check_branch
              %391 = sbr.rel (0) target = $region60
            $region59: #{fwd.24} parent=51 // pred_region
              %s393 = ssub.s32 16, 1
              loop: start=0, step=1, limit=1
              $region61: #{fwd.24} parent=59 // loop_pre_header
                _
              $region62: #{fwd.24} parent=59 // loop_header
                %s395 = sphi 0, %s399
                %p396 = scmp.ge.s32.totalorder %s395, 1
                %s400 = sphi %s377, %s377
                %s401 = sphi %s385, %s385
              $region63: #{fwd.24} parent=59 // loop_header_branch
                %398 = sbr.rel (%p396) target = $region67
              $region64: #{fwd.24} parent=59 // loop_body
                %v402 = vld [vmem:[%s400] sm:%s393]
                %403 = vst [vmem:[%s401] sm:%s393] %v402
                %v404 = vld [vmem:[%s400 + $0x4] sm:%s393]
                %405 = vst [vmem:[%s401 + $0xc] sm:%s393] %v404
              $region65: #{fwd.24} parent=59 // loop_footer
                %s399 = sadd.s32 1, %s395
              $region66: #{fwd.24} parent=59 // loop_footer_branch
                %394 = sbr.rel target = $region62
              $region67: #{fwd.24} parent=59 // loop_exit
                _
            $region60: #{fwd.24} parent=51 // pred_fallthru
              _
          $region52: #{fwd.24} parent=47 // pred_fallthru
            _
          %430 = vnop
        $region48: #{fwd.24} parent=31 // pred_fallthru
          _
      $region32: #{fwd.24} parent=5 // pred_fallthru
        _
      %p431 = scmp.le.s32.totalorder 2, %s12
      // Predicated region
      $region86: #{fwd.24} parent=5 // pred_check
        %p432 = pneg %p431
      $region87: #{fwd.24} parent=5 // pred_check_branch
        %434 = sbr.rel (%p432) target = $region89
      $region88: #{fwd.24} parent=5 // pred_region
        %s435 = ssub.s32 %s12, 2
        // Predicated region
        $region90: #{fwd.24} parent=88 // pred_check
          %p436 = pneg %p144
        $region91: #{fwd.24} parent=88 // pred_check_branch
          %438 = sbr.rel (%p436) target = $region93
        $region92: #{fwd.24} parent=88 // pred_region
          %s439 = sand.u32 %s129, 1
          %s440 = sand.u32 %s129, 1
          %s441 = smul.addr %s440, 8
          %s442 = scalar_lea.vmem [#allocation5], %s441
        $region93: #{fwd.24} parent=88 // pred_fallthru
          _
      $region89: #{fwd.24} parent=5 // pred_fallthru
        _
    $region6: #{fwd.24} parent=1 // loop_footer
      %s16 = sadd.s32 1, %s12
    $region7: #{fwd.24} parent=1 // loop_footer_branch
      %11 = sbr.rel target = $region3
    $region8: #{fwd.24} parent=1 // loop_exit
      _
    %443 = vsyncpa [#allocation4], 1
    %s444 = scalar_lea.sflag [#allocation4], 1
    %445 = vsyncpa %s444, 1

// kernel: fwd.31
$region0: #{fwd.31}
  #allocation0 [shape = 'u32[]', space=smem, size = 0x4, offset = 0x4, fixed_abs, tag = 'smem constant byte address 0x4 - core index']
  #allocation1 [shape = 'u32[72,128]{1,0:T(1,128)}', space=vmem, size = 0x9000, scoped, tag = 'internal scratch']
  #allocation2 [shape = 'f32[16,128]{1,0:T(8,128)}', space=vmem, size = 0x2000, scoped, tag = 'scratch operand']
  %s0 = inlined_call_operand.vmem [shape: bf16[16,128], index: 0, kind: input, shape index: {}]
  %s1 = inlined_call_operand.hbm [shape: bf16[128,256], index: 1, kind: input, shape index: {}]
  %s2 = inlined_call_operand.vmem [shape: f32[1,256], index: 2, kind: input, shape index: {}]
  %s3 = inlined_call_operand.vmem [shape: bf16[16,256], index: 3, kind: output, shape index: {}]
  %s4 = sld [smem:[#allocation0]]
  $region94: #{fwd.31} parent=0
    _
  %s6 = ssub.s32 1, %s4
  %s7 = scalar_select 0, %s6, %s4
  $region1: #{fwd.31} parent=0
    #allocation3 [shape = 'u8[65536]{0}', space=vmem, size = 0x10000, scoped, tag = 'input window, operand 1']
    #allocation4 [shape = 's32[2]{0}', space=sflag, size = 0x8, scoped, tag = 'scoped memory for fwd.31']
    #allocation5 [shape = 'u8[8192]{0}', space=vmem, size = 0x2000, scoped, tag = 'output window, operand 0']
    %8 = vsyncpa [#allocation4], 0
    %s9 = scalar_lea.sflag [#allocation4], 1
    %10 = vsyncpa %s9, 0
    loop: start=0, step=1, limit=4
    $region2: #{fwd.31} parent=1 // loop_pre_header
      _
    $region3: #{fwd.31} parent=1 // loop_header
      %s12 = sphi 0, %s16
      %p13 = scmp.ge.s32.totalorder %s12, 4
      %s19 = sphi 0, %s38
      %s20 = sphi 0, %s34
      %s21 = sphi 0, %s30
      %s22 = sphi 0, %s19
      %s23 = sphi 0, %s20
      %s24 = sphi 0, %s21
      %s25 = sphi 0, %s22
      %s26 = sphi 0, %s23
      %s27 = sphi 0, %s24
      %s43 = sphi 0, %s45
      %s46 = sphi 0, %s43
      %s47 = sphi 0, %s46
      %s63 = sphi 0, %s47
      %s71 = sphi 0, %s73
      %s74 = sphi 0, %s71
      %s75 = sphi 0, %s74
      %s91 = sphi 0, %s75
      %s97 = sphi 0, %s99
      %s100 = sphi 0, %s97
      %s101 = sphi 0, %s100
      %s117 = sphi 0, %s101
      %s125 = sphi 0, %s127
      %s128 = sphi 0, %s125
      %s129 = sphi 0, %s128
      %s145 = sphi 0, %s129
    $region4: #{fwd.31} parent=1 // loop_header_branch
      %15 = sbr.rel (%p13) target = $region8
    $region5: #{fwd.31} parent=1 // loop_body
      %s17 = ssub.s32 %s12, 1
      %s18 = ssub.s32 %s12, 2
      %s28 = sadd.s32 1, %s21
      %p29 = scmp.ge.s32.totalorder %s28, 1
      %s30 = scalar_select %p29, 0, %s28
      %s31 = sadd.s32 1, %s20
      %s32 = scalar_select %p29, %s31, %s20
      %p33 = scmp.ge.s32.totalorder %s32, 2
      %s34 = scalar_select %p33, 0, %s32
      %s35 = sadd.s32 1, %s19
      %s36 = scalar_select %p33, %s35, %s19
      %p37 = scmp.ge.s32.totalorder %s36, 1
      %s38 = scalar_select %p37, 0, %s36
      %s39 = ssub.s32 %s19, %s38
      %s40 = ssub.s32 %s21, %s30
      %s41 = sor.u32 %s39, %s40
      %p42 = scmp.eq.s32.totalorder %s41, 0
      %s44 = sadd.s32 %s43, 1
      %s45 = scalar_select %p42, %s43, %s44
      %p48 = pneg %p42
      %p49 = scmp.eq.s32.totalorder %s12, 1
      %p50 = por %p48, %p49
      %p51 = scmp.ne.s32.totalorder %s43, %s46
      %p52 = scmp.eq.s32.totalorder %s12, 0
      %p53 = por %p51, %p52
      %p54 = scmp.ne.s32.totalorder %s43, %s46
      %p55 = scmp.eq.s32.totalorder %s17, 1
      %p56 = por %p54, %p55
      %p57 = scmp.ne.s32.totalorder %s46, %s47
      %p58 = scmp.eq.s32.totalorder %s17, 0
      %p59 = por %p57, %p58
      %p60 = scmp.ne.s32.totalorder %s46, %s47
      %p61 = scmp.eq.s32.totalorder %s18, 1
      %p62 = por %p60, %p61
      %p64 = scmp.ne.s32.totalorder %s47, %s63
      %p65 = scmp.eq.s32.totalorder %s18, 0
      %p66 = por %p64, %p65
      %s67 = ssub.s32 %s21, %s30
      %s68 = ssub.s32 %s20, %s34
      %s69 = sor.u32 %s67, %s68
      %p70 = scmp.eq.s32.totalorder %s69, 0
      %s72 = sadd.s32 %s71, 1
      %s73 = scalar_select %p70, %s71, %s72
      %p76 = pneg %p70
      %p77 = scmp.eq.s32.totalorder %s12, 1
      %p78 = por %p76, %p77
      %p79 = scmp.ne.s32.totalorder %s71, %s74
      %p80 = scmp.eq.s32.totalorder %s12, 0
      %p81 = por %p79, %p80
      %p82 = scmp.ne.s32.totalorder %s71, %s74
      %p83 = scmp.eq.s32.totalorder %s17, 1
      %p84 = por %p82, %p83
      %p85 = scmp.ne.s32.totalorder %s74, %s75
      %p86 = scmp.eq.s32.totalorder %s17, 0
      %p87 = por %p85, %p86
      %p88 = scmp.ne.s32.totalorder %s74, %s75
      %p89 = scmp.eq.s32.totalorder %s18, 1
      %p90 = por %p88, %p89
      %p92 = scmp.ne.s32.totalorder %s75, %s91
      %p93 = scmp.eq.s32.totalorder %s18, 0
      %p94 = por %p92, %p93
      %s95 = ssub.s32 %s20, %s34
      %p96 = scmp.eq.s32.totalorder %s95, 0
      %s98 = sadd.s32 %s97, 1
      %s99 = scalar_select %p96, %s97, %s98
      %p102 = pneg %p96
      %p103 = scmp.eq.s32.totalorder %s12, 1
      %p104 = por %p102, %p103
      %p105 = scmp.ne.s32.totalorder %s97, %s100
      %p106 = scmp.eq.s32.totalorder %s12, 0
      %p107 = por %p105, %p106
      %p108 = scmp.ne.s32.totalorder %s97, %s100
      %p109 = scmp.eq.s32.totalorder %s17, 1
      %p110 = por %p108, %p109
      %p111 = scmp.ne.s32.totalorder %s100, %s101
      %p112 = scmp.eq.s32.totalorder %s17, 0
      %p113 = por %p111, %p112
      %p114 = scmp.ne.s32.totalorder %s100, %s101
      %p115 = scmp.eq.s32.totalorder %s18, 1
      %p116 = por %p114, %p115
      %p118 = scmp.ne.s32.totalorder %s101, %s117
      %p119 = scmp.eq.s32.totalorder %s18, 0
      %p120 = por %p118, %p119
      %s121 = ssub.s32 %s19, %s38
      %s122 = ssub.s32 %s20, %s34
      %s123 = sor.u32 %s121, %s122
      %p124 = scmp.eq.s32.totalorder %s123, 0
      %s126 = sadd.s32 %s125, 1
      %s127 = scalar_select %p124, %s125, %s126
      %p130 = pneg %p124
      %p131 = scmp.eq.s32.totalorder %s12, 1
      %p132 = por %p130, %p131
      %p133 = scmp.ne.s32.totalorder %s125, %s128
      %p134 = scmp.eq.s32.totalorder %s12, 0
      %p135 = por %p133, %p134
      %p136 = scmp.ne.s32.totalorder %s125, %s128
      %p137 = scmp.eq.s32.totalorder %s17, 1
      %p138 = por %p136, %p137
      %p139 = scmp.ne.s32.totalorder %s128, %s129
      %p140 = scmp.eq.s32.totalorder %s17, 0
      %p141 = por %p139, %p140
      %p142 = scmp.ne.s32.totalorder %s128, %s129
      %p143 = scmp.eq.s32.totalorder %s18, 1
      %p144 = por %p142, %p143
      %p146 = scmp.ne.s32.totalorder %s129, %s145
      %p147 = scmp.eq.s32.totalorder %s18, 0
      %p148 = por %p146, %p147
      %p149 = scmp.le.s32.totalorder 1, %s12
      %p150 = scmp.lt.s32.totalorder %s12, 3
      %p151 = pnand %p149, %p150
      %p152 = pneg %p151
      // Predicated region
      $region9: #{fwd.31} parent=5 // pred_check
        _
      $region10: #{fwd.31} parent=5 // pred_check_branch
        %154 = sbr.rel (%p151) target = $region12
      $region11: #{fwd.31} parent=5 // pred_region
        %s155 = ssub.s32 %s12, 1
        // Predicated region
        $region13: #{fwd.31} parent=11 // pred_check
          %p156 = pneg %p59
        $region14: #{fwd.31} parent=11 // pred_check_branch
          %158 = sbr.rel (%p156) target = $region16
        $region15: #{fwd.31} parent=11 // pred_region
          %s159 = smul.u32 2, %s22
          %p160 = scmp.lt.s32.totalorder %s159, 1
          %s161 = scalar_select %p160, %s159, 1
          %p162 = scmp.lt.s32.totalorder %s24, 0
          %s163 = scalar_select %p162, %s24, 0
          %s164 = sadd.s32 %s163, %s161
          %s165 = smul.addr %s164, 4
          %s166 = scalar_lea.vmem %s0, %s165
          %s167 = smul.u32 2, %s22
        $region16: #{fwd.31} parent=11 // pred_fallthru
          _
      $region12: #{fwd.31} parent=5 // pred_fallthru
        _
      %p168 = scmp.lt.s32.totalorder %s12, 2
      // Predicated region
      $region17: #{fwd.31} parent=5 // pred_check
        %p169 = pneg %p168
      $region18: #{fwd.31} parent=5 // pred_check_branch
        %171 = sbr.rel (%p169) target = $region20
      $region19: #{fwd.31} parent=5 // pred_region
        // Predicated region
        $region21: #{fwd.31} parent=19 // pred_check
          %p172 = pneg %p81
        $region22: #{fwd.31} parent=19 // pred_check_branch
          %174 = sbr.rel (%p172) target = $region24
        $region23: #{fwd.31} parent=19 // pred_region
          %s175 = sand.u32 %s71, 1
          %s176 = scalar_lea.sflag [#allocation4], %s175
          %s177 = sand.u32 %s71, 1
          %s178 = smul.addr %s177, 64
          %s179 = scalar_lea.vmem [#allocation3], %s178
          %s180 = smul.u32 16, %s21
          %182 = vsyncadd %s176, 0
          %s183 = smul.addr %s180, 2
          %s184 = sadd.s32 %s20, %s183
          %s185 = smul.addr %s184, 4
          %s186 = scalar_lea.hbm %s1, %s185
          %s187 = sshll.u32 %s186, 4
          %s188 = int_to_ptr.hbm [resolvable:$true] %s187
          %s189 = sshll.u32 %s179, 4
          %s190 = int_to_ptr.vmem [resolvable:$true] %s189
          %195 = dma.hbm_to_vmem [thread:$0]  %s188, 1024, %s190, %s176, 128, 64, 4
        $region24: #{fwd.31} parent=19 // pred_fallthru
          _
        // Predicated region
        $region25: #{fwd.31} parent=19 // pred_check
          %p196 = pneg %p107
        $region26: #{fwd.31} parent=19 // pred_check_branch
          %198 = sbr.rel (%p196) target = $region28
        $region27: #{fwd.31} parent=19 // pred_region
          %p199 = scmp.lt.s32.totalorder %s20, 1
          %s200 = scalar_select %p199, %s20, 1
          %s201 = scalar_lea.vmem %s2, %s200
        $region28: #{fwd.31} parent=19 // pred_fallthru
          _
      $region20: #{fwd.31} parent=5 // pred_fallthru
        _
      %p202 = scmp.le.s32.totalorder 1, %s12
      %p203 = scmp.lt.s32.totalorder %s12, 3
      %p204 = pnand %p202, %p203
      %p205 = pneg %p204
      // Predicated region
      $region29: #{fwd.31} parent=5 // pred_check
        _
      $region30: #{fwd.31} parent=5 // pred_check_branch
        %207 = sbr.rel (%p204) target = $region32
      $region31: #{fwd.31} parent=5 // pred_region
        %s208 = ssub.s32 %s12, 1
        %s209 = sand.u32 %s74, 1
        %s210 = scalar_lea.sflag [#allocation4], %s209
        %s211 = sand.u32 %s74, 1
        %s212 = smul.addr %s211, 64
        %s213 = scalar_lea.vmem [#allocation3], %s212
        // Predicated region
        $region33: #{fwd.31} parent=31 // pred_check
          %p214 = pneg %p87
        $region34: #{fwd.31} parent=31 // pred_check_branch
          %216 = sbr.rel (%p214) target = $region36
        $region35: #{fwd.31} parent=31 // pred_region
          %218 = dma.done %s210, 1024
        $region36: #{fwd.31} parent=31 // pred_fallthru
          _
        %s219 = smul.u32 2, %s22
        %p220 = scmp.lt.s32.totalorder %s219, 1
        %s221 = scalar_select %p220, %s219, 1
        %p222 = scmp.lt.s32.totalorder %s24, 0
        %s223 = scalar_select %p222, %s24, 0
        %s224 = sadd.s32 %s223, %s221
        %s225 = smul.addr %s224, 4
        %s226 = scalar_lea.vmem %s0, %s225
        %p227 = pneg %p59
        %p228 = pneg %p56
        %s229 = sand.u32 %s74, 1
        %s230 = scalar_lea.sflag [#allocation4], %s229
        %s231 = sand.u32 %s74, 1
        %s232 = smul.addr %s231, 64
        %s233 = scalar_lea.vmem [#allocation3], %s232
        %p234 = pneg %p87
        %p235 = pneg %p84
        %p236 = scmp.lt.s32.totalorder %s23, 1
        %s237 = scalar_select %p236, %s23, 1
        %s238 = scalar_lea.vmem %s2, %s237
        %p239 = pneg %p113
        %p240 = pneg %p110
        %p241 = pneg %p141
        %p242 = pneg %p138
        %s243 = sand.u32 %s128, 1
        %s244 = sand.u32 %s128, 1
        %s245 = smul.addr %s244, 8
        %s246 = scalar_lea.vmem [#allocation5], %s245
        %s247 = smul.u32 2, %s22
        %p248 = scmp.lt.s32.totalorder %s247, 1
        %s249 = scalar_select %p248, %s247, 1
        %p250 = scmp.lt.s32.totalorder %s24, 0
        %s251 = scalar_select %p250, %s24, 0
        %s252 = sadd.s32 %s251, %s249
        %s253 = smul.addr %s252, 4
        %s254 = scalar_lea.vmem %s0, %s253
        %s255 = smul.u32 2, %s22
        %s256 = smul.u32 16, %s24
        %p257 = scmp.lt.s32.totalorder %s23, 1
        %s258 = scalar_select %p257, %s23, 1
        %s259 = scalar_lea.vmem %s2, %s258
        %s260 = smul.u32 2, %s22
        %p261 = scmp.eq.s32.totalorder %s24, 0
        // Predicated region
        $region37: #{fwd.31} parent=31 // pred_check
          %p262 = pneg %p261
        $region38: #{fwd.31} parent=31 // pred_check_branch
          %264 = sbr.rel (%p262) target = $region40
        $region39: #{fwd.31} parent=31 // pred_region
          %265 = vst [vmem:[#allocation2] sm:$0xff] 0.0
          %266 = vst [vmem:[#allocation2 + $0x8] sm:$0xff] 0.0
        $region40: #{fwd.31} parent=31 // pred_fallthru
          _
        %v267 = vld [vmem:[#allocation2] sm:$0xff]
        %v268 = vld [vmem:[#allocation2 + $0x8] sm:$0xff]
        %v269 = vld [vmem:[%s254] sm:$0xf]
        %v270 = vld [vmem:[%s254 + $0x4] sm:$0xf]
        %v271 = vld [vmem:[%s213] sm:$0xf]
        %v272 = vld [vmem:[%s213 + $0x4] sm:$0xf]
        %v273 = vld [vmem:[%s213 + $0x8] sm:$0xf]
        %v274 = vld [vmem:[%s213 + $0xc] sm:$0xf]
        %v275 = vld [vmem:[%s213 + $0x10] sm:$0xf]
        %v276 = vld [vmem:[%s213 + $0x14] sm:$0xf]
        %v277 = vld [vmem:[%s213 + $0x18] sm:$0xf]
        %v278 = vld [vmem:[%s213 + $0x1c] sm:$0xf]
        %v279 = vld [vmem:[%s213 + $0x20] sm:$0xf]
        %v280 = vld [vmem:[%s213 + $0x24] sm:$0xf]
        %v281 = vld [vmem:[%s213 + $0x28] sm:$0xf]
        %v282 = vld [vmem:[%s213 + $0x2c] sm:$0xf]
        %v283 = vld [vmem:[%s213 + $0x30] sm:$0xf]
        %v284 = vld [vmem:[%s213 + $0x34] sm:$0xf]
        %v285 = vld [vmem:[%s213 + $0x38] sm:$0xf]
        %v286 = vld [vmem:[%s213 + $0x3c] sm:$0xf]
        %v289 = vunpack.c.l.b16 %v269
        %v290 = vunpack.c.l.b16 %v270
        %v291 = vpack.c.b16 %v290, %v289
        %v309 = vunpack.c.l.b16 %v271
        %v310 = vunpack.c.l.b16 %v272
        %v311 = vunpack.c.l.b16 %v273
        %v312 = vunpack.c.l.b16 %v274
        %v313 = vunpack.c.l.b16 %v275
        %v314 = vunpack.c.l.b16 %v276
        %v315 = vunpack.c.l.b16 %v277
        %v316 = vunpack.c.l.b16 %v278
        %v317 = vunpack.c.l.b16 %v279
        %v318 = vunpack.c.l.b16 %v280
        %v319 = vunpack.c.l.b16 %v281
        %v320 = vunpack.c.l.b16 %v282
        %v321 = vunpack.c.l.b16 %v283
        %v322 = vunpack.c.l.b16 %v284
        %v323 = vunpack.c.l.b16 %v285
        %v324 = vunpack.c.l.b16 %v286
        %v325 = vpack.c.b16 %v310, %v309
        %v326 = vpack.c.b16 %v312, %v311
        %v327 = vpack.c.b16 %v314, %v313
        %v328 = vpack.c.b16 %v316, %v315
        %v329 = vpack.c.b16 %v318, %v317
        %v330 = vpack.c.b16 %v320, %v319
        %v331 = vpack.c.b16 %v322, %v321
        %v332 = vpack.c.b16 %v324, %v323
        %341 = vmatpush.bf16.msra.mxu0 %v332
        %342 = vmatpush.bf16.msra.mxu0 %v331
        %343 = vmatpush.bf16.msra.mxu0 %v330
        %344 = vmatpush.bf16.msra.mxu0 %v329
        %345 = vmatpush.bf16.msra.mxu0 %v328
        %346 = vmatpush.bf16.msra.mxu0 %v327
        %347 = vmatpush.bf16.msra.mxu0 %v326
        %348 = vmatpush.bf16.msra.mxu0 %v325
        %349 = vmatmul.bf16.gmra.mxu0 %v291
        %v350 = vpop.f32.mrf.mxu0
        %v351 = vadd.f32 0.0, %v350
        %v352 = vpop.f32.mrf.mxu0
        %v353 = vadd.f32 0.0, %v352
        %354 = vdwg.mxu0
        %v355 = vadd.f32 %v267, %v351
        %v356 = vadd.f32 %v268, %v353
        %357 = vst [vmem:[#allocation2] sm:$0xff] %v355
        %358 = vst [vmem:[#allocation2 + $0x8] sm:$0xff] %v356
        // Predicated region
        $region41: #{fwd.31} parent=31 // pred_check
          %p359 = pneg %p261
        $region42: #{fwd.31} parent=31 // pred_check_branch
          %361 = sbr.rel (%p359) target = $region44
        $region43: #{fwd.31} parent=31 // pred_region
          %v362 = vld [vmem:[#allocation2] sm:$0xff]
          %v363 = vld [vmem:[#allocation2 + $0x8] sm:$0xff]
          %v364 = vld [vmem:[%s259] sm:$0x1]
          %v366 = vperm.slane %v364, 0
          %v368 = vadd.f32 %v362, %v366
          %v369 = vadd.f32 %v363, %v366
          %v370 = vpack.c.bf16 %v368, %v368
          %v371 = vpack.c.bf16 %v369, %v369
          %372 = vst [vmem:[%s246] sm:$0xf] %v370
          %373 = vst [vmem:[%s246 + $0x4] sm:$0xf] %v371
        $region44: #{fwd.31} parent=31 // pred_fallthru
          _
        %s374 = sand.u32 %s128, 1
        %s375 = sand.u32 %s128, 1
        %s376 = smul.addr %s375, 8
        %s377 = scalar_lea.vmem [#allocation5], %s376
        // Predicated region
        $region45: #{fwd.31} parent=31 // pred_check
          %p378 = pneg %p138
        $region46: #{fwd.31} parent=31 // pred_check_branch
          %380 = sbr.rel (%p378) target = $region48
        $region47: #{fwd.31} parent=31 // pred_region
          %s381 = smul.u32 2, %s22
          %s382 = smul.addr %s381, 2
          %s383 = sadd.s32 %s23, %s382
          %s384 = smul.addr %s383, 4
          %s385 = scalar_lea.vmem %s3, %s384
          // Predicated region
          $region49: #{fwd.31} parent=47 // pred_check
            _
          $region50: #{fwd.31} parent=47 // pred_check_branch
            %387 = sbr.rel (0) target = $region52
          $region51: #{fwd.31} parent=47 // pred_region
            // Predicated region
            $region53: #{fwd.31} parent=51 // pred_check
              _
            $region54: #{fwd.31} parent=51 // pred_check_branch
              %389 = sbr.rel target = $region56
            $region55: #{fwd.31} parent=51 // pred_region
              // Predicated region
              $region68: #{fwd.31} parent=55 // pred_check
                _
              $region69: #{fwd.31} parent=55 // pred_check_branch
                %407 = sbr.rel (0) target = $region71
              $region70: #{fwd.31} parent=55 // pred_region
                loop: start=0, step=1, limit=1
                $region72: #{fwd.31} parent=70 // loop_pre_header
                  _
                $region73: #{fwd.31} parent=70 // loop_header
                  %s409 = sphi 0, %s413
                  %p410 = scmp.ge.s32.totalorder %s409, 1
                  %s414 = sphi %s377, %s377
                  %s415 = sphi %s385, %s385
                $region74: #{fwd.31} parent=70 // loop_header_branch
                  %412 = sbr.rel (%p410) target = $region78
                $region75: #{fwd.31} parent=70 // loop_body
                  _
                $region76: #{fwd.31} parent=70 // loop_footer
                  %s413 = sadd.s32 1, %s409
                $region77: #{fwd.31} parent=70 // loop_footer_branch
                  %408 = sbr.rel target = $region73
                $region78: #{fwd.31} parent=70 // loop_exit
                  _
                %s417 = ssub.s32 16, 1
                loop: start=0, step=1, limit=1
                $region79: #{fwd.31} parent=70 // loop_pre_header
                  _
                $region80: #{fwd.31} parent=70 // loop_header
                  %s419 = sphi 0, %s423
                  %p420 = scmp.ge.s32.totalorder %s419, 1
                  %s424 = sphi %s377, %s377
                  %s425 = sphi %s385, %s385
                $region81: #{fwd.31} parent=70 // loop_header_branch
                  %422 = sbr.rel (%p420) target = $region85
                $region82: #{fwd.31} parent=70 // loop_body
                  %v426 = vld [vmem:[%s424] sm:%s417]
                  %427 = vst [vmem:[%s425] sm:%s417] %v426
                  %v428 = vld [vmem:[%s424 + $0x4] sm:%s417]
                  %429 = vst [vmem:[%s425 + $0x8] sm:%s417] %v428
                $region83: #{fwd.31} parent=70 // loop_footer
                  %s423 = sadd.s32 1, %s419
                $region84: #{fwd.31} parent=70 // loop_footer_branch
                  %418 = sbr.rel target = $region80
                $region85: #{fwd.31} parent=70 // loop_exit
                  _
              $region71: #{fwd.31} parent=55 // pred_fallthru
                _
            $region56: #{fwd.31} parent=51 // pred_fallthru
              _
            // Predicated region
            $region57: #{fwd.31} parent=51 // pred_check
              _
            $region58: #{fwd.31} parent=51 // pred_check_branch
              %391 = sbr.rel (0) target = $region60
            $region59: #{fwd.31} parent=51 // pred_region
              %s393 = ssub.s32 16, 1
              loop: start=0, step=1, limit=1
              $region61: #{fwd.31} parent=59 // loop_pre_header
                _
              $region62: #{fwd.31} parent=59 // loop_header
                %s395 = sphi 0, %s399
                %p396 = scmp.ge.s32.totalorder %s395, 1
                %s400 = sphi %s377, %s377
                %s401 = sphi %s385, %s385
              $region63: #{fwd.31} parent=59 // loop_header_branch
                %398 = sbr.rel (%p396) target = $region67
              $region64: #{fwd.31} parent=59 // loop_body
                %v402 = vld [vmem:[%s400] sm:%s393]
                %403 = vst [vmem:[%s401] sm:%s393] %v402
                %v404 = vld [vmem:[%s400 + $0x4] sm:%s393]
                %405 = vst [vmem:[%s401 + $0x8] sm:%s393] %v404
              $region65: #{fwd.31} parent=59 // loop_footer
                %s399 = sadd.s32 1, %s395
              $region66: #{fwd.31} parent=59 // loop_footer_branch
                %394 = sbr.rel target = $region62
              $region67: #{fwd.31} parent=59 // loop_exit
                _
            $region60: #{fwd.31} parent=51 // pred_fallthru
              _
          $region52: #{fwd.31} parent=47 // pred_fallthru
            _
          %430 = vnop
        $region48: #{fwd.31} parent=31 // pred_fallthru
          _
      $region32: #{fwd.31} parent=5 // pred_fallthru
        _
      %p431 = scmp.le.s32.totalorder 2, %s12
      // Predicated region
      $region86: #{fwd.31} parent=5 // pred_check
        %p432 = pneg %p431
      $region87: #{fwd.31} parent=5 // pred_check_branch
        %434 = sbr.rel (%p432) target = $region89
      $region88: #{fwd.31} parent=5 // pred_region
        %s435 = ssub.s32 %s12, 2
        // Predicated region
        $region90: #{fwd.31} parent=88 // pred_check
          %p436 = pneg %p144
        $region91: #{fwd.31} parent=88 // pred_check_branch
          %438 = sbr.rel (%p436) target = $region93
        $region92: #{fwd.31} parent=88 // pred_region
          %s439 = sand.u32 %s129, 1
          %s440 = sand.u32 %s129, 1
          %s441 = smul.addr %s440, 8
          %s442 = scalar_lea.vmem [#allocation5], %s441
        $region93: #{fwd.31} parent=88 // pred_fallthru
          _
      $region89: #{fwd.31} parent=5 // pred_fallthru
        _
    $region6: #{fwd.31} parent=1 // loop_footer
      %s16 = sadd.s32 1, %s12
    $region7: #{fwd.31} parent=1 // loop_footer_branch
      %11 = sbr.rel target = $region3
    $region8: #{fwd.31} parent=1 // loop_exit
      _
    %443 = vsyncpa [#allocation4], 1
    %s444 = scalar_lea.sflag [#allocation4], 1
    %445 = vsyncpa %s444, 1

// kernel: fwd.25
$region0: #{fwd.25}
  #allocation0 [shape = 'u32[]', space=smem, size = 0x4, offset = 0x4, fixed_abs, tag = 'smem constant byte address 0x4 - core index']
  #allocation1 [shape = 'u32[72,128]{1,0:T(1,128)}', space=vmem, size = 0x9000, scoped, tag = 'internal scratch']
  #allocation2 [shape = 'bf16[16,128]{1,0:T(8,128)(2,1)}', space=vmem, size = 0x1000, scoped, tag = 'scratch operand']
  %s0 = inlined_call_operand.vmem [shape: bf16[16,384], index: 0, kind: input, shape index: {}, may-alias: {0,1}]
  %s1 = inlined_call_operand.vmem [shape: bf16[16,384], index: 1, kind: input, shape index: {}, may-alias: {0,1}]
  %s2 = inlined_call_operand.hbm [shape: bf16[128,128], index: 2, kind: input, shape index: {}]
  %s3 = inlined_call_operand.vmem [shape: f32[1,128], index: 3, kind: input, shape index: {}]
  %s4 = inlined_call_operand.vmem [shape: bf16[16,128], index: 4, kind: input, shape index: {}]
  %s5 = inlined_call_operand.vmem [shape: f32[1,128], index: 5, kind: input, shape index: {}]
  %s6 = inlined_call_operand.vmem [shape: f32[1,128], index: 6, kind: input, shape index: {}]
  %s7 = inlined_call_operand.vmem [shape: bf16[16,128], index: 7, kind: output, shape index: {}]
  %s8 = sld [smem:[#allocation0]]
  $region83: #{fwd.25} parent=0
    _
  %s10 = ssub.s32 1, %s8
  %s11 = scalar_select 0, %s10, %s8
  $region1: #{fwd.25} parent=0
    #allocation3 [shape = 'u8[4096]{0}', space=vmem, size = 0x1000, scoped, tag = 'input window, operand 0, single buffered']
    #allocation4 [shape = 'u8[32768]{0}', space=vmem, size = 0x8000, scoped, tag = 'input window, operand 2, single buffered']
    #allocation5 [shape = 's32[1]{0}', space=sflag, size = 0x4, scoped, tag = 'scoped memory for fwd.25']
    %12 = vsyncpa [#allocation5], 0
    // Predicated region
    $region2: #{fwd.25} parent=1 // pred_check
      _
    $region3: #{fwd.25} parent=1 // pred_check_branch
      %14 = sbr.rel (0) target = $region5
    $region4: #{fwd.25} parent=1 // pred_region
      // Predicated region
      $region6: #{fwd.25} parent=4 // pred_check
        _
      $region7: #{fwd.25} parent=4 // pred_check_branch
        %16 = sbr.rel (0) target = $region9
      $region8: #{fwd.25} parent=4 // pred_region
        // Predicated region
        $region10: #{fwd.25} parent=8 // pred_check
          _
        $region11: #{fwd.25} parent=8 // pred_check_branch
          %18 = sbr.rel target = $region13
        $region12: #{fwd.25} parent=8 // pred_region
          // Predicated region
          $region25: #{fwd.25} parent=12 // pred_check
            _
          $region26: #{fwd.25} parent=12 // pred_check_branch
            %36 = sbr.rel (0) target = $region28
          $region27: #{fwd.25} parent=12 // pred_region
            loop: start=0, step=1, limit=1
            $region29: #{fwd.25} parent=27 // loop_pre_header
              _
            $region30: #{fwd.25} parent=27 // loop_header
              %s38 = sphi 0, %s42
              %p39 = scmp.ge.s32.totalorder %s38, 1
              %s43 = sphi %s0, %s0
              %s44 = sphi [#allocation3], [#allocation3]
            $region31: #{fwd.25} parent=27 // loop_header_branch
              %41 = sbr.rel (%p39) target = $region35
            $region32: #{fwd.25} parent=27 // loop_body
              _
            $region33: #{fwd.25} parent=27 // loop_footer
              %s42 = sadd.s32 1, %s38
            $region34: #{fwd.25} parent=27 // loop_footer_branch
              %37 = sbr.rel target = $region30
            $region35: #{fwd.25} parent=27 // loop_exit
              _
            %s46 = ssub.s32 16, 1
            loop: start=0, step=1, limit=1
            $region36: #{fwd.25} parent=27 // loop_pre_header
              _
            $region37: #{fwd.25} parent=27 // loop_header
              %s48 = sphi 0, %s52
              %p49 = scmp.ge.s32.totalorder %s48, 1
              %s53 = sphi %s0, %s0
              %s54 = sphi [#allocation3], [#allocation3]
            $region38: #{fwd.25} parent=27 // loop_header_branch
              %51 = sbr.rel (%p49) target = $region42
            $region39: #{fwd.25} parent=27 // loop_body
              %v55 = vld [vmem:[%s53] sm:%s46]
              %56 = vst [vmem:[%s54] sm:%s46] %v55
              %v57 = vld [vmem:[%s53 + $0xc] sm:%s46]
              %58 = vst [vmem:[%s54 + $0x4] sm:%s46] %v57
            $region40: #{fwd.25} parent=27 // loop_footer
              %s52 = sadd.s32 1, %s48
            $region41: #{fwd.25} parent=27 // loop_footer_branch
              %47 = sbr.rel target = $region37
            $region42: #{fwd.25} parent=27 // loop_exit
              _
          $region28: #{fwd.25} parent=12 // pred_fallthru
            _
        $region13: #{fwd.25} parent=8 // pred_fallthru
          _
        // Predicated region
        $region14: #{fwd.25} parent=8 // pred_check
          _
        $region15: #{fwd.25} parent=8 // pred_check_branch
          %20 = sbr.rel (0) target = $region17
        $region16: #{fwd.25} parent=8 // pred_region
          %s22 = ssub.s32 16, 1
          loop: start=0, step=1, limit=1
          $region18: #{fwd.25} parent=16 // loop_pre_header
            _
          $region19: #{fwd.25} parent=16 // loop_header
            %s24 = sphi 0, %s28
            %p25 = scmp.ge.s32.totalorder %s24, 1
            %s29 = sphi %s0, %s0
            %s30 = sphi [#allocation3], [#allocation3]
          $region20: #{fwd.25} parent=16 // loop_header_branch
            %27 = sbr.rel (%p25) target = $region24
          $region21: #{fwd.25} parent=16 // loop_body
            %v31 = vld [vmem:[%s29] sm:%s22]
            %32 = vst [vmem:[%s30] sm:%s22] %v31
            %v33 = vld [vmem:[%s29 + $0xc] sm:%s22]
            %34 = vst [vmem:[%s30 + $0x4] sm:%s22] %v33
          $region22: #{fwd.25} parent=16 // loop_footer
            %s28 = sadd.s32 1, %s24
          $region23: #{fwd.25} parent=16 // loop_footer_branch
            %23 = sbr.rel target = $region19
          $region24: #{fwd.25} parent=16 // loop_exit
            _
        $region17: #{fwd.25} parent=8 // pred_fallthru
          _
      $region9: #{fwd.25} parent=4 // pred_fallthru
        _
      %59 = vnop
    $region5: #{fwd.25} parent=1 // pred_fallthru
      _
    // Predicated region
    $region43: #{fwd.25} parent=1 // pred_check
      _
    $region44: #{fwd.25} parent=1 // pred_check_branch
      %61 = sbr.rel (0) target = $region46
    $region45: #{fwd.25} parent=1 // pred_region
      _
    $region46: #{fwd.25} parent=1 // pred_fallthru
      _
    // Predicated region
    $region47: #{fwd.25} parent=1 // pred_check
      _
    $region48: #{fwd.25} parent=1 // pred_check_branch
      %63 = sbr.rel (0) target = $region50
    $region49: #{fwd.25} parent=1 // pred_region
      %65 = vsyncadd [#allocation5], 0
      %s66 = sshll.u32 %s2, 4
      %s67 = int_to_ptr.hbm [resolvable:$true] %s66
      %s68 = sshll.u32 [#allocation4], 4
      %s69 = int_to_ptr.vmem [resolvable:$true] %s68
      %74 = dma.hbm_to_vmem [thread:$0]  %s67, 1024, %s69, [#allocation5], 64, 64, 4
    $region50: #{fwd.25} parent=1 // pred_fallthru
      _
    // Predicated region
    $region51: #{fwd.25} parent=1 // pred_check
      _
    $region52: #{fwd.25} parent=1 // pred_check_branch
      %76 = sbr.rel (0) target = $region54
    $region53: #{fwd.25} parent=1 // pred_region
      _
    $region54: #{fwd.25} parent=1 // pred_fallthru
      _
    // Predicated region
    $region55: #{fwd.25} parent=1 // pred_check
      _
    $region56: #{fwd.25} parent=1 // pred_check_branch
      %78 = sbr.rel (0) target = $region58
    $region57: #{fwd.25} parent=1 // pred_region
      _
    $region58: #{fwd.25} parent=1 // pred_fallthru
      _
    // Predicated region
    $region59: #{fwd.25} parent=1 // pred_check
      _
    $region60: #{fwd.25} parent=1 // pred_check_branch
      %80 = sbr.rel (0) target = $region62
    $region61: #{fwd.25} parent=1 // pred_region
      _
    $region62: #{fwd.25} parent=1 // pred_fallthru
      _
    // Predicated region
    $region63: #{fwd.25} parent=1 // pred_check
      _
    $region64: #{fwd.25} parent=1 // pred_check_branch
      %82 = sbr.rel (0) target = $region66
    $region65: #{fwd.25} parent=1 // pred_region
      _
    $region66: #{fwd.25} parent=1 // pred_fallthru
      _
    // Predicated region
    $region67: #{fwd.25} parent=1 // pred_check
      _
    $region68: #{fwd.25} parent=1 // pred_check_branch
      %84 = sbr.rel (0) target = $region70
    $region69: #{fwd.25} parent=1 // pred_region
      _
    $region70: #{fwd.25} parent=1 // pred_fallthru
      _
    // Predicated region
    $region71: #{fwd.25} parent=1 // pred_check
      _
    $region72: #{fwd.25} parent=1 // pred_check_branch
      %86 = sbr.rel (0) target = $region74
    $region73: #{fwd.25} parent=1 // pred_region
      %88 = dma.done [#allocation5], 1024
    $region74: #{fwd.25} parent=1 // pred_fallthru
      _
    %v90 = vld [vmem:[#allocation3] sm:$0xf]
    %v91 = vld [vmem:[#allocation3 + $0x4] sm:$0xf]
    %v92 = vunpack.c.l.bf16 %v90
    %v93 = vunpack.c.l.bf16 %v91
    %v94 = vmul.f32 %v92, 0.17677669
    %v95 = vmul.f32 %v93, 0.17677669
    %v96 = vpack.c.bf16 %v95, %v94
    %v97 = vld [vmem:[%s1 + $0x4] sm:$0xf]
    %v98 = vld [vmem:[%s1 + $0x10] sm:$0xf]
    %v99 = vld [vmem:[%s1 + $0x8] sm:$0xf]
    %v100 = vld [vmem:[%s1 + $0x14] sm:$0xf]
    %v103 = vunpack.c.l.b16 %v97
    %v104 = vunpack.c.l.b16 %v98
    %v105 = vpack.c.b16 %v104, %v103
    %vm106 = vcmask 261120
    %v108 = vsel %vm106, %v96, 0
    %v111 = vsel %vm106, %v105, 0
    %113 = vmatpush.bf16.xpose.msra.mxu0 0
    %114 = vmatpush.bf16.xpose.msra.mxu0 0
    %115 = vmatpush.bf16.xpose.msra.mxu0 0
    %116 = vmatpush.bf16.xpose.msra.mxu0 0
    %117 = vmatpush.bf16.xpose.msra.mxu0 0
    %118 = vmatpush.bf16.xpose.msra.mxu0 0
    %119 = vmatpush.bf16.xpose.msra.mxu0 0
    %120 = vmatpush.bf16.xpose.msra.mxu0 %v111
    %121 = vmatmul.bf16.gmra.mxu0 %v108
    %v122 = vpop.f32.mrf.mxu0
    %v123 = vadd.f32 0.0, %v122
    %v124 = vpop.f32.mrf.mxu0
    %v125 = vadd.f32 0.0, %v124
    %126 = vdwg.mxu0
    %vm127 = vcmask 130048
    %v128 = vsel %vm127, %v123, -inf
    %129 = vmax.xlane.f32.xlu0 %v128
    %v130 = vpop.xlane.xlu0 %129
    %v131 = vsel %vm127, %v125, -inf
    %132 = vmax.xlane.f32.xlu0 %v131
    %v133 = vpop.xlane.xlu0 %132
    %v134 = vsub.f32 %v123, %v130
    %v135 = vsub.f32 %v125, %v133
    %v136 = vmul.f32 %v134, 1.442695
    %v137 = vpow.pop %v136
    %v138 = vmul.f32 %v135, 1.442695
    %v139 = vpow.pop %v138
    %v140 = vsel %vm127, %v137, 0.0
    %141 = vadd.xlane.f32.xlu0 %v140
    %v142 = vpop.xlane.xlu0 %141
    %v143 = vsel %vm127, %v139, 0.0
    %144 = vadd.xlane.f32.xlu0 %v143
    %v145 = vpop.xlane.xlu0 %144
    %v146 = vrcp.pop %v142
    %v147 = vrcp.pop %v145
    %v148 = vmul.f32 %v137, %v146
    %v149 = vmul.f32 %v139, %v147
    %v150 = vpack.c.bf16 %v149, %v148
    %v153 = vunpack.c.l.b16 %v99
    %v154 = vunpack.c.l.b16 %v100
    %v155 = vpack.c.b16 %v154, %v153
    %v158 = vsel %vm127, %v150, 0
    %160 = vmatpush.bf16.msra.mxu0 0
    %161 = vmatpush.bf16.msra.mxu0 0
    %162 = vmatpush.bf16.msra.mxu0 0
    %163 = vmatpush.bf16.msra.mxu0 0
    %164 = vmatpush.bf16.msra.mxu0 0
    %165 = vmatpush.bf16.msra.mxu0 0
    %166 = vmatpush.bf16.msra.mxu0 0
    %167 = vmatpush.bf16.msra.mxu0 %v155
    %168 = vmatmul.bf16.gmra.mxu0 %v158
    %v169 = vpop.f32.mrf.mxu0
    %v170 = vadd.f32 0.0, %v169
    %v171 = vpop.f32.mrf.mxu0
    %v172 = vadd.f32 0.0, %v171
    %173 = vdwg.mxu0
    %v174 = vpack.c.bf16 %v170, %v170
    %v175 = vpack.c.bf16 %v172, %v172
    %vm176 = vcmask 257024
    %177 = vst.msk [vmem:[#allocation2] sm:$0xf] %vm176, %v174
    %178 = vst.msk [vmem:[#allocation2 + $0x4] sm:$0xf] %vm176, %v175
    %v179 = vld [vmem:[#allocation3] sm:$0xf]
    %v180 = vld [vmem:[#allocation3 + $0x4] sm:$0xf]
    %v181 = vunpack.c.l.bf16 %v179
    %v182 = vunpack.c.l.bf16 %v180
    %v183 = vmul.f32 %v181, 0.17677669
    %v184 = vmul.f32 %v182, 0.17677669
    %v185 = vpack.c.bf16 %v184, %v183
    %v186 = vld [vmem:[%s1 + $0x4] sm:$0xf]
    %v187 = vld [vmem:[%s1 + $0x10] sm:$0xf]
    %v188 = vld [vmem:[%s1 + $0x8] sm:$0xf]
    %v189 = vld [vmem:[%s1 + $0x14] sm:$0xf]
    %191 = vrot.lane.b32.xlu0 %v185, 96
    %v192 = vpop.permute.xlu0 %191
    %v195 = vunpack.c.l.b16 %v186
    %v196 = vunpack.c.l.b16 %v187
    %v197 = vpack.c.b16 %v196, %v195
    %198 = vrot.lane.b32.xlu0 %v197, 96
    %v199 = vpop.permute.xlu0 %198
    %v201 = vsel %vm106, %v192, 0
    %v204 = vsel %vm106, %v199, 0
    %206 = vmatpush.bf16.xpose.msra.mxu0 0
    %207 = vmatpush.bf16.xpose.msra.mxu0 0
    %208 = vmatpush.bf16.xpose.msra.mxu0 0
    %209 = vmatpush.bf16.xpose.msra.mxu0 0
    %210 = vmatpush.bf16.xpose.msra.mxu0 0
    %211 = vmatpush.bf16.xpose.msra.mxu0 0
    %212 = vmatpush.bf16.xpose.msra.mxu0 0
    %213 = vmatpush.bf16.xpose.msra.mxu0 %v204
    %214 = vmatmul.bf16.gmra.mxu0 %v201
    %v215 = vpop.f32.mrf.mxu0
    %v216 = vadd.f32 0.0, %v215
    %v217 = vpop.f32.mrf.mxu0
    %v218 = vadd.f32 0.0, %v217
    %219 = vdwg.mxu0
    %v220 = vsel %vm127, %v216, -inf
    %221 = vmax.xlane.f32.xlu0 %v220
    %v222 = vpop.xlane.xlu0 %221
    %v223 = vsel %vm127, %v218, -inf
    %224 = vmax.xlane.f32.xlu0 %v223
    %v225 = vpop.xlane.xlu0 %224
    %v226 = vsub.f32 %v216, %v222
    %v227 = vsub.f32 %v218, %v225
    %v228 = vmul.f32 %v226, 1.442695
    %v229 = vpow.pop %v228
    %v230 = vmul.f32 %v227, 1.442695
    %v231 = vpow.pop %v230
    %v232 = vsel %vm127, %v229, 0.0
    %233 = vadd.xlane.f32.xlu0 %v232
    %v234 = vpop.xlane.xlu0 %233
    %v235 = vsel %vm127, %v231, 0.0
    %236 = vadd.xlane.f32.xlu0 %v235
    %v237 = vpop.xlane.xlu0 %236
    %v238 = vrcp.pop %v234
    %v239 = vrcp.pop %v237
    %v240 = vmul.f32 %v229, %v238
    %v241 = vmul.f32 %v231, %v239
    %v242 = vpack.c.bf16 %v241, %v240
    %v245 = vunpack.c.l.b16 %v188
    %v246 = vunpack.c.l.b16 %v189
    %v247 = vpack.c.b16 %v246, %v245
    %248 = vrot.lane.b32.xlu0 %v247, 96
    %v249 = vpop.permute.xlu0 %248
    %v252 = vsel %vm127, %v242, 0
    %254 = vmatpush.bf16.msra.mxu0 0
    %255 = vmatpush.bf16.msra.mxu0 0
    %256 = vmatpush.bf16.msra.mxu0 0
    %257 = vmatpush.bf16.msra.mxu0 0
    %258 = vmatpush.bf16.msra.mxu0 0
    %259 = vmatpush.bf16.msra.mxu0 0
    %260 = vmatpush.bf16.msra.mxu0 0
    %261 = vmatpush.bf16.msra.mxu0 %v249
    %262 = vmatmul.bf16.gmra.mxu0 %v252
    %v263 = vpop.f32.mrf.mxu0
    %v264 = vadd.f32 0.0, %v263
    %v265 = vpop.f32.mrf.mxu0
    %v266 = vadd.f32 0.0, %v265
    %267 = vdwg.mxu0
    %v268 = vpack.c.bf16 %v264, %v264
    %v269 = vpack.c.bf16 %v266, %v266
    %272 = vrot.lane.b32.xlu0 %v268, 32
    %v273 = vpop.permute.xlu0 %272
    %274 = vrot.lane.b32.xlu0 %v269, 32
    %v275 = vpop.permute.xlu0 %274
    %vm278 = vcmask 519424
    %279 = vst.msk [vmem:[#allocation2] sm:$0xf] %vm278, %v273
    %280 = vst.msk [vmem:[#allocation2 + $0x4] sm:$0xf] %vm278, %v275
    %v281 = vld [vmem:[#allocation3] sm:$0xf]
    %v282 = vld [vmem:[#allocation3 + $0x4] sm:$0xf]
    %v283 = vunpack.c.l.bf16 %v281
    %v284 = vunpack.c.l.bf16 %v282
    %v285 = vmul.f32 %v283, 0.17677669
    %v286 = vmul.f32 %v284, 0.17677669
    %v287 = vpack.c.bf16 %v286, %v285
    %v288 = vld [vmem:[%s1 + $0x4] sm:$0xf]
    %v289 = vld [vmem:[%s1 + $0x10] sm:$0xf]
    %v290 = vld [vmem:[%s1 + $0x8] sm:$0xf]
    %v291 = vld [vmem:[%s1 + $0x14] sm:$0xf]
    %293 = vrot.lane.b32.xlu0 %v287, 64
    %v294 = vpop.permute.xlu0 %293
    %v297 = vunpack.c.l.b16 %v288
    %v298 = vunpack.c.l.b16 %v289
    %v299 = vpack.c.b16 %v298, %v297
    %300 = vrot.lane.b32.xlu0 %v299, 64
    %v301 = vpop.permute.xlu0 %300
    %v303 = vsel %vm106, %v294, 0
    %v306 = vsel %vm106, %v301, 0
    %308 = vmatpush.bf16.xpose.msra.mxu0 0
    %309 = vmatpush.bf16.xpose.msra.mxu0 0
    %310 = vmatpush.bf16.xpose.msra.mxu0 0
    %311 = vmatpush.bf16.xpose.msra.mxu0 0
    %312 = vmatpush.bf16.xpose.msra.mxu0 0
    %313 = vmatpush.bf16.xpose.msra.mxu0 0
    %314 = vmatpush.bf16.xpose.msra.mxu0 0
    %315 = vmatpush.bf16.xpose.msra.mxu0 %v306
    %316 = vmatmul.bf16.gmra.mxu0 %v303
    %v317 = vpop.f32.mrf.mxu0
    %v318 = vadd.f32 0.0, %v317
    %v319 = vpop.f32.mrf.mxu0
    %v320 = vadd.f32 0.0, %v319
    %321 = vdwg.mxu0
    %v322 = vsel %vm127, %v318, -inf
    %323 = vmax.xlane.f32.xlu0 %v322
    %v324 = vpop.xlane.xlu0 %323
    %v325 = vsel %vm127, %v320, -inf
    %326 = vmax.xlane.f32.xlu0 %v325
    %v327 = vpop.xlane.xlu0 %326
    %v328 = vsub.f32 %v318, %v324
    %v329 = vsub.f32 %v320, %v327
    %v330 = vmul.f32 %v328, 1.442695
    %v331 = vpow.pop %v330
    %v332 = vmul.f32 %v329, 1.442695
    %v333 = vpow.pop %v332
    %v334 = vsel %vm127, %v331, 0.0
    %335 = vadd.xlane.f32.xlu0 %v334
    %v336 = vpop.xlane.xlu0 %335
    %v337 = vsel %vm127, %v333, 0.0
    %338 = vadd.xlane.f32.xlu0 %v337
    %v339 = vpop.xlane.xlu0 %338
    %v340 = vrcp.pop %v336
    %v341 = vrcp.pop %v339
    %v342 = vmul.f32 %v331, %v340
    %v343 = vmul.f32 %v333, %v341
    %v344 = vpack.c.bf16 %v343, %v342
    %v347 = vunpack.c.l.b16 %v290
    %v348 = vunpack.c.l.b16 %v291
    %v349 = vpack.c.b16 %v348, %v347
    %350 = vrot.lane.b32.xlu0 %v349, 64
    %v351 = vpop.permute.xlu0 %350
    %v354 = vsel %vm127, %v344, 0
    %356 = vmatpush.bf16.msra.mxu0 0
    %357 = vmatpush.bf16.msra.mxu0 0
    %358 = vmatpush.bf16.msra.mxu0 0
    %359 = vmatpush.bf16.msra.mxu0 0
    %360 = vmatpush.bf16.msra.mxu0 0
    %361 = vmatpush.bf16.msra.mxu0 0
    %362 = vmatpush.bf16.msra.mxu0 0
    %363 = vmatpush.bf16.msra.mxu0 %v351
    %364 = vmatmul.bf16.gmra.mxu0 %v354
    %v365 = vpop.f32.mrf.mxu0
    %v366 = vadd.f32 0.0, %v365
    %v367 = vpop.f32.mrf.mxu0
    %v368 = vadd.f32 0.0, %v367
    %369 = vdwg.mxu0
    %v370 = vpack.c.bf16 %v366, %v366
    %v371 = vpack.c.bf16 %v368, %v368
    %374 = vrot.lane.b32.xlu0 %v370, 64
    %v375 = vpop.permute.xlu0 %374
    %376 = vrot.lane.b32.xlu0 %v371, 64
    %v377 = vpop.permute.xlu0 %376
    %vm380 = vcmask 781824
    %381 = vst.msk [vmem:[#allocation2] sm:$0xf] %vm380, %v375
    %382 = vst.msk [vmem:[#allocation2 + $0x4] sm:$0xf] %vm380, %v377
    %v383 = vld [vmem:[#allocation3] sm:$0xf]
    %v384 = vld [vmem:[#allocation3 + $0x4] sm:$0xf]
    %v385 = vunpack.c.l.bf16 %v383
    %v386 = vunpack.c.l.bf16 %v384
    %v387 = vmul.f32 %v385, 0.17677669
    %v388 = vmul.f32 %v386, 0.17677669
    %v389 = vpack.c.bf16 %v388, %v387
    %v390 = vld [vmem:[%s1 + $0x4] sm:$0xf]
    %v391 = vld [vmem:[%s1 + $0x10] sm:$0xf]
    %v392 = vld [vmem:[%s1 + $0x8] sm:$0xf]
    %v393 = vld [vmem:[%s1 + $0x14] sm:$0xf]
    %395 = vrot.lane.b32.xlu0 %v389, 32
    %v396 = vpop.permute.xlu0 %395
    %v399 = vunpack.c.l.b16 %v390
    %v400 = vunpack.c.l.b16 %v391
    %v401 = vpack.c.b16 %v400, %v399
    %402 = vrot.lane.b32.xlu0 %v401, 32
    %v403 = vpop.permute.xlu0 %402
    %v405 = vsel %vm106, %v396, 0
    %v408 = vsel %vm106, %v403, 0
    %410 = vmatpush.bf16.xpose.msra.mxu0 0
    %411 = vmatpush.bf16.xpose.msra.mxu0 0
    %412 = vmatpush.bf16.xpose.msra.mxu0 0
    %413 = vmatpush.bf16.xpose.msra.mxu0 0
    %414 = vmatpush.bf16.xpose.msra.mxu0 0
    %415 = vmatpush.bf16.xpose.msra.mxu0 0
    %416 = vmatpush.bf16.xpose.msra.mxu0 0
    %417 = vmatpush.bf16.xpose.msra.mxu0 %v408
    %418 = vmatmul.bf16.gmra.mxu0 %v405
    %v419 = vpop.f32.mrf.mxu0
    %v420 = vadd.f32 0.0, %v419
    %v421 = vpop.f32.mrf.mxu0
    %v422 = vadd.f32 0.0, %v421
    %423 = vdwg.mxu0
    %v424 = vsel %vm127, %v420, -inf
    %425 = vmax.xlane.f32.xlu0 %v424
    %v426 = vpop.xlane.xlu0 %425
    %v427 = vsel %vm127, %v422, -inf
    %428 = vmax.xlane.f32.xlu0 %v427
    %v429 = vpop.xlane.xlu0 %428
    %v430 = vsub.f32 %v420, %v426
    %v431 = vsub.f32 %v422, %v429
    %v432 = vmul.f32 %v430, 1.442695
    %v433 = vpow.pop %v432
    %v434 = vmul.f32 %v431, 1.442695
    %v435 = vpow.pop %v434
    %v436 = vsel %vm127, %v433, 0.0
    %437 = vadd.xlane.f32.xlu0 %v436
    %v438 = vpop.xlane.xlu0 %437
    %v439 = vsel %vm127, %v435, 0.0
    %440 = vadd.xlane.f32.xlu0 %v439
    %v441 = vpop.xlane.xlu0 %440
    %v442 = vrcp.pop %v438
    %v443 = vrcp.pop %v441
    %v444 = vmul.f32 %v433, %v442
    %v445 = vmul.f32 %v435, %v443
    %v446 = vpack.c.bf16 %v445, %v444
    %v449 = vunpack.c.l.b16 %v392
    %v450 = vunpack.c.l.b16 %v393
    %v451 = vpack.c.b16 %v450, %v449
    %452 = vrot.lane.b32.xlu0 %v451, 32
    %v453 = vpop.permute.xlu0 %452
    %v456 = vsel %vm127, %v446, 0
    %458 = vmatpush.bf16.msra.mxu0 0
    %459 = vmatpush.bf16.msra.mxu0 0
    %460 = vmatpush.bf16.msra.mxu0 0
    %461 = vmatpush.bf16.msra.mxu0 0
    %462 = vmatpush.bf16.msra.mxu0 0
    %463 = vmatpush.bf16.msra.mxu0 0
    %464 = vmatpush.bf16.msra.mxu0 0
    %465 = vmatpush.bf16.msra.mxu0 %v453
    %466 = vmatmul.bf16.gmra.mxu0 %v456
    %v467 = vpop.f32.mrf.mxu0
    %v468 = vadd.f32 0.0, %v467
    %v469 = vpop.f32.mrf.mxu0
    %v470 = vadd.f32 0.0, %v469
    %471 = vdwg.mxu0
    %v472 = vpack.c.bf16 %v468, %v468
    %v473 = vpack.c.bf16 %v470, %v470
    %476 = vrot.lane.b32.xlu0 %v472, 96
    %v477 = vpop.permute.xlu0 %476
    %478 = vrot.lane.b32.xlu0 %v473, 96
    %v479 = vpop.permute.xlu0 %478
    %vm482 = vcmask 1044224
    %483 = vst.msk [vmem:[#allocation2] sm:$0xf] %vm482, %v477
    %484 = vst.msk [vmem:[#allocation2 + $0x4] sm:$0xf] %vm482, %v479
    %v485 = vld [vmem:[#allocation2] sm:$0xf]
    %v486 = vld [vmem:[#allocation2 + $0x4] sm:$0xf]
    %v487 = vld [vmem:[#allocation4] sm:$0xf]
    %v488 = vld [vmem:[#allocation4 + $0x4] sm:$0xf]
    %v489 = vld [vmem:[#allocation4 + $0x8] sm:$0xf]
    %v490 = vld [vmem:[#allocation4 + $0xc] sm:$0xf]
    %v491 = vld [vmem:[#allocation4 + $0x10] sm:$0xf]
    %v492 = vld [vmem:[#allocation4 + $0x14] sm:$0xf]
    %v493 = vld [vmem:[#allocation4 + $0x18] sm:$0xf]
    %v494 = vld [vmem:[#allocation4 + $0x1c] sm:$0xf]
    %v495 = vld [vmem:[#allocation4 + $0x20] sm:$0xf]
    %v496 = vld [vmem:[#allocation4 + $0x24] sm:$0xf]
    %v497 = vld [vmem:[#allocation4 + $0x28] sm:$0xf]
    %v498 = vld [vmem:[#allocation4 + $0x2c] sm:$0xf]
    %v499 = vld [vmem:[#allocation4 + $0x30] sm:$0xf]
    %v500 = vld [vmem:[#allocation4 + $0x34] sm:$0xf]
    %v501 = vld [vmem:[#allocation4 + $0x38] sm:$0xf]
    %v502 = vld [vmem:[#allocation4 + $0x3c] sm:$0xf]
    %v503 = vld [vmem:[%s3] sm:$0x1]
    %v505 = vperm.slane %v503, 0
    %v509 = vunpack.c.l.b16 %v485
    %v510 = vunpack.c.l.b16 %v486
    %v511 = vpack.c.b16 %v510, %v509
    %v529 = vunpack.c.l.b16 %v487
    %v530 = vunpack.c.l.b16 %v488
    %v531 = vunpack.c.l.b16 %v489
    %v532 = vunpack.c.l.b16 %v490
    %v533 = vunpack.c.l.b16 %v491
    %v534 = vunpack.c.l.b16 %v492
    %v535 = vunpack.c.l.b16 %v493
    %v536 = vunpack.c.l.b16 %v494
    %v537 = vunpack.c.l.b16 %v495
    %v538 = vunpack.c.l.b16 %v496
    %v539 = vunpack.c.l.b16 %v497
    %v540 = vunpack.c.l.b16 %v498
    %v541 = vunpack.c.l.b16 %v499
    %v542 = vunpack.c.l.b16 %v500
    %v543 = vunpack.c.l.b16 %v501
    %v544 = vunpack.c.l.b16 %v502
    %v545 = vpack.c.b16 %v530, %v529
    %v546 = vpack.c.b16 %v532, %v531
    %v547 = vpack.c.b16 %v534, %v533
    %v548 = vpack.c.b16 %v536, %v535
    %v549 = vpack.c.b16 %v538, %v537
    %v550 = vpack.c.b16 %v540, %v539
    %v551 = vpack.c.b16 %v542, %v541
    %v552 = vpack.c.b16 %v544, %v543
    %561 = vmatpush.bf16.msra.mxu0 %v552
    %562 = vmatpush.bf16.msra.mxu0 %v551
    %563 = vmatpush.bf16.msra.mxu0 %v550
    %564 = vmatpush.bf16.msra.mxu0 %v549
    %565 = vmatpush.bf16.msra.mxu0 %v548
    %566 = vmatpush.bf16.msra.mxu0 %v547
    %567 = vmatpush.bf16.msra.mxu0 %v546
    %568 = vmatpush.bf16.msra.mxu0 %v545
    %569 = vmatmul.bf16.gmra.mxu0 %v511
    %v570 = vpop.f32.mrf.mxu0
    %v571 = vadd.f32 %v505, %v570
    %v572 = vpop.f32.mrf.mxu0
    %v573 = vadd.f32 %v505, %v572
    %574 = vdwg.mxu0
    %v575 = vld [vmem:[%s4] sm:$0xf]
    %v576 = vld [vmem:[%s4 + $0x4] sm:$0xf]
    %v577 = vunpack.c.l.bf16 %v575
    %v578 = vunpack.c.l.bf16 %v576
    %v579 = vadd.f32 %v571, %v577
    %v580 = vadd.f32 %v573, %v578
    %v581 = vld [vmem:[%s5] sm:$0x1]
    %v582 = vld [vmem:[%s6] sm:$0x1]
    %583 = vadd.xlane.f32.xlu0 %v579
    %v584 = vpop.xlane.xlu0 %583
    %585 = vadd.xlane.f32.xlu0 %v580
    %v586 = vpop.xlane.xlu0 %585
    %v587 = vrcp.pop 128.0
    %v588 = vmul.f32 128.0, %v587
    %v589 = vsub.f32 1.0, %v588
    %v590 = vmul.f32 %v587, %v589
    %v591 = vadd.f32 %v587, %v590
    %vm592 = vweird.f32 %v587
    %v593 = vsel %vm592, %v587, %v591
    %v594 = vmul.f32 %v584, %v593
    %v595 = vmul.f32 %v586, %v593
    %v596 = vsub.f32 %v579, %v594
    %v597 = vsub.f32 %v580, %v595
    %v598 = vmul.f32 %v596, %v596
    %v599 = vmul.f32 %v597, %v597
    %600 = vadd.xlane.f32.xlu0 %v598
    %v601 = vpop.xlane.xlu0 %600
    %602 = vadd.xlane.f32.xlu0 %v599
    %v603 = vpop.xlane.xlu0 %602
    %v604 = vmul.f32 %v601, %v593
    %v605 = vmul.f32 %v603, %v593
    %v606 = vadd.f32 %v604, 1e-05
    %v607 = vadd.f32 %v605, 1e-05
    %v608 = vrsqrt.pop %v606
    %v609 = vmul.f32 %v608, %v606
    %v610 = vmul.f32 %v609, %v608
    %v611 = vmul.f32 0.5, %v610
    %v612 = vsub.f32 1.5, %v611
    %v613 = vmul.f32 %v608, %v612
    %vm614 = vweird.f32 %v606
    %vm615 = vweird.f32 %v608
    %vm616 = vmor %vm614, %vm615
    %v617 = vsel %vm616, %v608, %v613
    %v618 = vrsqrt.pop %v607
    %v619 = vmul.f32 %v618, %v607
    %v620 = vmul.f32 %v619, %v618
    %v621 = vmul.f32 0.5, %v620
    %v622 = vsub.f32 1.5, %v621
    %v623 = vmul.f32 %v618, %v622
    %vm624 = vweird.f32 %v607
    %vm625 = vweird.f32 %v618
    %vm626 = vmor %vm624, %vm625
    %v627 = vsel %vm626, %v618, %v623
    %v628 = vmul.f32 %v596, %v617
    %v629 = vmul.f32 %v597, %v627
    %v631 = vperm.slane %v581, 0
    %v633 = vmul.f32 %v628, %v631
    %v634 = vmul.f32 %v629, %v631
    %v636 = vperm.slane %v582, 0
    %v638 = vadd.f32 %v633, %v636
    %v639 = vadd.f32 %v634, %v636
    %v640 = vpack.c.bf16 %v638, %v638
    %v641 = vpack.c.bf16 %v639, %v639
    %642 = vst [vmem:[%s7] sm:$0xf] %v640
    %643 = vst [vmem:[%s7 + $0x4] sm:$0xf] %v641
    // Predicated region
    $region75: #{fwd.25} parent=1 // pred_check
      _
    $region76: #{fwd.25} parent=1 // pred_check_branch
      %645 = sbr.rel (0) target = $region78
    $region77: #{fwd.25} parent=1 // pred_region
      _
    $region78: #{fwd.25} parent=1 // pred_fallthru
      _
    // Predicated region
    $region79: #{fwd.25} parent=1 // pred_check
      _
    $region80: #{fwd.25} parent=1 // pred_check_branch
      %647 = sbr.rel (0) target = $region82
    $region81: #{fwd.25} parent=1 // pred_region
      _
    $region82: #{fwd.25} parent=1 // pred_fallthru
      _
    %648 = vsyncpa [#allocation5], 1

// kernel: fwd.27
$region0: #{fwd.27}
  #allocation0 [shape = 'u32[]', space=smem, size = 0x4, offset = 0x4, fixed_abs, tag = 'smem constant byte address 0x4 - core index']
  #allocation1 [shape = 'u32[72,128]{1,0:T(1,128)}', space=vmem, size = 0x9000, scoped, tag = 'internal scratch']
  %s0 = inlined_call_operand.vmem [shape: f32[8,128], index: 0, kind: input, shape index: {}]
  %s1 = inlined_call_operand.vmem [shape: f32[1,128], index: 1, kind: input, shape index: {}]
  %s2 = inlined_call_operand.vmem [shape: f32[1,128], index: 2, kind: input, shape index: {}]
  %s3 = inlined_call_operand.vmem [shape: bf16[8,128], index: 3, kind: output, shape index: {}]
  %s4 = sld [smem:[#allocation0]]
  $region22: #{fwd.27} parent=0
    _
  %s6 = ssub.s32 1, %s4
  %s7 = scalar_select 0, %s6, %s4
  // Predicated region
  $region2: #{fwd.27} parent=0 // pred_check
    _
  $region3: #{fwd.27} parent=0 // pred_check_branch
    %9 = sbr.rel (0) target = $region5
  $region4: #{fwd.27} parent=0 // pred_region
    _
  $region5: #{fwd.27} parent=0 // pred_fallthru
    _
  // Predicated region
  $region6: #{fwd.27} parent=0 // pred_check
    _
  $region7: #{fwd.27} parent=0 // pred_check_branch
    %11 = sbr.rel (0) target = $region9
  $region8: #{fwd.27} parent=0 // pred_region
    _
  $region9: #{fwd.27} parent=0 // pred_fallthru
    _
  // Predicated region
  $region10: #{fwd.27} parent=0 // pred_check
    _
  $region11: #{fwd.27} parent=0 // pred_check_branch
    %13 = sbr.rel (0) target = $region13
  $region12: #{fwd.27} parent=0 // pred_region
    _
  $region13: #{fwd.27} parent=0 // pred_fallthru
    _
  %v14 = vld [vmem:[%s0] sm:$0xff]
  %v15 = vld [vmem:[%s1] sm:$0x1]
  %v16 = vld [vmem:[%s2] sm:$0x1]
  %17 = vadd.xlane.f32.xlu0 %v14
  %v18 = vpop.xlane.xlu0 %17
  %v19 = vrcp.pop 128.0
  %v20 = vmul.f32 128.0, %v19
  %v21 = vsub.f32 1.0, %v20
  %v22 = vmul.f32 %v19, %v21
  %v23 = vadd.f32 %v19, %v22
  %vm24 = vweird.f32 %v19
  %v25 = vsel %vm24, %v19, %v23
  %v26 = vmul.f32 %v18, %v25
  %v27 = vsub.f32 %v14, %v26
  %v28 = vmul.f32 %v27, %v27
  %29 = vadd.xlane.f32.xlu0 %v28
  %v30 = vpop.xlane.xlu0 %29
  %v31 = vmul.f32 %v30, %v25
  %v32 = vadd.f32 %v31, 1e-05
  %v33 = vrsqrt.pop %v32
  %v34 = vmul.f32 %v33, %v32
  %v35 = vmul.f32 %v34, %v33
  %v36 = vmul.f32 0.5, %v35
  %v37 = vsub.f32 1.5, %v36
  %v38 = vmul.f32 %v33, %v37
  %vm39 = vweird.f32 %v32
  %vm40 = vweird.f32 %v33
  %vm41 = vmor %vm39, %vm40
  %v42 = vsel %vm41, %v33, %v38
  %v43 = vmul.f32 %v27, %v42
  %v45 = vperm.slane %v15, 0
  %v47 = vmul.f32 %v43, %v45
  %v49 = vperm.slane %v16, 0
  %v51 = vadd.f32 %v47, %v49
  %v52 = vpack.c.bf16 %v51, %v51
  %53 = vst [vmem:[%s3] sm:$0xf] %v52
  // Predicated region
  $region14: #{fwd.27} parent=0 // pred_check
    _
  $region15: #{fwd.27} parent=0 // pred_check_branch
    %55 = sbr.rel (0) target = $region17
  $region16: #{fwd.27} parent=0 // pred_region
    _
  $region17: #{fwd.27} parent=0 // pred_fallthru
    _
  // Predicated region
  $region18: #{fwd.27} parent=0 // pred_check
    _
  $region19: #{fwd.27} parent=0 // pred_check_branch
    %57 = sbr.rel (0) target = $region21
  $region20: #{fwd.27} parent=0 // pred_region
    _
  $region21: #{fwd.27} parent=0 // pred_fallthru
    _

// kernel: fwd.28
$region0: #{fwd.28}
  #allocation0 [shape = 'u32[]', space=smem, size = 0x4, offset = 0x4, fixed_abs, tag = 'smem constant byte address 0x4 - core index']
  #allocation1 [shape = 'u32[72,128]{1,0:T(1,128)}', space=vmem, size = 0x9000, scoped, tag = 'internal scratch']
  #allocation2 [shape = 'f32[8,128]{1,0:T(8,128)}', space=vmem, size = 0x1000, scoped, tag = 'scratch operand']
  %s0 = inlined_call_operand.vmem [shape: bf16[8,128], index: 0, kind: input, shape index: {}]
  %s1 = inlined_call_operand.hbm [shape: bf16[128,384], index: 1, kind: input, shape index: {}]
  %s2 = inlined_call_operand.vmem [shape: f32[1,384], index: 2, kind: input, shape index: {}]
  %s3 = inlined_call_operand.vmem [shape: bf16[8,384], index: 3, kind: output, shape index: {}]
  %s4 = sld [smem:[#allocation0]]
  $region57: #{fwd.28} parent=0
    _
  %s6 = ssub.s32 1, %s4
  %s7 = scalar_select 0, %s6, %s4
  $region1: #{fwd.28} parent=0
    #allocation3 [shape = 'u8[65536]{0}', space=vmem, size = 0x10000, scoped, tag = 'input window, operand 1']
    #allocation4 [shape = 's32[2]{0}', space=sflag, size = 0x8, scoped, tag = 'scoped memory for fwd.28']
    %8 = vsyncpa [#allocation4], 0
    %s9 = scalar_lea.sflag [#allocation4], 1
    %10 = vsyncpa %s9, 0
    loop: start=0, step=1, limit=5
    $region2: #{fwd.28} parent=1 // loop_pre_header
      _
    $region3: #{fwd.28} parent=1 // loop_header
      %s12 = sphi 0, %s16
      %p13 = scmp.ge.s32.totalorder %s12, 5
      %s19 = sphi 0, %s38
      %s20 = sphi 0, %s34
      %s21 = sphi 0, %s30
      %s22 = sphi 0, %s19
      %s23 = sphi 0, %s20
      %s24 = sphi 0, %s21
      %s25 = sphi 0, %s22
      %s26 = sphi 0, %s23
      %s27 = sphi 0, %s24
      %s43 = sphi 0, %s45
      %s46 = sphi 0, %s43
      %s47 = sphi 0, %s46
      %s63 = sphi 0, %s47
      %s71 = sphi 0, %s73
      %s74 = sphi 0, %s71
      %s75 = sphi 0, %s74
      %s91 = sphi 0, %s75
      %s97 = sphi 0, %s99
      %s100 = sphi 0, %s97
      %s101 = sphi 0, %s100
      %s117 = sphi 0, %s101
      %s125 = sphi 0, %s127
      %s128 = sphi 0, %s125
      %s129 = sphi 0, %s128
      %s145 = sphi 0, %s129
    $region4: #{fwd.28} parent=1 // loop_header_branch
      %15 = sbr.rel (%p13) target = $region8
    $region5: #{fwd.28} parent=1 // loop_body
      %s17 = ssub.s32 %s12, 1
      %s18 = ssub.s32 %s12, 2
      %s28 = sadd.s32 1, %s21
      %p29 = scmp.ge.s32.totalorder %s28, 1
      %s30 = scalar_select %p29, 0, %s28
      %s31 = sadd.s32 1, %s20
      %s32 = scalar_select %p29, %s31, %s20
      %p33 = scmp.ge.s32.totalorder %s32, 3
      %s34 = scalar_select %p33, 0, %s32
      %s35 = sadd.s32 1, %s19
      %s36 = scalar_select %p33, %s35, %s19
      %p37 = scmp.ge.s32.totalorder %s36, 1
      %s38 = scalar_select %p37, 0, %s36
      %s39 = ssub.s32 %s19, %s38
      %s40 = ssub.s32 %s21, %s30
      %s41 = sor.u32 %s39, %s40
      %p42 = scmp.eq.s32.totalorder %s41, 0
      %s44 = sadd.s32 %s43, 1
      %s45 = scalar_select %p42, %s43, %s44
      %p48 = pneg %p42
      %p49 = scmp.eq.s32.totalorder %s12, 2
      %p50 = por %p48, %p49
      %p51 = scmp.ne.s32.totalorder %s43, %s46
      %p52 = scmp.eq.s32.totalorder %s12, 0
      %p53 = por %p51, %p52
      %p54 = scmp.ne.s32.totalorder %s43, %s46
      %p55 = scmp.eq.s32.totalorder %s17, 2
      %p56 = por %p54, %p55
      %p57 = scmp.ne.s32.totalorder %s46, %s47
      %p58 = scmp.eq.s32.totalorder %s17, 0
      %p59 = por %p57, %p58
      %p60 = scmp.ne.s32.totalorder %s46, %s47
      %p61 = scmp.eq.s32.totalorder %s18, 2
      %p62 = por %p60, %p61
      %p64 = scmp.ne.s32.totalorder %s47, %s63
      %p65 = scmp.eq.s32.totalorder %s18, 0
      %p66 = por %p64, %p65
      %s67 = ssub.s32 %s21, %s30
      %s68 = ssub.s32 %s20, %s34
      %s69 = sor.u32 %s67, %s68
      %p70 = scmp.eq.s32.totalorder %s69, 0
      %s72 = sadd.s32 %s71, 1
      %s73 = scalar_select %p70, %s71, %s72
      %p76 = pneg %p70
      %p77 = scmp.eq.s32.totalorder %s12, 2
      %p78 = por %p76, %p77
      %p79 = scmp.ne.s32.totalorder %s71, %s74
      %p80 = scmp.eq.s32.totalorder %s12, 0
      %p81 = por %p79, %p80
      %p82 = scmp.ne.s32.totalorder %s71, %s74
      %p83 = scmp.eq.s32.totalorder %s17, 2
      %p84 = por %p82, %p83
      %p85 = scmp.ne.s32.totalorder %s74, %s75
      %p86 = scmp.eq.s32.totalorder %s17, 0
      %p87 = por %p85, %p86
      %p88 = scmp.ne.s32.totalorder %s74, %s75
      %p89 = scmp.eq.s32.totalorder %s18, 2
      %p90 = por %p88, %p89
      %p92 = scmp.ne.s32.totalorder %s75, %s91
      %p93 = scmp.eq.s32.totalorder %s18, 0
      %p94 = por %p92, %p93
      %s95 = ssub.s32 %s20, %s34
      %p96 = scmp.eq.s32.totalorder %s95, 0
      %s98 = sadd.s32 %s97, 1
      %s99 = scalar_select %p96, %s97, %s98
      %p102 = pneg %p96
      %p103 = scmp.eq.s32.totalorder %s12, 2
      %p104 = por %p102, %p103
      %p105 = scmp.ne.s32.totalorder %s97, %s100
      %p106 = scmp.eq.s32.totalorder %s12, 0
      %p107 = por %p105, %p106
      %p108 = scmp.ne.s32.totalorder %s97, %s100
      %p109 = scmp.eq.s32.totalorder %s17, 2
      %p110 = por %p108, %p109
      %p111 = scmp.ne.s32.totalorder %s100, %s101
      %p112 = scmp.eq.s32.totalorder %s17, 0
      %p113 = por %p111, %p112
      %p114 = scmp.ne.s32.totalorder %s100, %s101
      %p115 = scmp.eq.s32.totalorder %s18, 2
      %p116 = por %p114, %p115
      %p118 = scmp.ne.s32.totalorder %s101, %s117
      %p119 = scmp.eq.s32.totalorder %s18, 0
      %p120 = por %p118, %p119
      %s121 = ssub.s32 %s19, %s38
      %s122 = ssub.s32 %s20, %s34
      %s123 = sor.u32 %s121, %s122
      %p124 = scmp.eq.s32.totalorder %s123, 0
      %s126 = sadd.s32 %s125, 1
      %s127 = scalar_select %p124, %s125, %s126
      %p130 = pneg %p124
      %p131 = scmp.eq.s32.totalorder %s12, 2
      %p132 = por %p130, %p131
      %p133 = scmp.ne.s32.totalorder %s125, %s128
      %p134 = scmp.eq.s32.totalorder %s12, 0
      %p135 = por %p133, %p134
      %p136 = scmp.ne.s32.totalorder %s125, %s128
      %p137 = scmp.eq.s32.totalorder %s17, 2
      %p138 = por %p136, %p137
      %p139 = scmp.ne.s32.totalorder %s128, %s129
      %p140 = scmp.eq.s32.totalorder %s17, 0
      %p141 = por %p139, %p140
      %p142 = scmp.ne.s32.totalorder %s128, %s129
      %p143 = scmp.eq.s32.totalorder %s18, 2
      %p144 = por %p142, %p143
      %p146 = scmp.ne.s32.totalorder %s129, %s145
      %p147 = scmp.eq.s32.totalorder %s18, 0
      %p148 = por %p146, %p147
      %p149 = scmp.le.s32.totalorder 1, %s12
      %p150 = scmp.lt.s32.totalorder %s12, 4
      %p151 = pnand %p149, %p150
      %p152 = pneg %p151
      // Predicated region
      $region9: #{fwd.28} parent=5 // pred_check
        _
      $region10: #{fwd.28} parent=5 // pred_check_branch
        %154 = sbr.rel (%p151) target = $region12
      $region11: #{fwd.28} parent=5 // pred_region
        %s155 = ssub.s32 %s12, 1
        // Predicated region
        $region13: #{fwd.28} parent=11 // pred_check
          %p156 = pneg %p59
        $region14: #{fwd.28} parent=11 // pred_check_branch
          %158 = sbr.rel (%p156) target = $region16
        $region15: #{fwd.28} parent=11 // pred_region
          %p159 = scmp.lt.s32.totalorder %s22, 0
          %s160 = scalar_select %p159, %s22, 0
          %p161 = scmp.lt.s32.totalorder %s24, 0
          %s162 = scalar_select %p161, %s24, 0
          %s163 = sadd.s32 %s162, %s160
          %s164 = smul.addr %s163, 4
          %s165 = scalar_lea.vmem %s0, %s164
        $region16: #{fwd.28} parent=11 // pred_fallthru
          _
      $region12: #{fwd.28} parent=5 // pred_fallthru
        _
      %p166 = scmp.lt.s32.totalorder %s12, 3
      // Predicated region
      $region17: #{fwd.28} parent=5 // pred_check
        %p167 = pneg %p166
      $region18: #{fwd.28} parent=5 // pred_check_branch
        %169 = sbr.rel (%p167) target = $region20
      $region19: #{fwd.28} parent=5 // pred_region
        // Predicated region
        $region21: #{fwd.28} parent=19 // pred_check
          %p170 = pneg %p81
        $region22: #{fwd.28} parent=19 // pred_check_branch
          %172 = sbr.rel (%p170) target = $region24
        $region23: #{fwd.28} parent=19 // pred_region
          %s173 = sand.u32 %s71, 1
          %s174 = scalar_lea.sflag [#allocation4], %s173
          %s175 = sand.u32 %s71, 1
          %s176 = smul.addr %s175, 64
          %s177 = scalar_lea.vmem [#allocation3], %s176
          %s178 = smul.u32 16, %s21
          %180 = vsyncadd %s174, 0
          %s181 = smul.addr %s178, 3
          %s182 = sadd.s32 %s20, %s181
          %s183 = smul.addr %s182, 4
          %s184 = scalar_lea.hbm %s1, %s183
          %s185 = sshll.u32 %s184, 4
          %s186 = int_to_ptr.hbm [resolvable:$true] %s185
          %s187 = sshll.u32 %s177, 4
          %s188 = int_to_ptr.vmem [resolvable:$true] %s187
          %193 = dma.hbm_to_vmem [thread:$0]  %s186, 1024, %s188, %s174, 192, 64, 4
        $region24: #{fwd.28} parent=19 // pred_fallthru
          _
        // Predicated region
        $region25: #{fwd.28} parent=19 // pred_check
          %p194 = pneg %p107
        $region26: #{fwd.28} parent=19 // pred_check_branch
          %196 = sbr.rel (%p194) target = $region28
        $region27: #{fwd.28} parent=19 // pred_region
          %p197 = scmp.lt.s32.totalorder %s20, 2
          %s198 = scalar_select %p197, %s20, 2
          %s199 = scalar_lea.vmem %s2, %s198
        $region28: #{fwd.28} parent=19 // pred_fallthru
          _
      $region20: #{fwd.28} parent=5 // pred_fallthru
        _
      %p200 = scmp.le.s32.totalorder 1, %s12
      %p201 = scmp.lt.s32.totalorder %s12, 4
      %p202 = pnand %p200, %p201
      %p203 = pneg %p202
      // Predicated region
      $region29: #{fwd.28} parent=5 // pred_check
        _
      $region30: #{fwd.28} parent=5 // pred_check_branch
        %205 = sbr.rel (%p202) target = $region32
      $region31: #{fwd.28} parent=5 // pred_region
        %s206 = ssub.s32 %s12, 1
        %s207 = sand.u32 %s74, 1
        %s208 = scalar_lea.sflag [#allocation4], %s207
        %s209 = sand.u32 %s74, 1
        %s210 = smul.addr %s209, 64
        %s211 = scalar_lea.vmem [#allocation3], %s210
        // Predicated region
        $region33: #{fwd.28} parent=31 // pred_check
          %p212 = pneg %p87
        $region34: #{fwd.28} parent=31 // pred_check_branch
          %214 = sbr.rel (%p212) target = $region36
        $region35: #{fwd.28} parent=31 // pred_region
          %216 = dma.done %s208, 1024
        $region36: #{fwd.28} parent=31 // pred_fallthru
          _
        %p217 = scmp.lt.s32.totalorder %s22, 0
        %s218 = scalar_select %p217, %s22, 0
        %p219 = scmp.lt.s32.totalorder %s24, 0
        %s220 = scalar_select %p219, %s24, 0
        %s221 = sadd.s32 %s220, %s218
        %s222 = smul.addr %s221, 4
        %s223 = scalar_lea.vmem %s0, %s222
        %p224 = pneg %p59
        %p225 = pneg %p56
        %s226 = sand.u32 %s74, 1
        %s227 = scalar_lea.sflag [#allocation4], %s226
        %s228 = sand.u32 %s74, 1
        %s229 = smul.addr %s228, 64
        %s230 = scalar_lea.vmem [#allocation3], %s229
        %p231 = pneg %p87
        %p232 = pneg %p84
        %p233 = scmp.lt.s32.totalorder %s23, 2
        %s234 = scalar_select %p233, %s23, 2
        %s235 = scalar_lea.vmem %s2, %s234
        %p236 = pneg %p113
        %p237 = pneg %p110
        %p238 = pneg %p141
        %p239 = pneg %p138
        %p240 = scmp.lt.s32.totalorder %s22, 0
        %s241 = scalar_select %p240, %s22, 0
        %p242 = scmp.lt.s32.totalorder %s23, 2
        %s243 = scalar_select %p242, %s23, 2
        %s244 = smul.addr %s241, 3
        %s245 = sadd.s32 %s243, %s244
        %s246 = smul.addr %s245, 4
        %s247 = scalar_lea.vmem %s3, %s246
        %p248 = scmp.lt.s32.totalorder %s22, 0
        %s249 = scalar_select %p248, %s22, 0
        %p250 = scmp.lt.s32.totalorder %s24, 0
        %s251 = scalar_select %p250, %s24, 0
        %s252 = sadd.s32 %s251, %s249
        %s253 = smul.addr %s252, 4
        %s254 = scalar_lea.vmem %s0, %s253
        %s255 = smul.u32 16, %s24
        %p256 = scmp.lt.s32.totalorder %s23, 2
        %s257 = scalar_select %p256, %s23, 2
        %s258 = scalar_lea.vmem %s2, %s257
        %p259 = scmp.lt.s32.totalorder %s22, 0
        %s260 = scalar_select %p259, %s22, 0
        %p261 = scmp.lt.s32.totalorder %s23, 2
        %s262 = scalar_select %p261, %s23, 2
        %s263 = smul.addr %s260, 3
        %s264 = sadd.s32 %s262, %s263
        %s265 = smul.addr %s264, 4
        %s266 = scalar_lea.vmem %s3, %s265
        %p267 = scmp.eq.s32.totalorder %s24, 0
        // Predicated region
        $region37: #{fwd.28} parent=31 // pred_check
          %p268 = pneg %p267
        $region38: #{fwd.28} parent=31 // pred_check_branch
          %270 = sbr.rel (%p268) target = $region40
        $region39: #{fwd.28} parent=31 // pred_region
          %271 = vst [vmem:[#allocation2] sm:$0xff] 0.0
        $region40: #{fwd.28} parent=31 // pred_fallthru
          _
        %v272 = vld [vmem:[#allocation2] sm:$0xff]
        %v273 = vld [vmem:[%s254] sm:$0xf]
        %v274 = vld [vmem:[%s211] sm:$0xf]
        %v275 = vld [vmem:[%s211 + $0x4] sm:$0xf]
        %v276 = vld [vmem:[%s211 + $0x8] sm:$0xf]
        %v277 = vld [vmem:[%s211 + $0xc] sm:$0xf]
        %v278 = vld [vmem:[%s211 + $0x10] sm:$0xf]
        %v279 = vld [vmem:[%s211 + $0x14] sm:$0xf]
        %v280 = vld [vmem:[%s211 + $0x18] sm:$0xf]
        %v281 = vld [vmem:[%s211 + $0x1c] sm:$0xf]
        %v282 = vld [vmem:[%s211 + $0x20] sm:$0xf]
        %v283 = vld [vmem:[%s211 + $0x24] sm:$0xf]
        %v284 = vld [vmem:[%s211 + $0x28] sm:$0xf]
        %v285 = vld [vmem:[%s211 + $0x2c] sm:$0xf]
        %v286 = vld [vmem:[%s211 + $0x30] sm:$0xf]
        %v287 = vld [vmem:[%s211 + $0x34] sm:$0xf]
        %v288 = vld [vmem:[%s211 + $0x38] sm:$0xf]
        %v289 = vld [vmem:[%s211 + $0x3c] sm:$0xf]
        %v306 = vunpack.c.l.b16 %v274
        %v307 = vunpack.c.l.b16 %v275
        %v308 = vunpack.c.l.b16 %v276
        %v309 = vunpack.c.l.b16 %v277
        %v310 = vunpack.c.l.b16 %v278
        %v311 = vunpack.c.l.b16 %v279
        %v312 = vunpack.c.l.b16 %v280
        %v313 = vunpack.c.l.b16 %v281
        %v314 = vunpack.c.l.b16 %v282
        %v315 = vunpack.c.l.b16 %v283
        %v316 = vunpack.c.l.b16 %v284
        %v317 = vunpack.c.l.b16 %v285
        %v318 = vunpack.c.l.b16 %v286
        %v319 = vunpack.c.l.b16 %v287
        %v320 = vunpack.c.l.b16 %v288
        %v321 = vunpack.c.l.b16 %v289
        %v322 = vpack.c.b16 %v307, %v306
        %v323 = vpack.c.b16 %v309, %v308
        %v324 = vpack.c.b16 %v311, %v310
        %v325 = vpack.c.b16 %v313, %v312
        %v326 = vpack.c.b16 %v315, %v314
        %v327 = vpack.c.b16 %v317, %v316
        %v328 = vpack.c.b16 %v319, %v318
        %v329 = vpack.c.b16 %v321, %v320
        %338 = vmatpush.bf16.msra.mxu0 %v329
        %339 = vmatpush.bf16.msra.mxu0 %v328
        %340 = vmatpush.bf16.msra.mxu0 %v327
        %341 = vmatpush.bf16.msra.mxu0 %v326
        %342 = vmatpush.bf16.msra.mxu0 %v325
        %343 = vmatpush.bf16.msra.mxu0 %v324
        %344 = vmatpush.bf16.msra.mxu0 %v323
        %345 = vmatpush.bf16.msra.mxu0 %v322
        %346 = vmatmul.bf16.gmra.mxu0 %v273
        %v347 = vpop.f32.mrf.mxu0
        %v348 = vadd.f32 0.0, %v347
        %v349 = vpop.f32.mrf.mxu0
        %350 = vdwg.mxu0
        %v351 = vadd.f32 %v272, %v348
        %352 = vst [vmem:[#allocation2] sm:$0xff] %v351
        // Predicated region
        $region41: #{fwd.28} parent=31 // pred_check
          %p353 = pneg %p267
        $region42: #{fwd.28} parent=31 // pred_check_branch
          %355 = sbr.rel (%p353) target = $region44
        $region43: #{fwd.28} parent=31 // pred_region
          %v356 = vld [vmem:[#allocation2] sm:$0xff]
          %v357 = vld [vmem:[%s258] sm:$0x1]
          %v359 = vperm.slane %v357, 0
          %v361 = vadd.f32 %v356, %v359
          %v362 = vpack.c.bf16 %v361, %v361
          %363 = vst [vmem:[%s266] sm:$0xf] %v362
        $region44: #{fwd.28} parent=31 // pred_fallthru
          _
        %p364 = scmp.lt.s32.totalorder %s22, 0
        %s365 = scalar_select %p364, %s22, 0
        %p366 = scmp.lt.s32.totalorder %s23, 2
        %s367 = scalar_select %p366, %s23, 2
        %s368 = smul.addr %s365, 3
        %s369 = sadd.s32 %s367, %s368
        %s370 = smul.addr %s369, 4
        %s371 = scalar_lea.vmem %s3, %s370
        // Predicated region
        $region45: #{fwd.28} parent=31 // pred_check
          %p372 = pneg %p138
        $region46: #{fwd.28} parent=31 // pred_check_branch
          %374 = sbr.rel (%p372) target = $region48
        $region47: #{fwd.28} parent=31 // pred_region
          _
        $region48: #{fwd.28} parent=31 // pred_fallthru
          _
      $region32: #{fwd.28} parent=5 // pred_fallthru
        _
      %p375 = scmp.le.s32.totalorder 2, %s12
      // Predicated region
      $region49: #{fwd.28} parent=5 // pred_check
        %p376 = pneg %p375
      $region50: #{fwd.28} parent=5 // pred_check_branch
        %378 = sbr.rel (%p376) target = $region52
      $region51: #{fwd.28} parent=5 // pred_region
        %s379 = ssub.s32 %s12, 2
        // Predicated region
        $region53: #{fwd.28} parent=51 // pred_check
          %p380 = pneg %p144
        $region54: #{fwd.28} parent=51 // pred_check_branch
          %382 = sbr.rel (%p380) target = $region56
        $region55: #{fwd.28} parent=51 // pred_region
          %p383 = scmp.lt.s32.totalorder %s25, 0
          %s384 = scalar_select %p383, %s25, 0
          %p385 = scmp.lt.s32.totalorder %s26, 2
          %s386 = scalar_select %p385, %s26, 2
          %s387 = smul.addr %s384, 3
          %s388 = sadd.s32 %s386, %s387
          %s389 = smul.addr %s388, 4
          %s390 = scalar_lea.vmem %s3, %s389
        $region56: #{fwd.28} parent=51 // pred_fallthru
          _
      $region52: #{fwd.28} parent=5 // pred_fallthru
        _
    $region6: #{fwd.28} parent=1 // loop_footer
      %s16 = sadd.s32 1, %s12
    $region7: #{fwd.28} parent=1 // loop_footer_branch
      %11 = sbr.rel target = $region3
    $region8: #{fwd.28} parent=1 // loop_exit
      _
    %391 = vsyncpa [#allocation4], 1
    %s392 = scalar_lea.sflag [#allocation4], 1
    %393 = vsyncpa %s392, 1

// kernel: fwd.30
$region0: #{fwd.30}
  #allocation0 [shape = 'u32[]', space=smem, size = 0x4, offset = 0x4, fixed_abs, tag = 'smem constant byte address 0x4 - core index']
  #allocation1 [shape = 'u32[72,128]{1,0:T(1,128)}', space=vmem, size = 0x9000, scoped, tag = 'internal scratch']
  #allocation2 [shape = 'f32[8,128]{1,0:T(8,128)}', space=vmem, size = 0x1000, scoped, tag = 'scratch operand']
  %s0 = inlined_call_operand.vmem [shape: bf16[8,128], index: 0, kind: input, shape index: {}]
  %s1 = inlined_call_operand.hbm [shape: bf16[128,128], index: 1, kind: input, shape index: {}]
  %s2 = inlined_call_operand.vmem [shape: f32[1,128], index: 2, kind: input, shape index: {}]
  %s3 = inlined_call_operand.vmem [shape: bf16[8,128], index: 3, kind: output, shape index: {}]
  %s4 = sld [smem:[#allocation0]]
  $region34: #{fwd.30} parent=0
    _
  %s6 = ssub.s32 1, %s4
  %s7 = scalar_select 0, %s6, %s4
  $region1: #{fwd.30} parent=0
    #allocation3 [shape = 'u8[32768]{0}', space=vmem, size = 0x8000, scoped, tag = 'input window, operand 1, single buffered']
    #allocation4 [shape = 's32[1]{0}', space=sflag, size = 0x4, scoped, tag = 'scoped memory for fwd.30']
    %8 = vsyncpa [#allocation4], 0
    // Predicated region
    $region2: #{fwd.30} parent=1 // pred_check
      _
    $region3: #{fwd.30} parent=1 // pred_check_branch
      %10 = sbr.rel (0) target = $region5
    $region4: #{fwd.30} parent=1 // pred_region
      _
    $region5: #{fwd.30} parent=1 // pred_fallthru
      _
    // Predicated region
    $region6: #{fwd.30} parent=1 // pred_check
      _
    $region7: #{fwd.30} parent=1 // pred_check_branch
      %12 = sbr.rel (0) target = $region9
    $region8: #{fwd.30} parent=1 // pred_region
      %14 = vsyncadd [#allocation4], 0
      %s15 = sshll.u32 %s1, 4
      %s16 = int_to_ptr.hbm [resolvable:$true] %s15
      %s17 = sshll.u32 [#allocation3], 4
      %s18 = int_to_ptr.vmem [resolvable:$true] %s17
      %23 = dma.hbm_to_vmem [thread:$0]  %s16, 1024, %s18, [#allocation4], 64, 64, 4
    $region9: #{fwd.30} parent=1 // pred_fallthru
      _
    // Predicated region
    $region10: #{fwd.30} parent=1 // pred_check
      _
    $region11: #{fwd.30} parent=1 // pred_check_branch
      %25 = sbr.rel (0) target = $region13
    $region12: #{fwd.30} parent=1 // pred_region
      _
    $region13: #{fwd.30} parent=1 // pred_fallthru
      _
    // Predicated region
    $region14: #{fwd.30} parent=1 // pred_check
      _
    $region15: #{fwd.30} parent=1 // pred_check_branch
      %27 = sbr.rel (0) target = $region17
    $region16: #{fwd.30} parent=1 // pred_region
      %29 = dma.done [#allocation4], 1024
    $region17: #{fwd.30} parent=1 // pred_fallthru
      _
    %p30 = scmp.eq.s32.totalorder 0, 0
    // Predicated region
    $region18: #{fwd.30} parent=1 // pred_check
      %p31 = pneg %p30
    $region19: #{fwd.30} parent=1 // pred_check_branch
      %33 = sbr.rel (%p31) target = $region21
    $region20: #{fwd.30} parent=1 // pred_region
      %34 = vst [vmem:[#allocation2] sm:$0xff] 0.0
    $region21: #{fwd.30} parent=1 // pred_fallthru
      _
    %v35 = vld [vmem:[#allocation2] sm:$0xff]
    %v36 = vld [vmem:[%s0] sm:$0xf]
    %v37 = vld [vmem:[#allocation3] sm:$0xf]
    %v38 = vld [vmem:[#allocation3 + $0x4] sm:$0xf]
    %v39 = vld [vmem:[#allocation3 + $0x8] sm:$0xf]
    %v40 = vld [vmem:[#allocation3 + $0xc] sm:$0xf]
    %v41 = vld [vmem:[#allocation3 + $0x10] sm:$0xf]
    %v42 = vld [vmem:[#allocation3 + $0x14] sm:$0xf]
    %v43 = vld [vmem:[#allocation3 + $0x18] sm:$0xf]
    %v44 = vld [vmem:[#allocation3 + $0x1c] sm:$0xf]
    %v45 = vld [vmem:[#allocation3 + $0x20] sm:$0xf]
    %v46 = vld [vmem:[#allocation3 + $0x24] sm:$0xf]
    %v47 = vld [vmem:[#allocation3 + $0x28] sm:$0xf]
    %v48 = vld [vmem:[#allocation3 + $0x2c] sm:$0xf]
    %v49 = vld [vmem:[#allocation3 + $0x30] sm:$0xf]
    %v50 = vld [vmem:[#allocation3 + $0x34] sm:$0xf]
    %v51 = vld [vmem:[#allocation3 + $0x38] sm:$0xf]
    %v52 = vld [vmem:[#allocation3 + $0x3c] sm:$0xf]
    %v69 = vunpack.c.l.b16 %v37
    %v70 = vunpack.c.l.b16 %v38
    %v71 = vunpack.c.l.b16 %v39
    %v72 = vunpack.c.l.b16 %v40
    %v73 = vunpack.c.l.b16 %v41
    %v74 = vunpack.c.l.b16 %v42
    %v75 = vunpack.c.l.b16 %v43
    %v76 = vunpack.c.l.b16 %v44
    %v77 = vunpack.c.l.b16 %v45
    %v78 = vunpack.c.l.b16 %v46
    %v79 = vunpack.c.l.b16 %v47
    %v80 = vunpack.c.l.b16 %v48
    %v81 = vunpack.c.l.b16 %v49
    %v82 = vunpack.c.l.b16 %v50
    %v83 = vunpack.c.l.b16 %v51
    %v84 = vunpack.c.l.b16 %v52
    %v85 = vpack.c.b16 %v70, %v69
    %v86 = vpack.c.b16 %v72, %v71
    %v87 = vpack.c.b16 %v74, %v73
    %v88 = vpack.c.b16 %v76, %v75
    %v89 = vpack.c.b16 %v78, %v77
    %v90 = vpack.c.b16 %v80, %v79
    %v91 = vpack.c.b16 %v82, %v81
    %v92 = vpack.c.b16 %v84, %v83
    %101 = vmatpush.bf16.msra.mxu0 %v92
    %102 = vmatpush.bf16.msra.mxu0 %v91
    %103 = vmatpush.bf16.msra.mxu0 %v90
    %104 = vmatpush.bf16.msra.mxu0 %v89
    %105 = vmatpush.bf16.msra.mxu0 %v88
    %106 = vmatpush.bf16.msra.mxu0 %v87
    %107 = vmatpush.bf16.msra.mxu0 %v86
    %108 = vmatpush.bf16.msra.mxu0 %v85
    %109 = vmatmul.bf16.gmra.mxu0 %v36
    %v110 = vpop.f32.mrf.mxu0
    %v111 = vadd.f32 0.0, %v110
    %v112 = vpop.f32.mrf.mxu0
    %113 = vdwg.mxu0
    %v114 = vadd.f32 %v35, %v111
    %115 = vst [vmem:[#allocation2] sm:$0xff] %v114
    // Predicated region
    $region22: #{fwd.30} parent=1 // pred_check
      %p116 = pneg %p30
    $region23: #{fwd.30} parent=1 // pred_check_branch
      %118 = sbr.rel (%p116) target = $region25
    $region24: #{fwd.30} parent=1 // pred_region
      %v119 = vld [vmem:[#allocation2] sm:$0xff]
      %v120 = vld [vmem:[%s2] sm:$0x1]
      %v122 = vperm.slane %v120, 0
      %v124 = vadd.f32 %v119, %v122
      %v125 = vpack.c.bf16 %v124, %v124
      %126 = vst [vmem:[%s3] sm:$0xf] %v125
    $region25: #{fwd.30} parent=1 // pred_fallthru
      _
    // Predicated region
    $region26: #{fwd.30} parent=1 // pred_check
      _
    $region27: #{fwd.30} parent=1 // pred_check_branch
      %128 = sbr.rel (0) target = $region29
    $region28: #{fwd.30} parent=1 // pred_region
      _
    $region29: #{fwd.30} parent=1 // pred_fallthru
      _
    // Predicated region
    $region30: #{fwd.30} parent=1 // pred_check
      _
    $region31: #{fwd.30} parent=1 // pred_check_branch
      %130 = sbr.rel (0) target = $region33
    $region32: #{fwd.30} parent=1 // pred_region
      _
    $region33: #{fwd.30} parent=1 // pred_fallthru
      _
    %131 = vsyncpa [#allocation4], 1

// kernel: fwd.29
$region0: #{fwd.29}
  #allocation0 [shape = 'u32[]', space=smem, size = 0x4, offset = 0x4, fixed_abs, tag = 'smem constant byte address 0x4 - core index']
  #allocation1 [shape = 'u32[72,128]{1,0:T(1,128)}', space=vmem, size = 0x9000, scoped, tag = 'internal scratch']
  #allocation2 [shape = 'bf16[8,128]{1,0:T(8,128)(2,1)}', space=vmem, size = 0x800, scoped, tag = 'scratch operand']
  %s0 = inlined_call_operand.vmem [shape: bf16[8,384], index: 0, kind: input, shape index: {}, may-alias: {0,1}]
  %s1 = inlined_call_operand.vmem [shape: bf16[8,384], index: 1, kind: input, shape index: {}, may-alias: {0,1}]
  %s2 = inlined_call_operand.hbm [shape: bf16[128,128], index: 2, kind: input, shape index: {}]
  %s3 = inlined_call_operand.vmem [shape: f32[1,128], index: 3, kind: input, shape index: {}]
  %s4 = inlined_call_operand.vmem [shape: bf16[8,128], index: 4, kind: input, shape index: {}]
  %s5 = inlined_call_operand.vmem [shape: f32[1,128], index: 5, kind: input, shape index: {}]
  %s6 = inlined_call_operand.vmem [shape: f32[1,128], index: 6, kind: input, shape index: {}]
  %s7 = inlined_call_operand.vmem [shape: bf16[8,128], index: 7, kind: output, shape index: {}]
  %s8 = sld [smem:[#allocation0]]
  $region42: #{fwd.29} parent=0
    _
  %s10 = ssub.s32 1, %s8
  %s11 = scalar_select 0, %s10, %s8
  $region1: #{fwd.29} parent=0
    #allocation3 [shape = 'u8[32768]{0}', space=vmem, size = 0x8000, scoped, tag = 'input window, operand 2, single buffered']
    #allocation4 [shape = 's32[1]{0}', space=sflag, size = 0x4, scoped, tag = 'scoped memory for fwd.29']
    %12 = vsyncpa [#allocation4], 0
    // Predicated region
    $region2: #{fwd.29} parent=1 // pred_check
      _
    $region3: #{fwd.29} parent=1 // pred_check_branch
      %14 = sbr.rel (0) target = $region5
    $region4: #{fwd.29} parent=1 // pred_region
      _
    $region5: #{fwd.29} parent=1 // pred_fallthru
      _
    // Predicated region
    $region6: #{fwd.29} parent=1 // pred_check
      _
    $region7: #{fwd.29} parent=1 // pred_check_branch
      %16 = sbr.rel (0) target = $region9
    $region8: #{fwd.29} parent=1 // pred_region
      _
    $region9: #{fwd.29} parent=1 // pred_fallthru
      _
    // Predicated region
    $region10: #{fwd.29} parent=1 // pred_check
      _
    $region11: #{fwd.29} parent=1 // pred_check_branch
      %18 = sbr.rel (0) target = $region13
    $region12: #{fwd.29} parent=1 // pred_region
      %20 = vsyncadd [#allocation4], 0
      %s21 = sshll.u32 %s2, 4
      %s22 = int_to_ptr.hbm [resolvable:$true] %s21
      %s23 = sshll.u32 [#allocation3], 4
      %s24 = int_to_ptr.vmem [resolvable:$true] %s23
      %29 = dma.hbm_to_vmem [thread:$0]  %s22, 1024, %s24, [#allocation4], 64, 64, 4
    $region13: #{fwd.29} parent=1 // pred_fallthru
      _
    // Predicated region
    $region14: #{fwd.29} parent=1 // pred_check
      _
    $region15: #{fwd.29} parent=1 // pred_check_branch
      %31 = sbr.rel (0) target = $region17
    $region16: #{fwd.29} parent=1 // pred_region
      _
    $region17: #{fwd.29} parent=1 // pred_fallthru
      _
    // Predicated region
    $region18: #{fwd.29} parent=1 // pred_check
      _
    $region19: #{fwd.29} parent=1 // pred_check_branch
      %33 = sbr.rel (0) target = $region21
    $region20: #{fwd.29} parent=1 // pred_region
      _
    $region21: #{fwd.29} parent=1 // pred_fallthru
      _
    // Predicated region
    $region22: #{fwd.29} parent=1 // pred_check
      _
    $region23: #{fwd.29} parent=1 // pred_check_branch
      %35 = sbr.rel (0) target = $region25
    $region24: #{fwd.29} parent=1 // pred_region
      _
    $region25: #{fwd.29} parent=1 // pred_fallthru
      _
    // Predicated region
    $region26: #{fwd.29} parent=1 // pred_check
      _
    $region27: #{fwd.29} parent=1 // pred_check_branch
      %37 = sbr.rel (0) target = $region29
    $region28: #{fwd.29} parent=1 // pred_region
      _
    $region29: #{fwd.29} parent=1 // pred_fallthru
      _
    // Predicated region
    $region30: #{fwd.29} parent=1 // pred_check
      _
    $region31: #{fwd.29} parent=1 // pred_check_branch
      %39 = sbr.rel (0) target = $region33
    $region32: #{fwd.29} parent=1 // pred_region
      %41 = dma.done [#allocation4], 1024
    $region33: #{fwd.29} parent=1 // pred_fallthru
      _
    %s43 = smul.u32 0, 8
    %v44 = vlaneseq
    %v45 = vshrl.u32 %v44, 7
    %v46 = vstv %s43
    %v47 = vadd.s32 %v46, %v45
    %v48 = vlaneseq
    %v49 = vand.u32 %v48, 127
    %vm50 = vcmp.le.s32.totalorder %v49, %v47
    %v51 = vld [vmem:[%s0] sm:$0xf]
    %v52 = vunpack.c.l.bf16 %v51
    %v53 = vmul.f32 %v52, 0.17677669
    %v54 = vpack.c.bf16 %v53, %v53
    %v55 = vld [vmem:[%s1 + $0x4] sm:$0xf]
    %v56 = vld [vmem:[%s1 + $0x8] sm:$0xf]
    %vm57 = vcmask 261120
    %v59 = vsel %vm57, %v54, 0
    %v62 = vsel %vm57, %v55, 0
    %64 = vmatpush.bf16.xpose.msra.mxu0 0
    %65 = vmatpush.bf16.xpose.msra.mxu0 0
    %66 = vmatpush.bf16.xpose.msra.mxu0 0
    %67 = vmatpush.bf16.xpose.msra.mxu0 0
    %68 = vmatpush.bf16.xpose.msra.mxu0 0
    %69 = vmatpush.bf16.xpose.msra.mxu0 0
    %70 = vmatpush.bf16.xpose.msra.mxu0 0
    %71 = vmatpush.bf16.xpose.msra.mxu0 %v62
    %72 = vmatmul.bf16.gmra.mxu0 %v59
    %v73 = vpop.f32.mrf.mxu0
    %v74 = vadd.f32 0.0, %v73
    %v75 = vpop.f32.mrf.mxu0
    %76 = vdwg.mxu0
    %v77 = vsel %vm50, %v74, -1e+30
    %vm78 = vcmask 64512
    %v79 = vsel %vm78, %v77, -inf
    %80 = vmax.xlane.f32.xlu0 %v79
    %v81 = vpop.xlane.xlu0 %80
    %v82 = vsub.f32 %v77, %v81
    %v83 = vmul.f32 %v82, 1.442695
    %v84 = vpow.pop %v83
    %v85 = vsel %vm78, %v84, 0.0
    %86 = vadd.xlane.f32.xlu0 %v85
    %v87 = vpop.xlane.xlu0 %86
    %v88 = vrcp.pop %v87
    %v89 = vmul.f32 %v84, %v88
    %v90 = vpack.c.bf16 %v89, %v89
    %v92 = vsel %vm78, %v90, 0
    %vm94 = vcmask 1043456
    %v96 = vsel %vm94, %v56, 0
    %98 = vmatpush.bf16.msra.mxu0 0
    %99 = vmatpush.bf16.msra.mxu0 0
    %100 = vmatpush.bf16.msra.mxu0 0
    %101 = vmatpush.bf16.msra.mxu0 0
    %102 = vmatpush.bf16.msra.mxu0 0
    %103 = vmatpush.bf16.msra.mxu0 0
    %104 = vmatpush.bf16.msra.mxu0 0
    %105 = vmatpush.bf16.msra.mxu0 %v96
    %106 = vmatmul.bf16.gmra.mxu0 %v92
    %v107 = vpop.f32.mrf.mxu0
    %v108 = vadd.f32 0.0, %v107
    %v109 = vpop.f32.mrf.mxu0
    %110 = vdwg.mxu0
    %v111 = vpack.c.bf16 %v108, %v108
    %vm112 = vcmask 257024
    %113 = vst.msk [vmem:[#allocation2] sm:$0xf] %vm112, %v111
    %v114 = vld [vmem:[%s0] sm:$0xf]
    %v115 = vunpack.c.l.bf16 %v114
    %v116 = vmul.f32 %v115, 0.17677669
    %v117 = vpack.c.bf16 %v116, %v116
    %v118 = vld [vmem:[%s1 + $0x4] sm:$0xf]
    %v119 = vld [vmem:[%s1 + $0x8] sm:$0xf]
    %121 = vrot.lane.b32.xlu0 %v117, 96
    %v122 = vpop.permute.xlu0 %121
    %v124 = vunpack.c.l.b16 %v118
    %v125 = vpack.c.b16 %v124, %v124
    %126 = vrot.lane.b32.xlu0 %v125, 96
    %v127 = vpop.permute.xlu0 %126
    %v129 = vsel %vm57, %v122, 0
    %v132 = vsel %vm57, %v127, 0
    %134 = vmatpush.bf16.xpose.msra.mxu0 0
    %135 = vmatpush.bf16.xpose.msra.mxu0 0
    %136 = vmatpush.bf16.xpose.msra.mxu0 0
    %137 = vmatpush.bf16.xpose.msra.mxu0 0
    %138 = vmatpush.bf16.xpose.msra.mxu0 0
    %139 = vmatpush.bf16.xpose.msra.mxu0 0
    %140 = vmatpush.bf16.xpose.msra.mxu0 0
    %141 = vmatpush.bf16.xpose.msra.mxu0 %v132
    %142 = vmatmul.bf16.gmra.mxu0 %v129
    %v143 = vpop.f32.mrf.mxu0
    %v144 = vadd.f32 0.0, %v143
    %v145 = vpop.f32.mrf.mxu0
    %146 = vdwg.mxu0
    %v147 = vsel %vm50, %v144, -1e+30
    %v148 = vsel %vm78, %v147, -inf
    %149 = vmax.xlane.f32.xlu0 %v148
    %v150 = vpop.xlane.xlu0 %149
    %v151 = vsub.f32 %v147, %v150
    %v152 = vmul.f32 %v151, 1.442695
    %v153 = vpow.pop %v152
    %v154 = vsel %vm78, %v153, 0.0
    %155 = vadd.xlane.f32.xlu0 %v154
    %v156 = vpop.xlane.xlu0 %155
    %v157 = vrcp.pop %v156
    %v158 = vmul.f32 %v153, %v157
    %v159 = vpack.c.bf16 %v158, %v158
    %v161 = vunpack.c.l.b16 %v119
    %v162 = vpack.c.b16 %v161, %v161
    %163 = vrot.lane.b32.xlu0 %v162, 96
    %v164 = vpop.permute.xlu0 %163
    %v166 = vsel %vm78, %v159, 0
    %v169 = vsel %vm94, %v164, 0
    %171 = vmatpush.bf16.msra.mxu0 0
    %172 = vmatpush.bf16.msra.mxu0 0
    %173 = vmatpush.bf16.msra.mxu0 0
    %174 = vmatpush.bf16.msra.mxu0 0
    %175 = vmatpush.bf16.msra.mxu0 0
    %176 = vmatpush.bf16.msra.mxu0 0
    %177 = vmatpush.bf16.msra.mxu0 0
    %178 = vmatpush.bf16.msra.mxu0 %v169
    %179 = vmatmul.bf16.gmra.mxu0 %v166
    %v180 = vpop.f32.mrf.mxu0
    %v181 = vadd.f32 0.0, %v180
    %v182 = vpop.f32.mrf.mxu0
    %183 = vdwg.mxu0
    %v184 = vpack.c.bf16 %v181, %v181
    %186 = vrot.lane.b32.xlu0 %v184, 32
    %v187 = vpop.permute.xlu0 %186
    %vm189 = vcmask 519424
    %190 = vst.msk [vmem:[#allocation2] sm:$0xf] %vm189, %v187
    %v191 = vld [vmem:[%s0] sm:$0xf]
    %v192 = vunpack.c.l.bf16 %v191
    %v193 = vmul.f32 %v192, 0.17677669
    %v194 = vpack.c.bf16 %v193, %v193
    %v195 = vld [vmem:[%s1 + $0x4] sm:$0xf]
    %v196 = vld [vmem:[%s1 + $0x8] sm:$0xf]
    %198 = vrot.lane.b32.xlu0 %v194, 64
    %v199 = vpop.permute.xlu0 %198
    %v201 = vunpack.c.l.b16 %v195
    %v202 = vpack.c.b16 %v201, %v201
    %203 = vrot.lane.b32.xlu0 %v202, 64
    %v204 = vpop.permute.xlu0 %203
    %v206 = vsel %vm57, %v199, 0
    %v209 = vsel %vm57, %v204, 0
    %211 = vmatpush.bf16.xpose.msra.mxu0 0
    %212 = vmatpush.bf16.xpose.msra.mxu0 0
    %213 = vmatpush.bf16.xpose.msra.mxu0 0
    %214 = vmatpush.bf16.xpose.msra.mxu0 0
    %215 = vmatpush.bf16.xpose.msra.mxu0 0
    %216 = vmatpush.bf16.xpose.msra.mxu0 0
    %217 = vmatpush.bf16.xpose.msra.mxu0 0
    %218 = vmatpush.bf16.xpose.msra.mxu0 %v209
    %219 = vmatmul.bf16.gmra.mxu0 %v206
    %v220 = vpop.f32.mrf.mxu0
    %v221 = vadd.f32 0.0, %v220
    %v222 = vpop.f32.mrf.mxu0
    %223 = vdwg.mxu0
    %v224 = vsel %vm50, %v221, -1e+30
    %v225 = vsel %vm78, %v224, -inf
    %226 = vmax.xlane.f32.xlu0 %v225
    %v227 = vpop.xlane.xlu0 %226
    %v228 = vsub.f32 %v224, %v227
    %v229 = vmul.f32 %v228, 1.442695
    %v230 = vpow.pop %v229
    %v231 = vsel %vm78, %v230, 0.0
    %232 = vadd.xlane.f32.xlu0 %v231
    %v233 = vpop.xlane.xlu0 %232
    %v234 = vrcp.pop %v233
    %v235 = vmul.f32 %v230, %v234
    %v236 = vpack.c.bf16 %v235, %v235
    %v238 = vunpack.c.l.b16 %v196
    %v239 = vpack.c.b16 %v238, %v238
    %240 = vrot.lane.b32.xlu0 %v239, 64
    %v241 = vpop.permute.xlu0 %240
    %v243 = vsel %vm78, %v236, 0
    %v246 = vsel %vm94, %v241, 0
    %248 = vmatpush.bf16.msra.mxu0 0
    %249 = vmatpush.bf16.msra.mxu0 0
    %250 = vmatpush.bf16.msra.mxu0 0
    %251 = vmatpush.bf16.msra.mxu0 0
    %252 = vmatpush.bf16.msra.mxu0 0
    %253 = vmatpush.bf16.msra.mxu0 0
    %254 = vmatpush.bf16.msra.mxu0 0
    %255 = vmatpush.bf16.msra.mxu0 %v246
    %256 = vmatmul.bf16.gmra.mxu0 %v243
    %v257 = vpop.f32.mrf.mxu0
    %v258 = vadd.f32 0.0, %v257
    %v259 = vpop.f32.mrf.mxu0
    %260 = vdwg.mxu0
    %v261 = vpack.c.bf16 %v258, %v258
    %263 = vrot.lane.b32.xlu0 %v261, 64
    %v264 = vpop.permute.xlu0 %263
    %vm266 = vcmask 781824
    %267 = vst.msk [vmem:[#allocation2] sm:$0xf] %vm266, %v264
    %v268 = vld [vmem:[%s0] sm:$0xf]
    %v269 = vunpack.c.l.bf16 %v268
    %v270 = vmul.f32 %v269, 0.17677669
    %v271 = vpack.c.bf16 %v270, %v270
    %v272 = vld [vmem:[%s1 + $0x4] sm:$0xf]
    %v273 = vld [vmem:[%s1 + $0x8] sm:$0xf]
    %275 = vrot.lane.b32.xlu0 %v271, 32
    %v276 = vpop.permute.xlu0 %275
    %v278 = vunpack.c.l.b16 %v272
    %v279 = vpack.c.b16 %v278, %v278
    %280 = vrot.lane.b32.xlu0 %v279, 32
    %v281 = vpop.permute.xlu0 %280
    %v283 = vsel %vm57, %v276, 0
    %v286 = vsel %vm57, %v281, 0
    %288 = vmatpush.bf16.xpose.msra.mxu0 0
    %289 = vmatpush.bf16.xpose.msra.mxu0 0
    %290 = vmatpush.bf16.xpose.msra.mxu0 0
    %291 = vmatpush.bf16.xpose.msra.mxu0 0
    %292 = vmatpush.bf16.xpose.msra.mxu0 0
    %293 = vmatpush.bf16.xpose.msra.mxu0 0
    %294 = vmatpush.bf16.xpose.msra.mxu0 0
    %295 = vmatpush.bf16.xpose.msra.mxu0 %v286
    %296 = vmatmul.bf16.gmra.mxu0 %v283
    %v297 = vpop.f32.mrf.mxu0
    %v298 = vadd.f32 0.0, %v297
    %v299 = vpop.f32.mrf.mxu0
    %300 = vdwg.mxu0
    %v301 = vsel %vm50, %v298, -1e+30
    %v302 = vsel %vm78, %v301, -inf
    %303 = vmax.xlane.f32.xlu0 %v302
    %v304 = vpop.xlane.xlu0 %303
    %v305 = vsub.f32 %v301, %v304
    %v306 = vmul.f32 %v305, 1.442695
    %v307 = vpow.pop %v306
    %v308 = vsel %vm78, %v307, 0.0
    %309 = vadd.xlane.f32.xlu0 %v308
    %v310 = vpop.xlane.xlu0 %309
    %v311 = vrcp.pop %v310
    %v312 = vmul.f32 %v307, %v311
    %v313 = vpack.c.bf16 %v312, %v312
    %v315 = vunpack.c.l.b16 %v273
    %v316 = vpack.c.b16 %v315, %v315
    %317 = vrot.lane.b32.xlu0 %v316, 32
    %v318 = vpop.permute.xlu0 %317
    %v320 = vsel %vm78, %v313, 0
    %v323 = vsel %vm94, %v318, 0
    %325 = vmatpush.bf16.msra.mxu0 0
    %326 = vmatpush.bf16.msra.mxu0 0
    %327 = vmatpush.bf16.msra.mxu0 0
    %328 = vmatpush.bf16.msra.mxu0 0
    %329 = vmatpush.bf16.msra.mxu0 0
    %330 = vmatpush.bf16.msra.mxu0 0
    %331 = vmatpush.bf16.msra.mxu0 0
    %332 = vmatpush.bf16.msra.mxu0 %v323
    %333 = vmatmul.bf16.gmra.mxu0 %v320
    %v334 = vpop.f32.mrf.mxu0
    %v335 = vadd.f32 0.0, %v334
    %v336 = vpop.f32.mrf.mxu0
    %337 = vdwg.mxu0
    %v338 = vpack.c.bf16 %v335, %v335
    %340 = vrot.lane.b32.xlu0 %v338, 96
    %v341 = vpop.permute.xlu0 %340
    %vm343 = vcmask 1044224
    %344 = vst.msk [vmem:[#allocation2] sm:$0xf] %vm343, %v341
    %v345 = vld [vmem:[#allocation2] sm:$0xf]
    %v346 = vld [vmem:[#allocation3] sm:$0xf]
    %v347 = vld [vmem:[#allocation3 + $0x4] sm:$0xf]
    %v348 = vld [vmem:[#allocation3 + $0x8] sm:$0xf]
    %v349 = vld [vmem:[#allocation3 + $0xc] sm:$0xf]
    %v350 = vld [vmem:[#allocation3 + $0x10] sm:$0xf]
    %v351 = vld [vmem:[#allocation3 + $0x14] sm:$0xf]
    %v352 = vld [vmem:[#allocation3 + $0x18] sm:$0xf]
    %v353 = vld [vmem:[#allocation3 + $0x1c] sm:$0xf]
    %v354 = vld [vmem:[#allocation3 + $0x20] sm:$0xf]
    %v355 = vld [vmem:[#allocation3 + $0x24] sm:$0xf]
    %v356 = vld [vmem:[#allocation3 + $0x28] sm:$0xf]
    %v357 = vld [vmem:[#allocation3 + $0x2c] sm:$0xf]
    %v358 = vld [vmem:[#allocation3 + $0x30] sm:$0xf]
    %v359 = vld [vmem:[#allocation3 + $0x34] sm:$0xf]
    %v360 = vld [vmem:[#allocation3 + $0x38] sm:$0xf]
    %v361 = vld [vmem:[#allocation3 + $0x3c] sm:$0xf]
    %v362 = vld [vmem:[%s3] sm:$0x1]
    %v364 = vperm.slane %v362, 0
    %v382 = vunpack.c.l.b16 %v346
    %v383 = vunpack.c.l.b16 %v347
    %v384 = vunpack.c.l.b16 %v348
    %v385 = vunpack.c.l.b16 %v349
    %v386 = vunpack.c.l.b16 %v350
    %v387 = vunpack.c.l.b16 %v351
    %v388 = vunpack.c.l.b16 %v352
    %v389 = vunpack.c.l.b16 %v353
    %v390 = vunpack.c.l.b16 %v354
    %v391 = vunpack.c.l.b16 %v355
    %v392 = vunpack.c.l.b16 %v356
    %v393 = vunpack.c.l.b16 %v357
    %v394 = vunpack.c.l.b16 %v358
    %v395 = vunpack.c.l.b16 %v359
    %v396 = vunpack.c.l.b16 %v360
    %v397 = vunpack.c.l.b16 %v361
    %v398 = vpack.c.b16 %v383, %v382
    %v399 = vpack.c.b16 %v385, %v384
    %v400 = vpack.c.b16 %v387, %v386
    %v401 = vpack.c.b16 %v389, %v388
    %v402 = vpack.c.b16 %v391, %v390
    %v403 = vpack.c.b16 %v393, %v392
    %v404 = vpack.c.b16 %v395, %v394
    %v405 = vpack.c.b16 %v397, %v396
    %414 = vmatpush.bf16.msra.mxu0 %v405
    %415 = vmatpush.bf16.msra.mxu0 %v404
    %416 = vmatpush.bf16.msra.mxu0 %v403
    %417 = vmatpush.bf16.msra.mxu0 %v402
    %418 = vmatpush.bf16.msra.mxu0 %v401
    %419 = vmatpush.bf16.msra.mxu0 %v400
    %420 = vmatpush.bf16.msra.mxu0 %v399
    %421 = vmatpush.bf16.msra.mxu0 %v398
    %422 = vmatmul.bf16.gmra.mxu0 %v345
    %v423 = vpop.f32.mrf.mxu0
    %v424 = vadd.f32 %v364, %v423
    %v425 = vpop.f32.mrf.mxu0
    %426 = vdwg.mxu0
    %v427 = vld [vmem:[%s4] sm:$0xf]
    %v428 = vunpack.c.l.bf16 %v427
    %v429 = vadd.f32 %v424, %v428
    %v430 = vld [vmem:[%s5] sm:$0x1]
    %v431 = vld [vmem:[%s6] sm:$0x1]
    %432 = vadd.xlane.f32.xlu0 %v429
    %v433 = vpop.xlane.xlu0 %432
    %v434 = vrcp.pop 128.0
    %v435 = vmul.f32 128.0, %v434
    %v436 = vsub.f32 1.0, %v435
    %v437 = vmul.f32 %v434, %v436
    %v438 = vadd.f32 %v434, %v437
    %vm439 = vweird.f32 %v434
    %v440 = vsel %vm439, %v434, %v438
    %v441 = vmul.f32 %v433, %v440
    %v442 = vsub.f32 %v429, %v441
    %v443 = vmul.f32 %v442, %v442
    %444 = vadd.xlane.f32.xlu0 %v443
    %v445 = vpop.xlane.xlu0 %444
    %v446 = vmul.f32 %v445, %v440
    %v447 = vadd.f32 %v446, 1e-05
    %v448 = vrsqrt.pop %v447
    %v449 = vmul.f32 %v448, %v447
    %v450 = vmul.f32 %v449, %v448
    %v451 = vmul.f32 0.5, %v450
    %v452 = vsub.f32 1.5, %v451
    %v453 = vmul.f32 %v448, %v452
    %vm454 = vweird.f32 %v447
    %vm455 = vweird.f32 %v448
    %vm456 = vmor %vm454, %vm455
    %v457 = vsel %vm456, %v448, %v453
    %v458 = vmul.f32 %v442, %v457
    %v460 = vperm.slane %v430, 0
    %v462 = vmul.f32 %v458, %v460
    %v464 = vperm.slane %v431, 0
    %v466 = vadd.f32 %v462, %v464
    %v467 = vpack.c.bf16 %v466, %v466
    %468 = vst [vmem:[%s7] sm:$0xf] %v467
    // Predicated region
    $region34: #{fwd.29} parent=1 // pred_check
      _
    $region35: #{fwd.29} parent=1 // pred_check_branch
      %470 = sbr.rel (0) target = $region37
    $region36: #{fwd.29} parent=1 // pred_region
      _
    $region37: #{fwd.29} parent=1 // pred_fallthru
      _
    // Predicated region
    $region38: #{fwd.29} parent=1 // pred_check
      _
    $region39: #{fwd.29} parent=1 // pred_check_branch
      %472 = sbr.rel (0) target = $region41
    $region40: #{fwd.29} parent=1 // pred_region
      _
    $region41: #{fwd.29} parent=1 // pred_fallthru
      _
    %473 = vsyncpa [#allocation4], 1

// kernel: fwd.32
$region0: #{fwd.32}
  #allocation0 [shape = 'u32[]', space=smem, size = 0x4, offset = 0x4, fixed_abs, tag = 'smem constant byte address 0x4 - core index']
  #allocation1 [shape = 'u32[72,128]{1,0:T(1,128)}', space=vmem, size = 0x9000, scoped, tag = 'internal scratch']
  #allocation2 [shape = 'bf16[8,128]{1,0:T(8,128)(2,1)}', space=vmem, size = 0x800, scoped, tag = 'scratch operand']
  %s0 = inlined_call_operand.vmem [shape: bf16[8,128], index: 0, kind: input, shape index: {}]
  %s1 = inlined_call_operand.vmem [shape: bf16[16,256], index: 1, kind: input, shape index: {}]
  %s2 = inlined_call_operand.hbm [shape: bf16[128,128], index: 2, kind: input, shape index: {}]
  %s3 = inlined_call_operand.vmem [shape: f32[1,128], index: 3, kind: input, shape index: {}]
  %s4 = inlined_call_operand.vmem [shape: bf16[8,128], index: 4, kind: input, shape index: {}]
  %s5 = inlined_call_operand.vmem [shape: f32[1,128], index: 5, kind: input, shape index: {}]
  %s6 = inlined_call_operand.vmem [shape: f32[1,128], index: 6, kind: input, shape index: {}]
  %s7 = inlined_call_operand.vmem [shape: bf16[8,128], index: 7, kind: output, shape index: {}]
  %s8 = sld [smem:[#allocation0]]
  $region42: #{fwd.32} parent=0
    _
  %s10 = ssub.s32 1, %s8
  %s11 = scalar_select 0, %s10, %s8
  $region1: #{fwd.32} parent=0
    #allocation3 [shape = 'u8[32768]{0}', space=vmem, size = 0x8000, scoped, tag = 'input window, operand 2, single buffered']
    #allocation4 [shape = 's32[1]{0}', space=sflag, size = 0x4, scoped, tag = 'scoped memory for fwd.32']
    %12 = vsyncpa [#allocation4], 0
    // Predicated region
    $region2: #{fwd.32} parent=1 // pred_check
      _
    $region3: #{fwd.32} parent=1 // pred_check_branch
      %14 = sbr.rel (0) target = $region5
    $region4: #{fwd.32} parent=1 // pred_region
      _
    $region5: #{fwd.32} parent=1 // pred_fallthru
      _
    // Predicated region
    $region6: #{fwd.32} parent=1 // pred_check
      _
    $region7: #{fwd.32} parent=1 // pred_check_branch
      %16 = sbr.rel (0) target = $region9
    $region8: #{fwd.32} parent=1 // pred_region
      _
    $region9: #{fwd.32} parent=1 // pred_fallthru
      _
    // Predicated region
    $region10: #{fwd.32} parent=1 // pred_check
      _
    $region11: #{fwd.32} parent=1 // pred_check_branch
      %18 = sbr.rel (0) target = $region13
    $region12: #{fwd.32} parent=1 // pred_region
      %20 = vsyncadd [#allocation4], 0
      %s21 = sshll.u32 %s2, 4
      %s22 = int_to_ptr.hbm [resolvable:$true] %s21
      %s23 = sshll.u32 [#allocation3], 4
      %s24 = int_to_ptr.vmem [resolvable:$true] %s23
      %29 = dma.hbm_to_vmem [thread:$0]  %s22, 1024, %s24, [#allocation4], 64, 64, 4
    $region13: #{fwd.32} parent=1 // pred_fallthru
      _
    // Predicated region
    $region14: #{fwd.32} parent=1 // pred_check
      _
    $region15: #{fwd.32} parent=1 // pred_check_branch
      %31 = sbr.rel (0) target = $region17
    $region16: #{fwd.32} parent=1 // pred_region
      _
    $region17: #{fwd.32} parent=1 // pred_fallthru
      _
    // Predicated region
    $region18: #{fwd.32} parent=1 // pred_check
      _
    $region19: #{fwd.32} parent=1 // pred_check_branch
      %33 = sbr.rel (0) target = $region21
    $region20: #{fwd.32} parent=1 // pred_region
      _
    $region21: #{fwd.32} parent=1 // pred_fallthru
      _
    // Predicated region
    $region22: #{fwd.32} parent=1 // pred_check
      _
    $region23: #{fwd.32} parent=1 // pred_check_branch
      %35 = sbr.rel (0) target = $region25
    $region24: #{fwd.32} parent=1 // pred_region
      _
    $region25: #{fwd.32} parent=1 // pred_fallthru
      _
    // Predicated region
    $region26: #{fwd.32} parent=1 // pred_check
      _
    $region27: #{fwd.32} parent=1 // pred_check_branch
      %37 = sbr.rel (0) target = $region29
    $region28: #{fwd.32} parent=1 // pred_region
      _
    $region29: #{fwd.32} parent=1 // pred_fallthru
      _
    // Predicated region
    $region30: #{fwd.32} parent=1 // pred_check
      _
    $region31: #{fwd.32} parent=1 // pred_check_branch
      %39 = sbr.rel (0) target = $region33
    $region32: #{fwd.32} parent=1 // pred_region
      %41 = dma.done [#allocation4], 1024
    $region33: #{fwd.32} parent=1 // pred_fallthru
      _
    %v43 = vld [vmem:[%s0] sm:$0xf]
    %v44 = vunpack.c.l.bf16 %v43
    %v45 = vmul.f32 %v44, 0.17677669
    %v46 = vpack.c.bf16 %v45, %v45
    %v47 = vld [vmem:[%s1] sm:$0xf]
    %v48 = vld [vmem:[%s1 + $0x8] sm:$0xf]
    %v49 = vld [vmem:[%s1 + $0x4] sm:$0xf]
    %v50 = vld [vmem:[%s1 + $0xc] sm:$0xf]
    %v53 = vunpack.c.l.b16 %v47
    %v54 = vunpack.c.l.b16 %v48
    %v55 = vpack.c.b16 %v54, %v53
    %vm56 = vcmask 261120
    %v58 = vsel %vm56, %v46, 0
    %v61 = vsel %vm56, %v55, 0
    %63 = vmatpush.bf16.xpose.msra.mxu0 0
    %64 = vmatpush.bf16.xpose.msra.mxu0 0
    %65 = vmatpush.bf16.xpose.msra.mxu0 0
    %66 = vmatpush.bf16.xpose.msra.mxu0 0
    %67 = vmatpush.bf16.xpose.msra.mxu0 0
    %68 = vmatpush.bf16.xpose.msra.mxu0 0
    %69 = vmatpush.bf16.xpose.msra.mxu0 0
    %70 = vmatpush.bf16.xpose.msra.mxu0 %v61
    %71 = vmatmul.bf16.gmra.mxu0 %v58
    %v72 = vpop.f32.mrf.mxu0
    %v73 = vadd.f32 0.0, %v72
    %v74 = vpop.f32.mrf.mxu0
    %75 = vdwg.mxu0
    %vm76 = vcmask 130048
    %v77 = vsel %vm76, %v73, -inf
    %78 = vmax.xlane.f32.xlu0 %v77
    %v79 = vpop.xlane.xlu0 %78
    %v80 = vsub.f32 %v73, %v79
    %v81 = vmul.f32 %v80, 1.442695
    %v82 = vpow.pop %v81
    %v83 = vsel %vm76, %v82, 0.0
    %84 = vadd.xlane.f32.xlu0 %v83
    %v85 = vpop.xlane.xlu0 %84
    %v86 = vrcp.pop %v85
    %v87 = vmul.f32 %v82, %v86
    %v88 = vpack.c.bf16 %v87, %v87
    %v91 = vunpack.c.l.b16 %v49
    %v92 = vunpack.c.l.b16 %v50
    %v93 = vpack.c.b16 %v92, %v91
    %v96 = vsel %vm76, %v88, 0
    %98 = vmatpush.bf16.msra.mxu0 0
    %99 = vmatpush.bf16.msra.mxu0 0
    %100 = vmatpush.bf16.msra.mxu0 0
    %101 = vmatpush.bf16.msra.mxu0 0
    %102 = vmatpush.bf16.msra.mxu0 0
    %103 = vmatpush.bf16.msra.mxu0 0
    %104 = vmatpush.bf16.msra.mxu0 0
    %105 = vmatpush.bf16.msra.mxu0 %v93
    %106 = vmatmul.bf16.gmra.mxu0 %v96
    %v107 = vpop.f32.mrf.mxu0
    %v108 = vadd.f32 0.0, %v107
    %v109 = vpop.f32.mrf.mxu0
    %110 = vdwg.mxu0
    %v111 = vpack.c.bf16 %v108, %v108
    %vm112 = vcmask 257024
    %113 = vst.msk [vmem:[#allocation2] sm:$0xf] %vm112, %v111
    %v114 = vld [vmem:[%s0] sm:$0xf]
    %v115 = vunpack.c.l.bf16 %v114
    %v116 = vmul.f32 %v115, 0.17677669
    %v117 = vpack.c.bf16 %v116, %v116
    %v118 = vld [vmem:[%s1] sm:$0xf]
    %v119 = vld [vmem:[%s1 + $0x8] sm:$0xf]
    %v120 = vld [vmem:[%s1 + $0x4] sm:$0xf]
    %v121 = vld [vmem:[%s1 + $0xc] sm:$0xf]
    %123 = vrot.lane.b32.xlu0 %v117, 96
    %v124 = vpop.permute.xlu0 %123
    %v127 = vunpack.c.l.b16 %v118
    %v128 = vunpack.c.l.b16 %v119
    %v129 = vpack.c.b16 %v128, %v127
    %130 = vrot.lane.b32.xlu0 %v129, 96
    %v131 = vpop.permute.xlu0 %130
    %v133 = vsel %vm56, %v124, 0
    %v136 = vsel %vm56, %v131, 0
    %138 = vmatpush.bf16.xpose.msra.mxu0 0
    %139 = vmatpush.bf16.xpose.msra.mxu0 0
    %140 = vmatpush.bf16.xpose.msra.mxu0 0
    %141 = vmatpush.bf16.xpose.msra.mxu0 0
    %142 = vmatpush.bf16.xpose.msra.mxu0 0
    %143 = vmatpush.bf16.xpose.msra.mxu0 0
    %144 = vmatpush.bf16.xpose.msra.mxu0 0
    %145 = vmatpush.bf16.xpose.msra.mxu0 %v136
    %146 = vmatmul.bf16.gmra.mxu0 %v133
    %v147 = vpop.f32.mrf.mxu0
    %v148 = vadd.f32 0.0, %v147
    %v149 = vpop.f32.mrf.mxu0
    %150 = vdwg.mxu0
    %v151 = vsel %vm76, %v148, -inf
    %152 = vmax.xlane.f32.xlu0 %v151
    %v153 = vpop.xlane.xlu0 %152
    %v154 = vsub.f32 %v148, %v153
    %v155 = vmul.f32 %v154, 1.442695
    %v156 = vpow.pop %v155
    %v157 = vsel %vm76, %v156, 0.0
    %158 = vadd.xlane.f32.xlu0 %v157
    %v159 = vpop.xlane.xlu0 %158
    %v160 = vrcp.pop %v159
    %v161 = vmul.f32 %v156, %v160
    %v162 = vpack.c.bf16 %v161, %v161
    %v165 = vunpack.c.l.b16 %v120
    %v166 = vunpack.c.l.b16 %v121
    %v167 = vpack.c.b16 %v166, %v165
    %168 = vrot.lane.b32.xlu0 %v167, 96
    %v169 = vpop.permute.xlu0 %168
    %v172 = vsel %vm76, %v162, 0
    %174 = vmatpush.bf16.msra.mxu0 0
    %175 = vmatpush.bf16.msra.mxu0 0
    %176 = vmatpush.bf16.msra.mxu0 0
    %177 = vmatpush.bf16.msra.mxu0 0
    %178 = vmatpush.bf16.msra.mxu0 0
    %179 = vmatpush.bf16.msra.mxu0 0
    %180 = vmatpush.bf16.msra.mxu0 0
    %181 = vmatpush.bf16.msra.mxu0 %v169
    %182 = vmatmul.bf16.gmra.mxu0 %v172
    %v183 = vpop.f32.mrf.mxu0
    %v184 = vadd.f32 0.0, %v183
    %v185 = vpop.f32.mrf.mxu0
    %186 = vdwg.mxu0
    %v187 = vpack.c.bf16 %v184, %v184
    %189 = vrot.lane.b32.xlu0 %v187, 32
    %v190 = vpop.permute.xlu0 %189
    %vm192 = vcmask 519424
    %193 = vst.msk [vmem:[#allocation2] sm:$0xf] %vm192, %v190
    %v194 = vld [vmem:[%s0] sm:$0xf]
    %v195 = vunpack.c.l.bf16 %v194
    %v196 = vmul.f32 %v195, 0.17677669
    %v197 = vpack.c.bf16 %v196, %v196
    %v198 = vld [vmem:[%s1] sm:$0xf]
    %v199 = vld [vmem:[%s1 + $0x8] sm:$0xf]
    %v200 = vld [vmem:[%s1 + $0x4] sm:$0xf]
    %v201 = vld [vmem:[%s1 + $0xc] sm:$0xf]
    %203 = vrot.lane.b32.xlu0 %v197, 64
    %v204 = vpop.permute.xlu0 %203
    %v207 = vunpack.c.l.b16 %v198
    %v208 = vunpack.c.l.b16 %v199
    %v209 = vpack.c.b16 %v208, %v207
    %210 = vrot.lane.b32.xlu0 %v209, 64
    %v211 = vpop.permute.xlu0 %210
    %v213 = vsel %vm56, %v204, 0
    %v216 = vsel %vm56, %v211, 0
    %218 = vmatpush.bf16.xpose.msra.mxu0 0
    %219 = vmatpush.bf16.xpose.msra.mxu0 0
    %220 = vmatpush.bf16.xpose.msra.mxu0 0
    %221 = vmatpush.bf16.xpose.msra.mxu0 0
    %222 = vmatpush.bf16.xpose.msra.mxu0 0
    %223 = vmatpush.bf16.xpose.msra.mxu0 0
    %224 = vmatpush.bf16.xpose.msra.mxu0 0
    %225 = vmatpush.bf16.xpose.msra.mxu0 %v216
    %226 = vmatmul.bf16.gmra.mxu0 %v213
    %v227 = vpop.f32.mrf.mxu0
    %v228 = vadd.f32 0.0, %v227
    %v229 = vpop.f32.mrf.mxu0
    %230 = vdwg.mxu0
    %v231 = vsel %vm76, %v228, -inf
    %232 = vmax.xlane.f32.xlu0 %v231
    %v233 = vpop.xlane.xlu0 %232
    %v234 = vsub.f32 %v228, %v233
    %v235 = vmul.f32 %v234, 1.442695
    %v236 = vpow.pop %v235
    %v237 = vsel %vm76, %v236, 0.0
    %238 = vadd.xlane.f32.xlu0 %v237
    %v239 = vpop.xlane.xlu0 %238
    %v240 = vrcp.pop %v239
    %v241 = vmul.f32 %v236, %v240
    %v242 = vpack.c.bf16 %v241, %v241
    %v245 = vunpack.c.l.b16 %v200
    %v246 = vunpack.c.l.b16 %v201
    %v247 = vpack.c.b16 %v246, %v245
    %248 = vrot.lane.b32.xlu0 %v247, 64
    %v249 = vpop.permute.xlu0 %248
    %v252 = vsel %vm76, %v242, 0
    %254 = vmatpush.bf16.msra.mxu0 0
    %255 = vmatpush.bf16.msra.mxu0 0
    %256 = vmatpush.bf16.msra.mxu0 0
    %257 = vmatpush.bf16.msra.mxu0 0
    %258 = vmatpush.bf16.msra.mxu0 0
    %259 = vmatpush.bf16.msra.mxu0 0
    %260 = vmatpush.bf16.msra.mxu0 0
    %261 = vmatpush.bf16.msra.mxu0 %v249
    %262 = vmatmul.bf16.gmra.mxu0 %v252
    %v263 = vpop.f32.mrf.mxu0
    %v264 = vadd.f32 0.0, %v263
    %v265 = vpop.f32.mrf.mxu0
    %266 = vdwg.mxu0
    %v267 = vpack.c.bf16 %v264, %v264
    %269 = vrot.lane.b32.xlu0 %v267, 64
    %v270 = vpop.permute.xlu0 %269
    %vm272 = vcmask 781824
    %273 = vst.msk [vmem:[#allocation2] sm:$0xf] %vm272, %v270
    %v274 = vld [vmem:[%s0] sm:$0xf]
    %v275 = vunpack.c.l.bf16 %v274
    %v276 = vmul.f32 %v275, 0.17677669
    %v277 = vpack.c.bf16 %v276, %v276
    %v278 = vld [vmem:[%s1] sm:$0xf]
    %v279 = vld [vmem:[%s1 + $0x8] sm:$0xf]
    %v280 = vld [vmem:[%s1 + $0x4] sm:$0xf]
    %v281 = vld [vmem:[%s1 + $0xc] sm:$0xf]
    %283 = vrot.lane.b32.xlu0 %v277, 32
    %v284 = vpop.permute.xlu0 %283
    %v287 = vunpack.c.l.b16 %v278
    %v288 = vunpack.c.l.b16 %v279
    %v289 = vpack.c.b16 %v288, %v287
    %290 = vrot.lane.b32.xlu0 %v289, 32
    %v291 = vpop.permute.xlu0 %290
    %v293 = vsel %vm56, %v284, 0
    %v296 = vsel %vm56, %v291, 0
    %298 = vmatpush.bf16.xpose.msra.mxu0 0
    %299 = vmatpush.bf16.xpose.msra.mxu0 0
    %300 = vmatpush.bf16.xpose.msra.mxu0 0
    %301 = vmatpush.bf16.xpose.msra.mxu0 0
    %302 = vmatpush.bf16.xpose.msra.mxu0 0
    %303 = vmatpush.bf16.xpose.msra.mxu0 0
    %304 = vmatpush.bf16.xpose.msra.mxu0 0
    %305 = vmatpush.bf16.xpose.msra.mxu0 %v296
    %306 = vmatmul.bf16.gmra.mxu0 %v293
    %v307 = vpop.f32.mrf.mxu0
    %v308 = vadd.f32 0.0, %v307
    %v309 = vpop.f32.mrf.mxu0
    %310 = vdwg.mxu0
    %v311 = vsel %vm76, %v308, -inf
    %312 = vmax.xlane.f32.xlu0 %v311
    %v313 = vpop.xlane.xlu0 %312
    %v314 = vsub.f32 %v308, %v313
    %v315 = vmul.f32 %v314, 1.442695
    %v316 = vpow.pop %v315
    %v317 = vsel %vm76, %v316, 0.0
    %318 = vadd.xlane.f32.xlu0 %v317
    %v319 = vpop.xlane.xlu0 %318
    %v320 = vrcp.pop %v319
    %v321 = vmul.f32 %v316, %v320
    %v322 = vpack.c.bf16 %v321, %v321
    %v325 = vunpack.c.l.b16 %v280
    %v326 = vunpack.c.l.b16 %v281
    %v327 = vpack.c.b16 %v326, %v325
    %328 = vrot.lane.b32.xlu0 %v327, 32
    %v329 = vpop.permute.xlu0 %328
    %v332 = vsel %vm76, %v322, 0
    %334 = vmatpush.bf16.msra.mxu0 0
    %335 = vmatpush.bf16.msra.mxu0 0
    %336 = vmatpush.bf16.msra.mxu0 0
    %337 = vmatpush.bf16.msra.mxu0 0
    %338 = vmatpush.bf16.msra.mxu0 0
    %339 = vmatpush.bf16.msra.mxu0 0
    %340 = vmatpush.bf16.msra.mxu0 0
    %341 = vmatpush.bf16.msra.mxu0 %v329
    %342 = vmatmul.bf16.gmra.mxu0 %v332
    %v343 = vpop.f32.mrf.mxu0
    %v344 = vadd.f32 0.0, %v343
    %v345 = vpop.f32.mrf.mxu0
    %346 = vdwg.mxu0
    %v347 = vpack.c.bf16 %v344, %v344
    %349 = vrot.lane.b32.xlu0 %v347, 96
    %v350 = vpop.permute.xlu0 %349
    %vm352 = vcmask 1044224
    %353 = vst.msk [vmem:[#allocation2] sm:$0xf] %vm352, %v350
    %v354 = vld [vmem:[#allocation2] sm:$0xf]
    %v355 = vld [vmem:[#allocation3] sm:$0xf]
    %v356 = vld [vmem:[#allocation3 + $0x4] sm:$0xf]
    %v357 = vld [vmem:[#allocation3 + $0x8] sm:$0xf]
    %v358 = vld [vmem:[#allocation3 + $0xc] sm:$0xf]
    %v359 = vld [vmem:[#allocation3 + $0x10] sm:$0xf]
    %v360 = vld [vmem:[#allocation3 + $0x14] sm:$0xf]
    %v361 = vld [vmem:[#allocation3 + $0x18] sm:$0xf]
    %v362 = vld [vmem:[#allocation3 + $0x1c] sm:$0xf]
    %v363 = vld [vmem:[#allocation3 + $0x20] sm:$0xf]
    %v364 = vld [vmem:[#allocation3 + $0x24] sm:$0xf]
    %v365 = vld [vmem:[#allocation3 + $0x28] sm:$0xf]
    %v366 = vld [vmem:[#allocation3 + $0x2c] sm:$0xf]
    %v367 = vld [vmem:[#allocation3 + $0x30] sm:$0xf]
    %v368 = vld [vmem:[#allocation3 + $0x34] sm:$0xf]
    %v369 = vld [vmem:[#allocation3 + $0x38] sm:$0xf]
    %v370 = vld [vmem:[#allocation3 + $0x3c] sm:$0xf]
    %v371 = vld [vmem:[%s3] sm:$0x1]
    %v373 = vperm.slane %v371, 0
    %v391 = vunpack.c.l.b16 %v355
    %v392 = vunpack.c.l.b16 %v356
    %v393 = vunpack.c.l.b16 %v357
    %v394 = vunpack.c.l.b16 %v358
    %v395 = vunpack.c.l.b16 %v359
    %v396 = vunpack.c.l.b16 %v360
    %v397 = vunpack.c.l.b16 %v361
    %v398 = vunpack.c.l.b16 %v362
    %v399 = vunpack.c.l.b16 %v363
    %v400 = vunpack.c.l.b16 %v364
    %v401 = vunpack.c.l.b16 %v365
    %v402 = vunpack.c.l.b16 %v366
    %v403 = vunpack.c.l.b16 %v367
    %v404 = vunpack.c.l.b16 %v368
    %v405 = vunpack.c.l.b16 %v369
    %v406 = vunpack.c.l.b16 %v370
    %v407 = vpack.c.b16 %v392, %v391
    %v408 = vpack.c.b16 %v394, %v393
    %v409 = vpack.c.b16 %v396, %v395
    %v410 = vpack.c.b16 %v398, %v397
    %v411 = vpack.c.b16 %v400, %v399
    %v412 = vpack.c.b16 %v402, %v401
    %v413 = vpack.c.b16 %v404, %v403
    %v414 = vpack.c.b16 %v406, %v405
    %423 = vmatpush.bf16.msra.mxu0 %v414
    %424 = vmatpush.bf16.msra.mxu0 %v413
    %425 = vmatpush.bf16.msra.mxu0 %v412
    %426 = vmatpush.bf16.msra.mxu0 %v411
    %427 = vmatpush.bf16.msra.mxu0 %v410
    %428 = vmatpush.bf16.msra.mxu0 %v409
    %429 = vmatpush.bf16.msra.mxu0 %v408
    %430 = vmatpush.bf16.msra.mxu0 %v407
    %431 = vmatmul.bf16.gmra.mxu0 %v354
    %v432 = vpop.f32.mrf.mxu0
    %v433 = vadd.f32 %v373, %v432
    %v434 = vpop.f32.mrf.mxu0
    %435 = vdwg.mxu0
    %v436 = vld [vmem:[%s4] sm:$0xf]
    %v437 = vunpack.c.l.bf16 %v436
    %v438 = vadd.f32 %v433, %v437
    %v439 = vld [vmem:[%s5] sm:$0x1]
    %v440 = vld [vmem:[%s6] sm:$0x1]
    %441 = vadd.xlane.f32.xlu0 %v438
    %v442 = vpop.xlane.xlu0 %441
    %v443 = vrcp.pop 128.0
    %v444 = vmul.f32 128.0, %v443
    %v445 = vsub.f32 1.0, %v444
    %v446 = vmul.f32 %v443, %v445
    %v447 = vadd.f32 %v443, %v446
    %vm448 = vweird.f32 %v443
    %v449 = vsel %vm448, %v443, %v447
    %v450 = vmul.f32 %v442, %v449
    %v451 = vsub.f32 %v438, %v450
    %v452 = vmul.f32 %v451, %v451
    %453 = vadd.xlane.f32.xlu0 %v452
    %v454 = vpop.xlane.xlu0 %453
    %v455 = vmul.f32 %v454, %v449
    %v456 = vadd.f32 %v455, 1e-05
    %v457 = vrsqrt.pop %v456
    %v458 = vmul.f32 %v457, %v456
    %v459 = vmul.f32 %v458, %v457
    %v460 = vmul.f32 0.5, %v459
    %v461 = vsub.f32 1.5, %v460
    %v462 = vmul.f32 %v457, %v461
    %vm463 = vweird.f32 %v456
    %vm464 = vweird.f32 %v457
    %vm465 = vmor %vm463, %vm464
    %v466 = vsel %vm465, %v457, %v462
    %v467 = vmul.f32 %v451, %v466
    %v469 = vperm.slane %v439, 0
    %v471 = vmul.f32 %v467, %v469
    %v473 = vperm.slane %v440, 0
    %v475 = vadd.f32 %v471, %v473
    %v476 = vpack.c.bf16 %v475, %v475
    %477 = vst [vmem:[%s7] sm:$0xf] %v476
    // Predicated region
    $region34: #{fwd.32} parent=1 // pred_check
      _
    $region35: #{fwd.32} parent=1 // pred_check_branch
      %479 = sbr.rel (0) target = $region37
    $region36: #{fwd.32} parent=1 // pred_region
      _
    $region37: #{fwd.32} parent=1 // pred_fallthru
      _
    // Predicated region
    $region38: #{fwd.32} parent=1 // pred_check
      _
    $region39: #{fwd.32} parent=1 // pred_check_branch
      %481 = sbr.rel (0) target = $region41
    $region40: #{fwd.32} parent=1 // pred_region
      _
    $region41: #{fwd.32} parent=1 // pred_fallthru
      _
    %482 = vsyncpa [#allocation4], 1

// kernel: fwd.33
$region0: #{fwd.33}
  #allocation0 [shape = 'u32[]', space=smem, size = 0x4, offset = 0x4, fixed_abs, tag = 'smem constant byte address 0x4 - core index']
  #allocation1 [shape = 'u32[72,128]{1,0:T(1,128)}', space=vmem, size = 0x9000, scoped, tag = 'internal scratch']
  %s0 = inlined_call_operand.vmem [shape: bf16[8,128], index: 0, kind: input, shape index: {}, may-alias: {0,5}]
  %s1 = inlined_call_operand.vmem [shape: bf16[128,256], index: 1, kind: input, shape index: {}]
  %s2 = inlined_call_operand.vmem [shape: f32[1,256], index: 2, kind: input, shape index: {}]
  %s3 = inlined_call_operand.hbm [shape: bf16[256,128], index: 3, kind: input, shape index: {}]
  %s4 = inlined_call_operand.vmem [shape: f32[1,128], index: 4, kind: input, shape index: {}]
  %s5 = inlined_call_operand.vmem [shape: bf16[8,128], index: 5, kind: input, shape index: {}, may-alias: {0,5}]
  %s6 = inlined_call_operand.vmem [shape: f32[1,128], index: 6, kind: input, shape index: {}]
  %s7 = inlined_call_operand.vmem [shape: f32[1,128], index: 7, kind: input, shape index: {}]
  %s8 = inlined_call_operand.vmem [shape: bf16[8,128], index: 8, kind: output, shape index: {}]
  %s9 = sld [smem:[#allocation0]]
  $region46: #{fwd.33} parent=0
    _
  %s11 = ssub.s32 1, %s9
  %s12 = scalar_select 0, %s11, %s9
  $region1: #{fwd.33} parent=0
    #allocation2 [shape = 'u8[65536]{0}', space=vmem, size = 0x10000, scoped, tag = 'input window, operand 3, single buffered']
    #allocation3 [shape = 's32[1]{0}', space=sflag, size = 0x4, scoped, tag = 'scoped memory for fwd.33']
    %13 = vsyncpa [#allocation3], 0
    // Predicated region
    $region2: #{fwd.33} parent=1 // pred_check
      _
    $region3: #{fwd.33} parent=1 // pred_check_branch
      %15 = sbr.rel (0) target = $region5
    $region4: #{fwd.33} parent=1 // pred_region
      _
    $region5: #{fwd.33} parent=1 // pred_fallthru
      _
    // Predicated region
    $region6: #{fwd.33} parent=1 // pred_check
      _
    $region7: #{fwd.33} parent=1 // pred_check_branch
      %17 = sbr.rel (0) target = $region9
    $region8: #{fwd.33} parent=1 // pred_region
      _
    $region9: #{fwd.33} parent=1 // pred_fallthru
      _
    // Predicated region
    $region10: #{fwd.33} parent=1 // pred_check
      _
    $region11: #{fwd.33} parent=1 // pred_check_branch
      %19 = sbr.rel (0) target = $region13
    $region12: #{fwd.33} parent=1 // pred_region
      _
    $region13: #{fwd.33} parent=1 // pred_fallthru
      _
    // Predicated region
    $region14: #{fwd.33} parent=1 // pred_check
      _
    $region15: #{fwd.33} parent=1 // pred_check_branch
      %21 = sbr.rel (0) target = $region17
    $region16: #{fwd.33} parent=1 // pred_region
      %23 = vsyncadd [#allocation3], 0
      %s24 = sshll.u32 %s3, 4
      %s25 = int_to_ptr.hbm [resolvable:$true] %s24
      %s26 = sshll.u32 [#allocation2], 4
      %s27 = int_to_ptr.vmem [resolvable:$true] %s26
      %32 = dma.hbm_to_vmem [thread:$0]  %s25, 2048, %s27, [#allocation3], 64, 64, 4
    $region17: #{fwd.33} parent=1 // pred_fallthru
      _
    // Predicated region
    $region18: #{fwd.33} parent=1 // pred_check
      _
    $region19: #{fwd.33} parent=1 // pred_check_branch
      %34 = sbr.rel (0) target = $region21
    $region20: #{fwd.33} parent=1 // pred_region
      _
    $region21: #{fwd.33} parent=1 // pred_fallthru
      _
    // Predicated region
    $region22: #{fwd.33} parent=1 // pred_check
      _
    $region23: #{fwd.33} parent=1 // pred_check_branch
      %36 = sbr.rel (0) target = $region25
    $region24: #{fwd.33} parent=1 // pred_region
      _
    $region25: #{fwd.33} parent=1 // pred_fallthru
      _
    // Predicated region
    $region26: #{fwd.33} parent=1 // pred_check
      _
    $region27: #{fwd.33} parent=1 // pred_check_branch
      %38 = sbr.rel (0) target = $region29
    $region28: #{fwd.33} parent=1 // pred_region
      _
    $region29: #{fwd.33} parent=1 // pred_fallthru
      _
    // Predicated region
    $region30: #{fwd.33} parent=1 // pred_check
      _
    $region31: #{fwd.33} parent=1 // pred_check_branch
      %40 = sbr.rel (0) target = $region33
    $region32: #{fwd.33} parent=1 // pred_region
      _
    $region33: #{fwd.33} parent=1 // pred_fallthru
      _
    // Predicated region
    $region34: #{fwd.33} parent=1 // pred_check
      _
    $region35: #{fwd.33} parent=1 // pred_check_branch
      %42 = sbr.rel (0) target = $region37
    $region36: #{fwd.33} parent=1 // pred_region
      %44 = dma.done [#allocation3], 2048
    $region37: #{fwd.33} parent=1 // pred_fallthru
      _
    %v45 = vld [vmem:[%s0] sm:$0xf]
    %v46 = vld [vmem:[%s1] sm:$0xff]
    %v47 = vld [vmem:[%s1 + $0x8] sm:$0xff]
    %v48 = vld [vmem:[%s1 + $0x10] sm:$0xff]
    %v49 = vld [vmem:[%s1 + $0x18] sm:$0xff]
    %v50 = vld [vmem:[%s1 + $0x20] sm:$0xff]
    %v51 = vld [vmem:[%s1 + $0x28] sm:$0xff]
    %v52 = vld [vmem:[%s1 + $0x30] sm:$0xff]
    %v53 = vld [vmem:[%s1 + $0x38] sm:$0xff]
    %v54 = vld [vmem:[%s1 + $0x40] sm:$0xff]
    %v55 = vld [vmem:[%s1 + $0x48] sm:$0xff]
    %v56 = vld [vmem:[%s1 + $0x50] sm:$0xff]
    %v57 = vld [vmem:[%s1 + $0x58] sm:$0xff]
    %v58 = vld [vmem:[%s1 + $0x60] sm:$0xff]
    %v59 = vld [vmem:[%s1 + $0x68] sm:$0xff]
    %v60 = vld [vmem:[%s1 + $0x70] sm:$0xff]
    %v61 = vld [vmem:[%s1 + $0x78] sm:$0xff]
    %v62 = vld [vmem:[%s2] sm:$0x3]
    %v64 = vperm.slane %v62, 0
    %v65 = vperm.slane %v62, 1
    %v84 = vunpack.c.l.b16 %v46
    %v85 = vunpack.c.h.b16 %v46
    %v86 = vunpack.c.l.b16 %v47
    %v87 = vunpack.c.h.b16 %v47
    %v88 = vunpack.c.l.b16 %v48
    %v89 = vunpack.c.h.b16 %v48
    %v90 = vunpack.c.l.b16 %v49
    %v91 = vunpack.c.h.b16 %v49
    %v92 = vunpack.c.l.b16 %v50
    %v93 = vunpack.c.h.b16 %v50
    %v94 = vunpack.c.l.b16 %v51
    %v95 = vunpack.c.h.b16 %v51
    %v96 = vunpack.c.l.b16 %v52
    %v97 = vunpack.c.h.b16 %v52
    %v98 = vunpack.c.l.b16 %v53
    %v99 = vunpack.c.h.b16 %v53
    %v100 = vunpack.c.l.b16 %v54
    %v101 = vunpack.c.h.b16 %v54
    %v102 = vunpack.c.l.b16 %v55
    %v103 = vunpack.c.h.b16 %v55
    %v104 = vunpack.c.l.b16 %v56
    %v105 = vunpack.c.h.b16 %v56
    %v106 = vunpack.c.l.b16 %v57
    %v107 = vunpack.c.h.b16 %v57
    %v108 = vunpack.c.l.b16 %v58
    %v109 = vunpack.c.h.b16 %v58
    %v110 = vunpack.c.l.b16 %v59
    %v111 = vunpack.c.h.b16 %v59
    %v112 = vunpack.c.l.b16 %v60
    %v113 = vunpack.c.h.b16 %v60
    %v114 = vunpack.c.l.b16 %v61
    %v115 = vunpack.c.h.b16 %v61
    %v116 = vpack.c.b16 %v86, %v84
    %v117 = vpack.c.b16 %v87, %v85
    %v118 = vpack.c.b16 %v90, %v88
    %v119 = vpack.c.b16 %v91, %v89
    %v120 = vpack.c.b16 %v94, %v92
    %v121 = vpack.c.b16 %v95, %v93
    %v122 = vpack.c.b16 %v98, %v96
    %v123 = vpack.c.b16 %v99, %v97
    %v124 = vpack.c.b16 %v102, %v100
    %v125 = vpack.c.b16 %v103, %v101
    %v126 = vpack.c.b16 %v106, %v104
    %v127 = vpack.c.b16 %v107, %v105
    %v128 = vpack.c.b16 %v110, %v108
    %v129 = vpack.c.b16 %v111, %v109
    %v130 = vpack.c.b16 %v114, %v112
    %v131 = vpack.c.b16 %v115, %v113
    %148 = vmatpush.bf16.msra.mxu0 %v130
    %149 = vmatpush.bf16.msra.mxu0 %v128
    %150 = vmatpush.bf16.msra.mxu0 %v126
    %151 = vmatpush.bf16.msra.mxu0 %v124
    %152 = vmatpush.bf16.msra.mxu0 %v122
    %153 = vmatpush.bf16.msra.mxu0 %v120
    %154 = vmatpush.bf16.msra.mxu0 %v118
    %155 = vmatpush.bf16.msra.mxu0 %v116
    %156 = vmatmul.bf16.gmra.mxu0 %v45
    %v157 = vpop.f32.mrf.mxu0
    %v158 = vadd.f32 %v64, %v157
    %v159 = vpop.f32.mrf.mxu0
    %160 = vdwg.mxu0
    %161 = vmatpush.bf16.msra.mxu0 %v131
    %162 = vmatpush.bf16.msra.mxu0 %v129
    %163 = vmatpush.bf16.msra.mxu0 %v127
    %164 = vmatpush.bf16.msra.mxu0 %v125
    %165 = vmatpush.bf16.msra.mxu0 %v123
    %166 = vmatpush.bf16.msra.mxu0 %v121
    %167 = vmatpush.bf16.msra.mxu0 %v119
    %168 = vmatpush.bf16.msra.mxu0 %v117
    %169 = vmatmul.bf16.gmra.mxu0 %v45
    %v170 = vpop.f32.mrf.mxu0
    %v171 = vadd.f32 %v65, %v170
    %v172 = vpop.f32.mrf.mxu0
    %173 = vdwg.mxu0
    %v174 = vmul.f32 %v158, 0.5
    %v175 = vmul.f32 %v171, 0.5
    %v176 = vmul.f32 %v158, 0.70710677
    %v177 = vmul.f32 %v171, 0.70710677
    %v178 = vmul.f32 %v176, %v176
    %v179 = vmin.f32 16.0, %v178
    %v180 = vmul.f32 %v179, 2.1237322e-06
    %v181 = vadd.f32 %v180, 0.00028619796
    %v182 = vmul.f32 %v179, %v181
    %v183 = vadd.f32 %v182, 0.0036580483
    %v184 = vmul.f32 %v179, %v183
    %v185 = vadd.f32 %v184, 0.05243302
    %v186 = vmul.f32 %v179, %v185
    %v187 = vadd.f32 %v186, 0.18741608
    %v188 = vmul.f32 %v179, %v187
    %v189 = vadd.f32 %v188, 1.1283791
    %v190 = vmul.f32 %v176, %v189
    %v191 = vmul.f32 %v179, 3.8918573e-05
    %v192 = vadd.f32 %v191, 0.001143296
    %v193 = vmul.f32 %v179, %v192
    %v194 = vadd.f32 %v193, 0.014752088
    %v195 = vmul.f32 %v179, %v194
    %v196 = vadd.f32 %v195, 0.112945676
    %v197 = vmul.f32 %v179, %v196
    %v198 = vadd.f32 %v197, 0.4994258
    %v199 = vmul.f32 %v179, %v198
    %v200 = vadd.f32 %v199, 1.0
    %v201 = vrcp.pop %v200
    %v202 = vmul.f32 %v200, %v201
    %v203 = vsub.f32 1.0, %v202
    %v204 = vmul.f32 %v201, %v203
    %v205 = vadd.f32 %v201, %v204
    %vm206 = vweird.f32 %v200
    %vm207 = vweird.f32 %v201
    %vm208 = vmor %vm206, %vm207
    %v209 = vsel %vm208, %v201, %v205
    %v210 = vand.u32 2147483647, %v200
    %vm211 = vcmp.eq.f32.partialorder %v210, 8.507059e+37
    %v212 = vand.u32 %v200, 2147483648
    %v213 = vor.u32 1.1754944e-38, %v212
    %v214 = vsel %vm211, %v213, %v209
    %v215 = vmul.f32 %v190, %v214
    %v216 = vmin.f32 %v215, 1.0
    %v217 = vmax.f32 %v216, -1.0
    %v218 = vmul.f32 %v177, %v177
    %v219 = vmin.f32 16.0, %v218
    %v220 = vmul.f32 %v219, 2.1237322e-06
    %v221 = vadd.f32 %v220, 0.00028619796
    %v222 = vmul.f32 %v219, %v221
    %v223 = vadd.f32 %v222, 0.0036580483
    %v224 = vmul.f32 %v219, %v223
    %v225 = vadd.f32 %v224, 0.05243302
    %v226 = vmul.f32 %v219, %v225
    %v227 = vadd.f32 %v226, 0.18741608
    %v228 = vmul.f32 %v219, %v227
    %v229 = vadd.f32 %v228, 1.1283791
    %v230 = vmul.f32 %v177, %v229
    %v231 = vmul.f32 %v219, 3.8918573e-05
    %v232 = vadd.f32 %v231, 0.001143296
    %v233 = vmul.f32 %v219, %v232
    %v234 = vadd.f32 %v233, 0.014752088
    %v235 = vmul.f32 %v219, %v234
    %v236 = vadd.f32 %v235, 0.112945676
    %v237 = vmul.f32 %v219, %v236
    %v238 = vadd.f32 %v237, 0.4994258
    %v239 = vmul.f32 %v219, %v238
    %v240 = vadd.f32 %v239, 1.0
    %v241 = vrcp.pop %v240
    %v242 = vmul.f32 %v240, %v241
    %v243 = vsub.f32 1.0, %v242
    %v244 = vmul.f32 %v241, %v243
    %v245 = vadd.f32 %v241, %v244
    %vm246 = vweird.f32 %v240
    %vm247 = vweird.f32 %v241
    %vm248 = vmor %vm246, %vm247
    %v249 = vsel %vm248, %v241, %v245
    %v250 = vand.u32 2147483647, %v240
    %vm251 = vcmp.eq.f32.partialorder %v250, 8.507059e+37
    %v252 = vand.u32 %v240, 2147483648
    %v253 = vor.u32 1.1754944e-38, %v252
    %v254 = vsel %vm251, %v253, %v249
    %v255 = vmul.f32 %v230, %v254
    %v256 = vmin.f32 %v255, 1.0
    %v257 = vmax.f32 %v256, -1.0
    %v258 = vadd.f32 %v217, 1.0
    %v259 = vadd.f32 %v257, 1.0
    %v260 = vmul.f32 %v174, %v258
    %v261 = vmul.f32 %v175, %v259
    %v262 = vpack.c.bf16 %v260, %v260
    %v263 = vpack.c.bf16 %v261, %v261
    %v264 = vld [vmem:[#allocation2] sm:$0xf]
    %v265 = vld [vmem:[#allocation2 + $0x4] sm:$0xf]
    %v266 = vld [vmem:[#allocation2 + $0x8] sm:$0xf]
    %v267 = vld [vmem:[#allocation2 + $0xc] sm:$0xf]
    %v268 = vld [vmem:[#allocation2 + $0x10] sm:$0xf]
    %v269 = vld [vmem:[#allocation2 + $0x14] sm:$0xf]
    %v270 = vld [vmem:[#allocation2 + $0x18] sm:$0xf]
    %v271 = vld [vmem:[#allocation2 + $0x1c] sm:$0xf]
    %v272 = vld [vmem:[#allocation2 + $0x20] sm:$0xf]
    %v273 = vld [vmem:[#allocation2 + $0x24] sm:$0xf]
    %v274 = vld [vmem:[#allocation2 + $0x28] sm:$0xf]
    %v275 = vld [vmem:[#allocation2 + $0x2c] sm:$0xf]
    %v276 = vld [vmem:[#allocation2 + $0x30] sm:$0xf]
    %v277 = vld [vmem:[#allocation2 + $0x34] sm:$0xf]
    %v278 = vld [vmem:[#allocation2 + $0x38] sm:$0xf]
    %v279 = vld [vmem:[#allocation2 + $0x3c] sm:$0xf]
    %v280 = vld [vmem:[#allocation2 + $0x40] sm:$0xf]
    %v281 = vld [vmem:[#allocation2 + $0x44] sm:$0xf]
    %v282 = vld [vmem:[#allocation2 + $0x48] sm:$0xf]
    %v283 = vld [vmem:[#allocation2 + $0x4c] sm:$0xf]
    %v284 = vld [vmem:[#allocation2 + $0x50] sm:$0xf]
    %v285 = vld [vmem:[#allocation2 + $0x54] sm:$0xf]
    %v286 = vld [vmem:[#allocation2 + $0x58] sm:$0xf]
    %v287 = vld [vmem:[#allocation2 + $0x5c] sm:$0xf]
    %v288 = vld [vmem:[#allocation2 + $0x60] sm:$0xf]
    %v289 = vld [vmem:[#allocation2 + $0x64] sm:$0xf]
    %v290 = vld [vmem:[#allocation2 + $0x68] sm:$0xf]
    %v291 = vld [vmem:[#allocation2 + $0x6c] sm:$0xf]
    %v292 = vld [vmem:[#allocation2 + $0x70] sm:$0xf]
    %v293 = vld [vmem:[#allocation2 + $0x74] sm:$0xf]
    %v294 = vld [vmem:[#allocation2 + $0x78] sm:$0xf]
    %v295 = vld [vmem:[#allocation2 + $0x7c] sm:$0xf]
    %v296 = vld [vmem:[%s4] sm:$0x1]
    %v298 = vperm.slane %v296, 0
    %v332 = vunpack.c.l.b16 %v264
    %v333 = vunpack.c.l.b16 %v265
    %v334 = vunpack.c.l.b16 %v266
    %v335 = vunpack.c.l.b16 %v267
    %v336 = vunpack.c.l.b16 %v268
    %v337 = vunpack.c.l.b16 %v269
    %v338 = vunpack.c.l.b16 %v270
    %v339 = vunpack.c.l.b16 %v271
    %v340 = vunpack.c.l.b16 %v272
    %v341 = vunpack.c.l.b16 %v273
    %v342 = vunpack.c.l.b16 %v274
    %v343 = vunpack.c.l.b16 %v275
    %v344 = vunpack.c.l.b16 %v276
    %v345 = vunpack.c.l.b16 %v277
    %v346 = vunpack.c.l.b16 %v278
    %v347 = vunpack.c.l.b16 %v279
    %v348 = vunpack.c.l.b16 %v280
    %v349 = vunpack.c.l.b16 %v281
    %v350 = vunpack.c.l.b16 %v282
    %v351 = vunpack.c.l.b16 %v283
    %v352 = vunpack.c.l.b16 %v284
    %v353 = vunpack.c.l.b16 %v285
    %v354 = vunpack.c.l.b16 %v286
    %v355 = vunpack.c.l.b16 %v287
    %v356 = vunpack.c.l.b16 %v288
    %v357 = vunpack.c.l.b16 %v289
    %v358 = vunpack.c.l.b16 %v290
    %v359 = vunpack.c.l.b16 %v291
    %v360 = vunpack.c.l.b16 %v292
    %v361 = vunpack.c.l.b16 %v293
    %v362 = vunpack.c.l.b16 %v294
    %v363 = vunpack.c.l.b16 %v295
    %v364 = vpack.c.b16 %v333, %v332
    %v365 = vpack.c.b16 %v335, %v334
    %v366 = vpack.c.b16 %v337, %v336
    %v367 = vpack.c.b16 %v339, %v338
    %v368 = vpack.c.b16 %v341, %v340
    %v369 = vpack.c.b16 %v343, %v342
    %v370 = vpack.c.b16 %v345, %v344
    %v371 = vpack.c.b16 %v347, %v346
    %v372 = vpack.c.b16 %v349, %v348
    %v373 = vpack.c.b16 %v351, %v350
    %v374 = vpack.c.b16 %v353, %v352
    %v375 = vpack.c.b16 %v355, %v354
    %v376 = vpack.c.b16 %v357, %v356
    %v377 = vpack.c.b16 %v359, %v358
    %v378 = vpack.c.b16 %v361, %v360
    %v379 = vpack.c.b16 %v363, %v362
    %396 = vmatpush.bf16.msra.mxu0 %v371
    %397 = vmatpush.bf16.msra.mxu0 %v370
    %398 = vmatpush.bf16.msra.mxu0 %v369
    %399 = vmatpush.bf16.msra.mxu0 %v368
    %400 = vmatpush.bf16.msra.mxu0 %v367
    %401 = vmatpush.bf16.msra.mxu0 %v366
    %402 = vmatpush.bf16.msra.mxu0 %v365
    %403 = vmatpush.bf16.msra.mxu0 %v364
    %404 = vmatmul.bf16.gmra.mxu0 %v262
    %v405 = vpop.f32.mrf.mxu0
    %v406 = vadd.f32 %v298, %v405
    %v407 = vpop.f32.mrf.mxu0
    %408 = vdwg.mxu0
    %409 = vmatpush.bf16.msra.mxu0 %v379
    %410 = vmatpush.bf16.msra.mxu0 %v378
    %411 = vmatpush.bf16.msra.mxu0 %v377
    %412 = vmatpush.bf16.msra.mxu0 %v376
    %413 = vmatpush.bf16.msra.mxu0 %v375
    %414 = vmatpush.bf16.msra.mxu0 %v374
    %415 = vmatpush.bf16.msra.mxu0 %v373
    %416 = vmatpush.bf16.msra.mxu0 %v372
    %417 = vmatmul.bf16.gmra.mxu0 %v263
    %v418 = vpop.f32.mrf.mxu0
    %v419 = vadd.f32 %v406, %v418
    %v420 = vpop.f32.mrf.mxu0
    %421 = vdwg.mxu0
    %v422 = vld [vmem:[%s5] sm:$0xf]
    %v423 = vunpack.c.l.bf16 %v422
    %v424 = vadd.f32 %v419, %v423
    %v425 = vld [vmem:[%s6] sm:$0x1]
    %v426 = vld [vmem:[%s7] sm:$0x1]
    %427 = vadd.xlane.f32.xlu0 %v424
    %v428 = vpop.xlane.xlu0 %427
    %v429 = vrcp.pop 128.0
    %v430 = vmul.f32 128.0, %v429
    %v431 = vsub.f32 1.0, %v430
    %v432 = vmul.f32 %v429, %v431
    %v433 = vadd.f32 %v429, %v432
    %vm434 = vweird.f32 %v429
    %v435 = vsel %vm434, %v429, %v433
    %v436 = vmul.f32 %v428, %v435
    %v437 = vsub.f32 %v424, %v436
    %v438 = vmul.f32 %v437, %v437
    %439 = vadd.xlane.f32.xlu0 %v438
    %v440 = vpop.xlane.xlu0 %439
    %v441 = vmul.f32 %v440, %v435
    %v442 = vadd.f32 %v441, 1e-05
    %v443 = vrsqrt.pop %v442
    %v444 = vmul.f32 %v443, %v442
    %v445 = vmul.f32 %v444, %v443
    %v446 = vmul.f32 0.5, %v445
    %v447 = vsub.f32 1.5, %v446
    %v448 = vmul.f32 %v443, %v447
    %vm449 = vweird.f32 %v442
    %vm450 = vweird.f32 %v443
    %vm451 = vmor %vm449, %vm450
    %v452 = vsel %vm451, %v443, %v448
    %v453 = vmul.f32 %v437, %v452
    %v455 = vperm.slane %v425, 0
    %v457 = vmul.f32 %v453, %v455
    %v459 = vperm.slane %v426, 0
    %v461 = vadd.f32 %v457, %v459
    %v462 = vpack.c.bf16 %v461, %v461
    %463 = vst [vmem:[%s8] sm:$0xf] %v462
    // Predicated region
    $region38: #{fwd.33} parent=1 // pred_check
      _
    $region39: #{fwd.33} parent=1 // pred_check_branch
      %465 = sbr.rel (0) target = $region41
    $region40: #{fwd.33} parent=1 // pred_region
      _
    $region41: #{fwd.33} parent=1 // pred_fallthru
      _
    // Predicated region
    $region42: #{fwd.33} parent=1 // pred_check
      _
    $region43: #{fwd.33} parent=1 // pred_check_branch
      %467 = sbr.rel (0) target = $region45
    $region44: #{fwd.33} parent=1 // pred_region
      _
    $region45: #{fwd.33} parent=1 // pred_fallthru
      _
    %468 = vsyncpa [#allocation3], 1

// kernel: fwd.39
$region0: #{fwd.39}
  #allocation0 [shape = 'u32[]', space=smem, size = 0x4, offset = 0x4, fixed_abs, tag = 'smem constant byte address 0x4 - core index']
  #allocation1 [shape = 'u32[72,128]{1,0:T(1,128)}', space=vmem, size = 0x9000, scoped, tag = 'internal scratch']
  %s0 = inlined_call_operand.vmem [shape: bf16[8,128], index: 0, kind: input, shape index: {}, may-alias: {0,5}]
  %s1 = inlined_call_operand.hbm [shape: bf16[128,256], index: 1, kind: input, shape index: {}]
  %s2 = inlined_call_operand.vmem [shape: f32[1,256], index: 2, kind: input, shape index: {}]
  %s3 = inlined_call_operand.hbm [shape: bf16[256,128], index: 3, kind: input, shape index: {}]
  %s4 = inlined_call_operand.vmem [shape: f32[1,128], index: 4, kind: input, shape index: {}]
  %s5 = inlined_call_operand.vmem [shape: bf16[8,128], index: 5, kind: input, shape index: {}, may-alias: {0,5}]
  %s6 = inlined_call_operand.vmem [shape: f32[1,128], index: 6, kind: input, shape index: {}]
  %s7 = inlined_call_operand.vmem [shape: f32[1,128], index: 7, kind: input, shape index: {}]
  %s8 = inlined_call_operand.vmem [shape: bf16[8,128], index: 8, kind: output, shape index: {}]
  %s9 = sld [smem:[#allocation0]]
  $region50: #{fwd.39} parent=0
    _
  %s11 = ssub.s32 1, %s9
  %s12 = scalar_select 0, %s11, %s9
  $region1: #{fwd.39} parent=0
    #allocation2 [shape = 'u8[65536]{0}', space=vmem, size = 0x10000, scoped, tag = 'input window, operand 1, single buffered']
    #allocation3 [shape = 's32[1]{0}', space=sflag, size = 0x4, scoped, tag = 'scoped memory for fwd.39']
    #allocation4 [shape = 'u8[65536]{0}', space=vmem, size = 0x10000, scoped, tag = 'input window, operand 3, single buffered']
    #allocation5 [shape = 's32[1]{0}', space=sflag, size = 0x4, scoped, tag = 'scoped memory for fwd.39']
    %13 = vsyncpa [#allocation3], 0
    %14 = vsyncpa [#allocation5], 0
    // Predicated region
    $region2: #{fwd.39} parent=1 // pred_check
      _
    $region3: #{fwd.39} parent=1 // pred_check_branch
      %16 = sbr.rel (0) target = $region5
    $region4: #{fwd.39} parent=1 // pred_region
      _
    $region5: #{fwd.39} parent=1 // pred_fallthru
      _
    // Predicated region
    $region6: #{fwd.39} parent=1 // pred_check
      _
    $region7: #{fwd.39} parent=1 // pred_check_branch
      %18 = sbr.rel (0) target = $region9
    $region8: #{fwd.39} parent=1 // pred_region
      %20 = vsyncadd [#allocation3], 0
      %s21 = sshll.u32 %s1, 4
      %s22 = int_to_ptr.hbm [resolvable:$true] %s21
      %s23 = sshll.u32 [#allocation2], 4
      %s24 = int_to_ptr.vmem [resolvable:$true] %s23
      %29 = dma.hbm_to_vmem [thread:$0]  %s22, 2048, %s24, [#allocation3], 128, 128, 8
    $region9: #{fwd.39} parent=1 // pred_fallthru
      _
    // Predicated region
    $region10: #{fwd.39} parent=1 // pred_check
      _
    $region11: #{fwd.39} parent=1 // pred_check_branch
      %31 = sbr.rel (0) target = $region13
    $region12: #{fwd.39} parent=1 // pred_region
      _
    $region13: #{fwd.39} parent=1 // pred_fallthru
      _
    // Predicated region
    $region14: #{fwd.39} parent=1 // pred_check
      _
    $region15: #{fwd.39} parent=1 // pred_check_branch
      %33 = sbr.rel (0) target = $region17
    $region16: #{fwd.39} parent=1 // pred_region
      %35 = vsyncadd [#allocation5], 0
      %s36 = sshll.u32 %s3, 4
      %s37 = int_to_ptr.hbm [resolvable:$true] %s36
      %s38 = sshll.u32 [#allocation4], 4
      %s39 = int_to_ptr.vmem [resolvable:$true] %s38
      %44 = dma.hbm_to_vmem [thread:$0]  %s37, 2048, %s39, [#allocation5], 64, 64, 4
    $region17: #{fwd.39} parent=1 // pred_fallthru
      _
    // Predicated region
    $region18: #{fwd.39} parent=1 // pred_check
      _
    $region19: #{fwd.39} parent=1 // pred_check_branch
      %46 = sbr.rel (0) target = $region21
    $region20: #{fwd.39} parent=1 // pred_region
      _
    $region21: #{fwd.39} parent=1 // pred_fallthru
      _
    // Predicated region
    $region22: #{fwd.39} parent=1 // pred_check
      _
    $region23: #{fwd.39} parent=1 // pred_check_branch
      %48 = sbr.rel (0) target = $region25
    $region24: #{fwd.39} parent=1 // pred_region
      _
    $region25: #{fwd.39} parent=1 // pred_fallthru
      _
    // Predicated region
    $region26: #{fwd.39} parent=1 // pred_check
      _
    $region27: #{fwd.39} parent=1 // pred_check_branch
      %50 = sbr.rel (0) target = $region29
    $region28: #{fwd.39} parent=1 // pred_region
      _
    $region29: #{fwd.39} parent=1 // pred_fallthru
      _
    // Predicated region
    $region30: #{fwd.39} parent=1 // pred_check
      _
    $region31: #{fwd.39} parent=1 // pred_check_branch
      %52 = sbr.rel (0) target = $region33
    $region32: #{fwd.39} parent=1 // pred_region
      _
    $region33: #{fwd.39} parent=1 // pred_fallthru
      _
    // Predicated region
    $region34: #{fwd.39} parent=1 // pred_check
      _
    $region35: #{fwd.39} parent=1 // pred_check_branch
      %54 = sbr.rel (0) target = $region37
    $region36: #{fwd.39} parent=1 // pred_region
      %56 = dma.done [#allocation3], 2048
    $region37: #{fwd.39} parent=1 // pred_fallthru
      _
    // Predicated region
    $region38: #{fwd.39} parent=1 // pred_check
      _
    $region39: #{fwd.39} parent=1 // pred_check_branch
      %58 = sbr.rel (0) target = $region41
    $region40: #{fwd.39} parent=1 // pred_region
      %60 = dma.done [#allocation5], 2048
    $region41: #{fwd.39} parent=1 // pred_fallthru
      _
    %v61 = vld [vmem:[%s0] sm:$0xf]
    %v62 = vld [vmem:[#allocation2] sm:$0xff]
    %v63 = vld [vmem:[#allocation2 + $0x8] sm:$0xff]
    %v64 = vld [vmem:[#allocation2 + $0x10] sm:$0xff]
    %v65 = vld [vmem:[#allocation2 + $0x18] sm:$0xff]
    %v66 = vld [vmem:[#allocation2 + $0x20] sm:$0xff]
    %v67 = vld [vmem:[#allocation2 + $0x28] sm:$0xff]
    %v68 = vld [vmem:[#allocation2 + $0x30] sm:$0xff]
    %v69 = vld [vmem:[#allocation2 + $0x38] sm:$0xff]
    %v70 = vld [vmem:[#allocation2 + $0x40] sm:$0xff]
    %v71 = vld [vmem:[#allocation2 + $0x48] sm:$0xff]
    %v72 = vld [vmem:[#allocation2 + $0x50] sm:$0xff]
    %v73 = vld [vmem:[#allocation2 + $0x58] sm:$0xff]
    %v74 = vld [vmem:[#allocation2 + $0x60] sm:$0xff]
    %v75 = vld [vmem:[#allocation2 + $0x68] sm:$0xff]
    %v76 = vld [vmem:[#allocation2 + $0x70] sm:$0xff]
    %v77 = vld [vmem:[#allocation2 + $0x78] sm:$0xff]
    %v78 = vld [vmem:[%s2] sm:$0x3]
    %v80 = vperm.slane %v78, 0
    %v81 = vperm.slane %v78, 1
    %v100 = vunpack.c.l.b16 %v62
    %v101 = vunpack.c.h.b16 %v62
    %v102 = vunpack.c.l.b16 %v63
    %v103 = vunpack.c.h.b16 %v63
    %v104 = vunpack.c.l.b16 %v64
    %v105 = vunpack.c.h.b16 %v64
    %v106 = vunpack.c.l.b16 %v65
    %v107 = vunpack.c.h.b16 %v65
    %v108 = vunpack.c.l.b16 %v66
    %v109 = vunpack.c.h.b16 %v66
    %v110 = vunpack.c.l.b16 %v67
    %v111 = vunpack.c.h.b16 %v67
    %v112 = vunpack.c.l.b16 %v68
    %v113 = vunpack.c.h.b16 %v68
    %v114 = vunpack.c.l.b16 %v69
    %v115 = vunpack.c.h.b16 %v69
    %v116 = vunpack.c.l.b16 %v70
    %v117 = vunpack.c.h.b16 %v70
    %v118 = vunpack.c.l.b16 %v71
    %v119 = vunpack.c.h.b16 %v71
    %v120 = vunpack.c.l.b16 %v72
    %v121 = vunpack.c.h.b16 %v72
    %v122 = vunpack.c.l.b16 %v73
    %v123 = vunpack.c.h.b16 %v73
    %v124 = vunpack.c.l.b16 %v74
    %v125 = vunpack.c.h.b16 %v74
    %v126 = vunpack.c.l.b16 %v75
    %v127 = vunpack.c.h.b16 %v75
    %v128 = vunpack.c.l.b16 %v76
    %v129 = vunpack.c.h.b16 %v76
    %v130 = vunpack.c.l.b16 %v77
    %v131 = vunpack.c.h.b16 %v77
    %v132 = vpack.c.b16 %v102, %v100
    %v133 = vpack.c.b16 %v103, %v101
    %v134 = vpack.c.b16 %v106, %v104
    %v135 = vpack.c.b16 %v107, %v105
    %v136 = vpack.c.b16 %v110, %v108
    %v137 = vpack.c.b16 %v111, %v109
    %v138 = vpack.c.b16 %v114, %v112
    %v139 = vpack.c.b16 %v115, %v113
    %v140 = vpack.c.b16 %v118, %v116
    %v141 = vpack.c.b16 %v119, %v117
    %v142 = vpack.c.b16 %v122, %v120
    %v143 = vpack.c.b16 %v123, %v121
    %v144 = vpack.c.b16 %v126, %v124
    %v145 = vpack.c.b16 %v127, %v125
    %v146 = vpack.c.b16 %v130, %v128
    %v147 = vpack.c.b16 %v131, %v129
    %164 = vmatpush.bf16.msra.mxu0 %v146
    %165 = vmatpush.bf16.msra.mxu0 %v144
    %166 = vmatpush.bf16.msra.mxu0 %v142
    %167 = vmatpush.bf16.msra.mxu0 %v140
    %168 = vmatpush.bf16.msra.mxu0 %v138
    %169 = vmatpush.bf16.msra.mxu0 %v136
    %170 = vmatpush.bf16.msra.mxu0 %v134
    %171 = vmatpush.bf16.msra.mxu0 %v132
    %172 = vmatmul.bf16.gmra.mxu0 %v61
    %v173 = vpop.f32.mrf.mxu0
    %v174 = vadd.f32 %v80, %v173
    %v175 = vpop.f32.mrf.mxu0
    %176 = vdwg.mxu0
    %177 = vmatpush.bf16.msra.mxu0 %v147
    %178 = vmatpush.bf16.msra.mxu0 %v145
    %179 = vmatpush.bf16.msra.mxu0 %v143
    %180 = vmatpush.bf16.msra.mxu0 %v141
    %181 = vmatpush.bf16.msra.mxu0 %v139
    %182 = vmatpush.bf16.msra.mxu0 %v137
    %183 = vmatpush.bf16.msra.mxu0 %v135
    %184 = vmatpush.bf16.msra.mxu0 %v133
    %185 = vmatmul.bf16.gmra.mxu0 %v61
    %v186 = vpop.f32.mrf.mxu0
    %v187 = vadd.f32 %v81, %v186
    %v188 = vpop.f32.mrf.mxu0
    %189 = vdwg.mxu0
    %v190 = vmul.f32 %v174, 0.5
    %v191 = vmul.f32 %v187, 0.5
    %v192 = vmul.f32 %v174, 0.70710677
    %v193 = vmul.f32 %v187, 0.70710677
    %v194 = vmul.f32 %v192, %v192
    %v195 = vmin.f32 16.0, %v194
    %v196 = vmul.f32 %v195, 2.1237322e-06
    %v197 = vadd.f32 %v196, 0.00028619796
    %v198 = vmul.f32 %v195, %v197
    %v199 = vadd.f32 %v198, 0.0036580483
    %v200 = vmul.f32 %v195, %v199
    %v201 = vadd.f32 %v200, 0.05243302
    %v202 = vmul.f32 %v195, %v201
    %v203 = vadd.f32 %v202, 0.18741608
    %v204 = vmul.f32 %v195, %v203
    %v205 = vadd.f32 %v204, 1.1283791
    %v206 = vmul.f32 %v192, %v205
    %v207 = vmul.f32 %v195, 3.8918573e-05
    %v208 = vadd.f32 %v207, 0.001143296
    %v209 = vmul.f32 %v195, %v208
    %v210 = vadd.f32 %v209, 0.014752088
    %v211 = vmul.f32 %v195, %v210
    %v212 = vadd.f32 %v211, 0.112945676
    %v213 = vmul.f32 %v195, %v212
    %v214 = vadd.f32 %v213, 0.4994258
    %v215 = vmul.f32 %v195, %v214
    %v216 = vadd.f32 %v215, 1.0
    %v217 = vrcp.pop %v216
    %v218 = vmul.f32 %v216, %v217
    %v219 = vsub.f32 1.0, %v218
    %v220 = vmul.f32 %v217, %v219
    %v221 = vadd.f32 %v217, %v220
    %vm222 = vweird.f32 %v216
    %vm223 = vweird.f32 %v217
    %vm224 = vmor %vm222, %vm223
    %v225 = vsel %vm224, %v217, %v221
    %v226 = vand.u32 2147483647, %v216
    %vm227 = vcmp.eq.f32.partialorder %v226, 8.507059e+37
    %v228 = vand.u32 %v216, 2147483648
    %v229 = vor.u32 1.1754944e-38, %v228
    %v230 = vsel %vm227, %v229, %v225
    %v231 = vmul.f32 %v206, %v230
    %v232 = vmin.f32 %v231, 1.0
    %v233 = vmax.f32 %v232, -1.0
    %v234 = vmul.f32 %v193, %v193
    %v235 = vmin.f32 16.0, %v234
    %v236 = vmul.f32 %v235, 2.1237322e-06
    %v237 = vadd.f32 %v236, 0.00028619796
    %v238 = vmul.f32 %v235, %v237
    %v239 = vadd.f32 %v238, 0.0036580483
    %v240 = vmul.f32 %v235, %v239
    %v241 = vadd.f32 %v240, 0.05243302
    %v242 = vmul.f32 %v235, %v241
    %v243 = vadd.f32 %v242, 0.18741608
    %v244 = vmul.f32 %v235, %v243
    %v245 = vadd.f32 %v244, 1.1283791
    %v246 = vmul.f32 %v193, %v245
    %v247 = vmul.f32 %v235, 3.8918573e-05
    %v248 = vadd.f32 %v247, 0.001143296
    %v249 = vmul.f32 %v235, %v248
    %v250 = vadd.f32 %v249, 0.014752088
    %v251 = vmul.f32 %v235, %v250
    %v252 = vadd.f32 %v251, 0.112945676
    %v253 = vmul.f32 %v235, %v252
    %v254 = vadd.f32 %v253, 0.4994258
    %v255 = vmul.f32 %v235, %v254
    %v256 = vadd.f32 %v255, 1.0
    %v257 = vrcp.pop %v256
    %v258 = vmul.f32 %v256, %v257
    %v259 = vsub.f32 1.0, %v258
    %v260 = vmul.f32 %v257, %v259
    %v261 = vadd.f32 %v257, %v260
    %vm262 = vweird.f32 %v256
    %vm263 = vweird.f32 %v257
    %vm264 = vmor %vm262, %vm263
    %v265 = vsel %vm264, %v257, %v261
    %v266 = vand.u32 2147483647, %v256
    %vm267 = vcmp.eq.f32.partialorder %v266, 8.507059e+37
    %v268 = vand.u32 %v256, 2147483648
    %v269 = vor.u32 1.1754944e-38, %v268
    %v270 = vsel %vm267, %v269, %v265
    %v271 = vmul.f32 %v246, %v270
    %v272 = vmin.f32 %v271, 1.0
    %v273 = vmax.f32 %v272, -1.0
    %v274 = vadd.f32 %v233, 1.0
    %v275 = vadd.f32 %v273, 1.0
    %v276 = vmul.f32 %v190, %v274
    %v277 = vmul.f32 %v191, %v275
    %v278 = vpack.c.bf16 %v276, %v276
    %v279 = vpack.c.bf16 %v277, %v277
    %v280 = vld [vmem:[#allocation4] sm:$0xf]
    %v281 = vld [vmem:[#allocation4 + $0x4] sm:$0xf]
    %v282 = vld [vmem:[#allocation4 + $0x8] sm:$0xf]
    %v283 = vld [vmem:[#allocation4 + $0xc] sm:$0xf]
    %v284 = vld [vmem:[#allocation4 + $0x10] sm:$0xf]
    %v285 = vld [vmem:[#allocation4 + $0x14] sm:$0xf]
    %v286 = vld [vmem:[#allocation4 + $0x18] sm:$0xf]
    %v287 = vld [vmem:[#allocation4 + $0x1c] sm:$0xf]
    %v288 = vld [vmem:[#allocation4 + $0x20] sm:$0xf]
    %v289 = vld [vmem:[#allocation4 + $0x24] sm:$0xf]
    %v290 = vld [vmem:[#allocation4 + $0x28] sm:$0xf]
    %v291 = vld [vmem:[#allocation4 + $0x2c] sm:$0xf]
    %v292 = vld [vmem:[#allocation4 + $0x30] sm:$0xf]
    %v293 = vld [vmem:[#allocation4 + $0x34] sm:$0xf]
    %v294 = vld [vmem:[#allocation4 + $0x38] sm:$0xf]
    %v295 = vld [vmem:[#allocation4 + $0x3c] sm:$0xf]
    %v296 = vld [vmem:[#allocation4 + $0x40] sm:$0xf]
    %v297 = vld [vmem:[#allocation4 + $0x44] sm:$0xf]
    %v298 = vld [vmem:[#allocation4 + $0x48] sm:$0xf]
    %v299 = vld [vmem:[#allocation4 + $0x4c] sm:$0xf]
    %v300 = vld [vmem:[#allocation4 + $0x50] sm:$0xf]
    %v301 = vld [vmem:[#allocation4 + $0x54] sm:$0xf]
    %v302 = vld [vmem:[#allocation4 + $0x58] sm:$0xf]
    %v303 = vld [vmem:[#allocation4 + $0x5c] sm:$0xf]
    %v304 = vld [vmem:[#allocation4 + $0x60] sm:$0xf]
    %v305 = vld [vmem:[#allocation4 + $0x64] sm:$0xf]
    %v306 = vld [vmem:[#allocation4 + $0x68] sm:$0xf]
    %v307 = vld [vmem:[#allocation4 + $0x6c] sm:$0xf]
    %v308 = vld [vmem:[#allocation4 + $0x70] sm:$0xf]
    %v309 = vld [vmem:[#allocation4 + $0x74] sm:$0xf]
    %v310 = vld [vmem:[#allocation4 + $0x78] sm:$0xf]
    %v311 = vld [vmem:[#allocation4 + $0x7c] sm:$0xf]
    %v312 = vld [vmem:[%s4] sm:$0x1]
    %v314 = vperm.slane %v312, 0
    %v348 = vunpack.c.l.b16 %v280
    %v349 = vunpack.c.l.b16 %v281
    %v350 = vunpack.c.l.b16 %v282
    %v351 = vunpack.c.l.b16 %v283
    %v352 = vunpack.c.l.b16 %v284
    %v353 = vunpack.c.l.b16 %v285
    %v354 = vunpack.c.l.b16 %v286
    %v355 = vunpack.c.l.b16 %v287
    %v356 = vunpack.c.l.b16 %v288
    %v357 = vunpack.c.l.b16 %v289
    %v358 = vunpack.c.l.b16 %v290
    %v359 = vunpack.c.l.b16 %v291
    %v360 = vunpack.c.l.b16 %v292
    %v361 = vunpack.c.l.b16 %v293
    %v362 = vunpack.c.l.b16 %v294
    %v363 = vunpack.c.l.b16 %v295
    %v364 = vunpack.c.l.b16 %v296
    %v365 = vunpack.c.l.b16 %v297
    %v366 = vunpack.c.l.b16 %v298
    %v367 = vunpack.c.l.b16 %v299
    %v368 = vunpack.c.l.b16 %v300
    %v369 = vunpack.c.l.b16 %v301
    %v370 = vunpack.c.l.b16 %v302
    %v371 = vunpack.c.l.b16 %v303
    %v372 = vunpack.c.l.b16 %v304
    %v373 = vunpack.c.l.b16 %v305
    %v374 = vunpack.c.l.b16 %v306
    %v375 = vunpack.c.l.b16 %v307
    %v376 = vunpack.c.l.b16 %v308
    %v377 = vunpack.c.l.b16 %v309
    %v378 = vunpack.c.l.b16 %v310
    %v379 = vunpack.c.l.b16 %v311
    %v380 = vpack.c.b16 %v349, %v348
    %v381 = vpack.c.b16 %v351, %v350
    %v382 = vpack.c.b16 %v353, %v352
    %v383 = vpack.c.b16 %v355, %v354
    %v384 = vpack.c.b16 %v357, %v356
    %v385 = vpack.c.b16 %v359, %v358
    %v386 = vpack.c.b16 %v361, %v360
    %v387 = vpack.c.b16 %v363, %v362
    %v388 = vpack.c.b16 %v365, %v364
    %v389 = vpack.c.b16 %v367, %v366
    %v390 = vpack.c.b16 %v369, %v368
    %v391 = vpack.c.b16 %v371, %v370
    %v392 = vpack.c.b16 %v373, %v372
    %v393 = vpack.c.b16 %v375, %v374
    %v394 = vpack.c.b16 %v377, %v376
    %v395 = vpack.c.b16 %v379, %v378
    %412 = vmatpush.bf16.msra.mxu0 %v387
    %413 = vmatpush.bf16.msra.mxu0 %v386
    %414 = vmatpush.bf16.msra.mxu0 %v385
    %415 = vmatpush.bf16.msra.mxu0 %v384
    %416 = vmatpush.bf16.msra.mxu0 %v383
    %417 = vmatpush.bf16.msra.mxu0 %v382
    %418 = vmatpush.bf16.msra.mxu0 %v381
    %419 = vmatpush.bf16.msra.mxu0 %v380
    %420 = vmatmul.bf16.gmra.mxu0 %v278
    %v421 = vpop.f32.mrf.mxu0
    %v422 = vadd.f32 %v314, %v421
    %v423 = vpop.f32.mrf.mxu0
    %424 = vdwg.mxu0
    %425 = vmatpush.bf16.msra.mxu0 %v395
    %426 = vmatpush.bf16.msra.mxu0 %v394
    %427 = vmatpush.bf16.msra.mxu0 %v393
    %428 = vmatpush.bf16.msra.mxu0 %v392
    %429 = vmatpush.bf16.msra.mxu0 %v391
    %430 = vmatpush.bf16.msra.mxu0 %v390
    %431 = vmatpush.bf16.msra.mxu0 %v389
    %432 = vmatpush.bf16.msra.mxu0 %v388
    %433 = vmatmul.bf16.gmra.mxu0 %v279
    %v434 = vpop.f32.mrf.mxu0
    %v435 = vadd.f32 %v422, %v434
    %v436 = vpop.f32.mrf.mxu0
    %437 = vdwg.mxu0
    %v438 = vld [vmem:[%s5] sm:$0xf]
    %v439 = vunpack.c.l.bf16 %v438
    %v440 = vadd.f32 %v435, %v439
    %v441 = vld [vmem:[%s6] sm:$0x1]
    %v442 = vld [vmem:[%s7] sm:$0x1]
    %443 = vadd.xlane.f32.xlu0 %v440
    %v444 = vpop.xlane.xlu0 %443
    %v445 = vrcp.pop 128.0
    %v446 = vmul.f32 128.0, %v445
    %v447 = vsub.f32 1.0, %v446
    %v448 = vmul.f32 %v445, %v447
    %v449 = vadd.f32 %v445, %v448
    %vm450 = vweird.f32 %v445
    %v451 = vsel %vm450, %v445, %v449
    %v452 = vmul.f32 %v444, %v451
    %v453 = vsub.f32 %v440, %v452
    %v454 = vmul.f32 %v453, %v453
    %455 = vadd.xlane.f32.xlu0 %v454
    %v456 = vpop.xlane.xlu0 %455
    %v457 = vmul.f32 %v456, %v451
    %v458 = vadd.f32 %v457, 1e-05
    %v459 = vrsqrt.pop %v458
    %v460 = vmul.f32 %v459, %v458
    %v461 = vmul.f32 %v460, %v459
    %v462 = vmul.f32 0.5, %v461
    %v463 = vsub.f32 1.5, %v462
    %v464 = vmul.f32 %v459, %v463
    %vm465 = vweird.f32 %v458
    %vm466 = vweird.f32 %v459
    %vm467 = vmor %vm465, %vm466
    %v468 = vsel %vm467, %v459, %v464
    %v469 = vmul.f32 %v453, %v468
    %v471 = vperm.slane %v441, 0
    %v473 = vmul.f32 %v469, %v471
    %v475 = vperm.slane %v442, 0
    %v477 = vadd.f32 %v473, %v475
    %v478 = vpack.c.bf16 %v477, %v477
    %479 = vst [vmem:[%s8] sm:$0xf] %v478
    // Predicated region
    $region42: #{fwd.39} parent=1 // pred_check
      _
    $region43: #{fwd.39} parent=1 // pred_check_branch
      %481 = sbr.rel (0) target = $region45
    $region44: #{fwd.39} parent=1 // pred_region
      _
    $region45: #{fwd.39} parent=1 // pred_fallthru
      _
    // Predicated region
    $region46: #{fwd.39} parent=1 // pred_check
      _
    $region47: #{fwd.39} parent=1 // pred_check_branch
      %483 = sbr.rel (0) target = $region49
    $region48: #{fwd.39} parent=1 // pred_region
      _
    $region49: #{fwd.39} parent=1 // pred_fallthru
      _
    %484 = vsyncpa [#allocation3], 1
    %485 = vsyncpa [#allocation5], 1

</llo_original>
